<compile_context>
chip_gen: v7x
topology: tpu7x:2x2x1
jax: 0.10.0
libtpu: 0.0.40
codegen_flags: <defaults>
</compile_context>

<pallas_src>
import math
import functools

import jax
import jax.numpy as jnp
from jax.experimental import pallas as pl
from jax.experimental.pallas import tpu as pltpu


# ----------------------------- shared math -----------------------------------

def _layernorm(x, gamma, beta, eps=1e-5):
    mu = jnp.mean(x, axis=-1, keepdims=True)
    var = jnp.mean(jnp.square(x - mu), axis=-1, keepdims=True)
    return (x - mu) * jax.lax.rsqrt(var + eps) * gamma + beta


# ----------------------------- kernel ---------------------------------------

def fused_encoder_kernel(mask_ref, x_ref, pe_ref,
                         wqkv_ref, bqkv_ref, wo_ref, bo_ref,
                         ln1g_ref, ln1b_ref,
                         w1_ref, b1_ref, w2_ref, b2_ref,
                         ln2g_ref, ln2b_ref,
                         o_ref,
                         *, num_layers, num_heads, batch, seq_len):
    # PositionalEncoding: x + pe.
    # TODO(synk): nn.Dropout of PositionalEncoding is identity in eval mode.
    x = x_ref[...] + pe_ref[...]                      # (M, D) f32, M = B*L
    M, D = x.shape
    dh = D // num_heads

    # Head-group indicator matrices (built once per call, f32, 0/1 exact):
    #   G [d, h] = 1  iff lane d belongs to head h   -> sums each head's dh lanes
    #   GT[h, d] = 1  iff lane d belongs to head h   -> expands head probs to lanes
    d_idx = jax.lax.broadcasted_iota(jnp.int32, (D, num_heads), 0)
    h_idx = jax.lax.broadcasted_iota(jnp.int32, (D, num_heads), 1)
    lo = h_idx * dh
    G = jnp.logical_and(d_idx >= lo, d_idx < lo + dh).astype(jnp.float32)     # (D, H)
    h_idx2 = jax.lax.broadcasted_iota(jnp.int32, (num_heads, D), 0)
    d_idx2 = jax.lax.broadcasted_iota(jnp.int32, (num_heads, D), 1)
    lo2 = h_idx2 * dh
    GT = jnp.logical_and(d_idx2 >= lo2, d_idx2 < lo2 + dh).astype(jnp.float32)  # (H, D)

    mask4 = mask_ref[...]                             # (B, 1, Lk, 1): 0 valid / -1e30 pad

    for l in range(num_layers):                       # static unroll; weights VMEM-resident
        # ----- self-attention (all heads at once, no lane slicing) ------------
        xb = x.astype(jnp.bfloat16)                   # bf16 MXU operands, f32 accumulation
        q = jnp.dot(xb, wqkv_ref[l, 0], preferred_element_type=jnp.float32) + bqkv_ref[l, 0]
        k = jnp.dot(xb, wqkv_ref[l, 1], preferred_element_type=jnp.float32) + bqkv_ref[l, 1]
        v = jnp.dot(xb, wqkv_ref[l, 2], preferred_element_type=jnp.float32) + bqkv_ref[l, 2]
        # (1/sqrt(dh) is pre-folded into W_q / b_q at stack_params time.)
        q3 = q.reshape(batch, seq_len, D)             # leading-dim splits only
        k3 = k.reshape(batch, seq_len, D)
        v3 = v.reshape(batch, seq_len, D)

        # scores for ALL heads: elementwise q*k product (VPU) then one
        # (B*L*L, D) @ (D, H) matmul that sums each head's dh lanes.
        prod = q3[:, :, None, :] * k3[:, None, :, :]                    # (B, Lq, Lk, D)
        s = jnp.dot(prod.reshape(batch * seq_len * seq_len, D), G,
                    preferred_element_type=jnp.float32)
        s = s.reshape(batch, seq_len, seq_len, num_heads) + mask4       # (B, Lq, Lk, H)

        # softmax over keys (axis=2); f32 VPU/EUP math.
        s = s - jnp.max(s, axis=2, keepdims=True)
        p = jnp.exp(s)
        # NOTE: approx reciprocal deviates ~2^-12 from an exact divide; assumes
        # no zero-length sequence (otherwise the denominator would be ~0).
        p = p * pl.reciprocal(jnp.sum(p, axis=2, keepdims=True), approx=True)

        # expand head probs back onto their dh lanes with one matmul, weight V
        # and reduce over keys on the VPU, then a single unsplit W_o projection.
        p_lane = jnp.dot(p.reshape(batch * seq_len * seq_len, num_heads), GT,
                         preferred_element_type=jnp.float32)
        p_lane = p_lane.reshape(batch, seq_len, seq_len, D)
        ctx = jnp.sum(p_lane * v3[:, None, :, :], axis=2)               # (B, Lq, D)

        attn = jnp.dot(ctx.reshape(M, D).astype(jnp.bfloat16), wo_ref[l],
                       preferred_element_type=jnp.float32) + bo_ref[l]

        # residual + LayerNorm 1 (post-norm, PyTorch default norm_first=False)
        x1 = _layernorm(x + attn, ln1g_ref[l], ln1b_ref[l])

        # ----- FFN: ReLU(x1 @ W1 + b1) @ W2 + b2 -------------------------------
        hdn = jnp.maximum(
            jnp.dot(x1.astype(jnp.bfloat16), w1_ref[l],
                    preferred_element_type=jnp.float32) + b1_ref[l], 0.0)
        ffn = jnp.dot(hdn.astype(jnp.bfloat16), w2_ref[l],
                      preferred_element_type=jnp.float32) + b2_ref[l]

        # residual + LayerNorm 2; carried as a plain value to the next layer.
        x = _layernorm(x1 + ffn, ln2g_ref[l], ln2b_ref[l])

    o_ref[...] = x


# ----------------------------- wrapper ---------------------------------------

def positional_encoding(max_len, d_model):
    position = jnp.arange(max_len, dtype=jnp.float32)[:, None]
    div_term = jnp.exp(
        jnp.arange(0, d_model, 2, dtype=jnp.float32) * (-math.log(10000.0) / d_model))
    pe = jnp.zeros((max_len, d_model), jnp.float32)
    pe = pe.at[:, 0::2].set(jnp.sin(position * div_term))
    pe = pe.at[:, 1::2].set(jnp.cos(position * div_term))
    return pe                                             # (max_len, d_model)


def init_params(key, D, H, num_layers):
    layers = []
    for i in range(num_layers):
        ks = jax.random.split(jax.random.fold_in(key, i), 8)
        layers.append(dict(
            wqkv=jax.random.normal(ks[0], (D, 3 * D), jnp.float32) * 0.05,
            bqkv=jax.random.normal(ks[1], (1, 3 * D), jnp.float32) * 0.01,
            wo=jax.random.normal(ks[2], (D, D), jnp.float32) * 0.05,
            bo=jax.random.normal(ks[3], (1, D), jnp.float32) * 0.01,
            ln1g=jnp.ones((1, D), jnp.float32),
            ln1b=jnp.zeros((1, D), jnp.float32),
            w1=jax.random.normal(ks[4], (D, H), jnp.float32) * 0.05,
            b1=jax.random.normal(ks[5], (1, H), jnp.float32) * 0.01,
            w2=jax.random.normal(ks[6], (H, D), jnp.float32) * 0.05,
            b2=jax.random.normal(ks[7], (1, D), jnp.float32) * 0.01,
            ln2g=jnp.ones((1, D), jnp.float32),
            ln2b=jnp.zeros((1, D), jnp.float32),
        ))
    return layers


def stack_params(layers, num_heads):
    """Stack per-layer params along a leading layer axis for the fused kernel.

    - wqkv reshaped to (NL, 3, D, D) so Q/K/V come from leading-dim indexing.
    - 1/sqrt(dh) folded into W_q and b_q.
    - matmul weights stored bf16 (f32 accumulation in-kernel); biases / LN f32.
    """
    D = layers[0]["wqkv"].shape[0]
    dh = D // num_heads
    scale = 1.0 / math.sqrt(dh)

    def prep_qkv(p):
        w3 = p["wqkv"].reshape(D, 3, D).transpose(1, 0, 2)   # (3, D, D)
        w3 = w3.at[0].multiply(scale)
        b3 = p["bqkv"].reshape(3, 1, D)                      # (3, 1, D)
        b3 = b3.at[0].multiply(scale)
        return w3, b3

    prepped = [prep_qkv(p) for p in layers]
    return dict(
        wqkv=jnp.stack([w for w, _ in prepped]).astype(jnp.bfloat16),   # (NL, 3, D, D)
        bqkv=jnp.stack([b for _, b in prepped]),                        # (NL, 3, 1, D)
        wo=jnp.stack([p["wo"] for p in layers]).astype(jnp.bfloat16),   # (NL, D, D)
        bo=jnp.stack([p["bo"] for p in layers]),                        # (NL, 1, D)
        ln1g=jnp.stack([p["ln1g"] for p in layers]),
        ln1b=jnp.stack([p["ln1b"] for p in layers]),
        w1=jnp.stack([p["w1"] for p in layers]).astype(jnp.bfloat16),   # (NL, D, H)
        b1=jnp.stack([p["b1"] for p in layers]),                        # (NL, 1, H)
        w2=jnp.stack([p["w2"] for p in layers]).astype(jnp.bfloat16),   # (NL, H, D)
        b2=jnp.stack([p["b2"] for p in layers]),                        # (NL, 1, D)
        ln2g=jnp.stack([p["ln2g"] for p in layers]),
        ln2b=jnp.stack([p["ln2b"] for p in layers]),
    )


def transformer_forward(src_lbd, src_lengths, stacked, num_heads, max_len=22):
    """src_lbd: padded (L, B, D) (= pad_packed_sequence output); returns (L, B, D)."""
    L, B, D = src_lbd.shape
    M = B * L
    NL = stacked["wqkv"].shape[0]
    H_ffn = stacked["w1"].shape[2]

    pe = positional_encoding(max_len, D)[:L]                           # (L, D)
    pe_flat = jnp.broadcast_to(pe[None, :, :], (B, L, D)).reshape(M, D)
    x_flat = jnp.transpose(src_lbd, (1, 0, 2)).reshape(M, D)           # (B*L, D)

    key_pad = jnp.arange(L)[None, :] >= src_lengths[:, None]           # (B, L), True = pad
    mask_add = jnp.where(key_pad, -1e30, 0.0).astype(jnp.float32)
    mask4 = mask_add.reshape(B, 1, L, 1)        # pre-shaped for the (B,Lq,Lk,H) score add

    kernel = functools.partial(fused_encoder_kernel,
                               num_layers=NL, num_heads=num_heads,
                               batch=B, seq_len=L)

    def full(shape):
        return pl.BlockSpec(shape, lambda i, _s=shape: (0,) * len(_s))

    out_flat = pl.pallas_call(
        kernel,
        out_shape=jax.ShapeDtypeStruct((M, D), jnp.float32),
        grid=(1,),                                   # single step: everything VMEM-resident
        in_specs=[
            full((B, 1, L, 1)),                      # key-padding additive mask
            full((M, D)),                            # x (B*L, D)
            full((M, D)),                            # pe (B*L, D)
            full((NL, 3, D, D)),                     # wqkv (bf16, W_q pre-scaled)
            full((NL, 3, 1, D)),                     # bqkv (f32, b_q pre-scaled)
            full((NL, D, D)),                        # wo (bf16, unsplit)
            full((NL, 1, D)),                        # bo
            full((NL, 1, D)),                        # ln1 gamma
            full((NL, 1, D)),                        # ln1 beta
            full((NL, D, H_ffn)),                    # w1 (bf16)
            full((NL, 1, H_ffn)),                    # b1
            full((NL, H_ffn, D)),                    # w2 (bf16)
            full((NL, 1, D)),                        # b2
            full((NL, 1, D)),                        # ln2 gamma
            full((NL, 1, D)),                        # ln2 beta
        ],
        out_specs=full((M, D)),
        compiler_params=pltpu.CompilerParams(dimension_semantics=("arbitrary",)),
    )(mask4, x_flat, pe_flat,
      stacked["wqkv"], stacked["bqkv"], stacked["wo"], stacked["bo"],
      stacked["ln1g"], stacked["ln1b"],
      stacked["w1"], stacked["b1"], stacked["w2"], stacked["b2"],
      stacked["ln2g"], stacked["ln2b"])

    # TODO(synk): pack_padded_sequence (PackedSequence container) has no Pallas
    # equivalent; the padded (L, B, D) output + lengths are returned instead.
    return out_flat.reshape(B, L, D).transpose(1, 0, 2)


# ----------------------------- pure-JAX reference -----------------------------

def ref_encoder_layer(x, mask_add, p, num_heads):
    B, L, D = x.shape
    dh = D // num_heads
    qkv = x @ p["wqkv"] + p["bqkv"][0]
    q, k, v = qkv[..., :D], qkv[..., D:2 * D], qkv[..., 2 * D:]
    q = q.reshape(B, L, num_heads, dh).transpose(0, 2, 1, 3) / math.sqrt(dh)
    k = k.reshape(B, L, num_heads, dh).transpose(0, 2, 1, 3)
    v = v.reshape(B, L, num_heads, dh).transpose(0, 2, 1, 3)
    s = jnp.einsum("bhqd,bhkd->bhqk", q, k) + mask_add[:, None, None, :]
    a = jax.nn.softmax(s, axis=-1)
    o = jnp.einsum("bhqk,bhkd->bhqd", a, v).transpose(0, 2, 1, 3).reshape(B, L, D)
    o = o @ p["wo"] + p["bo"][0]
    x1 = _layernorm(x + o, p["ln1g"][0], p["ln1b"][0])
    f = jax.nn.relu(x1 @ p["w1"] + p["b1"][0]) @ p["w2"] + p["b2"][0]
    return _layernorm(x1 + f, p["ln2g"][0], p["ln2b"][0])


def ref_forward(src_lbd, src_lengths, layer_params, num_heads, max_len=22):
    L, B, D = src_lbd.shape
    x = src_lbd + positional_encoding(max_len, D)[:L][:, None, :]
    x = jnp.transpose(x, (1, 0, 2))
    key_pad = jnp.arange(L)[None, :] >= src_lengths[:, None]
    mask_add = jnp.where(key_pad, -1e30, 0.0).astype(jnp.float32)
    for p in layer_params:
        x = ref_encoder_layer(x, mask_add, p, num_heads)
    return jnp.transpose(x, (1, 0, 2))


# ----------------------------- main ------------------------------------------

if __name__ == "__main__":
    B, L, D, NUM_HEADS, NUM_LAYERS = 2, 8, 32, 8, 4
    H = 4 * D

    key = jax.random.PRNGKey(0)
    k_src, k_par = jax.random.split(key)
    lengths = jnp.array([8, 5], dtype=jnp.int32)

    src = jax.random.normal(k_src, (L, B, D), jnp.float32)
    # pad_packed_sequence zero-fills padded positions
    valid = (jnp.arange(L)[:, None] < lengths[None, :]).astype(jnp.float32)   # (L, B)
    src = src * valid[:, :, None]

    params_list = init_params(k_par, D, H, NUM_LAYERS)
    stacked = stack_params(params_list, NUM_HEADS)

    out = transformer_forward(src, lengths, stacked, NUM_HEADS)
    out = jax.block_until_ready(out)

    assert out.shape == (L, B, D)
    assert bool(jnp.all(jnp.isfinite(out)))

    ref = ref_forward(src, lengths, params_list, NUM_HEADS)
    assert bool(jnp.allclose(out, ref, atol=5e-2, rtol=5e-2)), \
        f"max abs diff = {float(jnp.max(jnp.abs(out - ref)))}"

    print("KERNEL_OK")
</pallas_src>

<mosaic_0001>
module attributes {stable_mosaic.version = 11 : i64} {
  func.func @fused_encoder_kernel(%arg0: i32, %arg1: memref<2x1x8x1xf32, #tpu.memory_space<vmem>>, %arg2: memref<16x32xf32, #tpu.memory_space<vmem>>, %arg3: memref<16x32xf32, #tpu.memory_space<vmem>>, %arg4: memref<4x3x32x32xbf16, #tpu.memory_space<vmem>>, %arg5: memref<4x3x1x32xf32, #tpu.memory_space<vmem>>, %arg6: memref<4x32x32xbf16, #tpu.memory_space<vmem>>, %arg7: memref<4x1x32xf32, #tpu.memory_space<vmem>>, %arg8: memref<4x1x32xf32, #tpu.memory_space<vmem>>, %arg9: memref<4x1x32xf32, #tpu.memory_space<vmem>>, %arg10: memref<4x32x128xbf16, #tpu.memory_space<vmem>>, %arg11: memref<4x1x128xf32, #tpu.memory_space<vmem>>, %arg12: memref<4x128x32xbf16, #tpu.memory_space<vmem>>, %arg13: memref<4x1x32xf32, #tpu.memory_space<vmem>>, %arg14: memref<4x1x32xf32, #tpu.memory_space<vmem>>, %arg15: memref<4x1x32xf32, #tpu.memory_space<vmem>>, %arg16: memref<16x32xf32, #tpu.memory_space<vmem>>) attributes {dimension_semantics = [#tpu.dimension_semantics<arbitrary>], iteration_bounds = array<i64: 1>, scalar_prefetch = 0 : i64, scratch_operands = 0 : i64, tpu.core_type = #tpu.core_type<tc>, window_params = [{pipeline_mode = #tpu.pipeline_mode<synchronous>, transform_indices = @transform_0, window_bounds = array<i64: 2, 1, 8, 1>}, {pipeline_mode = #tpu.pipeline_mode<synchronous>, transform_indices = @transform_1, window_bounds = array<i64: 16, 32>}, {pipeline_mode = #tpu.pipeline_mode<synchronous>, transform_indices = @transform_2, window_bounds = array<i64: 16, 32>}, {pipeline_mode = #tpu.pipeline_mode<synchronous>, transform_indices = @transform_3, window_bounds = array<i64: 4, 3, 32, 32>}, {pipeline_mode = #tpu.pipeline_mode<synchronous>, transform_indices = @transform_4, window_bounds = array<i64: 4, 3, 1, 32>}, {pipeline_mode = #tpu.pipeline_mode<synchronous>, transform_indices = @transform_5, window_bounds = array<i64: 4, 32, 32>}, {pipeline_mode = #tpu.pipeline_mode<synchronous>, transform_indices = @transform_6, window_bounds = array<i64: 4, 1, 32>}, {pipeline_mode = #tpu.pipeline_mode<synchronous>, transform_indices = @transform_7, window_bounds = array<i64: 4, 1, 32>}, {pipeline_mode = #tpu.pipeline_mode<synchronous>, transform_indices = @transform_8, window_bounds = array<i64: 4, 1, 32>}, {pipeline_mode = #tpu.pipeline_mode<synchronous>, transform_indices = @transform_9, window_bounds = array<i64: 4, 32, 128>}, {pipeline_mode = #tpu.pipeline_mode<synchronous>, transform_indices = @transform_10, window_bounds = array<i64: 4, 1, 128>}, {pipeline_mode = #tpu.pipeline_mode<synchronous>, transform_indices = @transform_11, window_bounds = array<i64: 4, 128, 32>}, {pipeline_mode = #tpu.pipeline_mode<synchronous>, transform_indices = @transform_12, window_bounds = array<i64: 4, 1, 32>}, {pipeline_mode = #tpu.pipeline_mode<synchronous>, transform_indices = @transform_13, window_bounds = array<i64: 4, 1, 32>}, {pipeline_mode = #tpu.pipeline_mode<synchronous>, transform_indices = @transform_14, window_bounds = array<i64: 4, 1, 32>}, {pipeline_mode = #tpu.pipeline_mode<synchronous>, transform_indices = @transform_15, window_bounds = array<i64: 16, 32>}]} {
    %c0 = arith.constant 0 : index
    %c0_0 = arith.constant 0 : index
    %0 = vector.load %arg2[%c0, %c0_0] : memref<16x32xf32, #tpu.memory_space<vmem>>, vector<16x32xf32>
    %c0_1 = arith.constant 0 : index
    %c0_2 = arith.constant 0 : index
    %1 = vector.load %arg3[%c0_1, %c0_2] : memref<16x32xf32, #tpu.memory_space<vmem>>, vector<16x32xf32>
    %2 = arith.addf %0, %1 : vector<16x32xf32>
    %3 = tpu.iota {dimensions = array<i32: 0>} : vector<32x8xi32>
    %4 = tpu.iota {dimensions = array<i32: 1>} : vector<32x8xi32>
    %c4_i32 = arith.constant 4 : i32
    %5 = vector.broadcast %c4_i32 : i32 to vector<32x8xi32>
    %6 = arith.muli %4, %5 : vector<32x8xi32>
    %7 = arith.cmpi sge, %3, %6 : vector<32x8xi32>
    %c4_i32_3 = arith.constant 4 : i32
    %8 = vector.broadcast %c4_i32_3 : i32 to vector<32x8xi32>
    %9 = arith.addi %6, %8 : vector<32x8xi32>
    %10 = arith.cmpi slt, %3, %9 : vector<32x8xi32>
    %11 = arith.andi %7, %10 : vector<32x8xi1>
    %12 = arith.extui %11 : vector<32x8xi1> to vector<32x8xi32>
    %13 = arith.sitofp %12 : vector<32x8xi32> to vector<32x8xf32>
    %14 = tpu.iota {dimensions = array<i32: 0>} : vector<8x32xi32>
    %15 = tpu.iota {dimensions = array<i32: 1>} : vector<8x32xi32>
    %c4_i32_4 = arith.constant 4 : i32
    %16 = vector.broadcast %c4_i32_4 : i32 to vector<8x32xi32>
    %17 = arith.muli %14, %16 : vector<8x32xi32>
    %18 = arith.cmpi sge, %15, %17 : vector<8x32xi32>
    %c4_i32_5 = arith.constant 4 : i32
    %19 = vector.broadcast %c4_i32_5 : i32 to vector<8x32xi32>
    %20 = arith.addi %17, %19 : vector<8x32xi32>
    %21 = arith.cmpi slt, %15, %20 : vector<8x32xi32>
    %22 = arith.andi %18, %21 : vector<8x32xi1>
    %23 = arith.extui %22 : vector<8x32xi1> to vector<8x32xi32>
    %24 = arith.sitofp %23 : vector<8x32xi32> to vector<8x32xf32>
    %c0_6 = arith.constant 0 : index
    %c0_7 = arith.constant 0 : index
    %c0_8 = arith.constant 0 : index
    %c0_9 = arith.constant 0 : index
    %25 = vector.load %arg1[%c0_6, %c0_7, %c0_8, %c0_9] : memref<2x1x8x1xf32, #tpu.memory_space<vmem>>, vector<2x1x8x1xf32>
    %26 = arith.truncf %2 : vector<16x32xf32> to vector<16x32xbf16>
    %c0_10 = arith.constant 0 : index
    %c0_11 = arith.constant 0 : index
    %c0_12 = arith.constant 0 : index
    %c0_13 = arith.constant 0 : index
    %27 = vector.load %arg4[%c0_10, %c0_11, %c0_12, %c0_13] : memref<4x3x32x32xbf16, #tpu.memory_space<vmem>>, vector<1x1x32x32xbf16>
    %28 = vector.shape_cast %27 : vector<1x1x32x32xbf16> to vector<32x32xbf16>
    %cst = arith.constant dense<0.000000e+00> : vector<16x32xf32>
    %29 = tpu.matmul %26, %28, %cst {dimension_numbers = #tpu.dot_dimension_numbers<[1], [0], [0], [1], [0, 0, 1, 1], [], []>} : vector<16x32xbf16>, vector<32x32xbf16>, vector<16x32xf32> -> vector<16x32xf32>
    %c0_14 = arith.constant 0 : index
    %c0_15 = arith.constant 0 : index
    %c0_16 = arith.constant 0 : index
    %c0_17 = arith.constant 0 : index
    %30 = vector.load %arg5[%c0_14, %c0_15, %c0_16, %c0_17] : memref<4x3x1x32xf32, #tpu.memory_space<vmem>>, vector<1x1x1x32xf32>
    %31 = vector.shape_cast %30 : vector<1x1x1x32xf32> to vector<1x32xf32>
    %32 = vector.broadcast %31 : vector<1x32xf32> to vector<16x32xf32>
    %33 = arith.addf %29, %32 : vector<16x32xf32>
    %c0_18 = arith.constant 0 : index
    %c1 = arith.constant 1 : index
    %c0_19 = arith.constant 0 : index
    %c0_20 = arith.constant 0 : index
    %34 = vector.load %arg4[%c0_18, %c1, %c0_19, %c0_20] : memref<4x3x32x32xbf16, #tpu.memory_space<vmem>>, vector<1x1x32x32xbf16>
    %35 = vector.shape_cast %34 : vector<1x1x32x32xbf16> to vector<32x32xbf16>
    %cst_21 = arith.constant dense<0.000000e+00> : vector<16x32xf32>
    %36 = tpu.matmul %26, %35, %cst_21 {dimension_numbers = #tpu.dot_dimension_numbers<[1], [0], [0], [1], [0, 0, 1, 1], [], []>} : vector<16x32xbf16>, vector<32x32xbf16>, vector<16x32xf32> -> vector<16x32xf32>
    %c0_22 = arith.constant 0 : index
    %c1_23 = arith.constant 1 : index
    %c0_24 = arith.constant 0 : index
    %c0_25 = arith.constant 0 : index
    %37 = vector.load %arg5[%c0_22, %c1_23, %c0_24, %c0_25] : memref<4x3x1x32xf32, #tpu.memory_space<vmem>>, vector<1x1x1x32xf32>
    %38 = vector.shape_cast %37 : vector<1x1x1x32xf32> to vector<1x32xf32>
    %39 = vector.broadcast %38 : vector<1x32xf32> to vector<16x32xf32>
    %40 = arith.addf %36, %39 : vector<16x32xf32>
    %c0_26 = arith.constant 0 : index
    %c2 = arith.constant 2 : index
    %c0_27 = arith.constant 0 : index
    %c0_28 = arith.constant 0 : index
    %41 = vector.load %arg4[%c0_26, %c2, %c0_27, %c0_28] : memref<4x3x32x32xbf16, #tpu.memory_space<vmem>>, vector<1x1x32x32xbf16>
    %42 = vector.shape_cast %41 : vector<1x1x32x32xbf16> to vector<32x32xbf16>
    %cst_29 = arith.constant dense<0.000000e+00> : vector<16x32xf32>
    %43 = tpu.matmul %26, %42, %cst_29 {dimension_numbers = #tpu.dot_dimension_numbers<[1], [0], [0], [1], [0, 0, 1, 1], [], []>} : vector<16x32xbf16>, vector<32x32xbf16>, vector<16x32xf32> -> vector<16x32xf32>
    %c0_30 = arith.constant 0 : index
    %c2_31 = arith.constant 2 : index
    %c0_32 = arith.constant 0 : index
    %c0_33 = arith.constant 0 : index
    %44 = vector.load %arg5[%c0_30, %c2_31, %c0_32, %c0_33] : memref<4x3x1x32xf32, #tpu.memory_space<vmem>>, vector<1x1x1x32xf32>
    %45 = vector.shape_cast %44 : vector<1x1x1x32xf32> to vector<1x32xf32>
    %46 = vector.broadcast %45 : vector<1x32xf32> to vector<16x32xf32>
    %47 = arith.addf %43, %46 : vector<16x32xf32>
    %48 = vector.shape_cast %33 : vector<16x32xf32> to vector<2x8x32xf32>
    %49 = vector.shape_cast %40 : vector<16x32xf32> to vector<2x8x32xf32>
    %50 = vector.shape_cast %47 : vector<16x32xf32> to vector<2x8x32xf32>
    %51 = vector.shape_cast %48 : vector<2x8x32xf32> to vector<2x8x1x32xf32>
    %52 = vector.shape_cast %49 : vector<2x8x32xf32> to vector<2x1x8x32xf32>
    %53 = vector.broadcast %51 : vector<2x8x1x32xf32> to vector<2x8x8x32xf32>
    %54 = vector.broadcast %52 : vector<2x1x8x32xf32> to vector<2x8x8x32xf32>
    %55 = arith.mulf %53, %54 : vector<2x8x8x32xf32>
    %56 = vector.shape_cast %55 : vector<2x8x8x32xf32> to vector<128x32xf32>
    %cst_34 = arith.constant dense<0.000000e+00> : vector<128x8xf32>
    %57 = tpu.matmul %56, %13, %cst_34 {dimension_numbers = #tpu.dot_dimension_numbers<[1], [0], [0], [1], [0, 0, 1, 1], [], []>} : vector<128x32xf32>, vector<32x8xf32>, vector<128x8xf32> -> vector<128x8xf32>
    %58 = vector.shape_cast %57 : vector<128x8xf32> to vector<2x8x8x8xf32>
    %59 = vector.broadcast %25 : vector<2x1x8x1xf32> to vector<2x8x8x8xf32>
    %60 = arith.addf %58, %59 : vector<2x8x8x8xf32>
    %cst_35 = arith.constant dense<0xFF800000> : vector<2x8x8xf32>
    %61 = vector.multi_reduction <maximumf>, %60, %cst_35 [2] : vector<2x8x8x8xf32> to vector<2x8x8xf32>
    %62 = vector.shape_cast %61 : vector<2x8x8xf32> to vector<2x8x1x8xf32>
    %63 = vector.broadcast %62 : vector<2x8x1x8xf32> to vector<2x8x8x8xf32>
    %64 = arith.subf %60, %63 : vector<2x8x8x8xf32>
    %65 = math.exp %64 : vector<2x8x8x8xf32>
    %cst_36 = arith.constant dense<0.000000e+00> : vector<2x8x8xf32>
    %66 = vector.multi_reduction <add>, %65, %cst_36 [2] : vector<2x8x8x8xf32> to vector<2x8x8xf32>
    %67 = vector.shape_cast %66 : vector<2x8x8xf32> to vector<2x8x1x8xf32>
    %68 = tpu.reciprocal %67 {approx = true} : vector<2x8x1x8xf32> -> vector<2x8x1x8xf32>
    %69 = vector.broadcast %68 : vector<2x8x1x8xf32> to vector<2x8x8x8xf32>
    %70 = arith.mulf %65, %69 : vector<2x8x8x8xf32>
    %71 = vector.shape_cast %70 : vector<2x8x8x8xf32> to vector<128x8xf32>
    %cst_37 = arith.constant dense<0.000000e+00> : vector<128x32xf32>
    %72 = tpu.matmul %71, %24, %cst_37 {dimension_numbers = #tpu.dot_dimension_numbers<[1], [0], [0], [1], [0, 0, 1, 1], [], []>} : vector<128x8xf32>, vector<8x32xf32>, vector<128x32xf32> -> vector<128x32xf32>
    %73 = vector.shape_cast %72 : vector<128x32xf32> to vector<2x8x8x32xf32>
    %74 = vector.shape_cast %50 : vector<2x8x32xf32> to vector<2x1x8x32xf32>
    %75 = vector.broadcast %74 : vector<2x1x8x32xf32> to vector<2x8x8x32xf32>
    %76 = arith.mulf %73, %75 : vector<2x8x8x32xf32>
    %cst_38 = arith.constant dense<0.000000e+00> : vector<2x8x32xf32>
    %77 = vector.multi_reduction <add>, %76, %cst_38 [2] : vector<2x8x8x32xf32> to vector<2x8x32xf32>
    %78 = vector.shape_cast %77 : vector<2x8x32xf32> to vector<16x32xf32>
    %79 = arith.truncf %78 : vector<16x32xf32> to vector<16x32xbf16>
    %c0_39 = arith.constant 0 : index
    %c0_40 = arith.constant 0 : index
    %c0_41 = arith.constant 0 : index
    %80 = vector.load %arg6[%c0_39, %c0_40, %c0_41] : memref<4x32x32xbf16, #tpu.memory_space<vmem>>, vector<1x32x32xbf16>
    %81 = vector.shape_cast %80 : vector<1x32x32xbf16> to vector<32x32xbf16>
    %cst_42 = arith.constant dense<0.000000e+00> : vector<16x32xf32>
    %82 = tpu.matmul %79, %81, %cst_42 {dimension_numbers = #tpu.dot_dimension_numbers<[1], [0], [0], [1], [0, 0, 1, 1], [], []>} : vector<16x32xbf16>, vector<32x32xbf16>, vector<16x32xf32> -> vector<16x32xf32>
    %c0_43 = arith.constant 0 : index
    %c0_44 = arith.constant 0 : index
    %c0_45 = arith.constant 0 : index
    %83 = vector.load %arg7[%c0_43, %c0_44, %c0_45] : memref<4x1x32xf32, #tpu.memory_space<vmem>>, vector<1x1x32xf32>
    %84 = vector.shape_cast %83 : vector<1x1x32xf32> to vector<1x32xf32>
    %85 = vector.broadcast %84 : vector<1x32xf32> to vector<16x32xf32>
    %86 = arith.addf %82, %85 : vector<16x32xf32>
    %87 = arith.addf %2, %86 : vector<16x32xf32>
    %c0_46 = arith.constant 0 : index
    %c0_47 = arith.constant 0 : index
    %c0_48 = arith.constant 0 : index
    %88 = vector.load %arg8[%c0_46, %c0_47, %c0_48] : memref<4x1x32xf32, #tpu.memory_space<vmem>>, vector<1x1x32xf32>
    %89 = vector.shape_cast %88 : vector<1x1x32xf32> to vector<1x32xf32>
    %c0_49 = arith.constant 0 : index
    %c0_50 = arith.constant 0 : index
    %c0_51 = arith.constant 0 : index
    %90 = vector.load %arg9[%c0_49, %c0_50, %c0_51] : memref<4x1x32xf32, #tpu.memory_space<vmem>>, vector<1x1x32xf32>
    %91 = vector.shape_cast %90 : vector<1x1x32xf32> to vector<1x32xf32>
    %cst_52 = arith.constant dense<0.000000e+00> : vector<16xf32>
    %92 = vector.multi_reduction <add>, %87, %cst_52 [1] : vector<16x32xf32> to vector<16xf32>
    %93 = vector.shape_cast %92 : vector<16xf32> to vector<16x1xf32>
    %cst_53 = arith.constant 3.200000e+01 : f32
    %94 = vector.broadcast %cst_53 : f32 to vector<16x1xf32>
    %95 = arith.divf %93, %94 : vector<16x1xf32>
    %96 = vector.broadcast %95 : vector<16x1xf32> to vector<16x32xf32>
    %97 = arith.subf %87, %96 : vector<16x32xf32>
    %98 = arith.mulf %97, %97 : vector<16x32xf32>
    %cst_54 = arith.constant dense<0.000000e+00> : vector<16xf32>
    %99 = vector.multi_reduction <add>, %98, %cst_54 [1] : vector<16x32xf32> to vector<16xf32>
    %100 = vector.shape_cast %99 : vector<16xf32> to vector<16x1xf32>
    %cst_55 = arith.constant 3.200000e+01 : f32
    %101 = vector.broadcast %cst_55 : f32 to vector<16x1xf32>
    %102 = arith.divf %100, %101 : vector<16x1xf32>
    %103 = vector.broadcast %95 : vector<16x1xf32> to vector<16x32xf32>
    %104 = arith.subf %87, %103 : vector<16x32xf32>
    %cst_56 = arith.constant 9.99999974E-6 : f32
    %105 = vector.broadcast %cst_56 : f32 to vector<16x1xf32>
    %106 = arith.addf %102, %105 : vector<16x1xf32>
    %107 = math.rsqrt %106 : vector<16x1xf32>
    %108 = vector.broadcast %107 : vector<16x1xf32> to vector<16x32xf32>
    %109 = arith.mulf %104, %108 : vector<16x32xf32>
    %110 = vector.broadcast %89 : vector<1x32xf32> to vector<16x32xf32>
    %111 = arith.mulf %109, %110 : vector<16x32xf32>
    %112 = vector.broadcast %91 : vector<1x32xf32> to vector<16x32xf32>
    %113 = arith.addf %111, %112 : vector<16x32xf32>
    %114 = arith.truncf %113 : vector<16x32xf32> to vector<16x32xbf16>
    %c0_57 = arith.constant 0 : index
    %c0_58 = arith.constant 0 : index
    %c0_59 = arith.constant 0 : index
    %115 = vector.load %arg10[%c0_57, %c0_58, %c0_59] : memref<4x32x128xbf16, #tpu.memory_space<vmem>>, vector<1x32x128xbf16>
    %116 = vector.shape_cast %115 : vector<1x32x128xbf16> to vector<32x128xbf16>
    %cst_60 = arith.constant dense<0.000000e+00> : vector<16x128xf32>
    %117 = tpu.matmul %114, %116, %cst_60 {dimension_numbers = #tpu.dot_dimension_numbers<[1], [0], [0], [1], [0, 0, 1, 1], [], []>} : vector<16x32xbf16>, vector<32x128xbf16>, vector<16x128xf32> -> vector<16x128xf32>
    %c0_61 = arith.constant 0 : index
    %c0_62 = arith.constant 0 : index
    %c0_63 = arith.constant 0 : index
    %118 = vector.load %arg11[%c0_61, %c0_62, %c0_63] : memref<4x1x128xf32, #tpu.memory_space<vmem>>, vector<1x1x128xf32>
    %119 = vector.shape_cast %118 : vector<1x1x128xf32> to vector<1x128xf32>
    %120 = vector.broadcast %119 : vector<1x128xf32> to vector<16x128xf32>
    %121 = arith.addf %117, %120 : vector<16x128xf32>
    %cst_64 = arith.constant 0.000000e+00 : f32
    %122 = vector.broadcast %cst_64 : f32 to vector<16x128xf32>
    %123 = arith.maximumf %121, %122 : vector<16x128xf32>
    %124 = arith.truncf %123 : vector<16x128xf32> to vector<16x128xbf16>
    %c0_65 = arith.constant 0 : index
    %c0_66 = arith.constant 0 : index
    %c0_67 = arith.constant 0 : index
    %125 = vector.load %arg12[%c0_65, %c0_66, %c0_67] : memref<4x128x32xbf16, #tpu.memory_space<vmem>>, vector<1x128x32xbf16>
    %126 = vector.shape_cast %125 : vector<1x128x32xbf16> to vector<128x32xbf16>
    %cst_68 = arith.constant dense<0.000000e+00> : vector<16x32xf32>
    %127 = tpu.matmul %124, %126, %cst_68 {dimension_numbers = #tpu.dot_dimension_numbers<[1], [0], [0], [1], [0, 0, 1, 1], [], []>} : vector<16x128xbf16>, vector<128x32xbf16>, vector<16x32xf32> -> vector<16x32xf32>
    %c0_69 = arith.constant 0 : index
    %c0_70 = arith.constant 0 : index
    %c0_71 = arith.constant 0 : index
    %128 = vector.load %arg13[%c0_69, %c0_70, %c0_71] : memref<4x1x32xf32, #tpu.memory_space<vmem>>, vector<1x1x32xf32>
    %129 = vector.shape_cast %128 : vector<1x1x32xf32> to vector<1x32xf32>
    %130 = vector.broadcast %129 : vector<1x32xf32> to vector<16x32xf32>
    %131 = arith.addf %127, %130 : vector<16x32xf32>
    %132 = arith.addf %113, %131 : vector<16x32xf32>
    %c0_72 = arith.constant 0 : index
    %c0_73 = arith.constant 0 : index
    %c0_74 = arith.constant 0 : index
    %133 = vector.load %arg14[%c0_72, %c0_73, %c0_74] : memref<4x1x32xf32, #tpu.memory_space<vmem>>, vector<1x1x32xf32>
    %134 = vector.shape_cast %133 : vector<1x1x32xf32> to vector<1x32xf32>
    %c0_75 = arith.constant 0 : index
    %c0_76 = arith.constant 0 : index
    %c0_77 = arith.constant 0 : index
    %135 = vector.load %arg15[%c0_75, %c0_76, %c0_77] : memref<4x1x32xf32, #tpu.memory_space<vmem>>, vector<1x1x32xf32>
    %136 = vector.shape_cast %135 : vector<1x1x32xf32> to vector<1x32xf32>
    %cst_78 = arith.constant dense<0.000000e+00> : vector<16xf32>
    %137 = vector.multi_reduction <add>, %132, %cst_78 [1] : vector<16x32xf32> to vector<16xf32>
    %138 = vector.shape_cast %137 : vector<16xf32> to vector<16x1xf32>
    %cst_79 = arith.constant 3.200000e+01 : f32
    %139 = vector.broadcast %cst_79 : f32 to vector<16x1xf32>
    %140 = arith.divf %138, %139 : vector<16x1xf32>
    %141 = vector.broadcast %140 : vector<16x1xf32> to vector<16x32xf32>
    %142 = arith.subf %132, %141 : vector<16x32xf32>
    %143 = arith.mulf %142, %142 : vector<16x32xf32>
    %cst_80 = arith.constant dense<0.000000e+00> : vector<16xf32>
    %144 = vector.multi_reduction <add>, %143, %cst_80 [1] : vector<16x32xf32> to vector<16xf32>
    %145 = vector.shape_cast %144 : vector<16xf32> to vector<16x1xf32>
    %cst_81 = arith.constant 3.200000e+01 : f32
    %146 = vector.broadcast %cst_81 : f32 to vector<16x1xf32>
    %147 = arith.divf %145, %146 : vector<16x1xf32>
    %148 = vector.broadcast %140 : vector<16x1xf32> to vector<16x32xf32>
    %149 = arith.subf %132, %148 : vector<16x32xf32>
    %cst_82 = arith.constant 9.99999974E-6 : f32
    %150 = vector.broadcast %cst_82 : f32 to vector<16x1xf32>
    %151 = arith.addf %147, %150 : vector<16x1xf32>
    %152 = math.rsqrt %151 : vector<16x1xf32>
    %153 = vector.broadcast %152 : vector<16x1xf32> to vector<16x32xf32>
    %154 = arith.mulf %149, %153 : vector<16x32xf32>
    %155 = vector.broadcast %134 : vector<1x32xf32> to vector<16x32xf32>
    %156 = arith.mulf %154, %155 : vector<16x32xf32>
    %157 = vector.broadcast %136 : vector<1x32xf32> to vector<16x32xf32>
    %158 = arith.addf %156, %157 : vector<16x32xf32>
    %159 = arith.truncf %158 : vector<16x32xf32> to vector<16x32xbf16>
    %c1_83 = arith.constant 1 : index
    %c0_84 = arith.constant 0 : index
    %c0_85 = arith.constant 0 : index
    %c0_86 = arith.constant 0 : index
    %160 = vector.load %arg4[%c1_83, %c0_84, %c0_85, %c0_86] : memref<4x3x32x32xbf16, #tpu.memory_space<vmem>>, vector<1x1x32x32xbf16>
    %161 = vector.shape_cast %160 : vector<1x1x32x32xbf16> to vector<32x32xbf16>
    %cst_87 = arith.constant dense<0.000000e+00> : vector<16x32xf32>
    %162 = tpu.matmul %159, %161, %cst_87 {dimension_numbers = #tpu.dot_dimension_numbers<[1], [0], [0], [1], [0, 0, 1, 1], [], []>} : vector<16x32xbf16>, vector<32x32xbf16>, vector<16x32xf32> -> vector<16x32xf32>
    %c1_88 = arith.constant 1 : index
    %c0_89 = arith.constant 0 : index
    %c0_90 = arith.constant 0 : index
    %c0_91 = arith.constant 0 : index
    %163 = vector.load %arg5[%c1_88, %c0_89, %c0_90, %c0_91] : memref<4x3x1x32xf32, #tpu.memory_space<vmem>>, vector<1x1x1x32xf32>
    %164 = vector.shape_cast %163 : vector<1x1x1x32xf32> to vector<1x32xf32>
    %165 = vector.broadcast %164 : vector<1x32xf32> to vector<16x32xf32>
    %166 = arith.addf %162, %165 : vector<16x32xf32>
    %c1_92 = arith.constant 1 : index
    %c1_93 = arith.constant 1 : index
    %c0_94 = arith.constant 0 : index
    %c0_95 = arith.constant 0 : index
    %167 = vector.load %arg4[%c1_92, %c1_93, %c0_94, %c0_95] : memref<4x3x32x32xbf16, #tpu.memory_space<vmem>>, vector<1x1x32x32xbf16>
    %168 = vector.shape_cast %167 : vector<1x1x32x32xbf16> to vector<32x32xbf16>
    %cst_96 = arith.constant dense<0.000000e+00> : vector<16x32xf32>
    %169 = tpu.matmul %159, %168, %cst_96 {dimension_numbers = #tpu.dot_dimension_numbers<[1], [0], [0], [1], [0, 0, 1, 1], [], []>} : vector<16x32xbf16>, vector<32x32xbf16>, vector<16x32xf32> -> vector<16x32xf32>
    %c1_97 = arith.constant 1 : index
    %c1_98 = arith.constant 1 : index
    %c0_99 = arith.constant 0 : index
    %c0_100 = arith.constant 0 : index
    %170 = vector.load %arg5[%c1_97, %c1_98, %c0_99, %c0_100] : memref<4x3x1x32xf32, #tpu.memory_space<vmem>>, vector<1x1x1x32xf32>
    %171 = vector.shape_cast %170 : vector<1x1x1x32xf32> to vector<1x32xf32>
    %172 = vector.broadcast %171 : vector<1x32xf32> to vector<16x32xf32>
    %173 = arith.addf %169, %172 : vector<16x32xf32>
    %c1_101 = arith.constant 1 : index
    %c2_102 = arith.constant 2 : index
    %c0_103 = arith.constant 0 : index
    %c0_104 = arith.constant 0 : index
    %174 = vector.load %arg4[%c1_101, %c2_102, %c0_103, %c0_104] : memref<4x3x32x32xbf16, #tpu.memory_space<vmem>>, vector<1x1x32x32xbf16>
    %175 = vector.shape_cast %174 : vector<1x1x32x32xbf16> to vector<32x32xbf16>
    %cst_105 = arith.constant dense<0.000000e+00> : vector<16x32xf32>
    %176 = tpu.matmul %159, %175, %cst_105 {dimension_numbers = #tpu.dot_dimension_numbers<[1], [0], [0], [1], [0, 0, 1, 1], [], []>} : vector<16x32xbf16>, vector<32x32xbf16>, vector<16x32xf32> -> vector<16x32xf32>
    %c1_106 = arith.constant 1 : index
    %c2_107 = arith.constant 2 : index
    %c0_108 = arith.constant 0 : index
    %c0_109 = arith.constant 0 : index
    %177 = vector.load %arg5[%c1_106, %c2_107, %c0_108, %c0_109] : memref<4x3x1x32xf32, #tpu.memory_space<vmem>>, vector<1x1x1x32xf32>
    %178 = vector.shape_cast %177 : vector<1x1x1x32xf32> to vector<1x32xf32>
    %179 = vector.broadcast %178 : vector<1x32xf32> to vector<16x32xf32>
    %180 = arith.addf %176, %179 : vector<16x32xf32>
    %181 = vector.shape_cast %166 : vector<16x32xf32> to vector<2x8x32xf32>
    %182 = vector.shape_cast %173 : vector<16x32xf32> to vector<2x8x32xf32>
    %183 = vector.shape_cast %180 : vector<16x32xf32> to vector<2x8x32xf32>
    %184 = vector.shape_cast %181 : vector<2x8x32xf32> to vector<2x8x1x32xf32>
    %185 = vector.shape_cast %182 : vector<2x8x32xf32> to vector<2x1x8x32xf32>
    %186 = vector.broadcast %184 : vector<2x8x1x32xf32> to vector<2x8x8x32xf32>
    %187 = vector.broadcast %185 : vector<2x1x8x32xf32> to vector<2x8x8x32xf32>
    %188 = arith.mulf %186, %187 : vector<2x8x8x32xf32>
    %189 = vector.shape_cast %188 : vector<2x8x8x32xf32> to vector<128x32xf32>
    %cst_110 = arith.constant dense<0.000000e+00> : vector<128x8xf32>
    %190 = tpu.matmul %189, %13, %cst_110 {dimension_numbers = #tpu.dot_dimension_numbers<[1], [0], [0], [1], [0, 0, 1, 1], [], []>} : vector<128x32xf32>, vector<32x8xf32>, vector<128x8xf32> -> vector<128x8xf32>
    %191 = vector.shape_cast %190 : vector<128x8xf32> to vector<2x8x8x8xf32>
    %192 = vector.broadcast %25 : vector<2x1x8x1xf32> to vector<2x8x8x8xf32>
    %193 = arith.addf %191, %192 : vector<2x8x8x8xf32>
    %cst_111 = arith.constant dense<0xFF800000> : vector<2x8x8xf32>
    %194 = vector.multi_reduction <maximumf>, %193, %cst_111 [2] : vector<2x8x8x8xf32> to vector<2x8x8xf32>
    %195 = vector.shape_cast %194 : vector<2x8x8xf32> to vector<2x8x1x8xf32>
    %196 = vector.broadcast %195 : vector<2x8x1x8xf32> to vector<2x8x8x8xf32>
    %197 = arith.subf %193, %196 : vector<2x8x8x8xf32>
    %198 = math.exp %197 : vector<2x8x8x8xf32>
    %cst_112 = arith.constant dense<0.000000e+00> : vector<2x8x8xf32>
    %199 = vector.multi_reduction <add>, %198, %cst_112 [2] : vector<2x8x8x8xf32> to vector<2x8x8xf32>
    %200 = vector.shape_cast %199 : vector<2x8x8xf32> to vector<2x8x1x8xf32>
    %201 = tpu.reciprocal %200 {approx = true} : vector<2x8x1x8xf32> -> vector<2x8x1x8xf32>
    %202 = vector.broadcast %201 : vector<2x8x1x8xf32> to vector<2x8x8x8xf32>
    %203 = arith.mulf %198, %202 : vector<2x8x8x8xf32>
    %204 = vector.shape_cast %203 : vector<2x8x8x8xf32> to vector<128x8xf32>
    %cst_113 = arith.constant dense<0.000000e+00> : vector<128x32xf32>
    %205 = tpu.matmul %204, %24, %cst_113 {dimension_numbers = #tpu.dot_dimension_numbers<[1], [0], [0], [1], [0, 0, 1, 1], [], []>} : vector<128x8xf32>, vector<8x32xf32>, vector<128x32xf32> -> vector<128x32xf32>
    %206 = vector.shape_cast %205 : vector<128x32xf32> to vector<2x8x8x32xf32>
    %207 = vector.shape_cast %183 : vector<2x8x32xf32> to vector<2x1x8x32xf32>
    %208 = vector.broadcast %207 : vector<2x1x8x32xf32> to vector<2x8x8x32xf32>
    %209 = arith.mulf %206, %208 : vector<2x8x8x32xf32>
    %cst_114 = arith.constant dense<0.000000e+00> : vector<2x8x32xf32>
    %210 = vector.multi_reduction <add>, %209, %cst_114 [2] : vector<2x8x8x32xf32> to vector<2x8x32xf32>
    %211 = vector.shape_cast %210 : vector<2x8x32xf32> to vector<16x32xf32>
    %212 = arith.truncf %211 : vector<16x32xf32> to vector<16x32xbf16>
    %c1_115 = arith.constant 1 : index
    %c0_116 = arith.constant 0 : index
    %c0_117 = arith.constant 0 : index
    %213 = vector.load %arg6[%c1_115, %c0_116, %c0_117] : memref<4x32x32xbf16, #tpu.memory_space<vmem>>, vector<1x32x32xbf16>
    %214 = vector.shape_cast %213 : vector<1x32x32xbf16> to vector<32x32xbf16>
    %cst_118 = arith.constant dense<0.000000e+00> : vector<16x32xf32>
    %215 = tpu.matmul %212, %214, %cst_118 {dimension_numbers = #tpu.dot_dimension_numbers<[1], [0], [0], [1], [0, 0, 1, 1], [], []>} : vector<16x32xbf16>, vector<32x32xbf16>, vector<16x32xf32> -> vector<16x32xf32>
    %c1_119 = arith.constant 1 : index
    %c0_120 = arith.constant 0 : index
    %c0_121 = arith.constant 0 : index
    %216 = vector.load %arg7[%c1_119, %c0_120, %c0_121] : memref<4x1x32xf32, #tpu.memory_space<vmem>>, vector<1x1x32xf32>
    %217 = vector.shape_cast %216 : vector<1x1x32xf32> to vector<1x32xf32>
    %218 = vector.broadcast %217 : vector<1x32xf32> to vector<16x32xf32>
    %219 = arith.addf %215, %218 : vector<16x32xf32>
    %220 = arith.addf %158, %219 : vector<16x32xf32>
    %c1_122 = arith.constant 1 : index
    %c0_123 = arith.constant 0 : index
    %c0_124 = arith.constant 0 : index
    %221 = vector.load %arg8[%c1_122, %c0_123, %c0_124] : memref<4x1x32xf32, #tpu.memory_space<vmem>>, vector<1x1x32xf32>
    %222 = vector.shape_cast %221 : vector<1x1x32xf32> to vector<1x32xf32>
    %c1_125 = arith.constant 1 : index
    %c0_126 = arith.constant 0 : index
    %c0_127 = arith.constant 0 : index
    %223 = vector.load %arg9[%c1_125, %c0_126, %c0_127] : memref<4x1x32xf32, #tpu.memory_space<vmem>>, vector<1x1x32xf32>
    %224 = vector.shape_cast %223 : vector<1x1x32xf32> to vector<1x32xf32>
    %cst_128 = arith.constant dense<0.000000e+00> : vector<16xf32>
    %225 = vector.multi_reduction <add>, %220, %cst_128 [1] : vector<16x32xf32> to vector<16xf32>
    %226 = vector.shape_cast %225 : vector<16xf32> to vector<16x1xf32>
    %cst_129 = arith.constant 3.200000e+01 : f32
    %227 = vector.broadcast %cst_129 : f32 to vector<16x1xf32>
    %228 = arith.divf %226, %227 : vector<16x1xf32>
    %229 = vector.broadcast %228 : vector<16x1xf32> to vector<16x32xf32>
    %230 = arith.subf %220, %229 : vector<16x32xf32>
    %231 = arith.mulf %230, %230 : vector<16x32xf32>
    %cst_130 = arith.constant dense<0.000000e+00> : vector<16xf32>
    %232 = vector.multi_reduction <add>, %231, %cst_130 [1] : vector<16x32xf32> to vector<16xf32>
    %233 = vector.shape_cast %232 : vector<16xf32> to vector<16x1xf32>
    %cst_131 = arith.constant 3.200000e+01 : f32
    %234 = vector.broadcast %cst_131 : f32 to vector<16x1xf32>
    %235 = arith.divf %233, %234 : vector<16x1xf32>
    %236 = vector.broadcast %228 : vector<16x1xf32> to vector<16x32xf32>
    %237 = arith.subf %220, %236 : vector<16x32xf32>
    %cst_132 = arith.constant 9.99999974E-6 : f32
    %238 = vector.broadcast %cst_132 : f32 to vector<16x1xf32>
    %239 = arith.addf %235, %238 : vector<16x1xf32>
    %240 = math.rsqrt %239 : vector<16x1xf32>
    %241 = vector.broadcast %240 : vector<16x1xf32> to vector<16x32xf32>
    %242 = arith.mulf %237, %241 : vector<16x32xf32>
    %243 = vector.broadcast %222 : vector<1x32xf32> to vector<16x32xf32>
    %244 = arith.mulf %242, %243 : vector<16x32xf32>
    %245 = vector.broadcast %224 : vector<1x32xf32> to vector<16x32xf32>
    %246 = arith.addf %244, %245 : vector<16x32xf32>
    %247 = arith.truncf %246 : vector<16x32xf32> to vector<16x32xbf16>
    %c1_133 = arith.constant 1 : index
    %c0_134 = arith.constant 0 : index
    %c0_135 = arith.constant 0 : index
    %248 = vector.load %arg10[%c1_133, %c0_134, %c0_135] : memref<4x32x128xbf16, #tpu.memory_space<vmem>>, vector<1x32x128xbf16>
    %249 = vector.shape_cast %248 : vector<1x32x128xbf16> to vector<32x128xbf16>
    %cst_136 = arith.constant dense<0.000000e+00> : vector<16x128xf32>
    %250 = tpu.matmul %247, %249, %cst_136 {dimension_numbers = #tpu.dot_dimension_numbers<[1], [0], [0], [1], [0, 0, 1, 1], [], []>} : vector<16x32xbf16>, vector<32x128xbf16>, vector<16x128xf32> -> vector<16x128xf32>
    %c1_137 = arith.constant 1 : index
    %c0_138 = arith.constant 0 : index
    %c0_139 = arith.constant 0 : index
    %251 = vector.load %arg11[%c1_137, %c0_138, %c0_139] : memref<4x1x128xf32, #tpu.memory_space<vmem>>, vector<1x1x128xf32>
    %252 = vector.shape_cast %251 : vector<1x1x128xf32> to vector<1x128xf32>
    %253 = vector.broadcast %252 : vector<1x128xf32> to vector<16x128xf32>
    %254 = arith.addf %250, %253 : vector<16x128xf32>
    %cst_140 = arith.constant 0.000000e+00 : f32
    %255 = vector.broadcast %cst_140 : f32 to vector<16x128xf32>
    %256 = arith.maximumf %254, %255 : vector<16x128xf32>
    %257 = arith.truncf %256 : vector<16x128xf32> to vector<16x128xbf16>
    %c1_141 = arith.constant 1 : index
    %c0_142 = arith.constant 0 : index
    %c0_143 = arith.constant 0 : index
    %258 = vector.load %arg12[%c1_141, %c0_142, %c0_143] : memref<4x128x32xbf16, #tpu.memory_space<vmem>>, vector<1x128x32xbf16>
    %259 = vector.shape_cast %258 : vector<1x128x32xbf16> to vector<128x32xbf16>
    %cst_144 = arith.constant dense<0.000000e+00> : vector<16x32xf32>
    %260 = tpu.matmul %257, %259, %cst_144 {dimension_numbers = #tpu.dot_dimension_numbers<[1], [0], [0], [1], [0, 0, 1, 1], [], []>} : vector<16x128xbf16>, vector<128x32xbf16>, vector<16x32xf32> -> vector<16x32xf32>
    %c1_145 = arith.constant 1 : index
    %c0_146 = arith.constant 0 : index
    %c0_147 = arith.constant 0 : index
    %261 = vector.load %arg13[%c1_145, %c0_146, %c0_147] : memref<4x1x32xf32, #tpu.memory_space<vmem>>, vector<1x1x32xf32>
    %262 = vector.shape_cast %261 : vector<1x1x32xf32> to vector<1x32xf32>
    %263 = vector.broadcast %262 : vector<1x32xf32> to vector<16x32xf32>
    %264 = arith.addf %260, %263 : vector<16x32xf32>
    %265 = arith.addf %246, %264 : vector<16x32xf32>
    %c1_148 = arith.constant 1 : index
    %c0_149 = arith.constant 0 : index
    %c0_150 = arith.constant 0 : index
    %266 = vector.load %arg14[%c1_148, %c0_149, %c0_150] : memref<4x1x32xf32, #tpu.memory_space<vmem>>, vector<1x1x32xf32>
    %267 = vector.shape_cast %266 : vector<1x1x32xf32> to vector<1x32xf32>
    %c1_151 = arith.constant 1 : index
    %c0_152 = arith.constant 0 : index
    %c0_153 = arith.constant 0 : index
    %268 = vector.load %arg15[%c1_151, %c0_152, %c0_153] : memref<4x1x32xf32, #tpu.memory_space<vmem>>, vector<1x1x32xf32>
    %269 = vector.shape_cast %268 : vector<1x1x32xf32> to vector<1x32xf32>
    %cst_154 = arith.constant dense<0.000000e+00> : vector<16xf32>
    %270 = vector.multi_reduction <add>, %265, %cst_154 [1] : vector<16x32xf32> to vector<16xf32>
    %271 = vector.shape_cast %270 : vector<16xf32> to vector<16x1xf32>
    %cst_155 = arith.constant 3.200000e+01 : f32
    %272 = vector.broadcast %cst_155 : f32 to vector<16x1xf32>
    %273 = arith.divf %271, %272 : vector<16x1xf32>
    %274 = vector.broadcast %273 : vector<16x1xf32> to vector<16x32xf32>
    %275 = arith.subf %265, %274 : vector<16x32xf32>
    %276 = arith.mulf %275, %275 : vector<16x32xf32>
    %cst_156 = arith.constant dense<0.000000e+00> : vector<16xf32>
    %277 = vector.multi_reduction <add>, %276, %cst_156 [1] : vector<16x32xf32> to vector<16xf32>
    %278 = vector.shape_cast %277 : vector<16xf32> to vector<16x1xf32>
    %cst_157 = arith.constant 3.200000e+01 : f32
    %279 = vector.broadcast %cst_157 : f32 to vector<16x1xf32>
    %280 = arith.divf %278, %279 : vector<16x1xf32>
    %281 = vector.broadcast %273 : vector<16x1xf32> to vector<16x32xf32>
    %282 = arith.subf %265, %281 : vector<16x32xf32>
    %cst_158 = arith.constant 9.99999974E-6 : f32
    %283 = vector.broadcast %cst_158 : f32 to vector<16x1xf32>
    %284 = arith.addf %280, %283 : vector<16x1xf32>
    %285 = math.rsqrt %284 : vector<16x1xf32>
    %286 = vector.broadcast %285 : vector<16x1xf32> to vector<16x32xf32>
    %287 = arith.mulf %282, %286 : vector<16x32xf32>
    %288 = vector.broadcast %267 : vector<1x32xf32> to vector<16x32xf32>
    %289 = arith.mulf %287, %288 : vector<16x32xf32>
    %290 = vector.broadcast %269 : vector<1x32xf32> to vector<16x32xf32>
    %291 = arith.addf %289, %290 : vector<16x32xf32>
    %292 = arith.truncf %291 : vector<16x32xf32> to vector<16x32xbf16>
    %c2_159 = arith.constant 2 : index
    %c0_160 = arith.constant 0 : index
    %c0_161 = arith.constant 0 : index
    %c0_162 = arith.constant 0 : index
    %293 = vector.load %arg4[%c2_159, %c0_160, %c0_161, %c0_162] : memref<4x3x32x32xbf16, #tpu.memory_space<vmem>>, vector<1x1x32x32xbf16>
    %294 = vector.shape_cast %293 : vector<1x1x32x32xbf16> to vector<32x32xbf16>
    %cst_163 = arith.constant dense<0.000000e+00> : vector<16x32xf32>
    %295 = tpu.matmul %292, %294, %cst_163 {dimension_numbers = #tpu.dot_dimension_numbers<[1], [0], [0], [1], [0, 0, 1, 1], [], []>} : vector<16x32xbf16>, vector<32x32xbf16>, vector<16x32xf32> -> vector<16x32xf32>
    %c2_164 = arith.constant 2 : index
    %c0_165 = arith.constant 0 : index
    %c0_166 = arith.constant 0 : index
    %c0_167 = arith.constant 0 : index
    %296 = vector.load %arg5[%c2_164, %c0_165, %c0_166, %c0_167] : memref<4x3x1x32xf32, #tpu.memory_space<vmem>>, vector<1x1x1x32xf32>
    %297 = vector.shape_cast %296 : vector<1x1x1x32xf32> to vector<1x32xf32>
    %298 = vector.broadcast %297 : vector<1x32xf32> to vector<16x32xf32>
    %299 = arith.addf %295, %298 : vector<16x32xf32>
    %c2_168 = arith.constant 2 : index
    %c1_169 = arith.constant 1 : index
    %c0_170 = arith.constant 0 : index
    %c0_171 = arith.constant 0 : index
    %300 = vector.load %arg4[%c2_168, %c1_169, %c0_170, %c0_171] : memref<4x3x32x32xbf16, #tpu.memory_space<vmem>>, vector<1x1x32x32xbf16>
    %301 = vector.shape_cast %300 : vector<1x1x32x32xbf16> to vector<32x32xbf16>
    %cst_172 = arith.constant dense<0.000000e+00> : vector<16x32xf32>
    %302 = tpu.matmul %292, %301, %cst_172 {dimension_numbers = #tpu.dot_dimension_numbers<[1], [0], [0], [1], [0, 0, 1, 1], [], []>} : vector<16x32xbf16>, vector<32x32xbf16>, vector<16x32xf32> -> vector<16x32xf32>
    %c2_173 = arith.constant 2 : index
    %c1_174 = arith.constant 1 : index
    %c0_175 = arith.constant 0 : index
    %c0_176 = arith.constant 0 : index
    %303 = vector.load %arg5[%c2_173, %c1_174, %c0_175, %c0_176] : memref<4x3x1x32xf32, #tpu.memory_space<vmem>>, vector<1x1x1x32xf32>
    %304 = vector.shape_cast %303 : vector<1x1x1x32xf32> to vector<1x32xf32>
    %305 = vector.broadcast %304 : vector<1x32xf32> to vector<16x32xf32>
    %306 = arith.addf %302, %305 : vector<16x32xf32>
    %c2_177 = arith.constant 2 : index
    %c2_178 = arith.constant 2 : index
    %c0_179 = arith.constant 0 : index
    %c0_180 = arith.constant 0 : index
    %307 = vector.load %arg4[%c2_177, %c2_178, %c0_179, %c0_180] : memref<4x3x32x32xbf16, #tpu.memory_space<vmem>>, vector<1x1x32x32xbf16>
    %308 = vector.shape_cast %307 : vector<1x1x32x32xbf16> to vector<32x32xbf16>
    %cst_181 = arith.constant dense<0.000000e+00> : vector<16x32xf32>
    %309 = tpu.matmul %292, %308, %cst_181 {dimension_numbers = #tpu.dot_dimension_numbers<[1], [0], [0], [1], [0, 0, 1, 1], [], []>} : vector<16x32xbf16>, vector<32x32xbf16>, vector<16x32xf32> -> vector<16x32xf32>
    %c2_182 = arith.constant 2 : index
    %c2_183 = arith.constant 2 : index
    %c0_184 = arith.constant 0 : index
    %c0_185 = arith.constant 0 : index
    %310 = vector.load %arg5[%c2_182, %c2_183, %c0_184, %c0_185] : memref<4x3x1x32xf32, #tpu.memory_space<vmem>>, vector<1x1x1x32xf32>
    %311 = vector.shape_cast %310 : vector<1x1x1x32xf32> to vector<1x32xf32>
    %312 = vector.broadcast %311 : vector<1x32xf32> to vector<16x32xf32>
    %313 = arith.addf %309, %312 : vector<16x32xf32>
    %314 = vector.shape_cast %299 : vector<16x32xf32> to vector<2x8x32xf32>
    %315 = vector.shape_cast %306 : vector<16x32xf32> to vector<2x8x32xf32>
    %316 = vector.shape_cast %313 : vector<16x32xf32> to vector<2x8x32xf32>
    %317 = vector.shape_cast %314 : vector<2x8x32xf32> to vector<2x8x1x32xf32>
    %318 = vector.shape_cast %315 : vector<2x8x32xf32> to vector<2x1x8x32xf32>
    %319 = vector.broadcast %317 : vector<2x8x1x32xf32> to vector<2x8x8x32xf32>
    %320 = vector.broadcast %318 : vector<2x1x8x32xf32> to vector<2x8x8x32xf32>
    %321 = arith.mulf %319, %320 : vector<2x8x8x32xf32>
    %322 = vector.shape_cast %321 : vector<2x8x8x32xf32> to vector<128x32xf32>
    %cst_186 = arith.constant dense<0.000000e+00> : vector<128x8xf32>
    %323 = tpu.matmul %322, %13, %cst_186 {dimension_numbers = #tpu.dot_dimension_numbers<[1], [0], [0], [1], [0, 0, 1, 1], [], []>} : vector<128x32xf32>, vector<32x8xf32>, vector<128x8xf32> -> vector<128x8xf32>
    %324 = vector.shape_cast %323 : vector<128x8xf32> to vector<2x8x8x8xf32>
    %325 = vector.broadcast %25 : vector<2x1x8x1xf32> to vector<2x8x8x8xf32>
    %326 = arith.addf %324, %325 : vector<2x8x8x8xf32>
    %cst_187 = arith.constant dense<0xFF800000> : vector<2x8x8xf32>
    %327 = vector.multi_reduction <maximumf>, %326, %cst_187 [2] : vector<2x8x8x8xf32> to vector<2x8x8xf32>
    %328 = vector.shape_cast %327 : vector<2x8x8xf32> to vector<2x8x1x8xf32>
    %329 = vector.broadcast %328 : vector<2x8x1x8xf32> to vector<2x8x8x8xf32>
    %330 = arith.subf %326, %329 : vector<2x8x8x8xf32>
    %331 = math.exp %330 : vector<2x8x8x8xf32>
    %cst_188 = arith.constant dense<0.000000e+00> : vector<2x8x8xf32>
    %332 = vector.multi_reduction <add>, %331, %cst_188 [2] : vector<2x8x8x8xf32> to vector<2x8x8xf32>
    %333 = vector.shape_cast %332 : vector<2x8x8xf32> to vector<2x8x1x8xf32>
    %334 = tpu.reciprocal %333 {approx = true} : vector<2x8x1x8xf32> -> vector<2x8x1x8xf32>
    %335 = vector.broadcast %334 : vector<2x8x1x8xf32> to vector<2x8x8x8xf32>
    %336 = arith.mulf %331, %335 : vector<2x8x8x8xf32>
    %337 = vector.shape_cast %336 : vector<2x8x8x8xf32> to vector<128x8xf32>
    %cst_189 = arith.constant dense<0.000000e+00> : vector<128x32xf32>
    %338 = tpu.matmul %337, %24, %cst_189 {dimension_numbers = #tpu.dot_dimension_numbers<[1], [0], [0], [1], [0, 0, 1, 1], [], []>} : vector<128x8xf32>, vector<8x32xf32>, vector<128x32xf32> -> vector<128x32xf32>
    %339 = vector.shape_cast %338 : vector<128x32xf32> to vector<2x8x8x32xf32>
    %340 = vector.shape_cast %316 : vector<2x8x32xf32> to vector<2x1x8x32xf32>
    %341 = vector.broadcast %340 : vector<2x1x8x32xf32> to vector<2x8x8x32xf32>
    %342 = arith.mulf %339, %341 : vector<2x8x8x32xf32>
    %cst_190 = arith.constant dense<0.000000e+00> : vector<2x8x32xf32>
    %343 = vector.multi_reduction <add>, %342, %cst_190 [2] : vector<2x8x8x32xf32> to vector<2x8x32xf32>
    %344 = vector.shape_cast %343 : vector<2x8x32xf32> to vector<16x32xf32>
    %345 = arith.truncf %344 : vector<16x32xf32> to vector<16x32xbf16>
    %c2_191 = arith.constant 2 : index
    %c0_192 = arith.constant 0 : index
    %c0_193 = arith.constant 0 : index
    %346 = vector.load %arg6[%c2_191, %c0_192, %c0_193] : memref<4x32x32xbf16, #tpu.memory_space<vmem>>, vector<1x32x32xbf16>
    %347 = vector.shape_cast %346 : vector<1x32x32xbf16> to vector<32x32xbf16>
    %cst_194 = arith.constant dense<0.000000e+00> : vector<16x32xf32>
    %348 = tpu.matmul %345, %347, %cst_194 {dimension_numbers = #tpu.dot_dimension_numbers<[1], [0], [0], [1], [0, 0, 1, 1], [], []>} : vector<16x32xbf16>, vector<32x32xbf16>, vector<16x32xf32> -> vector<16x32xf32>
    %c2_195 = arith.constant 2 : index
    %c0_196 = arith.constant 0 : index
    %c0_197 = arith.constant 0 : index
    %349 = vector.load %arg7[%c2_195, %c0_196, %c0_197] : memref<4x1x32xf32, #tpu.memory_space<vmem>>, vector<1x1x32xf32>
    %350 = vector.shape_cast %349 : vector<1x1x32xf32> to vector<1x32xf32>
    %351 = vector.broadcast %350 : vector<1x32xf32> to vector<16x32xf32>
    %352 = arith.addf %348, %351 : vector<16x32xf32>
    %353 = arith.addf %291, %352 : vector<16x32xf32>
    %c2_198 = arith.constant 2 : index
    %c0_199 = arith.constant 0 : index
    %c0_200 = arith.constant 0 : index
    %354 = vector.load %arg8[%c2_198, %c0_199, %c0_200] : memref<4x1x32xf32, #tpu.memory_space<vmem>>, vector<1x1x32xf32>
    %355 = vector.shape_cast %354 : vector<1x1x32xf32> to vector<1x32xf32>
    %c2_201 = arith.constant 2 : index
    %c0_202 = arith.constant 0 : index
    %c0_203 = arith.constant 0 : index
    %356 = vector.load %arg9[%c2_201, %c0_202, %c0_203] : memref<4x1x32xf32, #tpu.memory_space<vmem>>, vector<1x1x32xf32>
    %357 = vector.shape_cast %356 : vector<1x1x32xf32> to vector<1x32xf32>
    %cst_204 = arith.constant dense<0.000000e+00> : vector<16xf32>
    %358 = vector.multi_reduction <add>, %353, %cst_204 [1] : vector<16x32xf32> to vector<16xf32>
    %359 = vector.shape_cast %358 : vector<16xf32> to vector<16x1xf32>
    %cst_205 = arith.constant 3.200000e+01 : f32
    %360 = vector.broadcast %cst_205 : f32 to vector<16x1xf32>
    %361 = arith.divf %359, %360 : vector<16x1xf32>
    %362 = vector.broadcast %361 : vector<16x1xf32> to vector<16x32xf32>
    %363 = arith.subf %353, %362 : vector<16x32xf32>
    %364 = arith.mulf %363, %363 : vector<16x32xf32>
    %cst_206 = arith.constant dense<0.000000e+00> : vector<16xf32>
    %365 = vector.multi_reduction <add>, %364, %cst_206 [1] : vector<16x32xf32> to vector<16xf32>
    %366 = vector.shape_cast %365 : vector<16xf32> to vector<16x1xf32>
    %cst_207 = arith.constant 3.200000e+01 : f32
    %367 = vector.broadcast %cst_207 : f32 to vector<16x1xf32>
    %368 = arith.divf %366, %367 : vector<16x1xf32>
    %369 = vector.broadcast %361 : vector<16x1xf32> to vector<16x32xf32>
    %370 = arith.subf %353, %369 : vector<16x32xf32>
    %cst_208 = arith.constant 9.99999974E-6 : f32
    %371 = vector.broadcast %cst_208 : f32 to vector<16x1xf32>
    %372 = arith.addf %368, %371 : vector<16x1xf32>
    %373 = math.rsqrt %372 : vector<16x1xf32>
    %374 = vector.broadcast %373 : vector<16x1xf32> to vector<16x32xf32>
    %375 = arith.mulf %370, %374 : vector<16x32xf32>
    %376 = vector.broadcast %355 : vector<1x32xf32> to vector<16x32xf32>
    %377 = arith.mulf %375, %376 : vector<16x32xf32>
    %378 = vector.broadcast %357 : vector<1x32xf32> to vector<16x32xf32>
    %379 = arith.addf %377, %378 : vector<16x32xf32>
    %380 = arith.truncf %379 : vector<16x32xf32> to vector<16x32xbf16>
    %c2_209 = arith.constant 2 : index
    %c0_210 = arith.constant 0 : index
    %c0_211 = arith.constant 0 : index
    %381 = vector.load %arg10[%c2_209, %c0_210, %c0_211] : memref<4x32x128xbf16, #tpu.memory_space<vmem>>, vector<1x32x128xbf16>
    %382 = vector.shape_cast %381 : vector<1x32x128xbf16> to vector<32x128xbf16>
    %cst_212 = arith.constant dense<0.000000e+00> : vector<16x128xf32>
    %383 = tpu.matmul %380, %382, %cst_212 {dimension_numbers = #tpu.dot_dimension_numbers<[1], [0], [0], [1], [0, 0, 1, 1], [], []>} : vector<16x32xbf16>, vector<32x128xbf16>, vector<16x128xf32> -> vector<16x128xf32>
    %c2_213 = arith.constant 2 : index
    %c0_214 = arith.constant 0 : index
    %c0_215 = arith.constant 0 : index
    %384 = vector.load %arg11[%c2_213, %c0_214, %c0_215] : memref<4x1x128xf32, #tpu.memory_space<vmem>>, vector<1x1x128xf32>
    %385 = vector.shape_cast %384 : vector<1x1x128xf32> to vector<1x128xf32>
    %386 = vector.broadcast %385 : vector<1x128xf32> to vector<16x128xf32>
    %387 = arith.addf %383, %386 : vector<16x128xf32>
    %cst_216 = arith.constant 0.000000e+00 : f32
    %388 = vector.broadcast %cst_216 : f32 to vector<16x128xf32>
    %389 = arith.maximumf %387, %388 : vector<16x128xf32>
    %390 = arith.truncf %389 : vector<16x128xf32> to vector<16x128xbf16>
    %c2_217 = arith.constant 2 : index
    %c0_218 = arith.constant 0 : index
    %c0_219 = arith.constant 0 : index
    %391 = vector.load %arg12[%c2_217, %c0_218, %c0_219] : memref<4x128x32xbf16, #tpu.memory_space<vmem>>, vector<1x128x32xbf16>
    %392 = vector.shape_cast %391 : vector<1x128x32xbf16> to vector<128x32xbf16>
    %cst_220 = arith.constant dense<0.000000e+00> : vector<16x32xf32>
    %393 = tpu.matmul %390, %392, %cst_220 {dimension_numbers = #tpu.dot_dimension_numbers<[1], [0], [0], [1], [0, 0, 1, 1], [], []>} : vector<16x128xbf16>, vector<128x32xbf16>, vector<16x32xf32> -> vector<16x32xf32>
    %c2_221 = arith.constant 2 : index
    %c0_222 = arith.constant 0 : index
    %c0_223 = arith.constant 0 : index
    %394 = vector.load %arg13[%c2_221, %c0_222, %c0_223] : memref<4x1x32xf32, #tpu.memory_space<vmem>>, vector<1x1x32xf32>
    %395 = vector.shape_cast %394 : vector<1x1x32xf32> to vector<1x32xf32>
    %396 = vector.broadcast %395 : vector<1x32xf32> to vector<16x32xf32>
    %397 = arith.addf %393, %396 : vector<16x32xf32>
    %398 = arith.addf %379, %397 : vector<16x32xf32>
    %c2_224 = arith.constant 2 : index
    %c0_225 = arith.constant 0 : index
    %c0_226 = arith.constant 0 : index
    %399 = vector.load %arg14[%c2_224, %c0_225, %c0_226] : memref<4x1x32xf32, #tpu.memory_space<vmem>>, vector<1x1x32xf32>
    %400 = vector.shape_cast %399 : vector<1x1x32xf32> to vector<1x32xf32>
    %c2_227 = arith.constant 2 : index
    %c0_228 = arith.constant 0 : index
    %c0_229 = arith.constant 0 : index
    %401 = vector.load %arg15[%c2_227, %c0_228, %c0_229] : memref<4x1x32xf32, #tpu.memory_space<vmem>>, vector<1x1x32xf32>
    %402 = vector.shape_cast %401 : vector<1x1x32xf32> to vector<1x32xf32>
    %cst_230 = arith.constant dense<0.000000e+00> : vector<16xf32>
    %403 = vector.multi_reduction <add>, %398, %cst_230 [1] : vector<16x32xf32> to vector<16xf32>
    %404 = vector.shape_cast %403 : vector<16xf32> to vector<16x1xf32>
    %cst_231 = arith.constant 3.200000e+01 : f32
    %405 = vector.broadcast %cst_231 : f32 to vector<16x1xf32>
    %406 = arith.divf %404, %405 : vector<16x1xf32>
    %407 = vector.broadcast %406 : vector<16x1xf32> to vector<16x32xf32>
    %408 = arith.subf %398, %407 : vector<16x32xf32>
    %409 = arith.mulf %408, %408 : vector<16x32xf32>
    %cst_232 = arith.constant dense<0.000000e+00> : vector<16xf32>
    %410 = vector.multi_reduction <add>, %409, %cst_232 [1] : vector<16x32xf32> to vector<16xf32>
    %411 = vector.shape_cast %410 : vector<16xf32> to vector<16x1xf32>
    %cst_233 = arith.constant 3.200000e+01 : f32
    %412 = vector.broadcast %cst_233 : f32 to vector<16x1xf32>
    %413 = arith.divf %411, %412 : vector<16x1xf32>
    %414 = vector.broadcast %406 : vector<16x1xf32> to vector<16x32xf32>
    %415 = arith.subf %398, %414 : vector<16x32xf32>
    %cst_234 = arith.constant 9.99999974E-6 : f32
    %416 = vector.broadcast %cst_234 : f32 to vector<16x1xf32>
    %417 = arith.addf %413, %416 : vector<16x1xf32>
    %418 = math.rsqrt %417 : vector<16x1xf32>
    %419 = vector.broadcast %418 : vector<16x1xf32> to vector<16x32xf32>
    %420 = arith.mulf %415, %419 : vector<16x32xf32>
    %421 = vector.broadcast %400 : vector<1x32xf32> to vector<16x32xf32>
    %422 = arith.mulf %420, %421 : vector<16x32xf32>
    %423 = vector.broadcast %402 : vector<1x32xf32> to vector<16x32xf32>
    %424 = arith.addf %422, %423 : vector<16x32xf32>
    %425 = arith.truncf %424 : vector<16x32xf32> to vector<16x32xbf16>
    %c3 = arith.constant 3 : index
    %c0_235 = arith.constant 0 : index
    %c0_236 = arith.constant 0 : index
    %c0_237 = arith.constant 0 : index
    %426 = vector.load %arg4[%c3, %c0_235, %c0_236, %c0_237] : memref<4x3x32x32xbf16, #tpu.memory_space<vmem>>, vector<1x1x32x32xbf16>
    %427 = vector.shape_cast %426 : vector<1x1x32x32xbf16> to vector<32x32xbf16>
    %cst_238 = arith.constant dense<0.000000e+00> : vector<16x32xf32>
    %428 = tpu.matmul %425, %427, %cst_238 {dimension_numbers = #tpu.dot_dimension_numbers<[1], [0], [0], [1], [0, 0, 1, 1], [], []>} : vector<16x32xbf16>, vector<32x32xbf16>, vector<16x32xf32> -> vector<16x32xf32>
    %c3_239 = arith.constant 3 : index
    %c0_240 = arith.constant 0 : index
    %c0_241 = arith.constant 0 : index
    %c0_242 = arith.constant 0 : index
    %429 = vector.load %arg5[%c3_239, %c0_240, %c0_241, %c0_242] : memref<4x3x1x32xf32, #tpu.memory_space<vmem>>, vector<1x1x1x32xf32>
    %430 = vector.shape_cast %429 : vector<1x1x1x32xf32> to vector<1x32xf32>
    %431 = vector.broadcast %430 : vector<1x32xf32> to vector<16x32xf32>
    %432 = arith.addf %428, %431 : vector<16x32xf32>
    %c3_243 = arith.constant 3 : index
    %c1_244 = arith.constant 1 : index
    %c0_245 = arith.constant 0 : index
    %c0_246 = arith.constant 0 : index
    %433 = vector.load %arg4[%c3_243, %c1_244, %c0_245, %c0_246] : memref<4x3x32x32xbf16, #tpu.memory_space<vmem>>, vector<1x1x32x32xbf16>
    %434 = vector.shape_cast %433 : vector<1x1x32x32xbf16> to vector<32x32xbf16>
    %cst_247 = arith.constant dense<0.000000e+00> : vector<16x32xf32>
    %435 = tpu.matmul %425, %434, %cst_247 {dimension_numbers = #tpu.dot_dimension_numbers<[1], [0], [0], [1], [0, 0, 1, 1], [], []>} : vector<16x32xbf16>, vector<32x32xbf16>, vector<16x32xf32> -> vector<16x32xf32>
    %c3_248 = arith.constant 3 : index
    %c1_249 = arith.constant 1 : index
    %c0_250 = arith.constant 0 : index
    %c0_251 = arith.constant 0 : index
    %436 = vector.load %arg5[%c3_248, %c1_249, %c0_250, %c0_251] : memref<4x3x1x32xf32, #tpu.memory_space<vmem>>, vector<1x1x1x32xf32>
    %437 = vector.shape_cast %436 : vector<1x1x1x32xf32> to vector<1x32xf32>
    %438 = vector.broadcast %437 : vector<1x32xf32> to vector<16x32xf32>
    %439 = arith.addf %435, %438 : vector<16x32xf32>
    %c3_252 = arith.constant 3 : index
    %c2_253 = arith.constant 2 : index
    %c0_254 = arith.constant 0 : index
    %c0_255 = arith.constant 0 : index
    %440 = vector.load %arg4[%c3_252, %c2_253, %c0_254, %c0_255] : memref<4x3x32x32xbf16, #tpu.memory_space<vmem>>, vector<1x1x32x32xbf16>
    %441 = vector.shape_cast %440 : vector<1x1x32x32xbf16> to vector<32x32xbf16>
    %cst_256 = arith.constant dense<0.000000e+00> : vector<16x32xf32>
    %442 = tpu.matmul %425, %441, %cst_256 {dimension_numbers = #tpu.dot_dimension_numbers<[1], [0], [0], [1], [0, 0, 1, 1], [], []>} : vector<16x32xbf16>, vector<32x32xbf16>, vector<16x32xf32> -> vector<16x32xf32>
    %c3_257 = arith.constant 3 : index
    %c2_258 = arith.constant 2 : index
    %c0_259 = arith.constant 0 : index
    %c0_260 = arith.constant 0 : index
    %443 = vector.load %arg5[%c3_257, %c2_258, %c0_259, %c0_260] : memref<4x3x1x32xf32, #tpu.memory_space<vmem>>, vector<1x1x1x32xf32>
    %444 = vector.shape_cast %443 : vector<1x1x1x32xf32> to vector<1x32xf32>
    %445 = vector.broadcast %444 : vector<1x32xf32> to vector<16x32xf32>
    %446 = arith.addf %442, %445 : vector<16x32xf32>
    %447 = vector.shape_cast %432 : vector<16x32xf32> to vector<2x8x32xf32>
    %448 = vector.shape_cast %439 : vector<16x32xf32> to vector<2x8x32xf32>
    %449 = vector.shape_cast %446 : vector<16x32xf32> to vector<2x8x32xf32>
    %450 = vector.shape_cast %447 : vector<2x8x32xf32> to vector<2x8x1x32xf32>
    %451 = vector.shape_cast %448 : vector<2x8x32xf32> to vector<2x1x8x32xf32>
    %452 = vector.broadcast %450 : vector<2x8x1x32xf32> to vector<2x8x8x32xf32>
    %453 = vector.broadcast %451 : vector<2x1x8x32xf32> to vector<2x8x8x32xf32>
    %454 = arith.mulf %452, %453 : vector<2x8x8x32xf32>
    %455 = vector.shape_cast %454 : vector<2x8x8x32xf32> to vector<128x32xf32>
    %cst_261 = arith.constant dense<0.000000e+00> : vector<128x8xf32>
    %456 = tpu.matmul %455, %13, %cst_261 {dimension_numbers = #tpu.dot_dimension_numbers<[1], [0], [0], [1], [0, 0, 1, 1], [], []>} : vector<128x32xf32>, vector<32x8xf32>, vector<128x8xf32> -> vector<128x8xf32>
    %457 = vector.shape_cast %456 : vector<128x8xf32> to vector<2x8x8x8xf32>
    %458 = vector.broadcast %25 : vector<2x1x8x1xf32> to vector<2x8x8x8xf32>
    %459 = arith.addf %457, %458 : vector<2x8x8x8xf32>
    %cst_262 = arith.constant dense<0xFF800000> : vector<2x8x8xf32>
    %460 = vector.multi_reduction <maximumf>, %459, %cst_262 [2] : vector<2x8x8x8xf32> to vector<2x8x8xf32>
    %461 = vector.shape_cast %460 : vector<2x8x8xf32> to vector<2x8x1x8xf32>
    %462 = vector.broadcast %461 : vector<2x8x1x8xf32> to vector<2x8x8x8xf32>
    %463 = arith.subf %459, %462 : vector<2x8x8x8xf32>
    %464 = math.exp %463 : vector<2x8x8x8xf32>
    %cst_263 = arith.constant dense<0.000000e+00> : vector<2x8x8xf32>
    %465 = vector.multi_reduction <add>, %464, %cst_263 [2] : vector<2x8x8x8xf32> to vector<2x8x8xf32>
    %466 = vector.shape_cast %465 : vector<2x8x8xf32> to vector<2x8x1x8xf32>
    %467 = tpu.reciprocal %466 {approx = true} : vector<2x8x1x8xf32> -> vector<2x8x1x8xf32>
    %468 = vector.broadcast %467 : vector<2x8x1x8xf32> to vector<2x8x8x8xf32>
    %469 = arith.mulf %464, %468 : vector<2x8x8x8xf32>
    %470 = vector.shape_cast %469 : vector<2x8x8x8xf32> to vector<128x8xf32>
    %cst_264 = arith.constant dense<0.000000e+00> : vector<128x32xf32>
    %471 = tpu.matmul %470, %24, %cst_264 {dimension_numbers = #tpu.dot_dimension_numbers<[1], [0], [0], [1], [0, 0, 1, 1], [], []>} : vector<128x8xf32>, vector<8x32xf32>, vector<128x32xf32> -> vector<128x32xf32>
    %472 = vector.shape_cast %471 : vector<128x32xf32> to vector<2x8x8x32xf32>
    %473 = vector.shape_cast %449 : vector<2x8x32xf32> to vector<2x1x8x32xf32>
    %474 = vector.broadcast %473 : vector<2x1x8x32xf32> to vector<2x8x8x32xf32>
    %475 = arith.mulf %472, %474 : vector<2x8x8x32xf32>
    %cst_265 = arith.constant dense<0.000000e+00> : vector<2x8x32xf32>
    %476 = vector.multi_reduction <add>, %475, %cst_265 [2] : vector<2x8x8x32xf32> to vector<2x8x32xf32>
    %477 = vector.shape_cast %476 : vector<2x8x32xf32> to vector<16x32xf32>
    %478 = arith.truncf %477 : vector<16x32xf32> to vector<16x32xbf16>
    %c3_266 = arith.constant 3 : index
    %c0_267 = arith.constant 0 : index
    %c0_268 = arith.constant 0 : index
    %479 = vector.load %arg6[%c3_266, %c0_267, %c0_268] : memref<4x32x32xbf16, #tpu.memory_space<vmem>>, vector<1x32x32xbf16>
    %480 = vector.shape_cast %479 : vector<1x32x32xbf16> to vector<32x32xbf16>
    %cst_269 = arith.constant dense<0.000000e+00> : vector<16x32xf32>
    %481 = tpu.matmul %478, %480, %cst_269 {dimension_numbers = #tpu.dot_dimension_numbers<[1], [0], [0], [1], [0, 0, 1, 1], [], []>} : vector<16x32xbf16>, vector<32x32xbf16>, vector<16x32xf32> -> vector<16x32xf32>
    %c3_270 = arith.constant 3 : index
    %c0_271 = arith.constant 0 : index
    %c0_272 = arith.constant 0 : index
    %482 = vector.load %arg7[%c3_270, %c0_271, %c0_272] : memref<4x1x32xf32, #tpu.memory_space<vmem>>, vector<1x1x32xf32>
    %483 = vector.shape_cast %482 : vector<1x1x32xf32> to vector<1x32xf32>
    %484 = vector.broadcast %483 : vector<1x32xf32> to vector<16x32xf32>
    %485 = arith.addf %481, %484 : vector<16x32xf32>
    %486 = arith.addf %424, %485 : vector<16x32xf32>
    %c3_273 = arith.constant 3 : index
    %c0_274 = arith.constant 0 : index
    %c0_275 = arith.constant 0 : index
    %487 = vector.load %arg8[%c3_273, %c0_274, %c0_275] : memref<4x1x32xf32, #tpu.memory_space<vmem>>, vector<1x1x32xf32>
    %488 = vector.shape_cast %487 : vector<1x1x32xf32> to vector<1x32xf32>
    %c3_276 = arith.constant 3 : index
    %c0_277 = arith.constant 0 : index
    %c0_278 = arith.constant 0 : index
    %489 = vector.load %arg9[%c3_276, %c0_277, %c0_278] : memref<4x1x32xf32, #tpu.memory_space<vmem>>, vector<1x1x32xf32>
    %490 = vector.shape_cast %489 : vector<1x1x32xf32> to vector<1x32xf32>
    %cst_279 = arith.constant dense<0.000000e+00> : vector<16xf32>
    %491 = vector.multi_reduction <add>, %486, %cst_279 [1] : vector<16x32xf32> to vector<16xf32>
    %492 = vector.shape_cast %491 : vector<16xf32> to vector<16x1xf32>
    %cst_280 = arith.constant 3.200000e+01 : f32
    %493 = vector.broadcast %cst_280 : f32 to vector<16x1xf32>
    %494 = arith.divf %492, %493 : vector<16x1xf32>
    %495 = vector.broadcast %494 : vector<16x1xf32> to vector<16x32xf32>
    %496 = arith.subf %486, %495 : vector<16x32xf32>
    %497 = arith.mulf %496, %496 : vector<16x32xf32>
    %cst_281 = arith.constant dense<0.000000e+00> : vector<16xf32>
    %498 = vector.multi_reduction <add>, %497, %cst_281 [1] : vector<16x32xf32> to vector<16xf32>
    %499 = vector.shape_cast %498 : vector<16xf32> to vector<16x1xf32>
    %cst_282 = arith.constant 3.200000e+01 : f32
    %500 = vector.broadcast %cst_282 : f32 to vector<16x1xf32>
    %501 = arith.divf %499, %500 : vector<16x1xf32>
    %502 = vector.broadcast %494 : vector<16x1xf32> to vector<16x32xf32>
    %503 = arith.subf %486, %502 : vector<16x32xf32>
    %cst_283 = arith.constant 9.99999974E-6 : f32
    %504 = vector.broadcast %cst_283 : f32 to vector<16x1xf32>
    %505 = arith.addf %501, %504 : vector<16x1xf32>
    %506 = math.rsqrt %505 : vector<16x1xf32>
    %507 = vector.broadcast %506 : vector<16x1xf32> to vector<16x32xf32>
    %508 = arith.mulf %503, %507 : vector<16x32xf32>
    %509 = vector.broadcast %488 : vector<1x32xf32> to vector<16x32xf32>
    %510 = arith.mulf %508, %509 : vector<16x32xf32>
    %511 = vector.broadcast %490 : vector<1x32xf32> to vector<16x32xf32>
    %512 = arith.addf %510, %511 : vector<16x32xf32>
    %513 = arith.truncf %512 : vector<16x32xf32> to vector<16x32xbf16>
    %c3_284 = arith.constant 3 : index
    %c0_285 = arith.constant 0 : index
    %c0_286 = arith.constant 0 : index
    %514 = vector.load %arg10[%c3_284, %c0_285, %c0_286] : memref<4x32x128xbf16, #tpu.memory_space<vmem>>, vector<1x32x128xbf16>
    %515 = vector.shape_cast %514 : vector<1x32x128xbf16> to vector<32x128xbf16>
    %cst_287 = arith.constant dense<0.000000e+00> : vector<16x128xf32>
    %516 = tpu.matmul %513, %515, %cst_287 {dimension_numbers = #tpu.dot_dimension_numbers<[1], [0], [0], [1], [0, 0, 1, 1], [], []>} : vector<16x32xbf16>, vector<32x128xbf16>, vector<16x128xf32> -> vector<16x128xf32>
    %c3_288 = arith.constant 3 : index
    %c0_289 = arith.constant 0 : index
    %c0_290 = arith.constant 0 : index
    %517 = vector.load %arg11[%c3_288, %c0_289, %c0_290] : memref<4x1x128xf32, #tpu.memory_space<vmem>>, vector<1x1x128xf32>
    %518 = vector.shape_cast %517 : vector<1x1x128xf32> to vector<1x128xf32>
    %519 = vector.broadcast %518 : vector<1x128xf32> to vector<16x128xf32>
    %520 = arith.addf %516, %519 : vector<16x128xf32>
    %cst_291 = arith.constant 0.000000e+00 : f32
    %521 = vector.broadcast %cst_291 : f32 to vector<16x128xf32>
    %522 = arith.maximumf %520, %521 : vector<16x128xf32>
    %523 = arith.truncf %522 : vector<16x128xf32> to vector<16x128xbf16>
    %c3_292 = arith.constant 3 : index
    %c0_293 = arith.constant 0 : index
    %c0_294 = arith.constant 0 : index
    %524 = vector.load %arg12[%c3_292, %c0_293, %c0_294] : memref<4x128x32xbf16, #tpu.memory_space<vmem>>, vector<1x128x32xbf16>
    %525 = vector.shape_cast %524 : vector<1x128x32xbf16> to vector<128x32xbf16>
    %cst_295 = arith.constant dense<0.000000e+00> : vector<16x32xf32>
    %526 = tpu.matmul %523, %525, %cst_295 {dimension_numbers = #tpu.dot_dimension_numbers<[1], [0], [0], [1], [0, 0, 1, 1], [], []>} : vector<16x128xbf16>, vector<128x32xbf16>, vector<16x32xf32> -> vector<16x32xf32>
    %c3_296 = arith.constant 3 : index
    %c0_297 = arith.constant 0 : index
    %c0_298 = arith.constant 0 : index
    %527 = vector.load %arg13[%c3_296, %c0_297, %c0_298] : memref<4x1x32xf32, #tpu.memory_space<vmem>>, vector<1x1x32xf32>
    %528 = vector.shape_cast %527 : vector<1x1x32xf32> to vector<1x32xf32>
    %529 = vector.broadcast %528 : vector<1x32xf32> to vector<16x32xf32>
    %530 = arith.addf %526, %529 : vector<16x32xf32>
    %531 = arith.addf %512, %530 : vector<16x32xf32>
    %c3_299 = arith.constant 3 : index
    %c0_300 = arith.constant 0 : index
    %c0_301 = arith.constant 0 : index
    %532 = vector.load %arg14[%c3_299, %c0_300, %c0_301] : memref<4x1x32xf32, #tpu.memory_space<vmem>>, vector<1x1x32xf32>
    %533 = vector.shape_cast %532 : vector<1x1x32xf32> to vector<1x32xf32>
    %c3_302 = arith.constant 3 : index
    %c0_303 = arith.constant 0 : index
    %c0_304 = arith.constant 0 : index
    %534 = vector.load %arg15[%c3_302, %c0_303, %c0_304] : memref<4x1x32xf32, #tpu.memory_space<vmem>>, vector<1x1x32xf32>
    %535 = vector.shape_cast %534 : vector<1x1x32xf32> to vector<1x32xf32>
    %cst_305 = arith.constant dense<0.000000e+00> : vector<16xf32>
    %536 = vector.multi_reduction <add>, %531, %cst_305 [1] : vector<16x32xf32> to vector<16xf32>
    %537 = vector.shape_cast %536 : vector<16xf32> to vector<16x1xf32>
    %cst_306 = arith.constant 3.200000e+01 : f32
    %538 = vector.broadcast %cst_306 : f32 to vector<16x1xf32>
    %539 = arith.divf %537, %538 : vector<16x1xf32>
    %540 = vector.broadcast %539 : vector<16x1xf32> to vector<16x32xf32>
    %541 = arith.subf %531, %540 : vector<16x32xf32>
    %542 = arith.mulf %541, %541 : vector<16x32xf32>
    %cst_307 = arith.constant dense<0.000000e+00> : vector<16xf32>
    %543 = vector.multi_reduction <add>, %542, %cst_307 [1] : vector<16x32xf32> to vector<16xf32>
    %544 = vector.shape_cast %543 : vector<16xf32> to vector<16x1xf32>
    %cst_308 = arith.constant 3.200000e+01 : f32
    %545 = vector.broadcast %cst_308 : f32 to vector<16x1xf32>
    %546 = arith.divf %544, %545 : vector<16x1xf32>
    %547 = vector.broadcast %539 : vector<16x1xf32> to vector<16x32xf32>
    %548 = arith.subf %531, %547 : vector<16x32xf32>
    %cst_309 = arith.constant 9.99999974E-6 : f32
    %549 = vector.broadcast %cst_309 : f32 to vector<16x1xf32>
    %550 = arith.addf %546, %549 : vector<16x1xf32>
    %551 = math.rsqrt %550 : vector<16x1xf32>
    %552 = vector.broadcast %551 : vector<16x1xf32> to vector<16x32xf32>
    %553 = arith.mulf %548, %552 : vector<16x32xf32>
    %554 = vector.broadcast %533 : vector<1x32xf32> to vector<16x32xf32>
    %555 = arith.mulf %553, %554 : vector<16x32xf32>
    %556 = vector.broadcast %535 : vector<1x32xf32> to vector<16x32xf32>
    %557 = arith.addf %555, %556 : vector<16x32xf32>
    %c0_310 = arith.constant 0 : index
    %c0_311 = arith.constant 0 : index
    %558 = vector.load %arg16[%c0_310, %c0_311] : memref<16x32xf32, #tpu.memory_space<vmem>>, vector<16x32xf32>
    tpu.vector_store %arg16[%c0_310, %c0_311], %557 {strides = array<i32>} : memref<16x32xf32, #tpu.memory_space<vmem>>, vector<16x32xf32>,
    return
  }
  func.func @transform_0(%arg0: i32) -> (i32, i32, i32, i32) {
    %c0_i32 = arith.constant 0 : i32
    %c0_i32_0 = arith.constant 0 : i32
    %c0_i32_1 = arith.constant 0 : i32
    %c0_i32_2 = arith.constant 0 : i32
    %c0_i32_3 = arith.constant 0 : i32
    return %c0_i32, %c0_i32_0, %c0_i32_1, %c0_i32_2 : i32, i32, i32, i32
  }
  func.func @transform_1(%arg0: i32) -> (i32, i32) {
    %c0_i32 = arith.constant 0 : i32
    %c0_i32_0 = arith.constant 0 : i32
    %c0_i32_1 = arith.constant 0 : i32
    return %c0_i32, %c0_i32_0 : i32, i32
  }
  func.func @transform_2(%arg0: i32) -> (i32, i32) {
    %c0_i32 = arith.constant 0 : i32
    %c0_i32_0 = arith.constant 0 : i32
    %c0_i32_1 = arith.constant 0 : i32
    return %c0_i32, %c0_i32_0 : i32, i32
  }
  func.func @transform_3(%arg0: i32) -> (i32, i32, i32, i32) {
    %c0_i32 = arith.constant 0 : i32
    %c0_i32_0 = arith.constant 0 : i32
    %c0_i32_1 = arith.constant 0 : i32
    %c0_i32_2 = arith.constant 0 : i32
    %c0_i32_3 = arith.constant 0 : i32
    return %c0_i32, %c0_i32_0, %c0_i32_1, %c0_i32_2 : i32, i32, i32, i32
  }
  func.func @transform_4(%arg0: i32) -> (i32, i32, i32, i32) {
    %c0_i32 = arith.constant 0 : i32
    %c0_i32_0 = arith.constant 0 : i32
    %c0_i32_1 = arith.constant 0 : i32
    %c0_i32_2 = arith.constant 0 : i32
    %c0_i32_3 = arith.constant 0 : i32
    return %c0_i32, %c0_i32_0, %c0_i32_1, %c0_i32_2 : i32, i32, i32, i32
  }
  func.func @transform_5(%arg0: i32) -> (i32, i32, i32) {
    %c0_i32 = arith.constant 0 : i32
    %c0_i32_0 = arith.constant 0 : i32
    %c0_i32_1 = arith.constant 0 : i32
    %c0_i32_2 = arith.constant 0 : i32
    return %c0_i32, %c0_i32_0, %c0_i32_1 : i32, i32, i32
  }
  func.func @transform_6(%arg0: i32) -> (i32, i32, i32) {
    %c0_i32 = arith.constant 0 : i32
    %c0_i32_0 = arith.constant 0 : i32
    %c0_i32_1 = arith.constant 0 : i32
    %c0_i32_2 = arith.constant 0 : i32
    return %c0_i32, %c0_i32_0, %c0_i32_1 : i32, i32, i32
  }
  func.func @transform_7(%arg0: i32) -> (i32, i32, i32) {
    %c0_i32 = arith.constant 0 : i32
    %c0_i32_0 = arith.constant 0 : i32
    %c0_i32_1 = arith.constant 0 : i32
    %c0_i32_2 = arith.constant 0 : i32
    return %c0_i32, %c0_i32_0, %c0_i32_1 : i32, i32, i32
  }
  func.func @transform_8(%arg0: i32) -> (i32, i32, i32) {
    %c0_i32 = arith.constant 0 : i32
    %c0_i32_0 = arith.constant 0 : i32
    %c0_i32_1 = arith.constant 0 : i32
    %c0_i32_2 = arith.constant 0 : i32
    return %c0_i32, %c0_i32_0, %c0_i32_1 : i32, i32, i32
  }
  func.func @transform_9(%arg0: i32) -> (i32, i32, i32) {
    %c0_i32 = arith.constant 0 : i32
    %c0_i32_0 = arith.constant 0 : i32
    %c0_i32_1 = arith.constant 0 : i32
    %c0_i32_2 = arith.constant 0 : i32
    return %c0_i32, %c0_i32_0, %c0_i32_1 : i32, i32, i32
  }
  func.func @transform_10(%arg0: i32) -> (i32, i32, i32) {
    %c0_i32 = arith.constant 0 : i32
    %c0_i32_0 = arith.constant 0 : i32
    %c0_i32_1 = arith.constant 0 : i32
    %c0_i32_2 = arith.constant 0 : i32
    return %c0_i32, %c0_i32_0, %c0_i32_1 : i32, i32, i32
  }
  func.func @transform_11(%arg0: i32) -> (i32, i32, i32) {
    %c0_i32 = arith.constant 0 : i32
    %c0_i32_0 = arith.constant 0 : i32
    %c0_i32_1 = arith.constant 0 : i32
    %c0_i32_2 = arith.constant 0 : i32
    return %c0_i32, %c0_i32_0, %c0_i32_1 : i32, i32, i32
  }
  func.func @transform_12(%arg0: i32) -> (i32, i32, i32) {
    %c0_i32 = arith.constant 0 : i32
    %c0_i32_0 = arith.constant 0 : i32
    %c0_i32_1 = arith.constant 0 : i32
    %c0_i32_2 = arith.constant 0 : i32
    return %c0_i32, %c0_i32_0, %c0_i32_1 : i32, i32, i32
  }
  func.func @transform_13(%arg0: i32) -> (i32, i32, i32) {
    %c0_i32 = arith.constant 0 : i32
    %c0_i32_0 = arith.constant 0 : i32
    %c0_i32_1 = arith.constant 0 : i32
    %c0_i32_2 = arith.constant 0 : i32
    return %c0_i32, %c0_i32_0, %c0_i32_1 : i32, i32, i32
  }
  func.func @transform_14(%arg0: i32) -> (i32, i32, i32) {
    %c0_i32 = arith.constant 0 : i32
    %c0_i32_0 = arith.constant 0 : i32
    %c0_i32_1 = arith.constant 0 : i32
    %c0_i32_2 = arith.constant 0 : i32
    return %c0_i32, %c0_i32_0, %c0_i32_1 : i32, i32, i32
  }
  func.func @transform_15(%arg0: i32) -> (i32, i32) {
    %c0_i32 = arith.constant 0 : i32
    %c0_i32_0 = arith.constant 0 : i32
    %c0_i32_1 = arith.constant 0 : i32
    return %c0_i32, %c0_i32_0 : i32, i32
  }
}

</mosaic_0001>

<llo_original>
// kernel: tpu_custom_call.1
$region0: #{tpu_custom_call.1}
  #allocation0 [shape = 'u32[]', space=smem, size = 0x4, offset = 0x4, fixed_abs, tag = 'smem constant byte address 0x4 - core index']
  #allocation1 [shape = 'u32[144,128]{1,0:T(1,128)}', space=vmem, size = 0x12000, scoped, tag = 'internal scratch']
  %s0 = inlined_call_operand.vmem [shape: f32[2,1,8,1], index: 0, kind: input, shape index: {}]
  %s1 = inlined_call_operand.vmem [shape: f32[16,32], index: 1, kind: input, shape index: {}]
  %s2 = inlined_call_operand.hbm [shape: f32[16,32], index: 2, kind: input, shape index: {}]
  %s3 = inlined_call_operand.vmem [shape: bf16[4,3,32,32], index: 3, kind: input, shape index: {}]
  %s4 = inlined_call_operand.vmem [shape: f32[4,3,1,32], index: 4, kind: input, shape index: {}]
  %s5 = inlined_call_operand.vmem [shape: bf16[4,32,32], index: 5, kind: input, shape index: {}]
  %s6 = inlined_call_operand.vmem [shape: f32[4,1,32], index: 6, kind: input, shape index: {}]
  %s7 = inlined_call_operand.vmem [shape: f32[4,1,32], index: 7, kind: input, shape index: {}]
  %s8 = inlined_call_operand.vmem [shape: f32[4,1,32], index: 8, kind: input, shape index: {}]
  %s9 = inlined_call_operand.vmem [shape: bf16[4,32,128], index: 9, kind: input, shape index: {}]
  %s10 = inlined_call_operand.vmem [shape: f32[4,1,128], index: 10, kind: input, shape index: {}]
  %s11 = inlined_call_operand.vmem [shape: bf16[4,128,32], index: 11, kind: input, shape index: {}]
  %s12 = inlined_call_operand.vmem [shape: f32[4,1,32], index: 12, kind: input, shape index: {}]
  %s13 = inlined_call_operand.vmem [shape: f32[4,1,32], index: 13, kind: input, shape index: {}]
  %s14 = inlined_call_operand.vmem [shape: f32[4,1,32], index: 14, kind: input, shape index: {}]
  %s15 = inlined_call_operand.hbm [shape: f32[16,32], index: 15, kind: output, shape index: {}]
  %s16 = sld [smem:[#allocation0]]
  $region74: #{tpu_custom_call.1} parent=0
    _
  %s18 = ssub.s32 1, %s16
  %s19 = scalar_select 0, %s18, %s16
  $region1: #{tpu_custom_call.1} parent=0
    #allocation2 [shape = 'u8[8192]{0}', space=vmem, size = 0x2000, scoped, tag = 'input window, operand 2, single buffered']
    #allocation3 [shape = 's32[1]{0}', space=sflag, size = 0x4, scoped, tag = 'scoped memory for tpu_custom_call.1']
    #allocation4 [shape = 's32[1]{0}', space=sflag, size = 0x4, scoped, tag = 'scoped memory for tpu_custom_call.1']
    #allocation5 [shape = 'u8[8192]{0}', space=vmem, size = 0x2000, scoped, tag = 'output window, operand 0, single buffered']
    %20 = vsyncpa [#allocation3], 0
    %21 = vsyncpa [#allocation4], 0
    // Predicated region
    $region2: #{tpu_custom_call.1} parent=1 // pred_check
      _
    $region3: #{tpu_custom_call.1} parent=1 // pred_check_branch
      %23 = sbr.rel (0) target = $region5
    $region4: #{tpu_custom_call.1} parent=1 // pred_region
      _
    $region5: #{tpu_custom_call.1} parent=1 // pred_fallthru
      _
    // Predicated region
    $region6: #{tpu_custom_call.1} parent=1 // pred_check
      _
    $region7: #{tpu_custom_call.1} parent=1 // pred_check_branch
      %25 = sbr.rel (0) target = $region9
    $region8: #{tpu_custom_call.1} parent=1 // pred_region
      _
    $region9: #{tpu_custom_call.1} parent=1 // pred_fallthru
      _
    // Predicated region
    $region10: #{tpu_custom_call.1} parent=1 // pred_check
      _
    $region11: #{tpu_custom_call.1} parent=1 // pred_check_branch
      %27 = sbr.rel (0) target = $region13
    $region12: #{tpu_custom_call.1} parent=1 // pred_region
      %s29 = ssub.s32 256, 256
      %30 = vsyncadd [#allocation3], %s29
      %s31 = sshll.u32 [#allocation2], 4
      %s32 = int_to_ptr.vmem [resolvable:$true] %s31
      %37 = dma.hbm_to_vmem [thread:$0]  %s2, 256, %s32, [#allocation3], 128, 128, 8
    $region13: #{tpu_custom_call.1} parent=1 // pred_fallthru
      _
    // Predicated region
    $region14: #{tpu_custom_call.1} parent=1 // pred_check
      _
    $region15: #{tpu_custom_call.1} parent=1 // pred_check_branch
      %39 = sbr.rel (0) target = $region17
    $region16: #{tpu_custom_call.1} parent=1 // pred_region
      _
    $region17: #{tpu_custom_call.1} parent=1 // pred_fallthru
      _
    // Predicated region
    $region18: #{tpu_custom_call.1} parent=1 // pred_check
      _
    $region19: #{tpu_custom_call.1} parent=1 // pred_check_branch
      %41 = sbr.rel (0) target = $region21
    $region20: #{tpu_custom_call.1} parent=1 // pred_region
      _
    $region21: #{tpu_custom_call.1} parent=1 // pred_fallthru
      _
    // Predicated region
    $region22: #{tpu_custom_call.1} parent=1 // pred_check
      _
    $region23: #{tpu_custom_call.1} parent=1 // pred_check_branch
      %43 = sbr.rel (0) target = $region25
    $region24: #{tpu_custom_call.1} parent=1 // pred_region
      _
    $region25: #{tpu_custom_call.1} parent=1 // pred_fallthru
      _
    // Predicated region
    $region26: #{tpu_custom_call.1} parent=1 // pred_check
      _
    $region27: #{tpu_custom_call.1} parent=1 // pred_check_branch
      %45 = sbr.rel (0) target = $region29
    $region28: #{tpu_custom_call.1} parent=1 // pred_region
      _
    $region29: #{tpu_custom_call.1} parent=1 // pred_fallthru
      _
    // Predicated region
    $region30: #{tpu_custom_call.1} parent=1 // pred_check
      _
    $region31: #{tpu_custom_call.1} parent=1 // pred_check_branch
      %47 = sbr.rel (0) target = $region33
    $region32: #{tpu_custom_call.1} parent=1 // pred_region
      _
    $region33: #{tpu_custom_call.1} parent=1 // pred_fallthru
      _
    // Predicated region
    $region34: #{tpu_custom_call.1} parent=1 // pred_check
      _
    $region35: #{tpu_custom_call.1} parent=1 // pred_check_branch
      %49 = sbr.rel (0) target = $region37
    $region36: #{tpu_custom_call.1} parent=1 // pred_region
      _
    $region37: #{tpu_custom_call.1} parent=1 // pred_fallthru
      _
    // Predicated region
    $region38: #{tpu_custom_call.1} parent=1 // pred_check
      _
    $region39: #{tpu_custom_call.1} parent=1 // pred_check_branch
      %51 = sbr.rel (0) target = $region41
    $region40: #{tpu_custom_call.1} parent=1 // pred_region
      _
    $region41: #{tpu_custom_call.1} parent=1 // pred_fallthru
      _
    // Predicated region
    $region42: #{tpu_custom_call.1} parent=1 // pred_check
      _
    $region43: #{tpu_custom_call.1} parent=1 // pred_check_branch
      %53 = sbr.rel (0) target = $region45
    $region44: #{tpu_custom_call.1} parent=1 // pred_region
      _
    $region45: #{tpu_custom_call.1} parent=1 // pred_fallthru
      _
    // Predicated region
    $region46: #{tpu_custom_call.1} parent=1 // pred_check
      _
    $region47: #{tpu_custom_call.1} parent=1 // pred_check_branch
      %55 = sbr.rel (0) target = $region49
    $region48: #{tpu_custom_call.1} parent=1 // pred_region
      _
    $region49: #{tpu_custom_call.1} parent=1 // pred_fallthru
      _
    // Predicated region
    $region50: #{tpu_custom_call.1} parent=1 // pred_check
      _
    $region51: #{tpu_custom_call.1} parent=1 // pred_check_branch
      %57 = sbr.rel (0) target = $region53
    $region52: #{tpu_custom_call.1} parent=1 // pred_region
      _
    $region53: #{tpu_custom_call.1} parent=1 // pred_fallthru
      _
    // Predicated region
    $region54: #{tpu_custom_call.1} parent=1 // pred_check
      _
    $region55: #{tpu_custom_call.1} parent=1 // pred_check_branch
      %59 = sbr.rel (0) target = $region57
    $region56: #{tpu_custom_call.1} parent=1 // pred_region
      _
    $region57: #{tpu_custom_call.1} parent=1 // pred_fallthru
      _
    // Predicated region
    $region58: #{tpu_custom_call.1} parent=1 // pred_check
      _
    $region59: #{tpu_custom_call.1} parent=1 // pred_check_branch
      %61 = sbr.rel (0) target = $region61
    $region60: #{tpu_custom_call.1} parent=1 // pred_region
      _
    $region61: #{tpu_custom_call.1} parent=1 // pred_fallthru
      _
    // Predicated region
    $region62: #{tpu_custom_call.1} parent=1 // pred_check
      _
    $region63: #{tpu_custom_call.1} parent=1 // pred_check_branch
      %63 = sbr.rel (0) target = $region65
    $region64: #{tpu_custom_call.1} parent=1 // pred_region
      %64 = dma.done [#allocation3], 256
    $region65: #{tpu_custom_call.1} parent=1 // pred_fallthru
      _
    %v66 = vld [vmem:[%s1] sm:$0xff]
    %v67 = vld [vmem:[%s1 + $0x8] sm:$0xff]
    %v68 = vld [vmem:[#allocation2] sm:$0xff]
    %v69 = vld [vmem:[#allocation2 + $0x8] sm:$0xff]
    %v70 = vadd.f32 %v66, %v68
    %v71 = vadd.f32 %v67, %v69
    %v72 = vlaneseq
    %v73 = vshrl.u32 %v72, 7
    %v74 = vadd.s32 %v73, 8
    %v75 = vadd.s32 %v73, 16
    %v76 = vadd.s32 %v73, 24
    %v77 = vlaneseq
    %v78 = vand.u32 %v77, 127
    %v79 = vmul.u32 %v78, 4
    %vm80 = vcmp.ge.s32.totalorder %v73, %v79
    %vm81 = vcmp.ge.s32.totalorder %v74, %v79
    %vm82 = vcmp.ge.s32.totalorder %v75, %v79
    %vm83 = vcmp.ge.s32.totalorder %v76, %v79
    %v84 = vadd.s32 %v79, 4
    %vm85 = vcmp.lt.s32.totalorder %v73, %v84
    %vm86 = vcmp.lt.s32.totalorder %v74, %v84
    %vm87 = vcmp.lt.s32.totalorder %v75, %v84
    %vm88 = vcmp.lt.s32.totalorder %v76, %v84
    %vm89 = vmand %vm80, %vm85
    %vm90 = vmand %vm81, %vm86
    %vm91 = vmand %vm82, %vm87
    %vm92 = vmand %vm83, %vm88
    %v93 = vsel %vm89, 1, 0
    %v94 = vsel %vm90, 1, 0
    %v95 = vsel %vm91, 1, 0
    %v96 = vsel %vm92, 1, 0
    %v97 = vcvt.s32.f32 %v93
    %v98 = vcvt.s32.f32 %v94
    %v99 = vcvt.s32.f32 %v95
    %v100 = vcvt.s32.f32 %v96
    %v101 = vmul.u32 %v73, 4
    %vm102 = vcmp.ge.s32.totalorder %v78, %v101
    %v103 = vadd.s32 %v101, 4
    %vm104 = vcmp.lt.s32.totalorder %v78, %v103
    %vm105 = vmand %vm102, %vm104
    %v106 = vsel %vm105, 1, 0
    %v107 = vcvt.s32.f32 %v106
    %v108 = vld [vmem:[%s0] sm:$0xff]
    %v109 = vld [vmem:[%s0 + $0x8] sm:$0xff]
    %v110 = vpack.c.bf16 %v71, %v70
    %v111 = vld [vmem:[%s3] sm:$0xf]
    %v112 = vld [vmem:[%s3 + $0x4] sm:$0xf]
    %v113 = vld [vmem:[%s3 + $0x8] sm:$0xf]
    %v114 = vld [vmem:[%s3 + $0xc] sm:$0xf]
    %v115 = vld [vmem:[%s4] sm:$0x1]
    %v117 = vlaneseq
    %v118 = vshrl.u32 %v117, 7
    %v119 = vsub.s32 0, %v118
    %v120 = vrot.slane %v115, %v119
    %v126 = vunpack.c.l.b16 %v111
    %v127 = vunpack.c.l.b16 %v112
    %v128 = vunpack.c.l.b16 %v113
    %v129 = vunpack.c.l.b16 %v114
    %v130 = vpack.c.b16 %v127, %v126
    %v131 = vpack.c.b16 %v129, %v128
    %vm134 = vcmask 261120
    %v136 = vsel %vm134, %v110, 0
    %138 = vmatprep.subr.bf16.mxu0 0
    %139 = vmatpush1.bf16.msra.mxu0 %v130
    %140 = vmatprep.subr.bf16.mxu0 0
    %141 = vmatpush1.bf16.msra.mxu0 %v131
    %142 = vmatprep.subr.bf16.mxu0 0
    %143 = vmatpush1.bf16.msra.mxu0 0
    %144 = vmatprep.subr.bf16.mxu0 0
    %145 = vmatpush1.bf16.msra.mxu0 0
    %146 = vmatprep.subr.bf16.mxu0 0
    %147 = vmatpush1.bf16.msra.mxu0 0
    %148 = vmatprep.subr.bf16.mxu0 0
    %149 = vmatpush1.bf16.msra.mxu0 0
    %150 = vmatprep.subr.bf16.mxu0 0
    %151 = vmatpush1.bf16.msra.mxu0 0
    %152 = vmatprep.subr.bf16.mxu0 0
    %153 = vmatpush1.bf16.msra.mxu0 0
    %154 = vmatprep.subr.bf16.mxu0 0
    %155 = vmatpush1.bf16.msra.mxu0 0
    %156 = vmatprep.subr.bf16.mxu0 0
    %157 = vmatpush1.bf16.msra.mxu0 0
    %158 = vmatprep.subr.bf16.mxu0 0
    %159 = vmatpush1.bf16.msra.mxu0 0
    %160 = vmatprep.subr.bf16.mxu0 0
    %161 = vmatpush1.bf16.msra.mxu0 0
    %162 = vmatprep.subr.bf16.mxu0 0
    %163 = vmatpush1.bf16.msra.mxu0 0
    %164 = vmatprep.subr.bf16.mxu0 0
    %165 = vmatpush1.bf16.msra.mxu0 0
    %166 = vmatprep.subr.bf16.mxu0 0
    %167 = vmatpush1.bf16.msra.mxu0 0
    %168 = vmatprep.subr.bf16.mxu0 0
    %169 = vmatpush1.bf16.msra.mxu0 0
    %170 = vmatprep.mubr.bf16.mxu0 0
    %171 = vmatmul.mubr.bf16.gmra.mrb[0].mxu0 %v136
    %v172 = vpop.f32.mrb[0].mxu0
    %v173 = vadd.f32 %v120, %v172
    %v174 = vpop.f32.mrb[0].mxu0
    %v175 = vpop.f32.mrb[0].mxu0
    %v176 = vadd.f32 %v120, %v175
    %v177 = vpop.f32.mrb[0].mxu0
    %178 = vdwg.mxu0
    %s179 = scalar_lea.vmem %s3, 16
    %v180 = vld [vmem:[%s179] sm:$0xf]
    %v181 = vld [vmem:[%s179 + $0x4] sm:$0xf]
    %v182 = vld [vmem:[%s179 + $0x8] sm:$0xf]
    %v183 = vld [vmem:[%s179 + $0xc] sm:$0xf]
    %s184 = scalar_lea.vmem %s4, 1
    %v185 = vld [vmem:[%s184] sm:$0x1]
    %v187 = vlaneseq
    %v188 = vshrl.u32 %v187, 7
    %v189 = vsub.s32 0, %v188
    %v190 = vrot.slane %v185, %v189
    %v196 = vunpack.c.l.b16 %v180
    %v197 = vunpack.c.l.b16 %v181
    %v198 = vunpack.c.l.b16 %v182
    %v199 = vunpack.c.l.b16 %v183
    %v200 = vpack.c.b16 %v197, %v196
    %v201 = vpack.c.b16 %v199, %v198
    %204 = vmatprep.subr.bf16.mxu0 0
    %205 = vmatpush1.bf16.msra.mxu0 %v200
    %206 = vmatprep.subr.bf16.mxu0 0
    %207 = vmatpush1.bf16.msra.mxu0 %v201
    %208 = vmatprep.subr.bf16.mxu0 0
    %209 = vmatpush1.bf16.msra.mxu0 0
    %210 = vmatprep.subr.bf16.mxu0 0
    %211 = vmatpush1.bf16.msra.mxu0 0
    %212 = vmatprep.subr.bf16.mxu0 0
    %213 = vmatpush1.bf16.msra.mxu0 0
    %214 = vmatprep.subr.bf16.mxu0 0
    %215 = vmatpush1.bf16.msra.mxu0 0
    %216 = vmatprep.subr.bf16.mxu0 0
    %217 = vmatpush1.bf16.msra.mxu0 0
    %218 = vmatprep.subr.bf16.mxu0 0
    %219 = vmatpush1.bf16.msra.mxu0 0
    %220 = vmatprep.subr.bf16.mxu0 0
    %221 = vmatpush1.bf16.msra.mxu0 0
    %222 = vmatprep.subr.bf16.mxu0 0
    %223 = vmatpush1.bf16.msra.mxu0 0
    %224 = vmatprep.subr.bf16.mxu0 0
    %225 = vmatpush1.bf16.msra.mxu0 0
    %226 = vmatprep.subr.bf16.mxu0 0
    %227 = vmatpush1.bf16.msra.mxu0 0
    %228 = vmatprep.subr.bf16.mxu0 0
    %229 = vmatpush1.bf16.msra.mxu0 0
    %230 = vmatprep.subr.bf16.mxu0 0
    %231 = vmatpush1.bf16.msra.mxu0 0
    %232 = vmatprep.subr.bf16.mxu0 0
    %233 = vmatpush1.bf16.msra.mxu0 0
    %234 = vmatprep.subr.bf16.mxu0 0
    %235 = vmatpush1.bf16.msra.mxu0 0
    %236 = vmatprep.mubr.bf16.mxu0 0
    %237 = vmatmul.mubr.bf16.gmra.mrb[0].mxu0 %v136
    %v238 = vpop.f32.mrb[0].mxu0
    %v239 = vadd.f32 %v190, %v238
    %v240 = vpop.f32.mrb[0].mxu0
    %v241 = vpop.f32.mrb[0].mxu0
    %v242 = vadd.f32 %v190, %v241
    %v243 = vpop.f32.mrb[0].mxu0
    %244 = vdwg.mxu0
    %s245 = scalar_lea.vmem %s3, 32
    %v246 = vld [vmem:[%s245] sm:$0xf]
    %v247 = vld [vmem:[%s245 + $0x4] sm:$0xf]
    %v248 = vld [vmem:[%s245 + $0x8] sm:$0xf]
    %v249 = vld [vmem:[%s245 + $0xc] sm:$0xf]
    %s250 = scalar_lea.vmem %s4, 2
    %v251 = vld [vmem:[%s250] sm:$0x1]
    %v253 = vlaneseq
    %v254 = vshrl.u32 %v253, 7
    %v255 = vsub.s32 0, %v254
    %v256 = vrot.slane %v251, %v255
    %v262 = vunpack.c.l.b16 %v246
    %v263 = vunpack.c.l.b16 %v247
    %v264 = vunpack.c.l.b16 %v248
    %v265 = vunpack.c.l.b16 %v249
    %v266 = vpack.c.b16 %v263, %v262
    %v267 = vpack.c.b16 %v265, %v264
    %270 = vmatprep.subr.bf16.mxu0 0
    %271 = vmatpush1.bf16.msra.mxu0 %v266
    %272 = vmatprep.subr.bf16.mxu0 0
    %273 = vmatpush1.bf16.msra.mxu0 %v267
    %274 = vmatprep.subr.bf16.mxu0 0
    %275 = vmatpush1.bf16.msra.mxu0 0
    %276 = vmatprep.subr.bf16.mxu0 0
    %277 = vmatpush1.bf16.msra.mxu0 0
    %278 = vmatprep.subr.bf16.mxu0 0
    %279 = vmatpush1.bf16.msra.mxu0 0
    %280 = vmatprep.subr.bf16.mxu0 0
    %281 = vmatpush1.bf16.msra.mxu0 0
    %282 = vmatprep.subr.bf16.mxu0 0
    %283 = vmatpush1.bf16.msra.mxu0 0
    %284 = vmatprep.subr.bf16.mxu0 0
    %285 = vmatpush1.bf16.msra.mxu0 0
    %286 = vmatprep.subr.bf16.mxu0 0
    %287 = vmatpush1.bf16.msra.mxu0 0
    %288 = vmatprep.subr.bf16.mxu0 0
    %289 = vmatpush1.bf16.msra.mxu0 0
    %290 = vmatprep.subr.bf16.mxu0 0
    %291 = vmatpush1.bf16.msra.mxu0 0
    %292 = vmatprep.subr.bf16.mxu0 0
    %293 = vmatpush1.bf16.msra.mxu0 0
    %294 = vmatprep.subr.bf16.mxu0 0
    %295 = vmatpush1.bf16.msra.mxu0 0
    %296 = vmatprep.subr.bf16.mxu0 0
    %297 = vmatpush1.bf16.msra.mxu0 0
    %298 = vmatprep.subr.bf16.mxu0 0
    %299 = vmatpush1.bf16.msra.mxu0 0
    %300 = vmatprep.subr.bf16.mxu0 0
    %301 = vmatpush1.bf16.msra.mxu0 0
    %302 = vmatprep.mubr.bf16.mxu0 0
    %303 = vmatmul.mubr.bf16.gmra.mrb[0].mxu0 %v136
    %v304 = vpop.f32.mrb[0].mxu0
    %v305 = vadd.f32 %v256, %v304
    %v306 = vpop.f32.mrb[0].mxu0
    %v307 = vpop.f32.mrb[0].mxu0
    %v308 = vadd.f32 %v256, %v307
    %v309 = vpop.f32.mrb[0].mxu0
    %310 = vdwg.mxu0
    %v313 = vcombine.high %v173, %v173
    %v315 = vunpack.c.l.s4 1966171168
    %v316 = vunpack.c.0.s8 %v315
    %v317 = vlaneseq
    %v318 = vshrl.u32 %v317, 7
    %v319 = vsub.s32 %v316, %v318
    %v320 = vrot.slane %v173, %v319
    %v322 = vunpack.c.l.s4 1966171168
    %v323 = vunpack.c.0.s8 %v322
    %v324 = vlaneseq
    %v325 = vshrl.u32 %v324, 7
    %v326 = vsub.s32 %v323, %v325
    %v327 = vrot.slane %v313, %v326
    %v328 = vcombine.high %v320, %v320
    %v329 = vcombine.high %v327, %v327
    %v331 = vunpack.c.l.s4 1966171168
    %v332 = vunpack.c.0.s8 %v331
    %v333 = vlaneseq
    %v334 = vshrl.u32 %v333, 7
    %v335 = vsub.s32 %v332, %v334
    %v336 = vrot.slane %v320, %v335
    %v338 = vunpack.c.l.s4 1966171168
    %v339 = vunpack.c.0.s8 %v338
    %v340 = vlaneseq
    %v341 = vshrl.u32 %v340, 7
    %v342 = vsub.s32 %v339, %v341
    %v343 = vrot.slane %v327, %v342
    %v345 = vunpack.c.l.s4 1966171168
    %v346 = vunpack.c.0.s8 %v345
    %v347 = vlaneseq
    %v348 = vshrl.u32 %v347, 7
    %v349 = vsub.s32 %v346, %v348
    %v350 = vrot.slane %v328, %v349
    %v352 = vunpack.c.l.s4 1966171168
    %v353 = vunpack.c.0.s8 %v352
    %v354 = vlaneseq
    %v355 = vshrl.u32 %v354, 7
    %v356 = vsub.s32 %v353, %v355
    %v357 = vrot.slane %v329, %v356
    %v358 = vcombine.high %v336, %v336
    %v359 = vcombine.high %v343, %v343
    %v360 = vcombine.high %v350, %v350
    %v361 = vcombine.high %v357, %v357
    %v362 = vcombine.high %v176, %v176
    %v364 = vunpack.c.l.s4 1966171168
    %v365 = vunpack.c.0.s8 %v364
    %v366 = vlaneseq
    %v367 = vshrl.u32 %v366, 7
    %v368 = vsub.s32 %v365, %v367
    %v369 = vrot.slane %v176, %v368
    %v371 = vunpack.c.l.s4 1966171168
    %v372 = vunpack.c.0.s8 %v371
    %v373 = vlaneseq
    %v374 = vshrl.u32 %v373, 7
    %v375 = vsub.s32 %v372, %v374
    %v376 = vrot.slane %v362, %v375
    %v377 = vcombine.high %v369, %v369
    %v378 = vcombine.high %v376, %v376
    %v380 = vunpack.c.l.s4 1966171168
    %v381 = vunpack.c.0.s8 %v380
    %v382 = vlaneseq
    %v383 = vshrl.u32 %v382, 7
    %v384 = vsub.s32 %v381, %v383
    %v385 = vrot.slane %v369, %v384
    %v387 = vunpack.c.l.s4 1966171168
    %v388 = vunpack.c.0.s8 %v387
    %v389 = vlaneseq
    %v390 = vshrl.u32 %v389, 7
    %v391 = vsub.s32 %v388, %v390
    %v392 = vrot.slane %v376, %v391
    %v394 = vunpack.c.l.s4 1966171168
    %v395 = vunpack.c.0.s8 %v394
    %v396 = vlaneseq
    %v397 = vshrl.u32 %v396, 7
    %v398 = vsub.s32 %v395, %v397
    %v399 = vrot.slane %v377, %v398
    %v401 = vunpack.c.l.s4 1966171168
    %v402 = vunpack.c.0.s8 %v401
    %v403 = vlaneseq
    %v404 = vshrl.u32 %v403, 7
    %v405 = vsub.s32 %v402, %v404
    %v406 = vrot.slane %v378, %v405
    %v407 = vcombine.high %v385, %v385
    %v408 = vcombine.high %v392, %v392
    %v409 = vcombine.high %v399, %v399
    %v410 = vcombine.high %v406, %v406
    %v411 = vlaneseq
    %v412 = vshrl.u32 %v411, 7
    %v413 = vsub.s32 0, %v412
    %v414 = vrot.slane %v336, %v413
    %v415 = vlaneseq
    %v416 = vshrl.u32 %v415, 7
    %v417 = vsub.s32 0, %v416
    %v418 = vrot.slane %v350, %v417
    %v419 = vlaneseq
    %v420 = vshrl.u32 %v419, 7
    %v421 = vsub.s32 0, %v420
    %v422 = vrot.slane %v358, %v421
    %v423 = vlaneseq
    %v424 = vshrl.u32 %v423, 7
    %v425 = vsub.s32 0, %v424
    %v426 = vrot.slane %v360, %v425
    %v427 = vlaneseq
    %v428 = vshrl.u32 %v427, 7
    %v429 = vsub.s32 0, %v428
    %v430 = vrot.slane %v343, %v429
    %v431 = vlaneseq
    %v432 = vshrl.u32 %v431, 7
    %v433 = vsub.s32 0, %v432
    %v434 = vrot.slane %v357, %v433
    %v435 = vlaneseq
    %v436 = vshrl.u32 %v435, 7
    %v437 = vsub.s32 0, %v436
    %v438 = vrot.slane %v359, %v437
    %v439 = vlaneseq
    %v440 = vshrl.u32 %v439, 7
    %v441 = vsub.s32 0, %v440
    %v442 = vrot.slane %v361, %v441
    %v443 = vlaneseq
    %v444 = vshrl.u32 %v443, 7
    %v445 = vsub.s32 0, %v444
    %v446 = vrot.slane %v385, %v445
    %v447 = vlaneseq
    %v448 = vshrl.u32 %v447, 7
    %v449 = vsub.s32 0, %v448
    %v450 = vrot.slane %v399, %v449
    %v451 = vlaneseq
    %v452 = vshrl.u32 %v451, 7
    %v453 = vsub.s32 0, %v452
    %v454 = vrot.slane %v407, %v453
    %v455 = vlaneseq
    %v456 = vshrl.u32 %v455, 7
    %v457 = vsub.s32 0, %v456
    %v458 = vrot.slane %v409, %v457
    %v459 = vlaneseq
    %v460 = vshrl.u32 %v459, 7
    %v461 = vsub.s32 0, %v460
    %v462 = vrot.slane %v392, %v461
    %v463 = vlaneseq
    %v464 = vshrl.u32 %v463, 7
    %v465 = vsub.s32 0, %v464
    %v466 = vrot.slane %v406, %v465
    %v467 = vlaneseq
    %v468 = vshrl.u32 %v467, 7
    %v469 = vsub.s32 0, %v468
    %v470 = vrot.slane %v408, %v469
    %v471 = vlaneseq
    %v472 = vshrl.u32 %v471, 7
    %v473 = vsub.s32 0, %v472
    %v474 = vrot.slane %v410, %v473
    %v491 = vmul.f32 %v414, %v239
    %v492 = vmul.f32 %v418, %v239
    %v493 = vmul.f32 %v422, %v239
    %v494 = vmul.f32 %v426, %v239
    %v495 = vmul.f32 %v430, %v239
    %v496 = vmul.f32 %v434, %v239
    %v497 = vmul.f32 %v438, %v239
    %v498 = vmul.f32 %v442, %v239
    %v499 = vmul.f32 %v446, %v242
    %v500 = vmul.f32 %v450, %v242
    %v501 = vmul.f32 %v454, %v242
    %v502 = vmul.f32 %v458, %v242
    %v503 = vmul.f32 %v462, %v242
    %v504 = vmul.f32 %v466, %v242
    %v505 = vmul.f32 %v470, %v242
    %v506 = vmul.f32 %v474, %v242
    %v508 = vsel %vm134, %v491, 0
    %v511 = vsel %vm134, %v492, 0
    %v514 = vsel %vm134, %v493, 0
    %v517 = vsel %vm134, %v494, 0
    %v520 = vsel %vm134, %v495, 0
    %v523 = vsel %vm134, %v496, 0
    %v526 = vsel %vm134, %v497, 0
    %v529 = vsel %vm134, %v498, 0
    %v532 = vsel %vm134, %v499, 0
    %v535 = vsel %vm134, %v500, 0
    %v538 = vsel %vm134, %v501, 0
    %v541 = vsel %vm134, %v502, 0
    %v544 = vsel %vm134, %v503, 0
    %v547 = vsel %vm134, %v504, 0
    %v550 = vsel %vm134, %v505, 0
    %v553 = vsel %vm134, %v506, 0
    %555 = vmatprep.subr.mxu0 0.0
    %556 = vmatpush1.msra.mxu0 %v97
    %557 = vmatprep.subr.mxu0 0.0
    %558 = vmatpush1.msra.mxu0 %v98
    %559 = vmatprep.subr.mxu0 0.0
    %560 = vmatpush1.msra.mxu0 %v99
    %561 = vmatprep.subr.mxu0 0.0
    %562 = vmatpush1.msra.mxu0 %v100
    %563 = vmatprep.subr.mxu0 0.0
    %564 = vmatpush1.msra.mxu0 0.0
    %565 = vmatprep.subr.mxu0 0.0
    %566 = vmatpush1.msra.mxu0 0.0
    %567 = vmatprep.subr.mxu0 0.0
    %568 = vmatpush1.msra.mxu0 0.0
    %569 = vmatprep.subr.mxu0 0.0
    %570 = vmatpush1.msra.mxu0 0.0
    %571 = vmatprep.subr.mxu0 0.0
    %572 = vmatpush1.msra.mxu0 0.0
    %573 = vmatprep.subr.mxu0 0.0
    %574 = vmatpush1.msra.mxu0 0.0
    %575 = vmatprep.subr.mxu0 0.0
    %576 = vmatpush1.msra.mxu0 0.0
    %577 = vmatprep.subr.mxu0 0.0
    %578 = vmatpush1.msra.mxu0 0.0
    %579 = vmatprep.subr.mxu0 0.0
    %580 = vmatpush1.msra.mxu0 0.0
    %581 = vmatprep.subr.mxu0 0.0
    %582 = vmatpush1.msra.mxu0 0.0
    %583 = vmatprep.subr.mxu0 0.0
    %584 = vmatpush1.msra.mxu0 0.0
    %585 = vmatprep.subr.mxu0 0.0
    %586 = vmatpush1.msra.mxu0 0.0
    %587 = vmatprep.subr.mxu0 0.0
    %588 = vmatpush1.msra.mxu0 0.0
    %589 = vmatprep.subr.mxu0 0.0
    %590 = vmatpush1.msra.mxu0 0.0
    %591 = vmatprep.subr.mxu0 0.0
    %592 = vmatpush1.msra.mxu0 0.0
    %593 = vmatprep.subr.mxu0 0.0
    %594 = vmatpush1.msra.mxu0 0.0
    %595 = vmatprep.subr.mxu0 0.0
    %596 = vmatpush1.msra.mxu0 0.0
    %597 = vmatprep.subr.mxu0 0.0
    %598 = vmatpush1.msra.mxu0 0.0
    %599 = vmatprep.subr.mxu0 0.0
    %600 = vmatpush1.msra.mxu0 0.0
    %601 = vmatprep.subr.mxu0 0.0
    %602 = vmatpush1.msra.mxu0 0.0
    %603 = vmatprep.subr.mxu0 0.0
    %604 = vmatpush1.msra.mxu0 0.0
    %605 = vmatprep.subr.mxu0 0.0
    %606 = vmatpush1.msra.mxu0 0.0
    %607 = vmatprep.subr.mxu0 0.0
    %608 = vmatpush1.msra.mxu0 0.0
    %609 = vmatprep.subr.mxu0 0.0
    %610 = vmatpush1.msra.mxu0 0.0
    %611 = vmatprep.subr.mxu0 0.0
    %612 = vmatpush1.msra.mxu0 0.0
    %613 = vmatprep.subr.mxu0 0.0
    %614 = vmatpush1.msra.mxu0 0.0
    %615 = vmatprep.subr.mxu0 0.0
    %616 = vmatpush1.msra.mxu0 0.0
    %617 = vmatprep.subr.mxu0 0.0
    %618 = vmatpush1.msra.mxu0 0.0
    %619 = vmatprep.mubr.f32.mxu0 0.0
    %620 = vmatmul.mubr.f32.gmra.mrb[0].mxu0 %v508
    %v621 = vpop.f32.mrb[0].mxu0
    %v622 = vadd.f32 0.0, %v621
    %v623 = vpop.f32.mrb[0].mxu0
    %624 = vmatprep.mubr.f32.mxu0 0.0
    %625 = vmatmul.mubr.f32.gmra.mrb[0].mxu0 %v511
    %v626 = vpop.f32.mrb[0].mxu0
    %v627 = vadd.f32 0.0, %v626
    %v628 = vpop.f32.mrb[0].mxu0
    %629 = vmatprep.mubr.f32.mxu0 0.0
    %630 = vmatmul.mubr.f32.gmra.mrb[0].mxu0 %v514
    %v631 = vpop.f32.mrb[0].mxu0
    %v632 = vadd.f32 0.0, %v631
    %v633 = vpop.f32.mrb[0].mxu0
    %634 = vmatprep.mubr.f32.mxu0 0.0
    %635 = vmatmul.mubr.f32.gmra.mrb[0].mxu0 %v517
    %v636 = vpop.f32.mrb[0].mxu0
    %v637 = vadd.f32 0.0, %v636
    %v638 = vpop.f32.mrb[0].mxu0
    %639 = vmatprep.mubr.f32.mxu0 0.0
    %640 = vmatmul.mubr.f32.gmra.mrb[0].mxu0 %v520
    %v641 = vpop.f32.mrb[0].mxu0
    %v642 = vadd.f32 0.0, %v641
    %v643 = vpop.f32.mrb[0].mxu0
    %644 = vmatprep.mubr.f32.mxu0 0.0
    %645 = vmatmul.mubr.f32.gmra.mrb[0].mxu0 %v523
    %v646 = vpop.f32.mrb[0].mxu0
    %v647 = vadd.f32 0.0, %v646
    %v648 = vpop.f32.mrb[0].mxu0
    %649 = vmatprep.mubr.f32.mxu0 0.0
    %650 = vmatmul.mubr.f32.gmra.mrb[0].mxu0 %v526
    %v651 = vpop.f32.mrb[0].mxu0
    %v652 = vadd.f32 0.0, %v651
    %v653 = vpop.f32.mrb[0].mxu0
    %654 = vmatprep.mubr.f32.mxu0 0.0
    %655 = vmatmul.mubr.f32.gmra.mrb[0].mxu0 %v529
    %v656 = vpop.f32.mrb[0].mxu0
    %v657 = vadd.f32 0.0, %v656
    %v658 = vpop.f32.mrb[0].mxu0
    %659 = vmatprep.mubr.f32.mxu0 0.0
    %660 = vmatmul.mubr.f32.gmra.mrb[0].mxu0 %v532
    %v661 = vpop.f32.mrb[0].mxu0
    %v662 = vadd.f32 0.0, %v661
    %v663 = vpop.f32.mrb[0].mxu0
    %664 = vmatprep.mubr.f32.mxu0 0.0
    %665 = vmatmul.mubr.f32.gmra.mrb[0].mxu0 %v535
    %v666 = vpop.f32.mrb[0].mxu0
    %v667 = vadd.f32 0.0, %v666
    %v668 = vpop.f32.mrb[0].mxu0
    %669 = vmatprep.mubr.f32.mxu0 0.0
    %670 = vmatmul.mubr.f32.gmra.mrb[0].mxu0 %v538
    %v671 = vpop.f32.mrb[0].mxu0
    %v672 = vadd.f32 0.0, %v671
    %v673 = vpop.f32.mrb[0].mxu0
    %674 = vmatprep.mubr.f32.mxu0 0.0
    %675 = vmatmul.mubr.f32.gmra.mrb[0].mxu0 %v541
    %v676 = vpop.f32.mrb[0].mxu0
    %v677 = vadd.f32 0.0, %v676
    %v678 = vpop.f32.mrb[0].mxu0
    %679 = vmatprep.mubr.f32.mxu0 0.0
    %680 = vmatmul.mubr.f32.gmra.mrb[0].mxu0 %v544
    %v681 = vpop.f32.mrb[0].mxu0
    %v682 = vadd.f32 0.0, %v681
    %v683 = vpop.f32.mrb[0].mxu0
    %684 = vmatprep.mubr.f32.mxu0 0.0
    %685 = vmatmul.mubr.f32.gmra.mrb[0].mxu0 %v547
    %v686 = vpop.f32.mrb[0].mxu0
    %v687 = vadd.f32 0.0, %v686
    %v688 = vpop.f32.mrb[0].mxu0
    %689 = vmatprep.mubr.f32.mxu0 0.0
    %690 = vmatmul.mubr.f32.gmra.mrb[0].mxu0 %v550
    %v691 = vpop.f32.mrb[0].mxu0
    %v692 = vadd.f32 0.0, %v691
    %v693 = vpop.f32.mrb[0].mxu0
    %694 = vmatprep.mubr.f32.mxu0 0.0
    %695 = vmatmul.mubr.f32.gmra.mrb[0].mxu0 %v553
    %v696 = vpop.f32.mrb[0].mxu0
    %v697 = vadd.f32 0.0, %v696
    %v698 = vpop.f32.mrb[0].mxu0
    %699 = vdwg.mxu0
    %701 = vset.pattern.permute.xlu0 0
    %702 = vperm.xlu0 %701, %v108
    %v703 = vpop.permute.xlu0 %702
    %706 = vset.pattern.permute.xlu0 0
    %707 = vperm.xlu0 %706, %v109
    %v708 = vpop.permute.xlu0 %707
    %v710 = vadd.f32 %v622, %v703
    %v711 = vadd.f32 %v627, %v703
    %v712 = vadd.f32 %v632, %v703
    %v713 = vadd.f32 %v637, %v703
    %v714 = vadd.f32 %v642, %v703
    %v715 = vadd.f32 %v647, %v703
    %v716 = vadd.f32 %v652, %v703
    %v717 = vadd.f32 %v657, %v703
    %v718 = vadd.f32 %v662, %v708
    %v719 = vadd.f32 %v667, %v708
    %v720 = vadd.f32 %v672, %v708
    %v721 = vadd.f32 %v677, %v708
    %v722 = vadd.f32 %v682, %v708
    %v723 = vadd.f32 %v687, %v708
    %v724 = vadd.f32 %v692, %v708
    %v725 = vadd.f32 %v697, %v708
    %vm726 = vcmask 64512
    %v727 = vsel %vm726, %v710, -inf
    %v728 = vrot.slane %v727, 4
    %v729 = vmax.f32 %v727, %v728
    %v730 = vrot.slane %v729, 2
    %v731 = vmax.f32 %v729, %v730
    %v732 = vrot.slane %v731, 1
    %v733 = vmax.f32 %v731, %v732
    %v734 = vsel %vm726, %v711, -inf
    %v735 = vrot.slane %v734, 4
    %v736 = vmax.f32 %v734, %v735
    %v737 = vrot.slane %v736, 2
    %v738 = vmax.f32 %v736, %v737
    %v739 = vrot.slane %v738, 1
    %v740 = vmax.f32 %v738, %v739
    %v741 = vsel %vm726, %v712, -inf
    %v742 = vrot.slane %v741, 4
    %v743 = vmax.f32 %v741, %v742
    %v744 = vrot.slane %v743, 2
    %v745 = vmax.f32 %v743, %v744
    %v746 = vrot.slane %v745, 1
    %v747 = vmax.f32 %v745, %v746
    %v748 = vsel %vm726, %v713, -inf
    %v749 = vrot.slane %v748, 4
    %v750 = vmax.f32 %v748, %v749
    %v751 = vrot.slane %v750, 2
    %v752 = vmax.f32 %v750, %v751
    %v753 = vrot.slane %v752, 1
    %v754 = vmax.f32 %v752, %v753
    %v755 = vsel %vm726, %v714, -inf
    %v756 = vrot.slane %v755, 4
    %v757 = vmax.f32 %v755, %v756
    %v758 = vrot.slane %v757, 2
    %v759 = vmax.f32 %v757, %v758
    %v760 = vrot.slane %v759, 1
    %v761 = vmax.f32 %v759, %v760
    %v762 = vsel %vm726, %v715, -inf
    %v763 = vrot.slane %v762, 4
    %v764 = vmax.f32 %v762, %v763
    %v765 = vrot.slane %v764, 2
    %v766 = vmax.f32 %v764, %v765
    %v767 = vrot.slane %v766, 1
    %v768 = vmax.f32 %v766, %v767
    %v769 = vsel %vm726, %v716, -inf
    %v770 = vrot.slane %v769, 4
    %v771 = vmax.f32 %v769, %v770
    %v772 = vrot.slane %v771, 2
    %v773 = vmax.f32 %v771, %v772
    %v774 = vrot.slane %v773, 1
    %v775 = vmax.f32 %v773, %v774
    %v776 = vsel %vm726, %v717, -inf
    %v777 = vrot.slane %v776, 4
    %v778 = vmax.f32 %v776, %v777
    %v779 = vrot.slane %v778, 2
    %v780 = vmax.f32 %v778, %v779
    %v781 = vrot.slane %v780, 1
    %v782 = vmax.f32 %v780, %v781
    %v783 = vsel %vm726, %v718, -inf
    %v784 = vrot.slane %v783, 4
    %v785 = vmax.f32 %v783, %v784
    %v786 = vrot.slane %v785, 2
    %v787 = vmax.f32 %v785, %v786
    %v788 = vrot.slane %v787, 1
    %v789 = vmax.f32 %v787, %v788
    %v790 = vsel %vm726, %v719, -inf
    %v791 = vrot.slane %v790, 4
    %v792 = vmax.f32 %v790, %v791
    %v793 = vrot.slane %v792, 2
    %v794 = vmax.f32 %v792, %v793
    %v795 = vrot.slane %v794, 1
    %v796 = vmax.f32 %v794, %v795
    %v797 = vsel %vm726, %v720, -inf
    %v798 = vrot.slane %v797, 4
    %v799 = vmax.f32 %v797, %v798
    %v800 = vrot.slane %v799, 2
    %v801 = vmax.f32 %v799, %v800
    %v802 = vrot.slane %v801, 1
    %v803 = vmax.f32 %v801, %v802
    %v804 = vsel %vm726, %v721, -inf
    %v805 = vrot.slane %v804, 4
    %v806 = vmax.f32 %v804, %v805
    %v807 = vrot.slane %v806, 2
    %v808 = vmax.f32 %v806, %v807
    %v809 = vrot.slane %v808, 1
    %v810 = vmax.f32 %v808, %v809
    %v811 = vsel %vm726, %v722, -inf
    %v812 = vrot.slane %v811, 4
    %v813 = vmax.f32 %v811, %v812
    %v814 = vrot.slane %v813, 2
    %v815 = vmax.f32 %v813, %v814
    %v816 = vrot.slane %v815, 1
    %v817 = vmax.f32 %v815, %v816
    %v818 = vsel %vm726, %v723, -inf
    %v819 = vrot.slane %v818, 4
    %v820 = vmax.f32 %v818, %v819
    %v821 = vrot.slane %v820, 2
    %v822 = vmax.f32 %v820, %v821
    %v823 = vrot.slane %v822, 1
    %v824 = vmax.f32 %v822, %v823
    %v825 = vsel %vm726, %v724, -inf
    %v826 = vrot.slane %v825, 4
    %v827 = vmax.f32 %v825, %v826
    %v828 = vrot.slane %v827, 2
    %v829 = vmax.f32 %v827, %v828
    %v830 = vrot.slane %v829, 1
    %v831 = vmax.f32 %v829, %v830
    %v832 = vsel %vm726, %v725, -inf
    %v833 = vrot.slane %v832, 4
    %v834 = vmax.f32 %v832, %v833
    %v835 = vrot.slane %v834, 2
    %v836 = vmax.f32 %v834, %v835
    %v837 = vrot.slane %v836, 1
    %v838 = vmax.f32 %v836, %v837
    %v839 = vsub.f32 %v710, %v733
    %v840 = vsub.f32 %v711, %v740
    %v841 = vsub.f32 %v712, %v747
    %v842 = vsub.f32 %v713, %v754
    %v843 = vsub.f32 %v714, %v761
    %v844 = vsub.f32 %v715, %v768
    %v845 = vsub.f32 %v716, %v775
    %v846 = vsub.f32 %v717, %v782
    %v847 = vsub.f32 %v718, %v789
    %v848 = vsub.f32 %v719, %v796
    %v849 = vsub.f32 %v720, %v803
    %v850 = vsub.f32 %v721, %v810
    %v851 = vsub.f32 %v722, %v817
    %v852 = vsub.f32 %v723, %v824
    %v853 = vsub.f32 %v724, %v831
    %v854 = vsub.f32 %v725, %v838
    %v855 = vmul.f32 %v839, 1.442695
    %v856 = vpow.pop %v855
    %v857 = vmul.f32 %v840, 1.442695
    %v858 = vpow.pop %v857
    %v859 = vmul.f32 %v841, 1.442695
    %v860 = vpow.pop %v859
    %v861 = vmul.f32 %v842, 1.442695
    %v862 = vpow.pop %v861
    %v863 = vmul.f32 %v843, 1.442695
    %v864 = vpow.pop %v863
    %v865 = vmul.f32 %v844, 1.442695
    %v866 = vpow.pop %v865
    %v867 = vmul.f32 %v845, 1.442695
    %v868 = vpow.pop %v867
    %v869 = vmul.f32 %v846, 1.442695
    %v870 = vpow.pop %v869
    %v871 = vmul.f32 %v847, 1.442695
    %v872 = vpow.pop %v871
    %v873 = vmul.f32 %v848, 1.442695
    %v874 = vpow.pop %v873
    %v875 = vmul.f32 %v849, 1.442695
    %v876 = vpow.pop %v875
    %v877 = vmul.f32 %v850, 1.442695
    %v878 = vpow.pop %v877
    %v879 = vmul.f32 %v851, 1.442695
    %v880 = vpow.pop %v879
    %v881 = vmul.f32 %v852, 1.442695
    %v882 = vpow.pop %v881
    %v883 = vmul.f32 %v853, 1.442695
    %v884 = vpow.pop %v883
    %v885 = vmul.f32 %v854, 1.442695
    %v886 = vpow.pop %v885
    %v887 = vsel %vm726, %v856, 0.0
    %v888 = vrot.slane %v887, 4
    %v889 = vadd.f32 %v887, %v888
    %v890 = vrot.slane %v889, 2
    %v891 = vadd.f32 %v889, %v890
    %v892 = vrot.slane %v891, 1
    %v893 = vadd.f32 %v891, %v892
    %v894 = vsel %vm726, %v858, 0.0
    %v895 = vrot.slane %v894, 4
    %v896 = vadd.f32 %v894, %v895
    %v897 = vrot.slane %v896, 2
    %v898 = vadd.f32 %v896, %v897
    %v899 = vrot.slane %v898, 1
    %v900 = vadd.f32 %v898, %v899
    %v901 = vsel %vm726, %v860, 0.0
    %v902 = vrot.slane %v901, 4
    %v903 = vadd.f32 %v901, %v902
    %v904 = vrot.slane %v903, 2
    %v905 = vadd.f32 %v903, %v904
    %v906 = vrot.slane %v905, 1
    %v907 = vadd.f32 %v905, %v906
    %v908 = vsel %vm726, %v862, 0.0
    %v909 = vrot.slane %v908, 4
    %v910 = vadd.f32 %v908, %v909
    %v911 = vrot.slane %v910, 2
    %v912 = vadd.f32 %v910, %v911
    %v913 = vrot.slane %v912, 1
    %v914 = vadd.f32 %v912, %v913
    %v915 = vsel %vm726, %v864, 0.0
    %v916 = vrot.slane %v915, 4
    %v917 = vadd.f32 %v915, %v916
    %v918 = vrot.slane %v917, 2
    %v919 = vadd.f32 %v917, %v918
    %v920 = vrot.slane %v919, 1
    %v921 = vadd.f32 %v919, %v920
    %v922 = vsel %vm726, %v866, 0.0
    %v923 = vrot.slane %v922, 4
    %v924 = vadd.f32 %v922, %v923
    %v925 = vrot.slane %v924, 2
    %v926 = vadd.f32 %v924, %v925
    %v927 = vrot.slane %v926, 1
    %v928 = vadd.f32 %v926, %v927
    %v929 = vsel %vm726, %v868, 0.0
    %v930 = vrot.slane %v929, 4
    %v931 = vadd.f32 %v929, %v930
    %v932 = vrot.slane %v931, 2
    %v933 = vadd.f32 %v931, %v932
    %v934 = vrot.slane %v933, 1
    %v935 = vadd.f32 %v933, %v934
    %v936 = vsel %vm726, %v870, 0.0
    %v937 = vrot.slane %v936, 4
    %v938 = vadd.f32 %v936, %v937
    %v939 = vrot.slane %v938, 2
    %v940 = vadd.f32 %v938, %v939
    %v941 = vrot.slane %v940, 1
    %v942 = vadd.f32 %v940, %v941
    %v943 = vsel %vm726, %v872, 0.0
    %v944 = vrot.slane %v943, 4
    %v945 = vadd.f32 %v943, %v944
    %v946 = vrot.slane %v945, 2
    %v947 = vadd.f32 %v945, %v946
    %v948 = vrot.slane %v947, 1
    %v949 = vadd.f32 %v947, %v948
    %v950 = vsel %vm726, %v874, 0.0
    %v951 = vrot.slane %v950, 4
    %v952 = vadd.f32 %v950, %v951
    %v953 = vrot.slane %v952, 2
    %v954 = vadd.f32 %v952, %v953
    %v955 = vrot.slane %v954, 1
    %v956 = vadd.f32 %v954, %v955
    %v957 = vsel %vm726, %v876, 0.0
    %v958 = vrot.slane %v957, 4
    %v959 = vadd.f32 %v957, %v958
    %v960 = vrot.slane %v959, 2
    %v961 = vadd.f32 %v959, %v960
    %v962 = vrot.slane %v961, 1
    %v963 = vadd.f32 %v961, %v962
    %v964 = vsel %vm726, %v878, 0.0
    %v965 = vrot.slane %v964, 4
    %v966 = vadd.f32 %v964, %v965
    %v967 = vrot.slane %v966, 2
    %v968 = vadd.f32 %v966, %v967
    %v969 = vrot.slane %v968, 1
    %v970 = vadd.f32 %v968, %v969
    %v971 = vsel %vm726, %v880, 0.0
    %v972 = vrot.slane %v971, 4
    %v973 = vadd.f32 %v971, %v972
    %v974 = vrot.slane %v973, 2
    %v975 = vadd.f32 %v973, %v974
    %v976 = vrot.slane %v975, 1
    %v977 = vadd.f32 %v975, %v976
    %v978 = vsel %vm726, %v882, 0.0
    %v979 = vrot.slane %v978, 4
    %v980 = vadd.f32 %v978, %v979
    %v981 = vrot.slane %v980, 2
    %v982 = vadd.f32 %v980, %v981
    %v983 = vrot.slane %v982, 1
    %v984 = vadd.f32 %v982, %v983
    %v985 = vsel %vm726, %v884, 0.0
    %v986 = vrot.slane %v985, 4
    %v987 = vadd.f32 %v985, %v986
    %v988 = vrot.slane %v987, 2
    %v989 = vadd.f32 %v987, %v988
    %v990 = vrot.slane %v989, 1
    %v991 = vadd.f32 %v989, %v990
    %v992 = vsel %vm726, %v886, 0.0
    %v993 = vrot.slane %v992, 4
    %v994 = vadd.f32 %v992, %v993
    %v995 = vrot.slane %v994, 2
    %v996 = vadd.f32 %v994, %v995
    %v997 = vrot.slane %v996, 1
    %v998 = vadd.f32 %v996, %v997
    %v999 = vrcp.pop %v893
    %v1000 = vrcp.pop %v900
    %v1001 = vrcp.pop %v907
    %v1002 = vrcp.pop %v914
    %v1003 = vrcp.pop %v921
    %v1004 = vrcp.pop %v928
    %v1005 = vrcp.pop %v935
    %v1006 = vrcp.pop %v942
    %v1007 = vrcp.pop %v949
    %v1008 = vrcp.pop %v956
    %v1009 = vrcp.pop %v963
    %v1010 = vrcp.pop %v970
    %v1011 = vrcp.pop %v977
    %v1012 = vrcp.pop %v984
    %v1013 = vrcp.pop %v991
    %v1014 = vrcp.pop %v998
    %v1015 = vmul.f32 %v856, %v999
    %v1016 = vmul.f32 %v858, %v1000
    %v1017 = vmul.f32 %v860, %v1001
    %v1018 = vmul.f32 %v862, %v1002
    %v1019 = vmul.f32 %v864, %v1003
    %v1020 = vmul.f32 %v866, %v1004
    %v1021 = vmul.f32 %v868, %v1005
    %v1022 = vmul.f32 %v870, %v1006
    %v1023 = vmul.f32 %v872, %v1007
    %v1024 = vmul.f32 %v874, %v1008
    %v1025 = vmul.f32 %v876, %v1009
    %v1026 = vmul.f32 %v878, %v1010
    %v1027 = vmul.f32 %v880, %v1011
    %v1028 = vmul.f32 %v882, %v1012
    %v1029 = vmul.f32 %v884, %v1013
    %v1030 = vmul.f32 %v886, %v1014
    %v1032 = vsel %vm726, %v1015, 0
    %v1035 = vsel %vm726, %v1016, 0
    %v1038 = vsel %vm726, %v1017, 0
    %v1041 = vsel %vm726, %v1018, 0
    %v1044 = vsel %vm726, %v1019, 0
    %v1047 = vsel %vm726, %v1020, 0
    %v1050 = vsel %vm726, %v1021, 0
    %v1053 = vsel %vm726, %v1022, 0
    %v1056 = vsel %vm726, %v1023, 0
    %v1059 = vsel %vm726, %v1024, 0
    %v1062 = vsel %vm726, %v1025, 0
    %v1065 = vsel %vm726, %v1026, 0
    %v1068 = vsel %vm726, %v1027, 0
    %v1071 = vsel %vm726, %v1028, 0
    %v1074 = vsel %vm726, %v1029, 0
    %v1077 = vsel %vm726, %v1030, 0
    %1079 = vmatprep.subr.mxu0 0.0
    %1080 = vmatpush1.msra.mxu0 %v107
    %1081 = vmatprep.subr.mxu0 0.0
    %1082 = vmatpush1.msra.mxu0 0.0
    %1083 = vmatprep.subr.mxu0 0.0
    %1084 = vmatpush1.msra.mxu0 0.0
    %1085 = vmatprep.subr.mxu0 0.0
    %1086 = vmatpush1.msra.mxu0 0.0
    %1087 = vmatprep.subr.mxu0 0.0
    %1088 = vmatpush1.msra.mxu0 0.0
    %1089 = vmatprep.subr.mxu0 0.0
    %1090 = vmatpush1.msra.mxu0 0.0
    %1091 = vmatprep.subr.mxu0 0.0
    %1092 = vmatpush1.msra.mxu0 0.0
    %1093 = vmatprep.subr.mxu0 0.0
    %1094 = vmatpush1.msra.mxu0 0.0
    %1095 = vmatprep.subr.mxu0 0.0
    %1096 = vmatpush1.msra.mxu0 0.0
    %1097 = vmatprep.subr.mxu0 0.0
    %1098 = vmatpush1.msra.mxu0 0.0
    %1099 = vmatprep.subr.mxu0 0.0
    %1100 = vmatpush1.msra.mxu0 0.0
    %1101 = vmatprep.subr.mxu0 0.0
    %1102 = vmatpush1.msra.mxu0 0.0
    %1103 = vmatprep.subr.mxu0 0.0
    %1104 = vmatpush1.msra.mxu0 0.0
    %1105 = vmatprep.subr.mxu0 0.0
    %1106 = vmatpush1.msra.mxu0 0.0
    %1107 = vmatprep.subr.mxu0 0.0
    %1108 = vmatpush1.msra.mxu0 0.0
    %1109 = vmatprep.subr.mxu0 0.0
    %1110 = vmatpush1.msra.mxu0 0.0
    %1111 = vmatprep.subr.mxu0 0.0
    %1112 = vmatpush1.msra.mxu0 0.0
    %1113 = vmatprep.subr.mxu0 0.0
    %1114 = vmatpush1.msra.mxu0 0.0
    %1115 = vmatprep.subr.mxu0 0.0
    %1116 = vmatpush1.msra.mxu0 0.0
    %1117 = vmatprep.subr.mxu0 0.0
    %1118 = vmatpush1.msra.mxu0 0.0
    %1119 = vmatprep.subr.mxu0 0.0
    %1120 = vmatpush1.msra.mxu0 0.0
    %1121 = vmatprep.subr.mxu0 0.0
    %1122 = vmatpush1.msra.mxu0 0.0
    %1123 = vmatprep.subr.mxu0 0.0
    %1124 = vmatpush1.msra.mxu0 0.0
    %1125 = vmatprep.subr.mxu0 0.0
    %1126 = vmatpush1.msra.mxu0 0.0
    %1127 = vmatprep.subr.mxu0 0.0
    %1128 = vmatpush1.msra.mxu0 0.0
    %1129 = vmatprep.subr.mxu0 0.0
    %1130 = vmatpush1.msra.mxu0 0.0
    %1131 = vmatprep.subr.mxu0 0.0
    %1132 = vmatpush1.msra.mxu0 0.0
    %1133 = vmatprep.subr.mxu0 0.0
    %1134 = vmatpush1.msra.mxu0 0.0
    %1135 = vmatprep.subr.mxu0 0.0
    %1136 = vmatpush1.msra.mxu0 0.0
    %1137 = vmatprep.subr.mxu0 0.0
    %1138 = vmatpush1.msra.mxu0 0.0
    %1139 = vmatprep.subr.mxu0 0.0
    %1140 = vmatpush1.msra.mxu0 0.0
    %1141 = vmatprep.subr.mxu0 0.0
    %1142 = vmatpush1.msra.mxu0 0.0
    %1143 = vmatprep.mubr.f32.mxu0 0.0
    %1144 = vmatmul.mubr.f32.gmra.mrb[0].mxu0 %v1032
    %v1145 = vpop.f32.mrb[0].mxu0
    %v1146 = vadd.f32 0.0, %v1145
    %v1147 = vpop.f32.mrb[0].mxu0
    %1148 = vmatprep.mubr.f32.mxu0 0.0
    %1149 = vmatmul.mubr.f32.gmra.mrb[0].mxu0 %v1035
    %v1150 = vpop.f32.mrb[0].mxu0
    %v1151 = vadd.f32 0.0, %v1150
    %v1152 = vpop.f32.mrb[0].mxu0
    %1153 = vmatprep.mubr.f32.mxu0 0.0
    %1154 = vmatmul.mubr.f32.gmra.mrb[0].mxu0 %v1038
    %v1155 = vpop.f32.mrb[0].mxu0
    %v1156 = vadd.f32 0.0, %v1155
    %v1157 = vpop.f32.mrb[0].mxu0
    %1158 = vmatprep.mubr.f32.mxu0 0.0
    %1159 = vmatmul.mubr.f32.gmra.mrb[0].mxu0 %v1041
    %v1160 = vpop.f32.mrb[0].mxu0
    %v1161 = vadd.f32 0.0, %v1160
    %v1162 = vpop.f32.mrb[0].mxu0
    %1163 = vmatprep.mubr.f32.mxu0 0.0
    %1164 = vmatmul.mubr.f32.gmra.mrb[0].mxu0 %v1044
    %v1165 = vpop.f32.mrb[0].mxu0
    %v1166 = vadd.f32 0.0, %v1165
    %v1167 = vpop.f32.mrb[0].mxu0
    %1168 = vmatprep.mubr.f32.mxu0 0.0
    %1169 = vmatmul.mubr.f32.gmra.mrb[0].mxu0 %v1047
    %v1170 = vpop.f32.mrb[0].mxu0
    %v1171 = vadd.f32 0.0, %v1170
    %v1172 = vpop.f32.mrb[0].mxu0
    %1173 = vmatprep.mubr.f32.mxu0 0.0
    %1174 = vmatmul.mubr.f32.gmra.mrb[0].mxu0 %v1050
    %v1175 = vpop.f32.mrb[0].mxu0
    %v1176 = vadd.f32 0.0, %v1175
    %v1177 = vpop.f32.mrb[0].mxu0
    %1178 = vmatprep.mubr.f32.mxu0 0.0
    %1179 = vmatmul.mubr.f32.gmra.mrb[0].mxu0 %v1053
    %v1180 = vpop.f32.mrb[0].mxu0
    %v1181 = vadd.f32 0.0, %v1180
    %v1182 = vpop.f32.mrb[0].mxu0
    %1183 = vmatprep.mubr.f32.mxu0 0.0
    %1184 = vmatmul.mubr.f32.gmra.mrb[0].mxu0 %v1056
    %v1185 = vpop.f32.mrb[0].mxu0
    %v1186 = vadd.f32 0.0, %v1185
    %v1187 = vpop.f32.mrb[0].mxu0
    %1188 = vmatprep.mubr.f32.mxu0 0.0
    %1189 = vmatmul.mubr.f32.gmra.mrb[0].mxu0 %v1059
    %v1190 = vpop.f32.mrb[0].mxu0
    %v1191 = vadd.f32 0.0, %v1190
    %v1192 = vpop.f32.mrb[0].mxu0
    %1193 = vmatprep.mubr.f32.mxu0 0.0
    %1194 = vmatmul.mubr.f32.gmra.mrb[0].mxu0 %v1062
    %v1195 = vpop.f32.mrb[0].mxu0
    %v1196 = vadd.f32 0.0, %v1195
    %v1197 = vpop.f32.mrb[0].mxu0
    %1198 = vmatprep.mubr.f32.mxu0 0.0
    %1199 = vmatmul.mubr.f32.gmra.mrb[0].mxu0 %v1065
    %v1200 = vpop.f32.mrb[0].mxu0
    %v1201 = vadd.f32 0.0, %v1200
    %v1202 = vpop.f32.mrb[0].mxu0
    %1203 = vmatprep.mubr.f32.mxu0 0.0
    %1204 = vmatmul.mubr.f32.gmra.mrb[0].mxu0 %v1068
    %v1205 = vpop.f32.mrb[0].mxu0
    %v1206 = vadd.f32 0.0, %v1205
    %v1207 = vpop.f32.mrb[0].mxu0
    %1208 = vmatprep.mubr.f32.mxu0 0.0
    %1209 = vmatmul.mubr.f32.gmra.mrb[0].mxu0 %v1071
    %v1210 = vpop.f32.mrb[0].mxu0
    %v1211 = vadd.f32 0.0, %v1210
    %v1212 = vpop.f32.mrb[0].mxu0
    %1213 = vmatprep.mubr.f32.mxu0 0.0
    %1214 = vmatmul.mubr.f32.gmra.mrb[0].mxu0 %v1074
    %v1215 = vpop.f32.mrb[0].mxu0
    %v1216 = vadd.f32 0.0, %v1215
    %v1217 = vpop.f32.mrb[0].mxu0
    %1218 = vmatprep.mubr.f32.mxu0 0.0
    %1219 = vmatmul.mubr.f32.gmra.mrb[0].mxu0 %v1077
    %v1220 = vpop.f32.mrb[0].mxu0
    %v1221 = vadd.f32 0.0, %v1220
    %v1222 = vpop.f32.mrb[0].mxu0
    %1223 = vdwg.mxu0
    %v1224 = vmul.f32 %v1146, %v305
    %v1225 = vmul.f32 %v1151, %v305
    %v1226 = vmul.f32 %v1156, %v305
    %v1227 = vmul.f32 %v1161, %v305
    %v1228 = vmul.f32 %v1166, %v305
    %v1229 = vmul.f32 %v1171, %v305
    %v1230 = vmul.f32 %v1176, %v305
    %v1231 = vmul.f32 %v1181, %v305
    %v1232 = vmul.f32 %v1186, %v308
    %v1233 = vmul.f32 %v1191, %v308
    %v1234 = vmul.f32 %v1196, %v308
    %v1235 = vmul.f32 %v1201, %v308
    %v1236 = vmul.f32 %v1206, %v308
    %v1237 = vmul.f32 %v1211, %v308
    %v1238 = vmul.f32 %v1216, %v308
    %v1239 = vmul.f32 %v1221, %v308
    %v1240 = vsel %vm134, %v1224, 0.0
    %v1241 = vrot.slane %v1240, 4
    %v1242 = vadd.f32 %v1240, %v1241
    %v1243 = vrot.slane %v1242, 2
    %v1244 = vadd.f32 %v1242, %v1243
    %v1245 = vrot.slane %v1244, 1
    %v1246 = vadd.f32 %v1244, %v1245
    %v1247 = vsel %vm134, %v1225, 0.0
    %v1248 = vrot.slane %v1247, 4
    %v1249 = vadd.f32 %v1247, %v1248
    %v1250 = vrot.slane %v1249, 2
    %v1251 = vadd.f32 %v1249, %v1250
    %v1252 = vrot.slane %v1251, 1
    %v1253 = vadd.f32 %v1251, %v1252
    %v1254 = vsel %vm134, %v1226, 0.0
    %v1255 = vrot.slane %v1254, 4
    %v1256 = vadd.f32 %v1254, %v1255
    %v1257 = vrot.slane %v1256, 2
    %v1258 = vadd.f32 %v1256, %v1257
    %v1259 = vrot.slane %v1258, 1
    %v1260 = vadd.f32 %v1258, %v1259
    %v1261 = vsel %vm134, %v1227, 0.0
    %v1262 = vrot.slane %v1261, 4
    %v1263 = vadd.f32 %v1261, %v1262
    %v1264 = vrot.slane %v1263, 2
    %v1265 = vadd.f32 %v1263, %v1264
    %v1266 = vrot.slane %v1265, 1
    %v1267 = vadd.f32 %v1265, %v1266
    %v1268 = vsel %vm134, %v1228, 0.0
    %v1269 = vrot.slane %v1268, 4
    %v1270 = vadd.f32 %v1268, %v1269
    %v1271 = vrot.slane %v1270, 2
    %v1272 = vadd.f32 %v1270, %v1271
    %v1273 = vrot.slane %v1272, 1
    %v1274 = vadd.f32 %v1272, %v1273
    %v1275 = vsel %vm134, %v1229, 0.0
    %v1276 = vrot.slane %v1275, 4
    %v1277 = vadd.f32 %v1275, %v1276
    %v1278 = vrot.slane %v1277, 2
    %v1279 = vadd.f32 %v1277, %v1278
    %v1280 = vrot.slane %v1279, 1
    %v1281 = vadd.f32 %v1279, %v1280
    %v1282 = vsel %vm134, %v1230, 0.0
    %v1283 = vrot.slane %v1282, 4
    %v1284 = vadd.f32 %v1282, %v1283
    %v1285 = vrot.slane %v1284, 2
    %v1286 = vadd.f32 %v1284, %v1285
    %v1287 = vrot.slane %v1286, 1
    %v1288 = vadd.f32 %v1286, %v1287
    %v1289 = vsel %vm134, %v1231, 0.0
    %v1290 = vrot.slane %v1289, 4
    %v1291 = vadd.f32 %v1289, %v1290
    %v1292 = vrot.slane %v1291, 2
    %v1293 = vadd.f32 %v1291, %v1292
    %v1294 = vrot.slane %v1293, 1
    %v1295 = vadd.f32 %v1293, %v1294
    %v1296 = vsel %vm134, %v1232, 0.0
    %v1297 = vrot.slane %v1296, 4
    %v1298 = vadd.f32 %v1296, %v1297
    %v1299 = vrot.slane %v1298, 2
    %v1300 = vadd.f32 %v1298, %v1299
    %v1301 = vrot.slane %v1300, 1
    %v1302 = vadd.f32 %v1300, %v1301
    %v1303 = vsel %vm134, %v1233, 0.0
    %v1304 = vrot.slane %v1303, 4
    %v1305 = vadd.f32 %v1303, %v1304
    %v1306 = vrot.slane %v1305, 2
    %v1307 = vadd.f32 %v1305, %v1306
    %v1308 = vrot.slane %v1307, 1
    %v1309 = vadd.f32 %v1307, %v1308
    %v1310 = vsel %vm134, %v1234, 0.0
    %v1311 = vrot.slane %v1310, 4
    %v1312 = vadd.f32 %v1310, %v1311
    %v1313 = vrot.slane %v1312, 2
    %v1314 = vadd.f32 %v1312, %v1313
    %v1315 = vrot.slane %v1314, 1
    %v1316 = vadd.f32 %v1314, %v1315
    %v1317 = vsel %vm134, %v1235, 0.0
    %v1318 = vrot.slane %v1317, 4
    %v1319 = vadd.f32 %v1317, %v1318
    %v1320 = vrot.slane %v1319, 2
    %v1321 = vadd.f32 %v1319, %v1320
    %v1322 = vrot.slane %v1321, 1
    %v1323 = vadd.f32 %v1321, %v1322
    %v1324 = vsel %vm134, %v1236, 0.0
    %v1325 = vrot.slane %v1324, 4
    %v1326 = vadd.f32 %v1324, %v1325
    %v1327 = vrot.slane %v1326, 2
    %v1328 = vadd.f32 %v1326, %v1327
    %v1329 = vrot.slane %v1328, 1
    %v1330 = vadd.f32 %v1328, %v1329
    %v1331 = vsel %vm134, %v1237, 0.0
    %v1332 = vrot.slane %v1331, 4
    %v1333 = vadd.f32 %v1331, %v1332
    %v1334 = vrot.slane %v1333, 2
    %v1335 = vadd.f32 %v1333, %v1334
    %v1336 = vrot.slane %v1335, 1
    %v1337 = vadd.f32 %v1335, %v1336
    %v1338 = vsel %vm134, %v1238, 0.0
    %v1339 = vrot.slane %v1338, 4
    %v1340 = vadd.f32 %v1338, %v1339
    %v1341 = vrot.slane %v1340, 2
    %v1342 = vadd.f32 %v1340, %v1341
    %v1343 = vrot.slane %v1342, 1
    %v1344 = vadd.f32 %v1342, %v1343
    %v1345 = vsel %vm134, %v1239, 0.0
    %v1346 = vrot.slane %v1345, 4
    %v1347 = vadd.f32 %v1345, %v1346
    %v1348 = vrot.slane %v1347, 2
    %v1349 = vadd.f32 %v1347, %v1348
    %v1350 = vrot.slane %v1349, 1
    %v1351 = vadd.f32 %v1349, %v1350
    %v1352 = vpack.c.bf16 %v1246, %v1246
    %v1353 = vpack.c.bf16 %v1253, %v1253
    %v1354 = vpack.c.bf16 %v1260, %v1260
    %v1355 = vpack.c.bf16 %v1267, %v1267
    %v1356 = vpack.c.bf16 %v1274, %v1274
    %v1357 = vpack.c.bf16 %v1281, %v1281
    %v1358 = vpack.c.bf16 %v1288, %v1288
    %v1359 = vpack.c.bf16 %v1295, %v1295
    %v1360 = vpack.c.bf16 %v1302, %v1302
    %v1361 = vpack.c.bf16 %v1309, %v1309
    %v1362 = vpack.c.bf16 %v1316, %v1316
    %v1363 = vpack.c.bf16 %v1323, %v1323
    %v1364 = vpack.c.bf16 %v1330, %v1330
    %v1365 = vpack.c.bf16 %v1337, %v1337
    %v1366 = vpack.c.bf16 %v1344, %v1344
    %v1367 = vpack.c.bf16 %v1351, %v1351
    %v1368 = vld [vmem:[%s5] sm:$0xf]
    %v1369 = vld [vmem:[%s5 + $0x4] sm:$0xf]
    %v1370 = vld [vmem:[%s5 + $0x8] sm:$0xf]
    %v1371 = vld [vmem:[%s5 + $0xc] sm:$0xf]
    %v1372 = vld [vmem:[%s6] sm:$0x1]
    %v1374 = vlaneseq
    %v1375 = vshrl.u32 %v1374, 7
    %v1376 = vsub.s32 0, %v1375
    %v1377 = vrot.slane %v1372, %v1376
    %v1395 = vunpack.c.l.b16 %v1352
    %v1396 = vunpack.c.l.b16 %v1353
    %v1397 = vunpack.c.l.b16 %v1354
    %v1398 = vunpack.c.l.b16 %v1355
    %v1399 = vunpack.c.l.b16 %v1356
    %v1400 = vunpack.c.l.b16 %v1357
    %v1401 = vunpack.c.l.b16 %v1358
    %v1402 = vunpack.c.l.b16 %v1359
    %v1403 = vunpack.c.l.b16 %v1360
    %v1404 = vunpack.c.l.b16 %v1361
    %v1405 = vunpack.c.l.b16 %v1362
    %v1406 = vunpack.c.l.b16 %v1363
    %v1407 = vunpack.c.l.b16 %v1364
    %v1408 = vunpack.c.l.b16 %v1365
    %v1409 = vunpack.c.l.b16 %v1366
    %v1410 = vunpack.c.l.b16 %v1367
    %vm1411 = vcmask 1041409
    %v1412 = vsel %vm1411, %v1396, %v1395
    %vm1413 = vcmask 1042434
    %v1414 = vsel %vm1413, %v1397, %v1412
    %vm1415 = vcmask 1043459
    %v1416 = vsel %vm1415, %v1398, %v1414
    %vm1417 = vcmask 1044484
    %v1418 = vsel %vm1417, %v1399, %v1416
    %vm1419 = vcmask 1045509
    %v1420 = vsel %vm1419, %v1400, %v1418
    %vm1421 = vcmask 1046534
    %v1422 = vsel %vm1421, %v1401, %v1420
    %vm1423 = vcmask 1047559
    %v1424 = vsel %vm1423, %v1402, %v1422
    %v1425 = vsel %vm1411, %v1404, %v1403
    %v1426 = vsel %vm1413, %v1405, %v1425
    %v1427 = vsel %vm1415, %v1406, %v1426
    %v1428 = vsel %vm1417, %v1407, %v1427
    %v1429 = vsel %vm1419, %v1408, %v1428
    %v1430 = vsel %vm1421, %v1409, %v1429
    %v1431 = vsel %vm1423, %v1410, %v1430
    %v1432 = vpack.c.b16 %v1431, %v1424
    %v1437 = vunpack.c.l.b16 %v1368
    %v1438 = vunpack.c.l.b16 %v1369
    %v1439 = vunpack.c.l.b16 %v1370
    %v1440 = vunpack.c.l.b16 %v1371
    %v1441 = vpack.c.b16 %v1438, %v1437
    %v1442 = vpack.c.b16 %v1440, %v1439
    %v1446 = vsel %vm134, %v1432, 0
    %1448 = vmatprep.subr.bf16.mxu0 0
    %1449 = vmatpush1.bf16.msra.mxu0 %v1441
    %1450 = vmatprep.subr.bf16.mxu0 0
    %1451 = vmatpush1.bf16.msra.mxu0 %v1442
    %1452 = vmatprep.subr.bf16.mxu0 0
    %1453 = vmatpush1.bf16.msra.mxu0 0
    %1454 = vmatprep.subr.bf16.mxu0 0
    %1455 = vmatpush1.bf16.msra.mxu0 0
    %1456 = vmatprep.subr.bf16.mxu0 0
    %1457 = vmatpush1.bf16.msra.mxu0 0
    %1458 = vmatprep.subr.bf16.mxu0 0
    %1459 = vmatpush1.bf16.msra.mxu0 0
    %1460 = vmatprep.subr.bf16.mxu0 0
    %1461 = vmatpush1.bf16.msra.mxu0 0
    %1462 = vmatprep.subr.bf16.mxu0 0
    %1463 = vmatpush1.bf16.msra.mxu0 0
    %1464 = vmatprep.subr.bf16.mxu0 0
    %1465 = vmatpush1.bf16.msra.mxu0 0
    %1466 = vmatprep.subr.bf16.mxu0 0
    %1467 = vmatpush1.bf16.msra.mxu0 0
    %1468 = vmatprep.subr.bf16.mxu0 0
    %1469 = vmatpush1.bf16.msra.mxu0 0
    %1470 = vmatprep.subr.bf16.mxu0 0
    %1471 = vmatpush1.bf16.msra.mxu0 0
    %1472 = vmatprep.subr.bf16.mxu0 0
    %1473 = vmatpush1.bf16.msra.mxu0 0
    %1474 = vmatprep.subr.bf16.mxu0 0
    %1475 = vmatpush1.bf16.msra.mxu0 0
    %1476 = vmatprep.subr.bf16.mxu0 0
    %1477 = vmatpush1.bf16.msra.mxu0 0
    %1478 = vmatprep.subr.bf16.mxu0 0
    %1479 = vmatpush1.bf16.msra.mxu0 0
    %1480 = vmatprep.mubr.bf16.mxu0 0
    %1481 = vmatmul.mubr.bf16.gmra.mrb[0].mxu0 %v1446
    %v1482 = vpop.f32.mrb[0].mxu0
    %v1483 = vadd.f32 %v1377, %v1482
    %v1484 = vpop.f32.mrb[0].mxu0
    %v1485 = vpop.f32.mrb[0].mxu0
    %v1486 = vadd.f32 %v1377, %v1485
    %v1487 = vpop.f32.mrb[0].mxu0
    %1488 = vdwg.mxu0
    %v1489 = vadd.f32 %v70, %v1483
    %v1490 = vadd.f32 %v71, %v1486
    %v1491 = vld [vmem:[%s7] sm:$0x1]
    %v1492 = vld [vmem:[%s8] sm:$0x1]
    %v1493 = vsel %vm134, %v1489, 0.0
    %1494 = vadd.xlane.f32.xlu0 %v1493
    %v1495 = vpop.xlane.xlu0 %1494
    %v1496 = vsel %vm134, %v1490, 0.0
    %1497 = vadd.xlane.f32.xlu0 %v1496
    %v1498 = vpop.xlane.xlu0 %1497
    %v1499 = vrcp.pop 32.0
    %v1500 = vmul.f32 %v1495, %v1499
    %v1501 = vmul.f32 %v1498, %v1499
    %v1502 = vsub.f32 %v1489, %v1500
    %v1503 = vsub.f32 %v1490, %v1501
    %v1504 = vmul.f32 %v1502, %v1502
    %v1505 = vmul.f32 %v1503, %v1503
    %v1506 = vsel %vm134, %v1504, 0.0
    %1507 = vadd.xlane.f32.xlu0 %v1506
    %v1508 = vpop.xlane.xlu0 %1507
    %v1509 = vsel %vm134, %v1505, 0.0
    %1510 = vadd.xlane.f32.xlu0 %v1509
    %v1511 = vpop.xlane.xlu0 %1510
    %v1512 = vmul.f32 %v1508, %v1499
    %v1513 = vmul.f32 %v1511, %v1499
    %v1514 = vadd.f32 %v1512, 1e-05
    %v1515 = vadd.f32 %v1513, 1e-05
    %v1516 = vrsqrt.pop %v1514
    %v1517 = vrsqrt.pop %v1515
    %v1518 = vmul.f32 %v1502, %v1516
    %v1519 = vmul.f32 %v1503, %v1517
    %v1521 = vlaneseq
    %v1522 = vshrl.u32 %v1521, 7
    %v1523 = vsub.s32 0, %v1522
    %v1524 = vrot.slane %v1491, %v1523
    %v1526 = vmul.f32 %v1518, %v1524
    %v1527 = vmul.f32 %v1519, %v1524
    %v1529 = vlaneseq
    %v1530 = vshrl.u32 %v1529, 7
    %v1531 = vsub.s32 0, %v1530
    %v1532 = vrot.slane %v1492, %v1531
    %v1534 = vadd.f32 %v1526, %v1532
    %v1535 = vadd.f32 %v1527, %v1532
    %v1536 = vpack.c.bf16 %v1535, %v1534
    %v1537 = vld [vmem:[%s9] sm:$0xf]
    %v1538 = vld [vmem:[%s9 + $0x4] sm:$0xf]
    %v1539 = vld [vmem:[%s9 + $0x8] sm:$0xf]
    %v1540 = vld [vmem:[%s9 + $0xc] sm:$0xf]
    %v1541 = vld [vmem:[%s10] sm:$0x1]
    %v1543 = vlaneseq
    %v1544 = vshrl.u32 %v1543, 7
    %v1545 = vsub.s32 0, %v1544
    %v1546 = vrot.slane %v1541, %v1545
    %v1552 = vunpack.c.l.b16 %v1537
    %v1553 = vunpack.c.l.b16 %v1538
    %v1554 = vunpack.c.l.b16 %v1539
    %v1555 = vunpack.c.l.b16 %v1540
    %v1556 = vpack.c.b16 %v1553, %v1552
    %v1557 = vpack.c.b16 %v1555, %v1554
    %v1561 = vsel %vm134, %v1536, 0
    %1563 = vmatprep.subr.bf16.mxu0 0
    %1564 = vmatpush1.bf16.msra.mxu0 %v1556
    %1565 = vmatprep.subr.bf16.mxu0 0
    %1566 = vmatpush1.bf16.msra.mxu0 %v1557
    %1567 = vmatprep.subr.bf16.mxu0 0
    %1568 = vmatpush1.bf16.msra.mxu0 0
    %1569 = vmatprep.subr.bf16.mxu0 0
    %1570 = vmatpush1.bf16.msra.mxu0 0
    %1571 = vmatprep.subr.bf16.mxu0 0
    %1572 = vmatpush1.bf16.msra.mxu0 0
    %1573 = vmatprep.subr.bf16.mxu0 0
    %1574 = vmatpush1.bf16.msra.mxu0 0
    %1575 = vmatprep.subr.bf16.mxu0 0
    %1576 = vmatpush1.bf16.msra.mxu0 0
    %1577 = vmatprep.subr.bf16.mxu0 0
    %1578 = vmatpush1.bf16.msra.mxu0 0
    %1579 = vmatprep.subr.bf16.mxu0 0
    %1580 = vmatpush1.bf16.msra.mxu0 0
    %1581 = vmatprep.subr.bf16.mxu0 0
    %1582 = vmatpush1.bf16.msra.mxu0 0
    %1583 = vmatprep.subr.bf16.mxu0 0
    %1584 = vmatpush1.bf16.msra.mxu0 0
    %1585 = vmatprep.subr.bf16.mxu0 0
    %1586 = vmatpush1.bf16.msra.mxu0 0
    %1587 = vmatprep.subr.bf16.mxu0 0
    %1588 = vmatpush1.bf16.msra.mxu0 0
    %1589 = vmatprep.subr.bf16.mxu0 0
    %1590 = vmatpush1.bf16.msra.mxu0 0
    %1591 = vmatprep.subr.bf16.mxu0 0
    %1592 = vmatpush1.bf16.msra.mxu0 0
    %1593 = vmatprep.subr.bf16.mxu0 0
    %1594 = vmatpush1.bf16.msra.mxu0 0
    %1595 = vmatprep.mubr.bf16.mxu0 0
    %1596 = vmatmul.mubr.bf16.gmra.mrb[0].mxu0 %v1561
    %v1597 = vpop.f32.mrb[0].mxu0
    %v1598 = vadd.f32 %v1546, %v1597
    %v1599 = vpop.f32.mrb[0].mxu0
    %v1600 = vpop.f32.mrb[0].mxu0
    %v1601 = vadd.f32 %v1546, %v1600
    %v1602 = vpop.f32.mrb[0].mxu0
    %1603 = vdwg.mxu0
    %v1604 = vmax.f32 %v1598, 0.0
    %v1605 = vmax.f32 %v1601, 0.0
    %v1606 = vpack.c.bf16 %v1605, %v1604
    %v1607 = vld [vmem:[%s11] sm:$0xf]
    %v1608 = vld [vmem:[%s11 + $0x4] sm:$0xf]
    %v1609 = vld [vmem:[%s11 + $0x8] sm:$0xf]
    %v1610 = vld [vmem:[%s11 + $0xc] sm:$0xf]
    %v1611 = vld [vmem:[%s11 + $0x10] sm:$0xf]
    %v1612 = vld [vmem:[%s11 + $0x14] sm:$0xf]
    %v1613 = vld [vmem:[%s11 + $0x18] sm:$0xf]
    %v1614 = vld [vmem:[%s11 + $0x1c] sm:$0xf]
    %v1615 = vld [vmem:[%s11 + $0x20] sm:$0xf]
    %v1616 = vld [vmem:[%s11 + $0x24] sm:$0xf]
    %v1617 = vld [vmem:[%s11 + $0x28] sm:$0xf]
    %v1618 = vld [vmem:[%s11 + $0x2c] sm:$0xf]
    %v1619 = vld [vmem:[%s11 + $0x30] sm:$0xf]
    %v1620 = vld [vmem:[%s11 + $0x34] sm:$0xf]
    %v1621 = vld [vmem:[%s11 + $0x38] sm:$0xf]
    %v1622 = vld [vmem:[%s11 + $0x3c] sm:$0xf]
    %v1623 = vld [vmem:[%s12] sm:$0x1]
    %v1625 = vlaneseq
    %v1626 = vshrl.u32 %v1625, 7
    %v1627 = vsub.s32 0, %v1626
    %v1628 = vrot.slane %v1623, %v1627
    %v1646 = vunpack.c.l.b16 %v1607
    %v1647 = vunpack.c.l.b16 %v1608
    %v1648 = vunpack.c.l.b16 %v1609
    %v1649 = vunpack.c.l.b16 %v1610
    %v1650 = vunpack.c.l.b16 %v1611
    %v1651 = vunpack.c.l.b16 %v1612
    %v1652 = vunpack.c.l.b16 %v1613
    %v1653 = vunpack.c.l.b16 %v1614
    %v1654 = vunpack.c.l.b16 %v1615
    %v1655 = vunpack.c.l.b16 %v1616
    %v1656 = vunpack.c.l.b16 %v1617
    %v1657 = vunpack.c.l.b16 %v1618
    %v1658 = vunpack.c.l.b16 %v1619
    %v1659 = vunpack.c.l.b16 %v1620
    %v1660 = vunpack.c.l.b16 %v1621
    %v1661 = vunpack.c.l.b16 %v1622
    %v1662 = vpack.c.b16 %v1647, %v1646
    %v1663 = vpack.c.b16 %v1649, %v1648
    %v1664 = vpack.c.b16 %v1651, %v1650
    %v1665 = vpack.c.b16 %v1653, %v1652
    %v1666 = vpack.c.b16 %v1655, %v1654
    %v1667 = vpack.c.b16 %v1657, %v1656
    %v1668 = vpack.c.b16 %v1659, %v1658
    %v1669 = vpack.c.b16 %v1661, %v1660
    %1678 = vmatprep.subr.bf16.mxu0 0
    %1679 = vmatpush1.bf16.msra.mxu0 %v1662
    %1680 = vmatprep.subr.bf16.mxu0 0
    %1681 = vmatpush1.bf16.msra.mxu0 %v1663
    %1682 = vmatprep.subr.bf16.mxu0 0
    %1683 = vmatpush1.bf16.msra.mxu0 %v1664
    %1684 = vmatprep.subr.bf16.mxu0 0
    %1685 = vmatpush1.bf16.msra.mxu0 %v1665
    %1686 = vmatprep.subr.bf16.mxu0 0
    %1687 = vmatpush1.bf16.msra.mxu0 %v1666
    %1688 = vmatprep.subr.bf16.mxu0 0
    %1689 = vmatpush1.bf16.msra.mxu0 %v1667
    %1690 = vmatprep.subr.bf16.mxu0 0
    %1691 = vmatpush1.bf16.msra.mxu0 %v1668
    %1692 = vmatprep.subr.bf16.mxu0 0
    %1693 = vmatpush1.bf16.msra.mxu0 %v1669
    %1694 = vmatprep.subr.bf16.mxu0 0
    %1695 = vmatpush1.bf16.msra.mxu0 0
    %1696 = vmatprep.subr.bf16.mxu0 0
    %1697 = vmatpush1.bf16.msra.mxu0 0
    %1698 = vmatprep.subr.bf16.mxu0 0
    %1699 = vmatpush1.bf16.msra.mxu0 0
    %1700 = vmatprep.subr.bf16.mxu0 0
    %1701 = vmatpush1.bf16.msra.mxu0 0
    %1702 = vmatprep.subr.bf16.mxu0 0
    %1703 = vmatpush1.bf16.msra.mxu0 0
    %1704 = vmatprep.subr.bf16.mxu0 0
    %1705 = vmatpush1.bf16.msra.mxu0 0
    %1706 = vmatprep.subr.bf16.mxu0 0
    %1707 = vmatpush1.bf16.msra.mxu0 0
    %1708 = vmatprep.subr.bf16.mxu0 0
    %1709 = vmatpush1.bf16.msra.mxu0 0
    %1710 = vmatprep.mubr.bf16.mxu0 0
    %1711 = vmatmul.mubr.bf16.gmra.mrb[0].mxu0 %v1606
    %v1712 = vpop.f32.mrb[0].mxu0
    %v1713 = vadd.f32 %v1628, %v1712
    %v1714 = vpop.f32.mrb[0].mxu0
    %v1715 = vpop.f32.mrb[0].mxu0
    %v1716 = vadd.f32 %v1628, %v1715
    %v1717 = vpop.f32.mrb[0].mxu0
    %1718 = vdwg.mxu0
    %v1719 = vadd.f32 %v1534, %v1713
    %v1720 = vadd.f32 %v1535, %v1716
    %v1721 = vld [vmem:[%s13] sm:$0x1]
    %v1722 = vld [vmem:[%s14] sm:$0x1]
    %v1723 = vsel %vm134, %v1719, 0.0
    %1724 = vadd.xlane.f32.xlu0 %v1723
    %v1725 = vpop.xlane.xlu0 %1724
    %v1726 = vsel %vm134, %v1720, 0.0
    %1727 = vadd.xlane.f32.xlu0 %v1726
    %v1728 = vpop.xlane.xlu0 %1727
    %v1729 = vmul.f32 %v1725, %v1499
    %v1730 = vmul.f32 %v1728, %v1499
    %v1731 = vsub.f32 %v1719, %v1729
    %v1732 = vsub.f32 %v1720, %v1730
    %v1733 = vmul.f32 %v1731, %v1731
    %v1734 = vmul.f32 %v1732, %v1732
    %v1735 = vsel %vm134, %v1733, 0.0
    %1736 = vadd.xlane.f32.xlu0 %v1735
    %v1737 = vpop.xlane.xlu0 %1736
    %v1738 = vsel %vm134, %v1734, 0.0
    %1739 = vadd.xlane.f32.xlu0 %v1738
    %v1740 = vpop.xlane.xlu0 %1739
    %v1741 = vmul.f32 %v1737, %v1499
    %v1742 = vmul.f32 %v1740, %v1499
    %v1743 = vadd.f32 %v1741, 1e-05
    %v1744 = vadd.f32 %v1742, 1e-05
    %v1745 = vrsqrt.pop %v1743
    %v1746 = vrsqrt.pop %v1744
    %v1747 = vmul.f32 %v1731, %v1745
    %v1748 = vmul.f32 %v1732, %v1746
    %v1750 = vlaneseq
    %v1751 = vshrl.u32 %v1750, 7
    %v1752 = vsub.s32 0, %v1751
    %v1753 = vrot.slane %v1721, %v1752
    %v1755 = vmul.f32 %v1747, %v1753
    %v1756 = vmul.f32 %v1748, %v1753
    %v1758 = vlaneseq
    %v1759 = vshrl.u32 %v1758, 7
    %v1760 = vsub.s32 0, %v1759
    %v1761 = vrot.slane %v1722, %v1760
    %v1763 = vadd.f32 %v1755, %v1761
    %v1764 = vadd.f32 %v1756, %v1761
    %v1765 = vpack.c.bf16 %v1764, %v1763
    %s1766 = scalar_lea.vmem %s3, 48
    %v1767 = vld [vmem:[%s1766] sm:$0xf]
    %v1768 = vld [vmem:[%s1766 + $0x4] sm:$0xf]
    %v1769 = vld [vmem:[%s1766 + $0x8] sm:$0xf]
    %v1770 = vld [vmem:[%s1766 + $0xc] sm:$0xf]
    %s1771 = scalar_lea.vmem %s4, 3
    %v1772 = vld [vmem:[%s1771] sm:$0x1]
    %v1774 = vlaneseq
    %v1775 = vshrl.u32 %v1774, 7
    %v1776 = vsub.s32 0, %v1775
    %v1777 = vrot.slane %v1772, %v1776
    %v1783 = vunpack.c.l.b16 %v1767
    %v1784 = vunpack.c.l.b16 %v1768
    %v1785 = vunpack.c.l.b16 %v1769
    %v1786 = vunpack.c.l.b16 %v1770
    %v1787 = vpack.c.b16 %v1784, %v1783
    %v1788 = vpack.c.b16 %v1786, %v1785
    %v1792 = vsel %vm134, %v1765, 0
    %1794 = vmatprep.subr.bf16.mxu0 0
    %1795 = vmatpush1.bf16.msra.mxu0 %v1787
    %1796 = vmatprep.subr.bf16.mxu0 0
    %1797 = vmatpush1.bf16.msra.mxu0 %v1788
    %1798 = vmatprep.subr.bf16.mxu0 0
    %1799 = vmatpush1.bf16.msra.mxu0 0
    %1800 = vmatprep.subr.bf16.mxu0 0
    %1801 = vmatpush1.bf16.msra.mxu0 0
    %1802 = vmatprep.subr.bf16.mxu0 0
    %1803 = vmatpush1.bf16.msra.mxu0 0
    %1804 = vmatprep.subr.bf16.mxu0 0
    %1805 = vmatpush1.bf16.msra.mxu0 0
    %1806 = vmatprep.subr.bf16.mxu0 0
    %1807 = vmatpush1.bf16.msra.mxu0 0
    %1808 = vmatprep.subr.bf16.mxu0 0
    %1809 = vmatpush1.bf16.msra.mxu0 0
    %1810 = vmatprep.subr.bf16.mxu0 0
    %1811 = vmatpush1.bf16.msra.mxu0 0
    %1812 = vmatprep.subr.bf16.mxu0 0
    %1813 = vmatpush1.bf16.msra.mxu0 0
    %1814 = vmatprep.subr.bf16.mxu0 0
    %1815 = vmatpush1.bf16.msra.mxu0 0
    %1816 = vmatprep.subr.bf16.mxu0 0
    %1817 = vmatpush1.bf16.msra.mxu0 0
    %1818 = vmatprep.subr.bf16.mxu0 0
    %1819 = vmatpush1.bf16.msra.mxu0 0
    %1820 = vmatprep.subr.bf16.mxu0 0
    %1821 = vmatpush1.bf16.msra.mxu0 0
    %1822 = vmatprep.subr.bf16.mxu0 0
    %1823 = vmatpush1.bf16.msra.mxu0 0
    %1824 = vmatprep.subr.bf16.mxu0 0
    %1825 = vmatpush1.bf16.msra.mxu0 0
    %1826 = vmatprep.mubr.bf16.mxu0 0
    %1827 = vmatmul.mubr.bf16.gmra.mrb[0].mxu0 %v1792
    %v1828 = vpop.f32.mrb[0].mxu0
    %v1829 = vadd.f32 %v1777, %v1828
    %v1830 = vpop.f32.mrb[0].mxu0
    %v1831 = vpop.f32.mrb[0].mxu0
    %v1832 = vadd.f32 %v1777, %v1831
    %v1833 = vpop.f32.mrb[0].mxu0
    %1834 = vdwg.mxu0
    %s1835 = scalar_lea.vmem %s3, 64
    %v1836 = vld [vmem:[%s1835] sm:$0xf]
    %v1837 = vld [vmem:[%s1835 + $0x4] sm:$0xf]
    %v1838 = vld [vmem:[%s1835 + $0x8] sm:$0xf]
    %v1839 = vld [vmem:[%s1835 + $0xc] sm:$0xf]
    %s1840 = scalar_lea.vmem %s4, 4
    %v1841 = vld [vmem:[%s1840] sm:$0x1]
    %v1843 = vlaneseq
    %v1844 = vshrl.u32 %v1843, 7
    %v1845 = vsub.s32 0, %v1844
    %v1846 = vrot.slane %v1841, %v1845
    %v1852 = vunpack.c.l.b16 %v1836
    %v1853 = vunpack.c.l.b16 %v1837
    %v1854 = vunpack.c.l.b16 %v1838
    %v1855 = vunpack.c.l.b16 %v1839
    %v1856 = vpack.c.b16 %v1853, %v1852
    %v1857 = vpack.c.b16 %v1855, %v1854
    %1860 = vmatprep.subr.bf16.mxu0 0
    %1861 = vmatpush1.bf16.msra.mxu0 %v1856
    %1862 = vmatprep.subr.bf16.mxu0 0
    %1863 = vmatpush1.bf16.msra.mxu0 %v1857
    %1864 = vmatprep.subr.bf16.mxu0 0
    %1865 = vmatpush1.bf16.msra.mxu0 0
    %1866 = vmatprep.subr.bf16.mxu0 0
    %1867 = vmatpush1.bf16.msra.mxu0 0
    %1868 = vmatprep.subr.bf16.mxu0 0
    %1869 = vmatpush1.bf16.msra.mxu0 0
    %1870 = vmatprep.subr.bf16.mxu0 0
    %1871 = vmatpush1.bf16.msra.mxu0 0
    %1872 = vmatprep.subr.bf16.mxu0 0
    %1873 = vmatpush1.bf16.msra.mxu0 0
    %1874 = vmatprep.subr.bf16.mxu0 0
    %1875 = vmatpush1.bf16.msra.mxu0 0
    %1876 = vmatprep.subr.bf16.mxu0 0
    %1877 = vmatpush1.bf16.msra.mxu0 0
    %1878 = vmatprep.subr.bf16.mxu0 0
    %1879 = vmatpush1.bf16.msra.mxu0 0
    %1880 = vmatprep.subr.bf16.mxu0 0
    %1881 = vmatpush1.bf16.msra.mxu0 0
    %1882 = vmatprep.subr.bf16.mxu0 0
    %1883 = vmatpush1.bf16.msra.mxu0 0
    %1884 = vmatprep.subr.bf16.mxu0 0
    %1885 = vmatpush1.bf16.msra.mxu0 0
    %1886 = vmatprep.subr.bf16.mxu0 0
    %1887 = vmatpush1.bf16.msra.mxu0 0
    %1888 = vmatprep.subr.bf16.mxu0 0
    %1889 = vmatpush1.bf16.msra.mxu0 0
    %1890 = vmatprep.subr.bf16.mxu0 0
    %1891 = vmatpush1.bf16.msra.mxu0 0
    %1892 = vmatprep.mubr.bf16.mxu0 0
    %1893 = vmatmul.mubr.bf16.gmra.mrb[0].mxu0 %v1792
    %v1894 = vpop.f32.mrb[0].mxu0
    %v1895 = vadd.f32 %v1846, %v1894
    %v1896 = vpop.f32.mrb[0].mxu0
    %v1897 = vpop.f32.mrb[0].mxu0
    %v1898 = vadd.f32 %v1846, %v1897
    %v1899 = vpop.f32.mrb[0].mxu0
    %1900 = vdwg.mxu0
    %s1901 = scalar_lea.vmem %s3, 80
    %v1902 = vld [vmem:[%s1901] sm:$0xf]
    %v1903 = vld [vmem:[%s1901 + $0x4] sm:$0xf]
    %v1904 = vld [vmem:[%s1901 + $0x8] sm:$0xf]
    %v1905 = vld [vmem:[%s1901 + $0xc] sm:$0xf]
    %s1906 = scalar_lea.vmem %s4, 5
    %v1907 = vld [vmem:[%s1906] sm:$0x1]
    %v1909 = vlaneseq
    %v1910 = vshrl.u32 %v1909, 7
    %v1911 = vsub.s32 0, %v1910
    %v1912 = vrot.slane %v1907, %v1911
    %v1918 = vunpack.c.l.b16 %v1902
    %v1919 = vunpack.c.l.b16 %v1903
    %v1920 = vunpack.c.l.b16 %v1904
    %v1921 = vunpack.c.l.b16 %v1905
    %v1922 = vpack.c.b16 %v1919, %v1918
    %v1923 = vpack.c.b16 %v1921, %v1920
    %1926 = vmatprep.subr.bf16.mxu0 0
    %1927 = vmatpush1.bf16.msra.mxu0 %v1922
    %1928 = vmatprep.subr.bf16.mxu0 0
    %1929 = vmatpush1.bf16.msra.mxu0 %v1923
    %1930 = vmatprep.subr.bf16.mxu0 0
    %1931 = vmatpush1.bf16.msra.mxu0 0
    %1932 = vmatprep.subr.bf16.mxu0 0
    %1933 = vmatpush1.bf16.msra.mxu0 0
    %1934 = vmatprep.subr.bf16.mxu0 0
    %1935 = vmatpush1.bf16.msra.mxu0 0
    %1936 = vmatprep.subr.bf16.mxu0 0
    %1937 = vmatpush1.bf16.msra.mxu0 0
    %1938 = vmatprep.subr.bf16.mxu0 0
    %1939 = vmatpush1.bf16.msra.mxu0 0
    %1940 = vmatprep.subr.bf16.mxu0 0
    %1941 = vmatpush1.bf16.msra.mxu0 0
    %1942 = vmatprep.subr.bf16.mxu0 0
    %1943 = vmatpush1.bf16.msra.mxu0 0
    %1944 = vmatprep.subr.bf16.mxu0 0
    %1945 = vmatpush1.bf16.msra.mxu0 0
    %1946 = vmatprep.subr.bf16.mxu0 0
    %1947 = vmatpush1.bf16.msra.mxu0 0
    %1948 = vmatprep.subr.bf16.mxu0 0
    %1949 = vmatpush1.bf16.msra.mxu0 0
    %1950 = vmatprep.subr.bf16.mxu0 0
    %1951 = vmatpush1.bf16.msra.mxu0 0
    %1952 = vmatprep.subr.bf16.mxu0 0
    %1953 = vmatpush1.bf16.msra.mxu0 0
    %1954 = vmatprep.subr.bf16.mxu0 0
    %1955 = vmatpush1.bf16.msra.mxu0 0
    %1956 = vmatprep.subr.bf16.mxu0 0
    %1957 = vmatpush1.bf16.msra.mxu0 0
    %1958 = vmatprep.mubr.bf16.mxu0 0
    %1959 = vmatmul.mubr.bf16.gmra.mrb[0].mxu0 %v1792
    %v1960 = vpop.f32.mrb[0].mxu0
    %v1961 = vadd.f32 %v1912, %v1960
    %v1962 = vpop.f32.mrb[0].mxu0
    %v1963 = vpop.f32.mrb[0].mxu0
    %v1964 = vadd.f32 %v1912, %v1963
    %v1965 = vpop.f32.mrb[0].mxu0
    %1966 = vdwg.mxu0
    %v1969 = vcombine.high %v1829, %v1829
    %v1971 = vunpack.c.l.s4 1966171168
    %v1972 = vunpack.c.0.s8 %v1971
    %v1973 = vlaneseq
    %v1974 = vshrl.u32 %v1973, 7
    %v1975 = vsub.s32 %v1972, %v1974
    %v1976 = vrot.slane %v1829, %v1975
    %v1978 = vunpack.c.l.s4 1966171168
    %v1979 = vunpack.c.0.s8 %v1978
    %v1980 = vlaneseq
    %v1981 = vshrl.u32 %v1980, 7
    %v1982 = vsub.s32 %v1979, %v1981
    %v1983 = vrot.slane %v1969, %v1982
    %v1984 = vcombine.high %v1976, %v1976
    %v1985 = vcombine.high %v1983, %v1983
    %v1987 = vunpack.c.l.s4 1966171168
    %v1988 = vunpack.c.0.s8 %v1987
    %v1989 = vlaneseq
    %v1990 = vshrl.u32 %v1989, 7
    %v1991 = vsub.s32 %v1988, %v1990
    %v1992 = vrot.slane %v1976, %v1991
    %v1994 = vunpack.c.l.s4 1966171168
    %v1995 = vunpack.c.0.s8 %v1994
    %v1996 = vlaneseq
    %v1997 = vshrl.u32 %v1996, 7
    %v1998 = vsub.s32 %v1995, %v1997
    %v1999 = vrot.slane %v1983, %v1998
    %v2001 = vunpack.c.l.s4 1966171168
    %v2002 = vunpack.c.0.s8 %v2001
    %v2003 = vlaneseq
    %v2004 = vshrl.u32 %v2003, 7
    %v2005 = vsub.s32 %v2002, %v2004
    %v2006 = vrot.slane %v1984, %v2005
    %v2008 = vunpack.c.l.s4 1966171168
    %v2009 = vunpack.c.0.s8 %v2008
    %v2010 = vlaneseq
    %v2011 = vshrl.u32 %v2010, 7
    %v2012 = vsub.s32 %v2009, %v2011
    %v2013 = vrot.slane %v1985, %v2012
    %v2014 = vcombine.high %v1992, %v1992
    %v2015 = vcombine.high %v1999, %v1999
    %v2016 = vcombine.high %v2006, %v2006
    %v2017 = vcombine.high %v2013, %v2013
    %v2018 = vcombine.high %v1832, %v1832
    %v2020 = vunpack.c.l.s4 1966171168
    %v2021 = vunpack.c.0.s8 %v2020
    %v2022 = vlaneseq
    %v2023 = vshrl.u32 %v2022, 7
    %v2024 = vsub.s32 %v2021, %v2023
    %v2025 = vrot.slane %v1832, %v2024
    %v2027 = vunpack.c.l.s4 1966171168
    %v2028 = vunpack.c.0.s8 %v2027
    %v2029 = vlaneseq
    %v2030 = vshrl.u32 %v2029, 7
    %v2031 = vsub.s32 %v2028, %v2030
    %v2032 = vrot.slane %v2018, %v2031
    %v2033 = vcombine.high %v2025, %v2025
    %v2034 = vcombine.high %v2032, %v2032
    %v2036 = vunpack.c.l.s4 1966171168
    %v2037 = vunpack.c.0.s8 %v2036
    %v2038 = vlaneseq
    %v2039 = vshrl.u32 %v2038, 7
    %v2040 = vsub.s32 %v2037, %v2039
    %v2041 = vrot.slane %v2025, %v2040
    %v2043 = vunpack.c.l.s4 1966171168
    %v2044 = vunpack.c.0.s8 %v2043
    %v2045 = vlaneseq
    %v2046 = vshrl.u32 %v2045, 7
    %v2047 = vsub.s32 %v2044, %v2046
    %v2048 = vrot.slane %v2032, %v2047
    %v2050 = vunpack.c.l.s4 1966171168
    %v2051 = vunpack.c.0.s8 %v2050
    %v2052 = vlaneseq
    %v2053 = vshrl.u32 %v2052, 7
    %v2054 = vsub.s32 %v2051, %v2053
    %v2055 = vrot.slane %v2033, %v2054
    %v2057 = vunpack.c.l.s4 1966171168
    %v2058 = vunpack.c.0.s8 %v2057
    %v2059 = vlaneseq
    %v2060 = vshrl.u32 %v2059, 7
    %v2061 = vsub.s32 %v2058, %v2060
    %v2062 = vrot.slane %v2034, %v2061
    %v2063 = vcombine.high %v2041, %v2041
    %v2064 = vcombine.high %v2048, %v2048
    %v2065 = vcombine.high %v2055, %v2055
    %v2066 = vcombine.high %v2062, %v2062
    %v2067 = vlaneseq
    %v2068 = vshrl.u32 %v2067, 7
    %v2069 = vsub.s32 0, %v2068
    %v2070 = vrot.slane %v1992, %v2069
    %v2071 = vlaneseq
    %v2072 = vshrl.u32 %v2071, 7
    %v2073 = vsub.s32 0, %v2072
    %v2074 = vrot.slane %v2006, %v2073
    %v2075 = vlaneseq
    %v2076 = vshrl.u32 %v2075, 7
    %v2077 = vsub.s32 0, %v2076
    %v2078 = vrot.slane %v2014, %v2077
    %v2079 = vlaneseq
    %v2080 = vshrl.u32 %v2079, 7
    %v2081 = vsub.s32 0, %v2080
    %v2082 = vrot.slane %v2016, %v2081
    %v2083 = vlaneseq
    %v2084 = vshrl.u32 %v2083, 7
    %v2085 = vsub.s32 0, %v2084
    %v2086 = vrot.slane %v1999, %v2085
    %v2087 = vlaneseq
    %v2088 = vshrl.u32 %v2087, 7
    %v2089 = vsub.s32 0, %v2088
    %v2090 = vrot.slane %v2013, %v2089
    %v2091 = vlaneseq
    %v2092 = vshrl.u32 %v2091, 7
    %v2093 = vsub.s32 0, %v2092
    %v2094 = vrot.slane %v2015, %v2093
    %v2095 = vlaneseq
    %v2096 = vshrl.u32 %v2095, 7
    %v2097 = vsub.s32 0, %v2096
    %v2098 = vrot.slane %v2017, %v2097
    %v2099 = vlaneseq
    %v2100 = vshrl.u32 %v2099, 7
    %v2101 = vsub.s32 0, %v2100
    %v2102 = vrot.slane %v2041, %v2101
    %v2103 = vlaneseq
    %v2104 = vshrl.u32 %v2103, 7
    %v2105 = vsub.s32 0, %v2104
    %v2106 = vrot.slane %v2055, %v2105
    %v2107 = vlaneseq
    %v2108 = vshrl.u32 %v2107, 7
    %v2109 = vsub.s32 0, %v2108
    %v2110 = vrot.slane %v2063, %v2109
    %v2111 = vlaneseq
    %v2112 = vshrl.u32 %v2111, 7
    %v2113 = vsub.s32 0, %v2112
    %v2114 = vrot.slane %v2065, %v2113
    %v2115 = vlaneseq
    %v2116 = vshrl.u32 %v2115, 7
    %v2117 = vsub.s32 0, %v2116
    %v2118 = vrot.slane %v2048, %v2117
    %v2119 = vlaneseq
    %v2120 = vshrl.u32 %v2119, 7
    %v2121 = vsub.s32 0, %v2120
    %v2122 = vrot.slane %v2062, %v2121
    %v2123 = vlaneseq
    %v2124 = vshrl.u32 %v2123, 7
    %v2125 = vsub.s32 0, %v2124
    %v2126 = vrot.slane %v2064, %v2125
    %v2127 = vlaneseq
    %v2128 = vshrl.u32 %v2127, 7
    %v2129 = vsub.s32 0, %v2128
    %v2130 = vrot.slane %v2066, %v2129
    %v2147 = vmul.f32 %v2070, %v1895
    %v2148 = vmul.f32 %v2074, %v1895
    %v2149 = vmul.f32 %v2078, %v1895
    %v2150 = vmul.f32 %v2082, %v1895
    %v2151 = vmul.f32 %v2086, %v1895
    %v2152 = vmul.f32 %v2090, %v1895
    %v2153 = vmul.f32 %v2094, %v1895
    %v2154 = vmul.f32 %v2098, %v1895
    %v2155 = vmul.f32 %v2102, %v1898
    %v2156 = vmul.f32 %v2106, %v1898
    %v2157 = vmul.f32 %v2110, %v1898
    %v2158 = vmul.f32 %v2114, %v1898
    %v2159 = vmul.f32 %v2118, %v1898
    %v2160 = vmul.f32 %v2122, %v1898
    %v2161 = vmul.f32 %v2126, %v1898
    %v2162 = vmul.f32 %v2130, %v1898
    %v2164 = vsel %vm134, %v2147, 0
    %v2167 = vsel %vm134, %v2148, 0
    %v2170 = vsel %vm134, %v2149, 0
    %v2173 = vsel %vm134, %v2150, 0
    %v2176 = vsel %vm134, %v2151, 0
    %v2179 = vsel %vm134, %v2152, 0
    %v2182 = vsel %vm134, %v2153, 0
    %v2185 = vsel %vm134, %v2154, 0
    %v2188 = vsel %vm134, %v2155, 0
    %v2191 = vsel %vm134, %v2156, 0
    %v2194 = vsel %vm134, %v2157, 0
    %v2197 = vsel %vm134, %v2158, 0
    %v2200 = vsel %vm134, %v2159, 0
    %v2203 = vsel %vm134, %v2160, 0
    %v2206 = vsel %vm134, %v2161, 0
    %v2209 = vsel %vm134, %v2162, 0
    %2211 = vmatprep.subr.mxu0 0.0
    %2212 = vmatpush1.msra.mxu0 %v97
    %2213 = vmatprep.subr.mxu0 0.0
    %2214 = vmatpush1.msra.mxu0 %v98
    %2215 = vmatprep.subr.mxu0 0.0
    %2216 = vmatpush1.msra.mxu0 %v99
    %2217 = vmatprep.subr.mxu0 0.0
    %2218 = vmatpush1.msra.mxu0 %v100
    %2219 = vmatprep.subr.mxu0 0.0
    %2220 = vmatpush1.msra.mxu0 0.0
    %2221 = vmatprep.subr.mxu0 0.0
    %2222 = vmatpush1.msra.mxu0 0.0
    %2223 = vmatprep.subr.mxu0 0.0
    %2224 = vmatpush1.msra.mxu0 0.0
    %2225 = vmatprep.subr.mxu0 0.0
    %2226 = vmatpush1.msra.mxu0 0.0
    %2227 = vmatprep.subr.mxu0 0.0
    %2228 = vmatpush1.msra.mxu0 0.0
    %2229 = vmatprep.subr.mxu0 0.0
    %2230 = vmatpush1.msra.mxu0 0.0
    %2231 = vmatprep.subr.mxu0 0.0
    %2232 = vmatpush1.msra.mxu0 0.0
    %2233 = vmatprep.subr.mxu0 0.0
    %2234 = vmatpush1.msra.mxu0 0.0
    %2235 = vmatprep.subr.mxu0 0.0
    %2236 = vmatpush1.msra.mxu0 0.0
    %2237 = vmatprep.subr.mxu0 0.0
    %2238 = vmatpush1.msra.mxu0 0.0
    %2239 = vmatprep.subr.mxu0 0.0
    %2240 = vmatpush1.msra.mxu0 0.0
    %2241 = vmatprep.subr.mxu0 0.0
    %2242 = vmatpush1.msra.mxu0 0.0
    %2243 = vmatprep.subr.mxu0 0.0
    %2244 = vmatpush1.msra.mxu0 0.0
    %2245 = vmatprep.subr.mxu0 0.0
    %2246 = vmatpush1.msra.mxu0 0.0
    %2247 = vmatprep.subr.mxu0 0.0
    %2248 = vmatpush1.msra.mxu0 0.0
    %2249 = vmatprep.subr.mxu0 0.0
    %2250 = vmatpush1.msra.mxu0 0.0
    %2251 = vmatprep.subr.mxu0 0.0
    %2252 = vmatpush1.msra.mxu0 0.0
    %2253 = vmatprep.subr.mxu0 0.0
    %2254 = vmatpush1.msra.mxu0 0.0
    %2255 = vmatprep.subr.mxu0 0.0
    %2256 = vmatpush1.msra.mxu0 0.0
    %2257 = vmatprep.subr.mxu0 0.0
    %2258 = vmatpush1.msra.mxu0 0.0
    %2259 = vmatprep.subr.mxu0 0.0
    %2260 = vmatpush1.msra.mxu0 0.0
    %2261 = vmatprep.subr.mxu0 0.0
    %2262 = vmatpush1.msra.mxu0 0.0
    %2263 = vmatprep.subr.mxu0 0.0
    %2264 = vmatpush1.msra.mxu0 0.0
    %2265 = vmatprep.subr.mxu0 0.0
    %2266 = vmatpush1.msra.mxu0 0.0
    %2267 = vmatprep.subr.mxu0 0.0
    %2268 = vmatpush1.msra.mxu0 0.0
    %2269 = vmatprep.subr.mxu0 0.0
    %2270 = vmatpush1.msra.mxu0 0.0
    %2271 = vmatprep.subr.mxu0 0.0
    %2272 = vmatpush1.msra.mxu0 0.0
    %2273 = vmatprep.subr.mxu0 0.0
    %2274 = vmatpush1.msra.mxu0 0.0
    %2275 = vmatprep.mubr.f32.mxu0 0.0
    %2276 = vmatmul.mubr.f32.gmra.mrb[0].mxu0 %v2164
    %v2277 = vpop.f32.mrb[0].mxu0
    %v2278 = vadd.f32 0.0, %v2277
    %v2279 = vpop.f32.mrb[0].mxu0
    %2280 = vmatprep.mubr.f32.mxu0 0.0
    %2281 = vmatmul.mubr.f32.gmra.mrb[0].mxu0 %v2167
    %v2282 = vpop.f32.mrb[0].mxu0
    %v2283 = vadd.f32 0.0, %v2282
    %v2284 = vpop.f32.mrb[0].mxu0
    %2285 = vmatprep.mubr.f32.mxu0 0.0
    %2286 = vmatmul.mubr.f32.gmra.mrb[0].mxu0 %v2170
    %v2287 = vpop.f32.mrb[0].mxu0
    %v2288 = vadd.f32 0.0, %v2287
    %v2289 = vpop.f32.mrb[0].mxu0
    %2290 = vmatprep.mubr.f32.mxu0 0.0
    %2291 = vmatmul.mubr.f32.gmra.mrb[0].mxu0 %v2173
    %v2292 = vpop.f32.mrb[0].mxu0
    %v2293 = vadd.f32 0.0, %v2292
    %v2294 = vpop.f32.mrb[0].mxu0
    %2295 = vmatprep.mubr.f32.mxu0 0.0
    %2296 = vmatmul.mubr.f32.gmra.mrb[0].mxu0 %v2176
    %v2297 = vpop.f32.mrb[0].mxu0
    %v2298 = vadd.f32 0.0, %v2297
    %v2299 = vpop.f32.mrb[0].mxu0
    %2300 = vmatprep.mubr.f32.mxu0 0.0
    %2301 = vmatmul.mubr.f32.gmra.mrb[0].mxu0 %v2179
    %v2302 = vpop.f32.mrb[0].mxu0
    %v2303 = vadd.f32 0.0, %v2302
    %v2304 = vpop.f32.mrb[0].mxu0
    %2305 = vmatprep.mubr.f32.mxu0 0.0
    %2306 = vmatmul.mubr.f32.gmra.mrb[0].mxu0 %v2182
    %v2307 = vpop.f32.mrb[0].mxu0
    %v2308 = vadd.f32 0.0, %v2307
    %v2309 = vpop.f32.mrb[0].mxu0
    %2310 = vmatprep.mubr.f32.mxu0 0.0
    %2311 = vmatmul.mubr.f32.gmra.mrb[0].mxu0 %v2185
    %v2312 = vpop.f32.mrb[0].mxu0
    %v2313 = vadd.f32 0.0, %v2312
    %v2314 = vpop.f32.mrb[0].mxu0
    %2315 = vmatprep.mubr.f32.mxu0 0.0
    %2316 = vmatmul.mubr.f32.gmra.mrb[0].mxu0 %v2188
    %v2317 = vpop.f32.mrb[0].mxu0
    %v2318 = vadd.f32 0.0, %v2317
    %v2319 = vpop.f32.mrb[0].mxu0
    %2320 = vmatprep.mubr.f32.mxu0 0.0
    %2321 = vmatmul.mubr.f32.gmra.mrb[0].mxu0 %v2191
    %v2322 = vpop.f32.mrb[0].mxu0
    %v2323 = vadd.f32 0.0, %v2322
    %v2324 = vpop.f32.mrb[0].mxu0
    %2325 = vmatprep.mubr.f32.mxu0 0.0
    %2326 = vmatmul.mubr.f32.gmra.mrb[0].mxu0 %v2194
    %v2327 = vpop.f32.mrb[0].mxu0
    %v2328 = vadd.f32 0.0, %v2327
    %v2329 = vpop.f32.mrb[0].mxu0
    %2330 = vmatprep.mubr.f32.mxu0 0.0
    %2331 = vmatmul.mubr.f32.gmra.mrb[0].mxu0 %v2197
    %v2332 = vpop.f32.mrb[0].mxu0
    %v2333 = vadd.f32 0.0, %v2332
    %v2334 = vpop.f32.mrb[0].mxu0
    %2335 = vmatprep.mubr.f32.mxu0 0.0
    %2336 = vmatmul.mubr.f32.gmra.mrb[0].mxu0 %v2200
    %v2337 = vpop.f32.mrb[0].mxu0
    %v2338 = vadd.f32 0.0, %v2337
    %v2339 = vpop.f32.mrb[0].mxu0
    %2340 = vmatprep.mubr.f32.mxu0 0.0
    %2341 = vmatmul.mubr.f32.gmra.mrb[0].mxu0 %v2203
    %v2342 = vpop.f32.mrb[0].mxu0
    %v2343 = vadd.f32 0.0, %v2342
    %v2344 = vpop.f32.mrb[0].mxu0
    %2345 = vmatprep.mubr.f32.mxu0 0.0
    %2346 = vmatmul.mubr.f32.gmra.mrb[0].mxu0 %v2206
    %v2347 = vpop.f32.mrb[0].mxu0
    %v2348 = vadd.f32 0.0, %v2347
    %v2349 = vpop.f32.mrb[0].mxu0
    %2350 = vmatprep.mubr.f32.mxu0 0.0
    %2351 = vmatmul.mubr.f32.gmra.mrb[0].mxu0 %v2209
    %v2352 = vpop.f32.mrb[0].mxu0
    %v2353 = vadd.f32 0.0, %v2352
    %v2354 = vpop.f32.mrb[0].mxu0
    %2355 = vdwg.mxu0
    %v2356 = vadd.f32 %v2278, %v703
    %v2357 = vadd.f32 %v2283, %v703
    %v2358 = vadd.f32 %v2288, %v703
    %v2359 = vadd.f32 %v2293, %v703
    %v2360 = vadd.f32 %v2298, %v703
    %v2361 = vadd.f32 %v2303, %v703
    %v2362 = vadd.f32 %v2308, %v703
    %v2363 = vadd.f32 %v2313, %v703
    %v2364 = vadd.f32 %v2318, %v708
    %v2365 = vadd.f32 %v2323, %v708
    %v2366 = vadd.f32 %v2328, %v708
    %v2367 = vadd.f32 %v2333, %v708
    %v2368 = vadd.f32 %v2338, %v708
    %v2369 = vadd.f32 %v2343, %v708
    %v2370 = vadd.f32 %v2348, %v708
    %v2371 = vadd.f32 %v2353, %v708
    %v2372 = vsel %vm726, %v2356, -inf
    %v2373 = vrot.slane %v2372, 4
    %v2374 = vmax.f32 %v2372, %v2373
    %v2375 = vrot.slane %v2374, 2
    %v2376 = vmax.f32 %v2374, %v2375
    %v2377 = vrot.slane %v2376, 1
    %v2378 = vmax.f32 %v2376, %v2377
    %v2379 = vsel %vm726, %v2357, -inf
    %v2380 = vrot.slane %v2379, 4
    %v2381 = vmax.f32 %v2379, %v2380
    %v2382 = vrot.slane %v2381, 2
    %v2383 = vmax.f32 %v2381, %v2382
    %v2384 = vrot.slane %v2383, 1
    %v2385 = vmax.f32 %v2383, %v2384
    %v2386 = vsel %vm726, %v2358, -inf
    %v2387 = vrot.slane %v2386, 4
    %v2388 = vmax.f32 %v2386, %v2387
    %v2389 = vrot.slane %v2388, 2
    %v2390 = vmax.f32 %v2388, %v2389
    %v2391 = vrot.slane %v2390, 1
    %v2392 = vmax.f32 %v2390, %v2391
    %v2393 = vsel %vm726, %v2359, -inf
    %v2394 = vrot.slane %v2393, 4
    %v2395 = vmax.f32 %v2393, %v2394
    %v2396 = vrot.slane %v2395, 2
    %v2397 = vmax.f32 %v2395, %v2396
    %v2398 = vrot.slane %v2397, 1
    %v2399 = vmax.f32 %v2397, %v2398
    %v2400 = vsel %vm726, %v2360, -inf
    %v2401 = vrot.slane %v2400, 4
    %v2402 = vmax.f32 %v2400, %v2401
    %v2403 = vrot.slane %v2402, 2
    %v2404 = vmax.f32 %v2402, %v2403
    %v2405 = vrot.slane %v2404, 1
    %v2406 = vmax.f32 %v2404, %v2405
    %v2407 = vsel %vm726, %v2361, -inf
    %v2408 = vrot.slane %v2407, 4
    %v2409 = vmax.f32 %v2407, %v2408
    %v2410 = vrot.slane %v2409, 2
    %v2411 = vmax.f32 %v2409, %v2410
    %v2412 = vrot.slane %v2411, 1
    %v2413 = vmax.f32 %v2411, %v2412
    %v2414 = vsel %vm726, %v2362, -inf
    %v2415 = vrot.slane %v2414, 4
    %v2416 = vmax.f32 %v2414, %v2415
    %v2417 = vrot.slane %v2416, 2
    %v2418 = vmax.f32 %v2416, %v2417
    %v2419 = vrot.slane %v2418, 1
    %v2420 = vmax.f32 %v2418, %v2419
    %v2421 = vsel %vm726, %v2363, -inf
    %v2422 = vrot.slane %v2421, 4
    %v2423 = vmax.f32 %v2421, %v2422
    %v2424 = vrot.slane %v2423, 2
    %v2425 = vmax.f32 %v2423, %v2424
    %v2426 = vrot.slane %v2425, 1
    %v2427 = vmax.f32 %v2425, %v2426
    %v2428 = vsel %vm726, %v2364, -inf
    %v2429 = vrot.slane %v2428, 4
    %v2430 = vmax.f32 %v2428, %v2429
    %v2431 = vrot.slane %v2430, 2
    %v2432 = vmax.f32 %v2430, %v2431
    %v2433 = vrot.slane %v2432, 1
    %v2434 = vmax.f32 %v2432, %v2433
    %v2435 = vsel %vm726, %v2365, -inf
    %v2436 = vrot.slane %v2435, 4
    %v2437 = vmax.f32 %v2435, %v2436
    %v2438 = vrot.slane %v2437, 2
    %v2439 = vmax.f32 %v2437, %v2438
    %v2440 = vrot.slane %v2439, 1
    %v2441 = vmax.f32 %v2439, %v2440
    %v2442 = vsel %vm726, %v2366, -inf
    %v2443 = vrot.slane %v2442, 4
    %v2444 = vmax.f32 %v2442, %v2443
    %v2445 = vrot.slane %v2444, 2
    %v2446 = vmax.f32 %v2444, %v2445
    %v2447 = vrot.slane %v2446, 1
    %v2448 = vmax.f32 %v2446, %v2447
    %v2449 = vsel %vm726, %v2367, -inf
    %v2450 = vrot.slane %v2449, 4
    %v2451 = vmax.f32 %v2449, %v2450
    %v2452 = vrot.slane %v2451, 2
    %v2453 = vmax.f32 %v2451, %v2452
    %v2454 = vrot.slane %v2453, 1
    %v2455 = vmax.f32 %v2453, %v2454
    %v2456 = vsel %vm726, %v2368, -inf
    %v2457 = vrot.slane %v2456, 4
    %v2458 = vmax.f32 %v2456, %v2457
    %v2459 = vrot.slane %v2458, 2
    %v2460 = vmax.f32 %v2458, %v2459
    %v2461 = vrot.slane %v2460, 1
    %v2462 = vmax.f32 %v2460, %v2461
    %v2463 = vsel %vm726, %v2369, -inf
    %v2464 = vrot.slane %v2463, 4
    %v2465 = vmax.f32 %v2463, %v2464
    %v2466 = vrot.slane %v2465, 2
    %v2467 = vmax.f32 %v2465, %v2466
    %v2468 = vrot.slane %v2467, 1
    %v2469 = vmax.f32 %v2467, %v2468
    %v2470 = vsel %vm726, %v2370, -inf
    %v2471 = vrot.slane %v2470, 4
    %v2472 = vmax.f32 %v2470, %v2471
    %v2473 = vrot.slane %v2472, 2
    %v2474 = vmax.f32 %v2472, %v2473
    %v2475 = vrot.slane %v2474, 1
    %v2476 = vmax.f32 %v2474, %v2475
    %v2477 = vsel %vm726, %v2371, -inf
    %v2478 = vrot.slane %v2477, 4
    %v2479 = vmax.f32 %v2477, %v2478
    %v2480 = vrot.slane %v2479, 2
    %v2481 = vmax.f32 %v2479, %v2480
    %v2482 = vrot.slane %v2481, 1
    %v2483 = vmax.f32 %v2481, %v2482
    %v2484 = vsub.f32 %v2356, %v2378
    %v2485 = vsub.f32 %v2357, %v2385
    %v2486 = vsub.f32 %v2358, %v2392
    %v2487 = vsub.f32 %v2359, %v2399
    %v2488 = vsub.f32 %v2360, %v2406
    %v2489 = vsub.f32 %v2361, %v2413
    %v2490 = vsub.f32 %v2362, %v2420
    %v2491 = vsub.f32 %v2363, %v2427
    %v2492 = vsub.f32 %v2364, %v2434
    %v2493 = vsub.f32 %v2365, %v2441
    %v2494 = vsub.f32 %v2366, %v2448
    %v2495 = vsub.f32 %v2367, %v2455
    %v2496 = vsub.f32 %v2368, %v2462
    %v2497 = vsub.f32 %v2369, %v2469
    %v2498 = vsub.f32 %v2370, %v2476
    %v2499 = vsub.f32 %v2371, %v2483
    %v2500 = vmul.f32 %v2484, 1.442695
    %v2501 = vpow.pop %v2500
    %v2502 = vmul.f32 %v2485, 1.442695
    %v2503 = vpow.pop %v2502
    %v2504 = vmul.f32 %v2486, 1.442695
    %v2505 = vpow.pop %v2504
    %v2506 = vmul.f32 %v2487, 1.442695
    %v2507 = vpow.pop %v2506
    %v2508 = vmul.f32 %v2488, 1.442695
    %v2509 = vpow.pop %v2508
    %v2510 = vmul.f32 %v2489, 1.442695
    %v2511 = vpow.pop %v2510
    %v2512 = vmul.f32 %v2490, 1.442695
    %v2513 = vpow.pop %v2512
    %v2514 = vmul.f32 %v2491, 1.442695
    %v2515 = vpow.pop %v2514
    %v2516 = vmul.f32 %v2492, 1.442695
    %v2517 = vpow.pop %v2516
    %v2518 = vmul.f32 %v2493, 1.442695
    %v2519 = vpow.pop %v2518
    %v2520 = vmul.f32 %v2494, 1.442695
    %v2521 = vpow.pop %v2520
    %v2522 = vmul.f32 %v2495, 1.442695
    %v2523 = vpow.pop %v2522
    %v2524 = vmul.f32 %v2496, 1.442695
    %v2525 = vpow.pop %v2524
    %v2526 = vmul.f32 %v2497, 1.442695
    %v2527 = vpow.pop %v2526
    %v2528 = vmul.f32 %v2498, 1.442695
    %v2529 = vpow.pop %v2528
    %v2530 = vmul.f32 %v2499, 1.442695
    %v2531 = vpow.pop %v2530
    %v2532 = vsel %vm726, %v2501, 0.0
    %v2533 = vrot.slane %v2532, 4
    %v2534 = vadd.f32 %v2532, %v2533
    %v2535 = vrot.slane %v2534, 2
    %v2536 = vadd.f32 %v2534, %v2535
    %v2537 = vrot.slane %v2536, 1
    %v2538 = vadd.f32 %v2536, %v2537
    %v2539 = vsel %vm726, %v2503, 0.0
    %v2540 = vrot.slane %v2539, 4
    %v2541 = vadd.f32 %v2539, %v2540
    %v2542 = vrot.slane %v2541, 2
    %v2543 = vadd.f32 %v2541, %v2542
    %v2544 = vrot.slane %v2543, 1
    %v2545 = vadd.f32 %v2543, %v2544
    %v2546 = vsel %vm726, %v2505, 0.0
    %v2547 = vrot.slane %v2546, 4
    %v2548 = vadd.f32 %v2546, %v2547
    %v2549 = vrot.slane %v2548, 2
    %v2550 = vadd.f32 %v2548, %v2549
    %v2551 = vrot.slane %v2550, 1
    %v2552 = vadd.f32 %v2550, %v2551
    %v2553 = vsel %vm726, %v2507, 0.0
    %v2554 = vrot.slane %v2553, 4
    %v2555 = vadd.f32 %v2553, %v2554
    %v2556 = vrot.slane %v2555, 2
    %v2557 = vadd.f32 %v2555, %v2556
    %v2558 = vrot.slane %v2557, 1
    %v2559 = vadd.f32 %v2557, %v2558
    %v2560 = vsel %vm726, %v2509, 0.0
    %v2561 = vrot.slane %v2560, 4
    %v2562 = vadd.f32 %v2560, %v2561
    %v2563 = vrot.slane %v2562, 2
    %v2564 = vadd.f32 %v2562, %v2563
    %v2565 = vrot.slane %v2564, 1
    %v2566 = vadd.f32 %v2564, %v2565
    %v2567 = vsel %vm726, %v2511, 0.0
    %v2568 = vrot.slane %v2567, 4
    %v2569 = vadd.f32 %v2567, %v2568
    %v2570 = vrot.slane %v2569, 2
    %v2571 = vadd.f32 %v2569, %v2570
    %v2572 = vrot.slane %v2571, 1
    %v2573 = vadd.f32 %v2571, %v2572
    %v2574 = vsel %vm726, %v2513, 0.0
    %v2575 = vrot.slane %v2574, 4
    %v2576 = vadd.f32 %v2574, %v2575
    %v2577 = vrot.slane %v2576, 2
    %v2578 = vadd.f32 %v2576, %v2577
    %v2579 = vrot.slane %v2578, 1
    %v2580 = vadd.f32 %v2578, %v2579
    %v2581 = vsel %vm726, %v2515, 0.0
    %v2582 = vrot.slane %v2581, 4
    %v2583 = vadd.f32 %v2581, %v2582
    %v2584 = vrot.slane %v2583, 2
    %v2585 = vadd.f32 %v2583, %v2584
    %v2586 = vrot.slane %v2585, 1
    %v2587 = vadd.f32 %v2585, %v2586
    %v2588 = vsel %vm726, %v2517, 0.0
    %v2589 = vrot.slane %v2588, 4
    %v2590 = vadd.f32 %v2588, %v2589
    %v2591 = vrot.slane %v2590, 2
    %v2592 = vadd.f32 %v2590, %v2591
    %v2593 = vrot.slane %v2592, 1
    %v2594 = vadd.f32 %v2592, %v2593
    %v2595 = vsel %vm726, %v2519, 0.0
    %v2596 = vrot.slane %v2595, 4
    %v2597 = vadd.f32 %v2595, %v2596
    %v2598 = vrot.slane %v2597, 2
    %v2599 = vadd.f32 %v2597, %v2598
    %v2600 = vrot.slane %v2599, 1
    %v2601 = vadd.f32 %v2599, %v2600
    %v2602 = vsel %vm726, %v2521, 0.0
    %v2603 = vrot.slane %v2602, 4
    %v2604 = vadd.f32 %v2602, %v2603
    %v2605 = vrot.slane %v2604, 2
    %v2606 = vadd.f32 %v2604, %v2605
    %v2607 = vrot.slane %v2606, 1
    %v2608 = vadd.f32 %v2606, %v2607
    %v2609 = vsel %vm726, %v2523, 0.0
    %v2610 = vrot.slane %v2609, 4
    %v2611 = vadd.f32 %v2609, %v2610
    %v2612 = vrot.slane %v2611, 2
    %v2613 = vadd.f32 %v2611, %v2612
    %v2614 = vrot.slane %v2613, 1
    %v2615 = vadd.f32 %v2613, %v2614
    %v2616 = vsel %vm726, %v2525, 0.0
    %v2617 = vrot.slane %v2616, 4
    %v2618 = vadd.f32 %v2616, %v2617
    %v2619 = vrot.slane %v2618, 2
    %v2620 = vadd.f32 %v2618, %v2619
    %v2621 = vrot.slane %v2620, 1
    %v2622 = vadd.f32 %v2620, %v2621
    %v2623 = vsel %vm726, %v2527, 0.0
    %v2624 = vrot.slane %v2623, 4
    %v2625 = vadd.f32 %v2623, %v2624
    %v2626 = vrot.slane %v2625, 2
    %v2627 = vadd.f32 %v2625, %v2626
    %v2628 = vrot.slane %v2627, 1
    %v2629 = vadd.f32 %v2627, %v2628
    %v2630 = vsel %vm726, %v2529, 0.0
    %v2631 = vrot.slane %v2630, 4
    %v2632 = vadd.f32 %v2630, %v2631
    %v2633 = vrot.slane %v2632, 2
    %v2634 = vadd.f32 %v2632, %v2633
    %v2635 = vrot.slane %v2634, 1
    %v2636 = vadd.f32 %v2634, %v2635
    %v2637 = vsel %vm726, %v2531, 0.0
    %v2638 = vrot.slane %v2637, 4
    %v2639 = vadd.f32 %v2637, %v2638
    %v2640 = vrot.slane %v2639, 2
    %v2641 = vadd.f32 %v2639, %v2640
    %v2642 = vrot.slane %v2641, 1
    %v2643 = vadd.f32 %v2641, %v2642
    %v2644 = vrcp.pop %v2538
    %v2645 = vrcp.pop %v2545
    %v2646 = vrcp.pop %v2552
    %v2647 = vrcp.pop %v2559
    %v2648 = vrcp.pop %v2566
    %v2649 = vrcp.pop %v2573
    %v2650 = vrcp.pop %v2580
    %v2651 = vrcp.pop %v2587
    %v2652 = vrcp.pop %v2594
    %v2653 = vrcp.pop %v2601
    %v2654 = vrcp.pop %v2608
    %v2655 = vrcp.pop %v2615
    %v2656 = vrcp.pop %v2622
    %v2657 = vrcp.pop %v2629
    %v2658 = vrcp.pop %v2636
    %v2659 = vrcp.pop %v2643
    %v2660 = vmul.f32 %v2501, %v2644
    %v2661 = vmul.f32 %v2503, %v2645
    %v2662 = vmul.f32 %v2505, %v2646
    %v2663 = vmul.f32 %v2507, %v2647
    %v2664 = vmul.f32 %v2509, %v2648
    %v2665 = vmul.f32 %v2511, %v2649
    %v2666 = vmul.f32 %v2513, %v2650
    %v2667 = vmul.f32 %v2515, %v2651
    %v2668 = vmul.f32 %v2517, %v2652
    %v2669 = vmul.f32 %v2519, %v2653
    %v2670 = vmul.f32 %v2521, %v2654
    %v2671 = vmul.f32 %v2523, %v2655
    %v2672 = vmul.f32 %v2525, %v2656
    %v2673 = vmul.f32 %v2527, %v2657
    %v2674 = vmul.f32 %v2529, %v2658
    %v2675 = vmul.f32 %v2531, %v2659
    %v2677 = vsel %vm726, %v2660, 0
    %v2680 = vsel %vm726, %v2661, 0
    %v2683 = vsel %vm726, %v2662, 0
    %v2686 = vsel %vm726, %v2663, 0
    %v2689 = vsel %vm726, %v2664, 0
    %v2692 = vsel %vm726, %v2665, 0
    %v2695 = vsel %vm726, %v2666, 0
    %v2698 = vsel %vm726, %v2667, 0
    %v2701 = vsel %vm726, %v2668, 0
    %v2704 = vsel %vm726, %v2669, 0
    %v2707 = vsel %vm726, %v2670, 0
    %v2710 = vsel %vm726, %v2671, 0
    %v2713 = vsel %vm726, %v2672, 0
    %v2716 = vsel %vm726, %v2673, 0
    %v2719 = vsel %vm726, %v2674, 0
    %v2722 = vsel %vm726, %v2675, 0
    %2724 = vmatprep.subr.mxu0 0.0
    %2725 = vmatpush1.msra.mxu0 %v107
    %2726 = vmatprep.subr.mxu0 0.0
    %2727 = vmatpush1.msra.mxu0 0.0
    %2728 = vmatprep.subr.mxu0 0.0
    %2729 = vmatpush1.msra.mxu0 0.0
    %2730 = vmatprep.subr.mxu0 0.0
    %2731 = vmatpush1.msra.mxu0 0.0
    %2732 = vmatprep.subr.mxu0 0.0
    %2733 = vmatpush1.msra.mxu0 0.0
    %2734 = vmatprep.subr.mxu0 0.0
    %2735 = vmatpush1.msra.mxu0 0.0
    %2736 = vmatprep.subr.mxu0 0.0
    %2737 = vmatpush1.msra.mxu0 0.0
    %2738 = vmatprep.subr.mxu0 0.0
    %2739 = vmatpush1.msra.mxu0 0.0
    %2740 = vmatprep.subr.mxu0 0.0
    %2741 = vmatpush1.msra.mxu0 0.0
    %2742 = vmatprep.subr.mxu0 0.0
    %2743 = vmatpush1.msra.mxu0 0.0
    %2744 = vmatprep.subr.mxu0 0.0
    %2745 = vmatpush1.msra.mxu0 0.0
    %2746 = vmatprep.subr.mxu0 0.0
    %2747 = vmatpush1.msra.mxu0 0.0
    %2748 = vmatprep.subr.mxu0 0.0
    %2749 = vmatpush1.msra.mxu0 0.0
    %2750 = vmatprep.subr.mxu0 0.0
    %2751 = vmatpush1.msra.mxu0 0.0
    %2752 = vmatprep.subr.mxu0 0.0
    %2753 = vmatpush1.msra.mxu0 0.0
    %2754 = vmatprep.subr.mxu0 0.0
    %2755 = vmatpush1.msra.mxu0 0.0
    %2756 = vmatprep.subr.mxu0 0.0
    %2757 = vmatpush1.msra.mxu0 0.0
    %2758 = vmatprep.subr.mxu0 0.0
    %2759 = vmatpush1.msra.mxu0 0.0
    %2760 = vmatprep.subr.mxu0 0.0
    %2761 = vmatpush1.msra.mxu0 0.0
    %2762 = vmatprep.subr.mxu0 0.0
    %2763 = vmatpush1.msra.mxu0 0.0
    %2764 = vmatprep.subr.mxu0 0.0
    %2765 = vmatpush1.msra.mxu0 0.0
    %2766 = vmatprep.subr.mxu0 0.0
    %2767 = vmatpush1.msra.mxu0 0.0
    %2768 = vmatprep.subr.mxu0 0.0
    %2769 = vmatpush1.msra.mxu0 0.0
    %2770 = vmatprep.subr.mxu0 0.0
    %2771 = vmatpush1.msra.mxu0 0.0
    %2772 = vmatprep.subr.mxu0 0.0
    %2773 = vmatpush1.msra.mxu0 0.0
    %2774 = vmatprep.subr.mxu0 0.0
    %2775 = vmatpush1.msra.mxu0 0.0
    %2776 = vmatprep.subr.mxu0 0.0
    %2777 = vmatpush1.msra.mxu0 0.0
    %2778 = vmatprep.subr.mxu0 0.0
    %2779 = vmatpush1.msra.mxu0 0.0
    %2780 = vmatprep.subr.mxu0 0.0
    %2781 = vmatpush1.msra.mxu0 0.0
    %2782 = vmatprep.subr.mxu0 0.0
    %2783 = vmatpush1.msra.mxu0 0.0
    %2784 = vmatprep.subr.mxu0 0.0
    %2785 = vmatpush1.msra.mxu0 0.0
    %2786 = vmatprep.subr.mxu0 0.0
    %2787 = vmatpush1.msra.mxu0 0.0
    %2788 = vmatprep.mubr.f32.mxu0 0.0
    %2789 = vmatmul.mubr.f32.gmra.mrb[0].mxu0 %v2677
    %v2790 = vpop.f32.mrb[0].mxu0
    %v2791 = vadd.f32 0.0, %v2790
    %v2792 = vpop.f32.mrb[0].mxu0
    %2793 = vmatprep.mubr.f32.mxu0 0.0
    %2794 = vmatmul.mubr.f32.gmra.mrb[0].mxu0 %v2680
    %v2795 = vpop.f32.mrb[0].mxu0
    %v2796 = vadd.f32 0.0, %v2795
    %v2797 = vpop.f32.mrb[0].mxu0
    %2798 = vmatprep.mubr.f32.mxu0 0.0
    %2799 = vmatmul.mubr.f32.gmra.mrb[0].mxu0 %v2683
    %v2800 = vpop.f32.mrb[0].mxu0
    %v2801 = vadd.f32 0.0, %v2800
    %v2802 = vpop.f32.mrb[0].mxu0
    %2803 = vmatprep.mubr.f32.mxu0 0.0
    %2804 = vmatmul.mubr.f32.gmra.mrb[0].mxu0 %v2686
    %v2805 = vpop.f32.mrb[0].mxu0
    %v2806 = vadd.f32 0.0, %v2805
    %v2807 = vpop.f32.mrb[0].mxu0
    %2808 = vmatprep.mubr.f32.mxu0 0.0
    %2809 = vmatmul.mubr.f32.gmra.mrb[0].mxu0 %v2689
    %v2810 = vpop.f32.mrb[0].mxu0
    %v2811 = vadd.f32 0.0, %v2810
    %v2812 = vpop.f32.mrb[0].mxu0
    %2813 = vmatprep.mubr.f32.mxu0 0.0
    %2814 = vmatmul.mubr.f32.gmra.mrb[0].mxu0 %v2692
    %v2815 = vpop.f32.mrb[0].mxu0
    %v2816 = vadd.f32 0.0, %v2815
    %v2817 = vpop.f32.mrb[0].mxu0
    %2818 = vmatprep.mubr.f32.mxu0 0.0
    %2819 = vmatmul.mubr.f32.gmra.mrb[0].mxu0 %v2695
    %v2820 = vpop.f32.mrb[0].mxu0
    %v2821 = vadd.f32 0.0, %v2820
    %v2822 = vpop.f32.mrb[0].mxu0
    %2823 = vmatprep.mubr.f32.mxu0 0.0
    %2824 = vmatmul.mubr.f32.gmra.mrb[0].mxu0 %v2698
    %v2825 = vpop.f32.mrb[0].mxu0
    %v2826 = vadd.f32 0.0, %v2825
    %v2827 = vpop.f32.mrb[0].mxu0
    %2828 = vmatprep.mubr.f32.mxu0 0.0
    %2829 = vmatmul.mubr.f32.gmra.mrb[0].mxu0 %v2701
    %v2830 = vpop.f32.mrb[0].mxu0
    %v2831 = vadd.f32 0.0, %v2830
    %v2832 = vpop.f32.mrb[0].mxu0
    %2833 = vmatprep.mubr.f32.mxu0 0.0
    %2834 = vmatmul.mubr.f32.gmra.mrb[0].mxu0 %v2704
    %v2835 = vpop.f32.mrb[0].mxu0
    %v2836 = vadd.f32 0.0, %v2835
    %v2837 = vpop.f32.mrb[0].mxu0
    %2838 = vmatprep.mubr.f32.mxu0 0.0
    %2839 = vmatmul.mubr.f32.gmra.mrb[0].mxu0 %v2707
    %v2840 = vpop.f32.mrb[0].mxu0
    %v2841 = vadd.f32 0.0, %v2840
    %v2842 = vpop.f32.mrb[0].mxu0
    %2843 = vmatprep.mubr.f32.mxu0 0.0
    %2844 = vmatmul.mubr.f32.gmra.mrb[0].mxu0 %v2710
    %v2845 = vpop.f32.mrb[0].mxu0
    %v2846 = vadd.f32 0.0, %v2845
    %v2847 = vpop.f32.mrb[0].mxu0
    %2848 = vmatprep.mubr.f32.mxu0 0.0
    %2849 = vmatmul.mubr.f32.gmra.mrb[0].mxu0 %v2713
    %v2850 = vpop.f32.mrb[0].mxu0
    %v2851 = vadd.f32 0.0, %v2850
    %v2852 = vpop.f32.mrb[0].mxu0
    %2853 = vmatprep.mubr.f32.mxu0 0.0
    %2854 = vmatmul.mubr.f32.gmra.mrb[0].mxu0 %v2716
    %v2855 = vpop.f32.mrb[0].mxu0
    %v2856 = vadd.f32 0.0, %v2855
    %v2857 = vpop.f32.mrb[0].mxu0
    %2858 = vmatprep.mubr.f32.mxu0 0.0
    %2859 = vmatmul.mubr.f32.gmra.mrb[0].mxu0 %v2719
    %v2860 = vpop.f32.mrb[0].mxu0
    %v2861 = vadd.f32 0.0, %v2860
    %v2862 = vpop.f32.mrb[0].mxu0
    %2863 = vmatprep.mubr.f32.mxu0 0.0
    %2864 = vmatmul.mubr.f32.gmra.mrb[0].mxu0 %v2722
    %v2865 = vpop.f32.mrb[0].mxu0
    %v2866 = vadd.f32 0.0, %v2865
    %v2867 = vpop.f32.mrb[0].mxu0
    %2868 = vdwg.mxu0
    %v2869 = vmul.f32 %v2791, %v1961
    %v2870 = vmul.f32 %v2796, %v1961
    %v2871 = vmul.f32 %v2801, %v1961
    %v2872 = vmul.f32 %v2806, %v1961
    %v2873 = vmul.f32 %v2811, %v1961
    %v2874 = vmul.f32 %v2816, %v1961
    %v2875 = vmul.f32 %v2821, %v1961
    %v2876 = vmul.f32 %v2826, %v1961
    %v2877 = vmul.f32 %v2831, %v1964
    %v2878 = vmul.f32 %v2836, %v1964
    %v2879 = vmul.f32 %v2841, %v1964
    %v2880 = vmul.f32 %v2846, %v1964
    %v2881 = vmul.f32 %v2851, %v1964
    %v2882 = vmul.f32 %v2856, %v1964
    %v2883 = vmul.f32 %v2861, %v1964
    %v2884 = vmul.f32 %v2866, %v1964
    %v2885 = vsel %vm134, %v2869, 0.0
    %v2886 = vrot.slane %v2885, 4
    %v2887 = vadd.f32 %v2885, %v2886
    %v2888 = vrot.slane %v2887, 2
    %v2889 = vadd.f32 %v2887, %v2888
    %v2890 = vrot.slane %v2889, 1
    %v2891 = vadd.f32 %v2889, %v2890
    %v2892 = vsel %vm134, %v2870, 0.0
    %v2893 = vrot.slane %v2892, 4
    %v2894 = vadd.f32 %v2892, %v2893
    %v2895 = vrot.slane %v2894, 2
    %v2896 = vadd.f32 %v2894, %v2895
    %v2897 = vrot.slane %v2896, 1
    %v2898 = vadd.f32 %v2896, %v2897
    %v2899 = vsel %vm134, %v2871, 0.0
    %v2900 = vrot.slane %v2899, 4
    %v2901 = vadd.f32 %v2899, %v2900
    %v2902 = vrot.slane %v2901, 2
    %v2903 = vadd.f32 %v2901, %v2902
    %v2904 = vrot.slane %v2903, 1
    %v2905 = vadd.f32 %v2903, %v2904
    %v2906 = vsel %vm134, %v2872, 0.0
    %v2907 = vrot.slane %v2906, 4
    %v2908 = vadd.f32 %v2906, %v2907
    %v2909 = vrot.slane %v2908, 2
    %v2910 = vadd.f32 %v2908, %v2909
    %v2911 = vrot.slane %v2910, 1
    %v2912 = vadd.f32 %v2910, %v2911
    %v2913 = vsel %vm134, %v2873, 0.0
    %v2914 = vrot.slane %v2913, 4
    %v2915 = vadd.f32 %v2913, %v2914
    %v2916 = vrot.slane %v2915, 2
    %v2917 = vadd.f32 %v2915, %v2916
    %v2918 = vrot.slane %v2917, 1
    %v2919 = vadd.f32 %v2917, %v2918
    %v2920 = vsel %vm134, %v2874, 0.0
    %v2921 = vrot.slane %v2920, 4
    %v2922 = vadd.f32 %v2920, %v2921
    %v2923 = vrot.slane %v2922, 2
    %v2924 = vadd.f32 %v2922, %v2923
    %v2925 = vrot.slane %v2924, 1
    %v2926 = vadd.f32 %v2924, %v2925
    %v2927 = vsel %vm134, %v2875, 0.0
    %v2928 = vrot.slane %v2927, 4
    %v2929 = vadd.f32 %v2927, %v2928
    %v2930 = vrot.slane %v2929, 2
    %v2931 = vadd.f32 %v2929, %v2930
    %v2932 = vrot.slane %v2931, 1
    %v2933 = vadd.f32 %v2931, %v2932
    %v2934 = vsel %vm134, %v2876, 0.0
    %v2935 = vrot.slane %v2934, 4
    %v2936 = vadd.f32 %v2934, %v2935
    %v2937 = vrot.slane %v2936, 2
    %v2938 = vadd.f32 %v2936, %v2937
    %v2939 = vrot.slane %v2938, 1
    %v2940 = vadd.f32 %v2938, %v2939
    %v2941 = vsel %vm134, %v2877, 0.0
    %v2942 = vrot.slane %v2941, 4
    %v2943 = vadd.f32 %v2941, %v2942
    %v2944 = vrot.slane %v2943, 2
    %v2945 = vadd.f32 %v2943, %v2944
    %v2946 = vrot.slane %v2945, 1
    %v2947 = vadd.f32 %v2945, %v2946
    %v2948 = vsel %vm134, %v2878, 0.0
    %v2949 = vrot.slane %v2948, 4
    %v2950 = vadd.f32 %v2948, %v2949
    %v2951 = vrot.slane %v2950, 2
    %v2952 = vadd.f32 %v2950, %v2951
    %v2953 = vrot.slane %v2952, 1
    %v2954 = vadd.f32 %v2952, %v2953
    %v2955 = vsel %vm134, %v2879, 0.0
    %v2956 = vrot.slane %v2955, 4
    %v2957 = vadd.f32 %v2955, %v2956
    %v2958 = vrot.slane %v2957, 2
    %v2959 = vadd.f32 %v2957, %v2958
    %v2960 = vrot.slane %v2959, 1
    %v2961 = vadd.f32 %v2959, %v2960
    %v2962 = vsel %vm134, %v2880, 0.0
    %v2963 = vrot.slane %v2962, 4
    %v2964 = vadd.f32 %v2962, %v2963
    %v2965 = vrot.slane %v2964, 2
    %v2966 = vadd.f32 %v2964, %v2965
    %v2967 = vrot.slane %v2966, 1
    %v2968 = vadd.f32 %v2966, %v2967
    %v2969 = vsel %vm134, %v2881, 0.0
    %v2970 = vrot.slane %v2969, 4
    %v2971 = vadd.f32 %v2969, %v2970
    %v2972 = vrot.slane %v2971, 2
    %v2973 = vadd.f32 %v2971, %v2972
    %v2974 = vrot.slane %v2973, 1
    %v2975 = vadd.f32 %v2973, %v2974
    %v2976 = vsel %vm134, %v2882, 0.0
    %v2977 = vrot.slane %v2976, 4
    %v2978 = vadd.f32 %v2976, %v2977
    %v2979 = vrot.slane %v2978, 2
    %v2980 = vadd.f32 %v2978, %v2979
    %v2981 = vrot.slane %v2980, 1
    %v2982 = vadd.f32 %v2980, %v2981
    %v2983 = vsel %vm134, %v2883, 0.0
    %v2984 = vrot.slane %v2983, 4
    %v2985 = vadd.f32 %v2983, %v2984
    %v2986 = vrot.slane %v2985, 2
    %v2987 = vadd.f32 %v2985, %v2986
    %v2988 = vrot.slane %v2987, 1
    %v2989 = vadd.f32 %v2987, %v2988
    %v2990 = vsel %vm134, %v2884, 0.0
    %v2991 = vrot.slane %v2990, 4
    %v2992 = vadd.f32 %v2990, %v2991
    %v2993 = vrot.slane %v2992, 2
    %v2994 = vadd.f32 %v2992, %v2993
    %v2995 = vrot.slane %v2994, 1
    %v2996 = vadd.f32 %v2994, %v2995
    %v2997 = vpack.c.bf16 %v2891, %v2891
    %v2998 = vpack.c.bf16 %v2898, %v2898
    %v2999 = vpack.c.bf16 %v2905, %v2905
    %v3000 = vpack.c.bf16 %v2912, %v2912
    %v3001 = vpack.c.bf16 %v2919, %v2919
    %v3002 = vpack.c.bf16 %v2926, %v2926
    %v3003 = vpack.c.bf16 %v2933, %v2933
    %v3004 = vpack.c.bf16 %v2940, %v2940
    %v3005 = vpack.c.bf16 %v2947, %v2947
    %v3006 = vpack.c.bf16 %v2954, %v2954
    %v3007 = vpack.c.bf16 %v2961, %v2961
    %v3008 = vpack.c.bf16 %v2968, %v2968
    %v3009 = vpack.c.bf16 %v2975, %v2975
    %v3010 = vpack.c.bf16 %v2982, %v2982
    %v3011 = vpack.c.bf16 %v2989, %v2989
    %v3012 = vpack.c.bf16 %v2996, %v2996
    %s3013 = scalar_lea.vmem %s5, 16
    %v3014 = vld [vmem:[%s3013] sm:$0xf]
    %v3015 = vld [vmem:[%s3013 + $0x4] sm:$0xf]
    %v3016 = vld [vmem:[%s3013 + $0x8] sm:$0xf]
    %v3017 = vld [vmem:[%s3013 + $0xc] sm:$0xf]
    %s3018 = scalar_lea.vmem %s6, 1
    %v3019 = vld [vmem:[%s3018] sm:$0x1]
    %v3021 = vlaneseq
    %v3022 = vshrl.u32 %v3021, 7
    %v3023 = vsub.s32 0, %v3022
    %v3024 = vrot.slane %v3019, %v3023
    %v3042 = vunpack.c.l.b16 %v2997
    %v3043 = vunpack.c.l.b16 %v2998
    %v3044 = vunpack.c.l.b16 %v2999
    %v3045 = vunpack.c.l.b16 %v3000
    %v3046 = vunpack.c.l.b16 %v3001
    %v3047 = vunpack.c.l.b16 %v3002
    %v3048 = vunpack.c.l.b16 %v3003
    %v3049 = vunpack.c.l.b16 %v3004
    %v3050 = vunpack.c.l.b16 %v3005
    %v3051 = vunpack.c.l.b16 %v3006
    %v3052 = vunpack.c.l.b16 %v3007
    %v3053 = vunpack.c.l.b16 %v3008
    %v3054 = vunpack.c.l.b16 %v3009
    %v3055 = vunpack.c.l.b16 %v3010
    %v3056 = vunpack.c.l.b16 %v3011
    %v3057 = vunpack.c.l.b16 %v3012
    %v3058 = vsel %vm1411, %v3043, %v3042
    %v3059 = vsel %vm1413, %v3044, %v3058
    %v3060 = vsel %vm1415, %v3045, %v3059
    %v3061 = vsel %vm1417, %v3046, %v3060
    %v3062 = vsel %vm1419, %v3047, %v3061
    %v3063 = vsel %vm1421, %v3048, %v3062
    %v3064 = vsel %vm1423, %v3049, %v3063
    %v3065 = vsel %vm1411, %v3051, %v3050
    %v3066 = vsel %vm1413, %v3052, %v3065
    %v3067 = vsel %vm1415, %v3053, %v3066
    %v3068 = vsel %vm1417, %v3054, %v3067
    %v3069 = vsel %vm1419, %v3055, %v3068
    %v3070 = vsel %vm1421, %v3056, %v3069
    %v3071 = vsel %vm1423, %v3057, %v3070
    %v3072 = vpack.c.b16 %v3071, %v3064
    %v3077 = vunpack.c.l.b16 %v3014
    %v3078 = vunpack.c.l.b16 %v3015
    %v3079 = vunpack.c.l.b16 %v3016
    %v3080 = vunpack.c.l.b16 %v3017
    %v3081 = vpack.c.b16 %v3078, %v3077
    %v3082 = vpack.c.b16 %v3080, %v3079
    %v3086 = vsel %vm134, %v3072, 0
    %3088 = vmatprep.subr.bf16.mxu0 0
    %3089 = vmatpush1.bf16.msra.mxu0 %v3081
    %3090 = vmatprep.subr.bf16.mxu0 0
    %3091 = vmatpush1.bf16.msra.mxu0 %v3082
    %3092 = vmatprep.subr.bf16.mxu0 0
    %3093 = vmatpush1.bf16.msra.mxu0 0
    %3094 = vmatprep.subr.bf16.mxu0 0
    %3095 = vmatpush1.bf16.msra.mxu0 0
    %3096 = vmatprep.subr.bf16.mxu0 0
    %3097 = vmatpush1.bf16.msra.mxu0 0
    %3098 = vmatprep.subr.bf16.mxu0 0
    %3099 = vmatpush1.bf16.msra.mxu0 0
    %3100 = vmatprep.subr.bf16.mxu0 0
    %3101 = vmatpush1.bf16.msra.mxu0 0
    %3102 = vmatprep.subr.bf16.mxu0 0
    %3103 = vmatpush1.bf16.msra.mxu0 0
    %3104 = vmatprep.subr.bf16.mxu0 0
    %3105 = vmatpush1.bf16.msra.mxu0 0
    %3106 = vmatprep.subr.bf16.mxu0 0
    %3107 = vmatpush1.bf16.msra.mxu0 0
    %3108 = vmatprep.subr.bf16.mxu0 0
    %3109 = vmatpush1.bf16.msra.mxu0 0
    %3110 = vmatprep.subr.bf16.mxu0 0
    %3111 = vmatpush1.bf16.msra.mxu0 0
    %3112 = vmatprep.subr.bf16.mxu0 0
    %3113 = vmatpush1.bf16.msra.mxu0 0
    %3114 = vmatprep.subr.bf16.mxu0 0
    %3115 = vmatpush1.bf16.msra.mxu0 0
    %3116 = vmatprep.subr.bf16.mxu0 0
    %3117 = vmatpush1.bf16.msra.mxu0 0
    %3118 = vmatprep.subr.bf16.mxu0 0
    %3119 = vmatpush1.bf16.msra.mxu0 0
    %3120 = vmatprep.mubr.bf16.mxu0 0
    %3121 = vmatmul.mubr.bf16.gmra.mrb[0].mxu0 %v3086
    %v3122 = vpop.f32.mrb[0].mxu0
    %v3123 = vadd.f32 %v3024, %v3122
    %v3124 = vpop.f32.mrb[0].mxu0
    %v3125 = vpop.f32.mrb[0].mxu0
    %v3126 = vadd.f32 %v3024, %v3125
    %v3127 = vpop.f32.mrb[0].mxu0
    %3128 = vdwg.mxu0
    %v3129 = vadd.f32 %v1763, %v3123
    %v3130 = vadd.f32 %v1764, %v3126
    %s3131 = scalar_lea.vmem %s7, 1
    %v3132 = vld [vmem:[%s3131] sm:$0x1]
    %s3133 = scalar_lea.vmem %s8, 1
    %v3134 = vld [vmem:[%s3133] sm:$0x1]
    %v3135 = vsel %vm134, %v3129, 0.0
    %3136 = vadd.xlane.f32.xlu0 %v3135
    %v3137 = vpop.xlane.xlu0 %3136
    %v3138 = vsel %vm134, %v3130, 0.0
    %3139 = vadd.xlane.f32.xlu0 %v3138
    %v3140 = vpop.xlane.xlu0 %3139
    %v3141 = vmul.f32 %v3137, %v1499
    %v3142 = vmul.f32 %v3140, %v1499
    %v3143 = vsub.f32 %v3129, %v3141
    %v3144 = vsub.f32 %v3130, %v3142
    %v3145 = vmul.f32 %v3143, %v3143
    %v3146 = vmul.f32 %v3144, %v3144
    %v3147 = vsel %vm134, %v3145, 0.0
    %3148 = vadd.xlane.f32.xlu0 %v3147
    %v3149 = vpop.xlane.xlu0 %3148
    %v3150 = vsel %vm134, %v3146, 0.0
    %3151 = vadd.xlane.f32.xlu0 %v3150
    %v3152 = vpop.xlane.xlu0 %3151
    %v3153 = vmul.f32 %v3149, %v1499
    %v3154 = vmul.f32 %v3152, %v1499
    %v3155 = vadd.f32 %v3153, 1e-05
    %v3156 = vadd.f32 %v3154, 1e-05
    %v3157 = vrsqrt.pop %v3155
    %v3158 = vrsqrt.pop %v3156
    %v3159 = vmul.f32 %v3143, %v3157
    %v3160 = vmul.f32 %v3144, %v3158
    %v3162 = vlaneseq
    %v3163 = vshrl.u32 %v3162, 7
    %v3164 = vsub.s32 0, %v3163
    %v3165 = vrot.slane %v3132, %v3164
    %v3167 = vmul.f32 %v3159, %v3165
    %v3168 = vmul.f32 %v3160, %v3165
    %v3170 = vlaneseq
    %v3171 = vshrl.u32 %v3170, 7
    %v3172 = vsub.s32 0, %v3171
    %v3173 = vrot.slane %v3134, %v3172
    %v3175 = vadd.f32 %v3167, %v3173
    %v3176 = vadd.f32 %v3168, %v3173
    %v3177 = vpack.c.bf16 %v3176, %v3175
    %s3178 = scalar_lea.vmem %s9, 16
    %v3179 = vld [vmem:[%s3178] sm:$0xf]
    %v3180 = vld [vmem:[%s3178 + $0x4] sm:$0xf]
    %v3181 = vld [vmem:[%s3178 + $0x8] sm:$0xf]
    %v3182 = vld [vmem:[%s3178 + $0xc] sm:$0xf]
    %s3183 = scalar_lea.vmem %s10, 1
    %v3184 = vld [vmem:[%s3183] sm:$0x1]
    %v3186 = vlaneseq
    %v3187 = vshrl.u32 %v3186, 7
    %v3188 = vsub.s32 0, %v3187
    %v3189 = vrot.slane %v3184, %v3188
    %v3195 = vunpack.c.l.b16 %v3179
    %v3196 = vunpack.c.l.b16 %v3180
    %v3197 = vunpack.c.l.b16 %v3181
    %v3198 = vunpack.c.l.b16 %v3182
    %v3199 = vpack.c.b16 %v3196, %v3195
    %v3200 = vpack.c.b16 %v3198, %v3197
    %v3204 = vsel %vm134, %v3177, 0
    %3206 = vmatprep.subr.bf16.mxu0 0
    %3207 = vmatpush1.bf16.msra.mxu0 %v3199
    %3208 = vmatprep.subr.bf16.mxu0 0
    %3209 = vmatpush1.bf16.msra.mxu0 %v3200
    %3210 = vmatprep.subr.bf16.mxu0 0
    %3211 = vmatpush1.bf16.msra.mxu0 0
    %3212 = vmatprep.subr.bf16.mxu0 0
    %3213 = vmatpush1.bf16.msra.mxu0 0
    %3214 = vmatprep.subr.bf16.mxu0 0
    %3215 = vmatpush1.bf16.msra.mxu0 0
    %3216 = vmatprep.subr.bf16.mxu0 0
    %3217 = vmatpush1.bf16.msra.mxu0 0
    %3218 = vmatprep.subr.bf16.mxu0 0
    %3219 = vmatpush1.bf16.msra.mxu0 0
    %3220 = vmatprep.subr.bf16.mxu0 0
    %3221 = vmatpush1.bf16.msra.mxu0 0
    %3222 = vmatprep.subr.bf16.mxu0 0
    %3223 = vmatpush1.bf16.msra.mxu0 0
    %3224 = vmatprep.subr.bf16.mxu0 0
    %3225 = vmatpush1.bf16.msra.mxu0 0
    %3226 = vmatprep.subr.bf16.mxu0 0
    %3227 = vmatpush1.bf16.msra.mxu0 0
    %3228 = vmatprep.subr.bf16.mxu0 0
    %3229 = vmatpush1.bf16.msra.mxu0 0
    %3230 = vmatprep.subr.bf16.mxu0 0
    %3231 = vmatpush1.bf16.msra.mxu0 0
    %3232 = vmatprep.subr.bf16.mxu0 0
    %3233 = vmatpush1.bf16.msra.mxu0 0
    %3234 = vmatprep.subr.bf16.mxu0 0
    %3235 = vmatpush1.bf16.msra.mxu0 0
    %3236 = vmatprep.subr.bf16.mxu0 0
    %3237 = vmatpush1.bf16.msra.mxu0 0
    %3238 = vmatprep.mubr.bf16.mxu0 0
    %3239 = vmatmul.mubr.bf16.gmra.mrb[0].mxu0 %v3204
    %v3240 = vpop.f32.mrb[0].mxu0
    %v3241 = vadd.f32 %v3189, %v3240
    %v3242 = vpop.f32.mrb[0].mxu0
    %v3243 = vpop.f32.mrb[0].mxu0
    %v3244 = vadd.f32 %v3189, %v3243
    %v3245 = vpop.f32.mrb[0].mxu0
    %3246 = vdwg.mxu0
    %v3247 = vmax.f32 %v3241, 0.0
    %v3248 = vmax.f32 %v3244, 0.0
    %v3249 = vpack.c.bf16 %v3248, %v3247
    %s3250 = scalar_lea.vmem %s11, 64
    %v3251 = vld [vmem:[%s3250] sm:$0xf]
    %v3252 = vld [vmem:[%s3250 + $0x4] sm:$0xf]
    %v3253 = vld [vmem:[%s3250 + $0x8] sm:$0xf]
    %v3254 = vld [vmem:[%s3250 + $0xc] sm:$0xf]
    %v3255 = vld [vmem:[%s3250 + $0x10] sm:$0xf]
    %v3256 = vld [vmem:[%s3250 + $0x14] sm:$0xf]
    %v3257 = vld [vmem:[%s3250 + $0x18] sm:$0xf]
    %v3258 = vld [vmem:[%s3250 + $0x1c] sm:$0xf]
    %v3259 = vld [vmem:[%s3250 + $0x20] sm:$0xf]
    %v3260 = vld [vmem:[%s3250 + $0x24] sm:$0xf]
    %v3261 = vld [vmem:[%s3250 + $0x28] sm:$0xf]
    %v3262 = vld [vmem:[%s3250 + $0x2c] sm:$0xf]
    %v3263 = vld [vmem:[%s3250 + $0x30] sm:$0xf]
    %v3264 = vld [vmem:[%s3250 + $0x34] sm:$0xf]
    %v3265 = vld [vmem:[%s3250 + $0x38] sm:$0xf]
    %v3266 = vld [vmem:[%s3250 + $0x3c] sm:$0xf]
    %s3267 = scalar_lea.vmem %s12, 1
    %v3268 = vld [vmem:[%s3267] sm:$0x1]
    %v3270 = vlaneseq
    %v3271 = vshrl.u32 %v3270, 7
    %v3272 = vsub.s32 0, %v3271
    %v3273 = vrot.slane %v3268, %v3272
    %v3291 = vunpack.c.l.b16 %v3251
    %v3292 = vunpack.c.l.b16 %v3252
    %v3293 = vunpack.c.l.b16 %v3253
    %v3294 = vunpack.c.l.b16 %v3254
    %v3295 = vunpack.c.l.b16 %v3255
    %v3296 = vunpack.c.l.b16 %v3256
    %v3297 = vunpack.c.l.b16 %v3257
    %v3298 = vunpack.c.l.b16 %v3258
    %v3299 = vunpack.c.l.b16 %v3259
    %v3300 = vunpack.c.l.b16 %v3260
    %v3301 = vunpack.c.l.b16 %v3261
    %v3302 = vunpack.c.l.b16 %v3262
    %v3303 = vunpack.c.l.b16 %v3263
    %v3304 = vunpack.c.l.b16 %v3264
    %v3305 = vunpack.c.l.b16 %v3265
    %v3306 = vunpack.c.l.b16 %v3266
    %v3307 = vpack.c.b16 %v3292, %v3291
    %v3308 = vpack.c.b16 %v3294, %v3293
    %v3309 = vpack.c.b16 %v3296, %v3295
    %v3310 = vpack.c.b16 %v3298, %v3297
    %v3311 = vpack.c.b16 %v3300, %v3299
    %v3312 = vpack.c.b16 %v3302, %v3301
    %v3313 = vpack.c.b16 %v3304, %v3303
    %v3314 = vpack.c.b16 %v3306, %v3305
    %3323 = vmatprep.subr.bf16.mxu0 0
    %3324 = vmatpush1.bf16.msra.mxu0 %v3307
    %3325 = vmatprep.subr.bf16.mxu0 0
    %3326 = vmatpush1.bf16.msra.mxu0 %v3308
    %3327 = vmatprep.subr.bf16.mxu0 0
    %3328 = vmatpush1.bf16.msra.mxu0 %v3309
    %3329 = vmatprep.subr.bf16.mxu0 0
    %3330 = vmatpush1.bf16.msra.mxu0 %v3310
    %3331 = vmatprep.subr.bf16.mxu0 0
    %3332 = vmatpush1.bf16.msra.mxu0 %v3311
    %3333 = vmatprep.subr.bf16.mxu0 0
    %3334 = vmatpush1.bf16.msra.mxu0 %v3312
    %3335 = vmatprep.subr.bf16.mxu0 0
    %3336 = vmatpush1.bf16.msra.mxu0 %v3313
    %3337 = vmatprep.subr.bf16.mxu0 0
    %3338 = vmatpush1.bf16.msra.mxu0 %v3314
    %3339 = vmatprep.subr.bf16.mxu0 0
    %3340 = vmatpush1.bf16.msra.mxu0 0
    %3341 = vmatprep.subr.bf16.mxu0 0
    %3342 = vmatpush1.bf16.msra.mxu0 0
    %3343 = vmatprep.subr.bf16.mxu0 0
    %3344 = vmatpush1.bf16.msra.mxu0 0
    %3345 = vmatprep.subr.bf16.mxu0 0
    %3346 = vmatpush1.bf16.msra.mxu0 0
    %3347 = vmatprep.subr.bf16.mxu0 0
    %3348 = vmatpush1.bf16.msra.mxu0 0
    %3349 = vmatprep.subr.bf16.mxu0 0
    %3350 = vmatpush1.bf16.msra.mxu0 0
    %3351 = vmatprep.subr.bf16.mxu0 0
    %3352 = vmatpush1.bf16.msra.mxu0 0
    %3353 = vmatprep.subr.bf16.mxu0 0
    %3354 = vmatpush1.bf16.msra.mxu0 0
    %3355 = vmatprep.mubr.bf16.mxu0 0
    %3356 = vmatmul.mubr.bf16.gmra.mrb[0].mxu0 %v3249
    %v3357 = vpop.f32.mrb[0].mxu0
    %v3358 = vadd.f32 %v3273, %v3357
    %v3359 = vpop.f32.mrb[0].mxu0
    %v3360 = vpop.f32.mrb[0].mxu0
    %v3361 = vadd.f32 %v3273, %v3360
    %v3362 = vpop.f32.mrb[0].mxu0
    %3363 = vdwg.mxu0
    %v3364 = vadd.f32 %v3175, %v3358
    %v3365 = vadd.f32 %v3176, %v3361
    %s3366 = scalar_lea.vmem %s13, 1
    %v3367 = vld [vmem:[%s3366] sm:$0x1]
    %s3368 = scalar_lea.vmem %s14, 1
    %v3369 = vld [vmem:[%s3368] sm:$0x1]
    %v3370 = vsel %vm134, %v3364, 0.0
    %3371 = vadd.xlane.f32.xlu0 %v3370
    %v3372 = vpop.xlane.xlu0 %3371
    %v3373 = vsel %vm134, %v3365, 0.0
    %3374 = vadd.xlane.f32.xlu0 %v3373
    %v3375 = vpop.xlane.xlu0 %3374
    %v3376 = vmul.f32 %v3372, %v1499
    %v3377 = vmul.f32 %v3375, %v1499
    %v3378 = vsub.f32 %v3364, %v3376
    %v3379 = vsub.f32 %v3365, %v3377
    %v3380 = vmul.f32 %v3378, %v3378
    %v3381 = vmul.f32 %v3379, %v3379
    %v3382 = vsel %vm134, %v3380, 0.0
    %3383 = vadd.xlane.f32.xlu0 %v3382
    %v3384 = vpop.xlane.xlu0 %3383
    %v3385 = vsel %vm134, %v3381, 0.0
    %3386 = vadd.xlane.f32.xlu0 %v3385
    %v3387 = vpop.xlane.xlu0 %3386
    %v3388 = vmul.f32 %v3384, %v1499
    %v3389 = vmul.f32 %v3387, %v1499
    %v3390 = vadd.f32 %v3388, 1e-05
    %v3391 = vadd.f32 %v3389, 1e-05
    %v3392 = vrsqrt.pop %v3390
    %v3393 = vrsqrt.pop %v3391
    %v3394 = vmul.f32 %v3378, %v3392
    %v3395 = vmul.f32 %v3379, %v3393
    %v3397 = vlaneseq
    %v3398 = vshrl.u32 %v3397, 7
    %v3399 = vsub.s32 0, %v3398
    %v3400 = vrot.slane %v3367, %v3399
    %v3402 = vmul.f32 %v3394, %v3400
    %v3403 = vmul.f32 %v3395, %v3400
    %v3405 = vlaneseq
    %v3406 = vshrl.u32 %v3405, 7
    %v3407 = vsub.s32 0, %v3406
    %v3408 = vrot.slane %v3369, %v3407
    %v3410 = vadd.f32 %v3402, %v3408
    %v3411 = vadd.f32 %v3403, %v3408
    %v3412 = vpack.c.bf16 %v3411, %v3410
    %s3413 = scalar_lea.vmem %s3, 96
    %v3414 = vld [vmem:[%s3413] sm:$0xf]
    %v3415 = vld [vmem:[%s3413 + $0x4] sm:$0xf]
    %v3416 = vld [vmem:[%s3413 + $0x8] sm:$0xf]
    %v3417 = vld [vmem:[%s3413 + $0xc] sm:$0xf]
    %s3418 = scalar_lea.vmem %s4, 6
    %v3419 = vld [vmem:[%s3418] sm:$0x1]
    %v3421 = vlaneseq
    %v3422 = vshrl.u32 %v3421, 7
    %v3423 = vsub.s32 0, %v3422
    %v3424 = vrot.slane %v3419, %v3423
    %v3430 = vunpack.c.l.b16 %v3414
    %v3431 = vunpack.c.l.b16 %v3415
    %v3432 = vunpack.c.l.b16 %v3416
    %v3433 = vunpack.c.l.b16 %v3417
    %v3434 = vpack.c.b16 %v3431, %v3430
    %v3435 = vpack.c.b16 %v3433, %v3432
    %v3439 = vsel %vm134, %v3412, 0
    %3441 = vmatprep.subr.bf16.mxu0 0
    %3442 = vmatpush1.bf16.msra.mxu0 %v3434
    %3443 = vmatprep.subr.bf16.mxu0 0
    %3444 = vmatpush1.bf16.msra.mxu0 %v3435
    %3445 = vmatprep.subr.bf16.mxu0 0
    %3446 = vmatpush1.bf16.msra.mxu0 0
    %3447 = vmatprep.subr.bf16.mxu0 0
    %3448 = vmatpush1.bf16.msra.mxu0 0
    %3449 = vmatprep.subr.bf16.mxu0 0
    %3450 = vmatpush1.bf16.msra.mxu0 0
    %3451 = vmatprep.subr.bf16.mxu0 0
    %3452 = vmatpush1.bf16.msra.mxu0 0
    %3453 = vmatprep.subr.bf16.mxu0 0
    %3454 = vmatpush1.bf16.msra.mxu0 0
    %3455 = vmatprep.subr.bf16.mxu0 0
    %3456 = vmatpush1.bf16.msra.mxu0 0
    %3457 = vmatprep.subr.bf16.mxu0 0
    %3458 = vmatpush1.bf16.msra.mxu0 0
    %3459 = vmatprep.subr.bf16.mxu0 0
    %3460 = vmatpush1.bf16.msra.mxu0 0
    %3461 = vmatprep.subr.bf16.mxu0 0
    %3462 = vmatpush1.bf16.msra.mxu0 0
    %3463 = vmatprep.subr.bf16.mxu0 0
    %3464 = vmatpush1.bf16.msra.mxu0 0
    %3465 = vmatprep.subr.bf16.mxu0 0
    %3466 = vmatpush1.bf16.msra.mxu0 0
    %3467 = vmatprep.subr.bf16.mxu0 0
    %3468 = vmatpush1.bf16.msra.mxu0 0
    %3469 = vmatprep.subr.bf16.mxu0 0
    %3470 = vmatpush1.bf16.msra.mxu0 0
    %3471 = vmatprep.subr.bf16.mxu0 0
    %3472 = vmatpush1.bf16.msra.mxu0 0
    %3473 = vmatprep.mubr.bf16.mxu0 0
    %3474 = vmatmul.mubr.bf16.gmra.mrb[0].mxu0 %v3439
    %v3475 = vpop.f32.mrb[0].mxu0
    %v3476 = vadd.f32 %v3424, %v3475
    %v3477 = vpop.f32.mrb[0].mxu0
    %v3478 = vpop.f32.mrb[0].mxu0
    %v3479 = vadd.f32 %v3424, %v3478
    %v3480 = vpop.f32.mrb[0].mxu0
    %3481 = vdwg.mxu0
    %s3482 = scalar_lea.vmem %s3, 112
    %v3483 = vld [vmem:[%s3482] sm:$0xf]
    %v3484 = vld [vmem:[%s3482 + $0x4] sm:$0xf]
    %v3485 = vld [vmem:[%s3482 + $0x8] sm:$0xf]
    %v3486 = vld [vmem:[%s3482 + $0xc] sm:$0xf]
    %s3487 = scalar_lea.vmem %s4, 7
    %v3488 = vld [vmem:[%s3487] sm:$0x1]
    %v3490 = vlaneseq
    %v3491 = vshrl.u32 %v3490, 7
    %v3492 = vsub.s32 0, %v3491
    %v3493 = vrot.slane %v3488, %v3492
    %v3499 = vunpack.c.l.b16 %v3483
    %v3500 = vunpack.c.l.b16 %v3484
    %v3501 = vunpack.c.l.b16 %v3485
    %v3502 = vunpack.c.l.b16 %v3486
    %v3503 = vpack.c.b16 %v3500, %v3499
    %v3504 = vpack.c.b16 %v3502, %v3501
    %3507 = vmatprep.subr.bf16.mxu0 0
    %3508 = vmatpush1.bf16.msra.mxu0 %v3503
    %3509 = vmatprep.subr.bf16.mxu0 0
    %3510 = vmatpush1.bf16.msra.mxu0 %v3504
    %3511 = vmatprep.subr.bf16.mxu0 0
    %3512 = vmatpush1.bf16.msra.mxu0 0
    %3513 = vmatprep.subr.bf16.mxu0 0
    %3514 = vmatpush1.bf16.msra.mxu0 0
    %3515 = vmatprep.subr.bf16.mxu0 0
    %3516 = vmatpush1.bf16.msra.mxu0 0
    %3517 = vmatprep.subr.bf16.mxu0 0
    %3518 = vmatpush1.bf16.msra.mxu0 0
    %3519 = vmatprep.subr.bf16.mxu0 0
    %3520 = vmatpush1.bf16.msra.mxu0 0
    %3521 = vmatprep.subr.bf16.mxu0 0
    %3522 = vmatpush1.bf16.msra.mxu0 0
    %3523 = vmatprep.subr.bf16.mxu0 0
    %3524 = vmatpush1.bf16.msra.mxu0 0
    %3525 = vmatprep.subr.bf16.mxu0 0
    %3526 = vmatpush1.bf16.msra.mxu0 0
    %3527 = vmatprep.subr.bf16.mxu0 0
    %3528 = vmatpush1.bf16.msra.mxu0 0
    %3529 = vmatprep.subr.bf16.mxu0 0
    %3530 = vmatpush1.bf16.msra.mxu0 0
    %3531 = vmatprep.subr.bf16.mxu0 0
    %3532 = vmatpush1.bf16.msra.mxu0 0
    %3533 = vmatprep.subr.bf16.mxu0 0
    %3534 = vmatpush1.bf16.msra.mxu0 0
    %3535 = vmatprep.subr.bf16.mxu0 0
    %3536 = vmatpush1.bf16.msra.mxu0 0
    %3537 = vmatprep.subr.bf16.mxu0 0
    %3538 = vmatpush1.bf16.msra.mxu0 0
    %3539 = vmatprep.mubr.bf16.mxu0 0
    %3540 = vmatmul.mubr.bf16.gmra.mrb[0].mxu0 %v3439
    %v3541 = vpop.f32.mrb[0].mxu0
    %v3542 = vadd.f32 %v3493, %v3541
    %v3543 = vpop.f32.mrb[0].mxu0
    %v3544 = vpop.f32.mrb[0].mxu0
    %v3545 = vadd.f32 %v3493, %v3544
    %v3546 = vpop.f32.mrb[0].mxu0
    %3547 = vdwg.mxu0
    %s3548 = scalar_lea.vmem %s3, 128
    %v3549 = vld [vmem:[%s3548] sm:$0xf]
    %v3550 = vld [vmem:[%s3548 + $0x4] sm:$0xf]
    %v3551 = vld [vmem:[%s3548 + $0x8] sm:$0xf]
    %v3552 = vld [vmem:[%s3548 + $0xc] sm:$0xf]
    %s3553 = scalar_lea.vmem %s4, 8
    %v3554 = vld [vmem:[%s3553] sm:$0x1]
    %v3556 = vlaneseq
    %v3557 = vshrl.u32 %v3556, 7
    %v3558 = vsub.s32 0, %v3557
    %v3559 = vrot.slane %v3554, %v3558
    %v3565 = vunpack.c.l.b16 %v3549
    %v3566 = vunpack.c.l.b16 %v3550
    %v3567 = vunpack.c.l.b16 %v3551
    %v3568 = vunpack.c.l.b16 %v3552
    %v3569 = vpack.c.b16 %v3566, %v3565
    %v3570 = vpack.c.b16 %v3568, %v3567
    %3573 = vmatprep.subr.bf16.mxu0 0
    %3574 = vmatpush1.bf16.msra.mxu0 %v3569
    %3575 = vmatprep.subr.bf16.mxu0 0
    %3576 = vmatpush1.bf16.msra.mxu0 %v3570
    %3577 = vmatprep.subr.bf16.mxu0 0
    %3578 = vmatpush1.bf16.msra.mxu0 0
    %3579 = vmatprep.subr.bf16.mxu0 0
    %3580 = vmatpush1.bf16.msra.mxu0 0
    %3581 = vmatprep.subr.bf16.mxu0 0
    %3582 = vmatpush1.bf16.msra.mxu0 0
    %3583 = vmatprep.subr.bf16.mxu0 0
    %3584 = vmatpush1.bf16.msra.mxu0 0
    %3585 = vmatprep.subr.bf16.mxu0 0
    %3586 = vmatpush1.bf16.msra.mxu0 0
    %3587 = vmatprep.subr.bf16.mxu0 0
    %3588 = vmatpush1.bf16.msra.mxu0 0
    %3589 = vmatprep.subr.bf16.mxu0 0
    %3590 = vmatpush1.bf16.msra.mxu0 0
    %3591 = vmatprep.subr.bf16.mxu0 0
    %3592 = vmatpush1.bf16.msra.mxu0 0
    %3593 = vmatprep.subr.bf16.mxu0 0
    %3594 = vmatpush1.bf16.msra.mxu0 0
    %3595 = vmatprep.subr.bf16.mxu0 0
    %3596 = vmatpush1.bf16.msra.mxu0 0
    %3597 = vmatprep.subr.bf16.mxu0 0
    %3598 = vmatpush1.bf16.msra.mxu0 0
    %3599 = vmatprep.subr.bf16.mxu0 0
    %3600 = vmatpush1.bf16.msra.mxu0 0
    %3601 = vmatprep.subr.bf16.mxu0 0
    %3602 = vmatpush1.bf16.msra.mxu0 0
    %3603 = vmatprep.subr.bf16.mxu0 0
    %3604 = vmatpush1.bf16.msra.mxu0 0
    %3605 = vmatprep.mubr.bf16.mxu0 0
    %3606 = vmatmul.mubr.bf16.gmra.mrb[0].mxu0 %v3439
    %v3607 = vpop.f32.mrb[0].mxu0
    %v3608 = vadd.f32 %v3559, %v3607
    %v3609 = vpop.f32.mrb[0].mxu0
    %v3610 = vpop.f32.mrb[0].mxu0
    %v3611 = vadd.f32 %v3559, %v3610
    %v3612 = vpop.f32.mrb[0].mxu0
    %3613 = vdwg.mxu0
    %v3616 = vcombine.high %v3476, %v3476
    %v3618 = vunpack.c.l.s4 1966171168
    %v3619 = vunpack.c.0.s8 %v3618
    %v3620 = vlaneseq
    %v3621 = vshrl.u32 %v3620, 7
    %v3622 = vsub.s32 %v3619, %v3621
    %v3623 = vrot.slane %v3476, %v3622
    %v3625 = vunpack.c.l.s4 1966171168
    %v3626 = vunpack.c.0.s8 %v3625
    %v3627 = vlaneseq
    %v3628 = vshrl.u32 %v3627, 7
    %v3629 = vsub.s32 %v3626, %v3628
    %v3630 = vrot.slane %v3616, %v3629
    %v3631 = vcombine.high %v3623, %v3623
    %v3632 = vcombine.high %v3630, %v3630
    %v3634 = vunpack.c.l.s4 1966171168
    %v3635 = vunpack.c.0.s8 %v3634
    %v3636 = vlaneseq
    %v3637 = vshrl.u32 %v3636, 7
    %v3638 = vsub.s32 %v3635, %v3637
    %v3639 = vrot.slane %v3623, %v3638
    %v3641 = vunpack.c.l.s4 1966171168
    %v3642 = vunpack.c.0.s8 %v3641
    %v3643 = vlaneseq
    %v3644 = vshrl.u32 %v3643, 7
    %v3645 = vsub.s32 %v3642, %v3644
    %v3646 = vrot.slane %v3630, %v3645
    %v3648 = vunpack.c.l.s4 1966171168
    %v3649 = vunpack.c.0.s8 %v3648
    %v3650 = vlaneseq
    %v3651 = vshrl.u32 %v3650, 7
    %v3652 = vsub.s32 %v3649, %v3651
    %v3653 = vrot.slane %v3631, %v3652
    %v3655 = vunpack.c.l.s4 1966171168
    %v3656 = vunpack.c.0.s8 %v3655
    %v3657 = vlaneseq
    %v3658 = vshrl.u32 %v3657, 7
    %v3659 = vsub.s32 %v3656, %v3658
    %v3660 = vrot.slane %v3632, %v3659
    %v3661 = vcombine.high %v3639, %v3639
    %v3662 = vcombine.high %v3646, %v3646
    %v3663 = vcombine.high %v3653, %v3653
    %v3664 = vcombine.high %v3660, %v3660
    %v3665 = vcombine.high %v3479, %v3479
    %v3667 = vunpack.c.l.s4 1966171168
    %v3668 = vunpack.c.0.s8 %v3667
    %v3669 = vlaneseq
    %v3670 = vshrl.u32 %v3669, 7
    %v3671 = vsub.s32 %v3668, %v3670
    %v3672 = vrot.slane %v3479, %v3671
    %v3674 = vunpack.c.l.s4 1966171168
    %v3675 = vunpack.c.0.s8 %v3674
    %v3676 = vlaneseq
    %v3677 = vshrl.u32 %v3676, 7
    %v3678 = vsub.s32 %v3675, %v3677
    %v3679 = vrot.slane %v3665, %v3678
    %v3680 = vcombine.high %v3672, %v3672
    %v3681 = vcombine.high %v3679, %v3679
    %v3683 = vunpack.c.l.s4 1966171168
    %v3684 = vunpack.c.0.s8 %v3683
    %v3685 = vlaneseq
    %v3686 = vshrl.u32 %v3685, 7
    %v3687 = vsub.s32 %v3684, %v3686
    %v3688 = vrot.slane %v3672, %v3687
    %v3690 = vunpack.c.l.s4 1966171168
    %v3691 = vunpack.c.0.s8 %v3690
    %v3692 = vlaneseq
    %v3693 = vshrl.u32 %v3692, 7
    %v3694 = vsub.s32 %v3691, %v3693
    %v3695 = vrot.slane %v3679, %v3694
    %v3697 = vunpack.c.l.s4 1966171168
    %v3698 = vunpack.c.0.s8 %v3697
    %v3699 = vlaneseq
    %v3700 = vshrl.u32 %v3699, 7
    %v3701 = vsub.s32 %v3698, %v3700
    %v3702 = vrot.slane %v3680, %v3701
    %v3704 = vunpack.c.l.s4 1966171168
    %v3705 = vunpack.c.0.s8 %v3704
    %v3706 = vlaneseq
    %v3707 = vshrl.u32 %v3706, 7
    %v3708 = vsub.s32 %v3705, %v3707
    %v3709 = vrot.slane %v3681, %v3708
    %v3710 = vcombine.high %v3688, %v3688
    %v3711 = vcombine.high %v3695, %v3695
    %v3712 = vcombine.high %v3702, %v3702
    %v3713 = vcombine.high %v3709, %v3709
    %v3714 = vlaneseq
    %v3715 = vshrl.u32 %v3714, 7
    %v3716 = vsub.s32 0, %v3715
    %v3717 = vrot.slane %v3639, %v3716
    %v3718 = vlaneseq
    %v3719 = vshrl.u32 %v3718, 7
    %v3720 = vsub.s32 0, %v3719
    %v3721 = vrot.slane %v3653, %v3720
    %v3722 = vlaneseq
    %v3723 = vshrl.u32 %v3722, 7
    %v3724 = vsub.s32 0, %v3723
    %v3725 = vrot.slane %v3661, %v3724
    %v3726 = vlaneseq
    %v3727 = vshrl.u32 %v3726, 7
    %v3728 = vsub.s32 0, %v3727
    %v3729 = vrot.slane %v3663, %v3728
    %v3730 = vlaneseq
    %v3731 = vshrl.u32 %v3730, 7
    %v3732 = vsub.s32 0, %v3731
    %v3733 = vrot.slane %v3646, %v3732
    %v3734 = vlaneseq
    %v3735 = vshrl.u32 %v3734, 7
    %v3736 = vsub.s32 0, %v3735
    %v3737 = vrot.slane %v3660, %v3736
    %v3738 = vlaneseq
    %v3739 = vshrl.u32 %v3738, 7
    %v3740 = vsub.s32 0, %v3739
    %v3741 = vrot.slane %v3662, %v3740
    %v3742 = vlaneseq
    %v3743 = vshrl.u32 %v3742, 7
    %v3744 = vsub.s32 0, %v3743
    %v3745 = vrot.slane %v3664, %v3744
    %v3746 = vlaneseq
    %v3747 = vshrl.u32 %v3746, 7
    %v3748 = vsub.s32 0, %v3747
    %v3749 = vrot.slane %v3688, %v3748
    %v3750 = vlaneseq
    %v3751 = vshrl.u32 %v3750, 7
    %v3752 = vsub.s32 0, %v3751
    %v3753 = vrot.slane %v3702, %v3752
    %v3754 = vlaneseq
    %v3755 = vshrl.u32 %v3754, 7
    %v3756 = vsub.s32 0, %v3755
    %v3757 = vrot.slane %v3710, %v3756
    %v3758 = vlaneseq
    %v3759 = vshrl.u32 %v3758, 7
    %v3760 = vsub.s32 0, %v3759
    %v3761 = vrot.slane %v3712, %v3760
    %v3762 = vlaneseq
    %v3763 = vshrl.u32 %v3762, 7
    %v3764 = vsub.s32 0, %v3763
    %v3765 = vrot.slane %v3695, %v3764
    %v3766 = vlaneseq
    %v3767 = vshrl.u32 %v3766, 7
    %v3768 = vsub.s32 0, %v3767
    %v3769 = vrot.slane %v3709, %v3768
    %v3770 = vlaneseq
    %v3771 = vshrl.u32 %v3770, 7
    %v3772 = vsub.s32 0, %v3771
    %v3773 = vrot.slane %v3711, %v3772
    %v3774 = vlaneseq
    %v3775 = vshrl.u32 %v3774, 7
    %v3776 = vsub.s32 0, %v3775
    %v3777 = vrot.slane %v3713, %v3776
    %v3794 = vmul.f32 %v3717, %v3542
    %v3795 = vmul.f32 %v3721, %v3542
    %v3796 = vmul.f32 %v3725, %v3542
    %v3797 = vmul.f32 %v3729, %v3542
    %v3798 = vmul.f32 %v3733, %v3542
    %v3799 = vmul.f32 %v3737, %v3542
    %v3800 = vmul.f32 %v3741, %v3542
    %v3801 = vmul.f32 %v3745, %v3542
    %v3802 = vmul.f32 %v3749, %v3545
    %v3803 = vmul.f32 %v3753, %v3545
    %v3804 = vmul.f32 %v3757, %v3545
    %v3805 = vmul.f32 %v3761, %v3545
    %v3806 = vmul.f32 %v3765, %v3545
    %v3807 = vmul.f32 %v3769, %v3545
    %v3808 = vmul.f32 %v3773, %v3545
    %v3809 = vmul.f32 %v3777, %v3545
    %v3811 = vsel %vm134, %v3794, 0
    %v3814 = vsel %vm134, %v3795, 0
    %v3817 = vsel %vm134, %v3796, 0
    %v3820 = vsel %vm134, %v3797, 0
    %v3823 = vsel %vm134, %v3798, 0
    %v3826 = vsel %vm134, %v3799, 0
    %v3829 = vsel %vm134, %v3800, 0
    %v3832 = vsel %vm134, %v3801, 0
    %v3835 = vsel %vm134, %v3802, 0
    %v3838 = vsel %vm134, %v3803, 0
    %v3841 = vsel %vm134, %v3804, 0
    %v3844 = vsel %vm134, %v3805, 0
    %v3847 = vsel %vm134, %v3806, 0
    %v3850 = vsel %vm134, %v3807, 0
    %v3853 = vsel %vm134, %v3808, 0
    %v3856 = vsel %vm134, %v3809, 0
    %3858 = vmatprep.subr.mxu0 0.0
    %3859 = vmatpush1.msra.mxu0 %v97
    %3860 = vmatprep.subr.mxu0 0.0
    %3861 = vmatpush1.msra.mxu0 %v98
    %3862 = vmatprep.subr.mxu0 0.0
    %3863 = vmatpush1.msra.mxu0 %v99
    %3864 = vmatprep.subr.mxu0 0.0
    %3865 = vmatpush1.msra.mxu0 %v100
    %3866 = vmatprep.subr.mxu0 0.0
    %3867 = vmatpush1.msra.mxu0 0.0
    %3868 = vmatprep.subr.mxu0 0.0
    %3869 = vmatpush1.msra.mxu0 0.0
    %3870 = vmatprep.subr.mxu0 0.0
    %3871 = vmatpush1.msra.mxu0 0.0
    %3872 = vmatprep.subr.mxu0 0.0
    %3873 = vmatpush1.msra.mxu0 0.0
    %3874 = vmatprep.subr.mxu0 0.0
    %3875 = vmatpush1.msra.mxu0 0.0
    %3876 = vmatprep.subr.mxu0 0.0
    %3877 = vmatpush1.msra.mxu0 0.0
    %3878 = vmatprep.subr.mxu0 0.0
    %3879 = vmatpush1.msra.mxu0 0.0
    %3880 = vmatprep.subr.mxu0 0.0
    %3881 = vmatpush1.msra.mxu0 0.0
    %3882 = vmatprep.subr.mxu0 0.0
    %3883 = vmatpush1.msra.mxu0 0.0
    %3884 = vmatprep.subr.mxu0 0.0
    %3885 = vmatpush1.msra.mxu0 0.0
    %3886 = vmatprep.subr.mxu0 0.0
    %3887 = vmatpush1.msra.mxu0 0.0
    %3888 = vmatprep.subr.mxu0 0.0
    %3889 = vmatpush1.msra.mxu0 0.0
    %3890 = vmatprep.subr.mxu0 0.0
    %3891 = vmatpush1.msra.mxu0 0.0
    %3892 = vmatprep.subr.mxu0 0.0
    %3893 = vmatpush1.msra.mxu0 0.0
    %3894 = vmatprep.subr.mxu0 0.0
    %3895 = vmatpush1.msra.mxu0 0.0
    %3896 = vmatprep.subr.mxu0 0.0
    %3897 = vmatpush1.msra.mxu0 0.0
    %3898 = vmatprep.subr.mxu0 0.0
    %3899 = vmatpush1.msra.mxu0 0.0
    %3900 = vmatprep.subr.mxu0 0.0
    %3901 = vmatpush1.msra.mxu0 0.0
    %3902 = vmatprep.subr.mxu0 0.0
    %3903 = vmatpush1.msra.mxu0 0.0
    %3904 = vmatprep.subr.mxu0 0.0
    %3905 = vmatpush1.msra.mxu0 0.0
    %3906 = vmatprep.subr.mxu0 0.0
    %3907 = vmatpush1.msra.mxu0 0.0
    %3908 = vmatprep.subr.mxu0 0.0
    %3909 = vmatpush1.msra.mxu0 0.0
    %3910 = vmatprep.subr.mxu0 0.0
    %3911 = vmatpush1.msra.mxu0 0.0
    %3912 = vmatprep.subr.mxu0 0.0
    %3913 = vmatpush1.msra.mxu0 0.0
    %3914 = vmatprep.subr.mxu0 0.0
    %3915 = vmatpush1.msra.mxu0 0.0
    %3916 = vmatprep.subr.mxu0 0.0
    %3917 = vmatpush1.msra.mxu0 0.0
    %3918 = vmatprep.subr.mxu0 0.0
    %3919 = vmatpush1.msra.mxu0 0.0
    %3920 = vmatprep.subr.mxu0 0.0
    %3921 = vmatpush1.msra.mxu0 0.0
    %3922 = vmatprep.mubr.f32.mxu0 0.0
    %3923 = vmatmul.mubr.f32.gmra.mrb[0].mxu0 %v3811
    %v3924 = vpop.f32.mrb[0].mxu0
    %v3925 = vadd.f32 0.0, %v3924
    %v3926 = vpop.f32.mrb[0].mxu0
    %3927 = vmatprep.mubr.f32.mxu0 0.0
    %3928 = vmatmul.mubr.f32.gmra.mrb[0].mxu0 %v3814
    %v3929 = vpop.f32.mrb[0].mxu0
    %v3930 = vadd.f32 0.0, %v3929
    %v3931 = vpop.f32.mrb[0].mxu0
    %3932 = vmatprep.mubr.f32.mxu0 0.0
    %3933 = vmatmul.mubr.f32.gmra.mrb[0].mxu0 %v3817
    %v3934 = vpop.f32.mrb[0].mxu0
    %v3935 = vadd.f32 0.0, %v3934
    %v3936 = vpop.f32.mrb[0].mxu0
    %3937 = vmatprep.mubr.f32.mxu0 0.0
    %3938 = vmatmul.mubr.f32.gmra.mrb[0].mxu0 %v3820
    %v3939 = vpop.f32.mrb[0].mxu0
    %v3940 = vadd.f32 0.0, %v3939
    %v3941 = vpop.f32.mrb[0].mxu0
    %3942 = vmatprep.mubr.f32.mxu0 0.0
    %3943 = vmatmul.mubr.f32.gmra.mrb[0].mxu0 %v3823
    %v3944 = vpop.f32.mrb[0].mxu0
    %v3945 = vadd.f32 0.0, %v3944
    %v3946 = vpop.f32.mrb[0].mxu0
    %3947 = vmatprep.mubr.f32.mxu0 0.0
    %3948 = vmatmul.mubr.f32.gmra.mrb[0].mxu0 %v3826
    %v3949 = vpop.f32.mrb[0].mxu0
    %v3950 = vadd.f32 0.0, %v3949
    %v3951 = vpop.f32.mrb[0].mxu0
    %3952 = vmatprep.mubr.f32.mxu0 0.0
    %3953 = vmatmul.mubr.f32.gmra.mrb[0].mxu0 %v3829
    %v3954 = vpop.f32.mrb[0].mxu0
    %v3955 = vadd.f32 0.0, %v3954
    %v3956 = vpop.f32.mrb[0].mxu0
    %3957 = vmatprep.mubr.f32.mxu0 0.0
    %3958 = vmatmul.mubr.f32.gmra.mrb[0].mxu0 %v3832
    %v3959 = vpop.f32.mrb[0].mxu0
    %v3960 = vadd.f32 0.0, %v3959
    %v3961 = vpop.f32.mrb[0].mxu0
    %3962 = vmatprep.mubr.f32.mxu0 0.0
    %3963 = vmatmul.mubr.f32.gmra.mrb[0].mxu0 %v3835
    %v3964 = vpop.f32.mrb[0].mxu0
    %v3965 = vadd.f32 0.0, %v3964
    %v3966 = vpop.f32.mrb[0].mxu0
    %3967 = vmatprep.mubr.f32.mxu0 0.0
    %3968 = vmatmul.mubr.f32.gmra.mrb[0].mxu0 %v3838
    %v3969 = vpop.f32.mrb[0].mxu0
    %v3970 = vadd.f32 0.0, %v3969
    %v3971 = vpop.f32.mrb[0].mxu0
    %3972 = vmatprep.mubr.f32.mxu0 0.0
    %3973 = vmatmul.mubr.f32.gmra.mrb[0].mxu0 %v3841
    %v3974 = vpop.f32.mrb[0].mxu0
    %v3975 = vadd.f32 0.0, %v3974
    %v3976 = vpop.f32.mrb[0].mxu0
    %3977 = vmatprep.mubr.f32.mxu0 0.0
    %3978 = vmatmul.mubr.f32.gmra.mrb[0].mxu0 %v3844
    %v3979 = vpop.f32.mrb[0].mxu0
    %v3980 = vadd.f32 0.0, %v3979
    %v3981 = vpop.f32.mrb[0].mxu0
    %3982 = vmatprep.mubr.f32.mxu0 0.0
    %3983 = vmatmul.mubr.f32.gmra.mrb[0].mxu0 %v3847
    %v3984 = vpop.f32.mrb[0].mxu0
    %v3985 = vadd.f32 0.0, %v3984
    %v3986 = vpop.f32.mrb[0].mxu0
    %3987 = vmatprep.mubr.f32.mxu0 0.0
    %3988 = vmatmul.mubr.f32.gmra.mrb[0].mxu0 %v3850
    %v3989 = vpop.f32.mrb[0].mxu0
    %v3990 = vadd.f32 0.0, %v3989
    %v3991 = vpop.f32.mrb[0].mxu0
    %3992 = vmatprep.mubr.f32.mxu0 0.0
    %3993 = vmatmul.mubr.f32.gmra.mrb[0].mxu0 %v3853
    %v3994 = vpop.f32.mrb[0].mxu0
    %v3995 = vadd.f32 0.0, %v3994
    %v3996 = vpop.f32.mrb[0].mxu0
    %3997 = vmatprep.mubr.f32.mxu0 0.0
    %3998 = vmatmul.mubr.f32.gmra.mrb[0].mxu0 %v3856
    %v3999 = vpop.f32.mrb[0].mxu0
    %v4000 = vadd.f32 0.0, %v3999
    %v4001 = vpop.f32.mrb[0].mxu0
    %4002 = vdwg.mxu0
    %v4003 = vadd.f32 %v3925, %v703
    %v4004 = vadd.f32 %v3930, %v703
    %v4005 = vadd.f32 %v3935, %v703
    %v4006 = vadd.f32 %v3940, %v703
    %v4007 = vadd.f32 %v3945, %v703
    %v4008 = vadd.f32 %v3950, %v703
    %v4009 = vadd.f32 %v3955, %v703
    %v4010 = vadd.f32 %v3960, %v703
    %v4011 = vadd.f32 %v3965, %v708
    %v4012 = vadd.f32 %v3970, %v708
    %v4013 = vadd.f32 %v3975, %v708
    %v4014 = vadd.f32 %v3980, %v708
    %v4015 = vadd.f32 %v3985, %v708
    %v4016 = vadd.f32 %v3990, %v708
    %v4017 = vadd.f32 %v3995, %v708
    %v4018 = vadd.f32 %v4000, %v708
    %v4019 = vsel %vm726, %v4003, -inf
    %v4020 = vrot.slane %v4019, 4
    %v4021 = vmax.f32 %v4019, %v4020
    %v4022 = vrot.slane %v4021, 2
    %v4023 = vmax.f32 %v4021, %v4022
    %v4024 = vrot.slane %v4023, 1
    %v4025 = vmax.f32 %v4023, %v4024
    %v4026 = vsel %vm726, %v4004, -inf
    %v4027 = vrot.slane %v4026, 4
    %v4028 = vmax.f32 %v4026, %v4027
    %v4029 = vrot.slane %v4028, 2
    %v4030 = vmax.f32 %v4028, %v4029
    %v4031 = vrot.slane %v4030, 1
    %v4032 = vmax.f32 %v4030, %v4031
    %v4033 = vsel %vm726, %v4005, -inf
    %v4034 = vrot.slane %v4033, 4
    %v4035 = vmax.f32 %v4033, %v4034
    %v4036 = vrot.slane %v4035, 2
    %v4037 = vmax.f32 %v4035, %v4036
    %v4038 = vrot.slane %v4037, 1
    %v4039 = vmax.f32 %v4037, %v4038
    %v4040 = vsel %vm726, %v4006, -inf
    %v4041 = vrot.slane %v4040, 4
    %v4042 = vmax.f32 %v4040, %v4041
    %v4043 = vrot.slane %v4042, 2
    %v4044 = vmax.f32 %v4042, %v4043
    %v4045 = vrot.slane %v4044, 1
    %v4046 = vmax.f32 %v4044, %v4045
    %v4047 = vsel %vm726, %v4007, -inf
    %v4048 = vrot.slane %v4047, 4
    %v4049 = vmax.f32 %v4047, %v4048
    %v4050 = vrot.slane %v4049, 2
    %v4051 = vmax.f32 %v4049, %v4050
    %v4052 = vrot.slane %v4051, 1
    %v4053 = vmax.f32 %v4051, %v4052
    %v4054 = vsel %vm726, %v4008, -inf
    %v4055 = vrot.slane %v4054, 4
    %v4056 = vmax.f32 %v4054, %v4055
    %v4057 = vrot.slane %v4056, 2
    %v4058 = vmax.f32 %v4056, %v4057
    %v4059 = vrot.slane %v4058, 1
    %v4060 = vmax.f32 %v4058, %v4059
    %v4061 = vsel %vm726, %v4009, -inf
    %v4062 = vrot.slane %v4061, 4
    %v4063 = vmax.f32 %v4061, %v4062
    %v4064 = vrot.slane %v4063, 2
    %v4065 = vmax.f32 %v4063, %v4064
    %v4066 = vrot.slane %v4065, 1
    %v4067 = vmax.f32 %v4065, %v4066
    %v4068 = vsel %vm726, %v4010, -inf
    %v4069 = vrot.slane %v4068, 4
    %v4070 = vmax.f32 %v4068, %v4069
    %v4071 = vrot.slane %v4070, 2
    %v4072 = vmax.f32 %v4070, %v4071
    %v4073 = vrot.slane %v4072, 1
    %v4074 = vmax.f32 %v4072, %v4073
    %v4075 = vsel %vm726, %v4011, -inf
    %v4076 = vrot.slane %v4075, 4
    %v4077 = vmax.f32 %v4075, %v4076
    %v4078 = vrot.slane %v4077, 2
    %v4079 = vmax.f32 %v4077, %v4078
    %v4080 = vrot.slane %v4079, 1
    %v4081 = vmax.f32 %v4079, %v4080
    %v4082 = vsel %vm726, %v4012, -inf
    %v4083 = vrot.slane %v4082, 4
    %v4084 = vmax.f32 %v4082, %v4083
    %v4085 = vrot.slane %v4084, 2
    %v4086 = vmax.f32 %v4084, %v4085
    %v4087 = vrot.slane %v4086, 1
    %v4088 = vmax.f32 %v4086, %v4087
    %v4089 = vsel %vm726, %v4013, -inf
    %v4090 = vrot.slane %v4089, 4
    %v4091 = vmax.f32 %v4089, %v4090
    %v4092 = vrot.slane %v4091, 2
    %v4093 = vmax.f32 %v4091, %v4092
    %v4094 = vrot.slane %v4093, 1
    %v4095 = vmax.f32 %v4093, %v4094
    %v4096 = vsel %vm726, %v4014, -inf
    %v4097 = vrot.slane %v4096, 4
    %v4098 = vmax.f32 %v4096, %v4097
    %v4099 = vrot.slane %v4098, 2
    %v4100 = vmax.f32 %v4098, %v4099
    %v4101 = vrot.slane %v4100, 1
    %v4102 = vmax.f32 %v4100, %v4101
    %v4103 = vsel %vm726, %v4015, -inf
    %v4104 = vrot.slane %v4103, 4
    %v4105 = vmax.f32 %v4103, %v4104
    %v4106 = vrot.slane %v4105, 2
    %v4107 = vmax.f32 %v4105, %v4106
    %v4108 = vrot.slane %v4107, 1
    %v4109 = vmax.f32 %v4107, %v4108
    %v4110 = vsel %vm726, %v4016, -inf
    %v4111 = vrot.slane %v4110, 4
    %v4112 = vmax.f32 %v4110, %v4111
    %v4113 = vrot.slane %v4112, 2
    %v4114 = vmax.f32 %v4112, %v4113
    %v4115 = vrot.slane %v4114, 1
    %v4116 = vmax.f32 %v4114, %v4115
    %v4117 = vsel %vm726, %v4017, -inf
    %v4118 = vrot.slane %v4117, 4
    %v4119 = vmax.f32 %v4117, %v4118
    %v4120 = vrot.slane %v4119, 2
    %v4121 = vmax.f32 %v4119, %v4120
    %v4122 = vrot.slane %v4121, 1
    %v4123 = vmax.f32 %v4121, %v4122
    %v4124 = vsel %vm726, %v4018, -inf
    %v4125 = vrot.slane %v4124, 4
    %v4126 = vmax.f32 %v4124, %v4125
    %v4127 = vrot.slane %v4126, 2
    %v4128 = vmax.f32 %v4126, %v4127
    %v4129 = vrot.slane %v4128, 1
    %v4130 = vmax.f32 %v4128, %v4129
    %v4131 = vsub.f32 %v4003, %v4025
    %v4132 = vsub.f32 %v4004, %v4032
    %v4133 = vsub.f32 %v4005, %v4039
    %v4134 = vsub.f32 %v4006, %v4046
    %v4135 = vsub.f32 %v4007, %v4053
    %v4136 = vsub.f32 %v4008, %v4060
    %v4137 = vsub.f32 %v4009, %v4067
    %v4138 = vsub.f32 %v4010, %v4074
    %v4139 = vsub.f32 %v4011, %v4081
    %v4140 = vsub.f32 %v4012, %v4088
    %v4141 = vsub.f32 %v4013, %v4095
    %v4142 = vsub.f32 %v4014, %v4102
    %v4143 = vsub.f32 %v4015, %v4109
    %v4144 = vsub.f32 %v4016, %v4116
    %v4145 = vsub.f32 %v4017, %v4123
    %v4146 = vsub.f32 %v4018, %v4130
    %v4147 = vmul.f32 %v4131, 1.442695
    %v4148 = vpow.pop %v4147
    %v4149 = vmul.f32 %v4132, 1.442695
    %v4150 = vpow.pop %v4149
    %v4151 = vmul.f32 %v4133, 1.442695
    %v4152 = vpow.pop %v4151
    %v4153 = vmul.f32 %v4134, 1.442695
    %v4154 = vpow.pop %v4153
    %v4155 = vmul.f32 %v4135, 1.442695
    %v4156 = vpow.pop %v4155
    %v4157 = vmul.f32 %v4136, 1.442695
    %v4158 = vpow.pop %v4157
    %v4159 = vmul.f32 %v4137, 1.442695
    %v4160 = vpow.pop %v4159
    %v4161 = vmul.f32 %v4138, 1.442695
    %v4162 = vpow.pop %v4161
    %v4163 = vmul.f32 %v4139, 1.442695
    %v4164 = vpow.pop %v4163
    %v4165 = vmul.f32 %v4140, 1.442695
    %v4166 = vpow.pop %v4165
    %v4167 = vmul.f32 %v4141, 1.442695
    %v4168 = vpow.pop %v4167
    %v4169 = vmul.f32 %v4142, 1.442695
    %v4170 = vpow.pop %v4169
    %v4171 = vmul.f32 %v4143, 1.442695
    %v4172 = vpow.pop %v4171
    %v4173 = vmul.f32 %v4144, 1.442695
    %v4174 = vpow.pop %v4173
    %v4175 = vmul.f32 %v4145, 1.442695
    %v4176 = vpow.pop %v4175
    %v4177 = vmul.f32 %v4146, 1.442695
    %v4178 = vpow.pop %v4177
    %v4179 = vsel %vm726, %v4148, 0.0
    %v4180 = vrot.slane %v4179, 4
    %v4181 = vadd.f32 %v4179, %v4180
    %v4182 = vrot.slane %v4181, 2
    %v4183 = vadd.f32 %v4181, %v4182
    %v4184 = vrot.slane %v4183, 1
    %v4185 = vadd.f32 %v4183, %v4184
    %v4186 = vsel %vm726, %v4150, 0.0
    %v4187 = vrot.slane %v4186, 4
    %v4188 = vadd.f32 %v4186, %v4187
    %v4189 = vrot.slane %v4188, 2
    %v4190 = vadd.f32 %v4188, %v4189
    %v4191 = vrot.slane %v4190, 1
    %v4192 = vadd.f32 %v4190, %v4191
    %v4193 = vsel %vm726, %v4152, 0.0
    %v4194 = vrot.slane %v4193, 4
    %v4195 = vadd.f32 %v4193, %v4194
    %v4196 = vrot.slane %v4195, 2
    %v4197 = vadd.f32 %v4195, %v4196
    %v4198 = vrot.slane %v4197, 1
    %v4199 = vadd.f32 %v4197, %v4198
    %v4200 = vsel %vm726, %v4154, 0.0
    %v4201 = vrot.slane %v4200, 4
    %v4202 = vadd.f32 %v4200, %v4201
    %v4203 = vrot.slane %v4202, 2
    %v4204 = vadd.f32 %v4202, %v4203
    %v4205 = vrot.slane %v4204, 1
    %v4206 = vadd.f32 %v4204, %v4205
    %v4207 = vsel %vm726, %v4156, 0.0
    %v4208 = vrot.slane %v4207, 4
    %v4209 = vadd.f32 %v4207, %v4208
    %v4210 = vrot.slane %v4209, 2
    %v4211 = vadd.f32 %v4209, %v4210
    %v4212 = vrot.slane %v4211, 1
    %v4213 = vadd.f32 %v4211, %v4212
    %v4214 = vsel %vm726, %v4158, 0.0
    %v4215 = vrot.slane %v4214, 4
    %v4216 = vadd.f32 %v4214, %v4215
    %v4217 = vrot.slane %v4216, 2
    %v4218 = vadd.f32 %v4216, %v4217
    %v4219 = vrot.slane %v4218, 1
    %v4220 = vadd.f32 %v4218, %v4219
    %v4221 = vsel %vm726, %v4160, 0.0
    %v4222 = vrot.slane %v4221, 4
    %v4223 = vadd.f32 %v4221, %v4222
    %v4224 = vrot.slane %v4223, 2
    %v4225 = vadd.f32 %v4223, %v4224
    %v4226 = vrot.slane %v4225, 1
    %v4227 = vadd.f32 %v4225, %v4226
    %v4228 = vsel %vm726, %v4162, 0.0
    %v4229 = vrot.slane %v4228, 4
    %v4230 = vadd.f32 %v4228, %v4229
    %v4231 = vrot.slane %v4230, 2
    %v4232 = vadd.f32 %v4230, %v4231
    %v4233 = vrot.slane %v4232, 1
    %v4234 = vadd.f32 %v4232, %v4233
    %v4235 = vsel %vm726, %v4164, 0.0
    %v4236 = vrot.slane %v4235, 4
    %v4237 = vadd.f32 %v4235, %v4236
    %v4238 = vrot.slane %v4237, 2
    %v4239 = vadd.f32 %v4237, %v4238
    %v4240 = vrot.slane %v4239, 1
    %v4241 = vadd.f32 %v4239, %v4240
    %v4242 = vsel %vm726, %v4166, 0.0
    %v4243 = vrot.slane %v4242, 4
    %v4244 = vadd.f32 %v4242, %v4243
    %v4245 = vrot.slane %v4244, 2
    %v4246 = vadd.f32 %v4244, %v4245
    %v4247 = vrot.slane %v4246, 1
    %v4248 = vadd.f32 %v4246, %v4247
    %v4249 = vsel %vm726, %v4168, 0.0
    %v4250 = vrot.slane %v4249, 4
    %v4251 = vadd.f32 %v4249, %v4250
    %v4252 = vrot.slane %v4251, 2
    %v4253 = vadd.f32 %v4251, %v4252
    %v4254 = vrot.slane %v4253, 1
    %v4255 = vadd.f32 %v4253, %v4254
    %v4256 = vsel %vm726, %v4170, 0.0
    %v4257 = vrot.slane %v4256, 4
    %v4258 = vadd.f32 %v4256, %v4257
    %v4259 = vrot.slane %v4258, 2
    %v4260 = vadd.f32 %v4258, %v4259
    %v4261 = vrot.slane %v4260, 1
    %v4262 = vadd.f32 %v4260, %v4261
    %v4263 = vsel %vm726, %v4172, 0.0
    %v4264 = vrot.slane %v4263, 4
    %v4265 = vadd.f32 %v4263, %v4264
    %v4266 = vrot.slane %v4265, 2
    %v4267 = vadd.f32 %v4265, %v4266
    %v4268 = vrot.slane %v4267, 1
    %v4269 = vadd.f32 %v4267, %v4268
    %v4270 = vsel %vm726, %v4174, 0.0
    %v4271 = vrot.slane %v4270, 4
    %v4272 = vadd.f32 %v4270, %v4271
    %v4273 = vrot.slane %v4272, 2
    %v4274 = vadd.f32 %v4272, %v4273
    %v4275 = vrot.slane %v4274, 1
    %v4276 = vadd.f32 %v4274, %v4275
    %v4277 = vsel %vm726, %v4176, 0.0
    %v4278 = vrot.slane %v4277, 4
    %v4279 = vadd.f32 %v4277, %v4278
    %v4280 = vrot.slane %v4279, 2
    %v4281 = vadd.f32 %v4279, %v4280
    %v4282 = vrot.slane %v4281, 1
    %v4283 = vadd.f32 %v4281, %v4282
    %v4284 = vsel %vm726, %v4178, 0.0
    %v4285 = vrot.slane %v4284, 4
    %v4286 = vadd.f32 %v4284, %v4285
    %v4287 = vrot.slane %v4286, 2
    %v4288 = vadd.f32 %v4286, %v4287
    %v4289 = vrot.slane %v4288, 1
    %v4290 = vadd.f32 %v4288, %v4289
    %v4291 = vrcp.pop %v4185
    %v4292 = vrcp.pop %v4192
    %v4293 = vrcp.pop %v4199
    %v4294 = vrcp.pop %v4206
    %v4295 = vrcp.pop %v4213
    %v4296 = vrcp.pop %v4220
    %v4297 = vrcp.pop %v4227
    %v4298 = vrcp.pop %v4234
    %v4299 = vrcp.pop %v4241
    %v4300 = vrcp.pop %v4248
    %v4301 = vrcp.pop %v4255
    %v4302 = vrcp.pop %v4262
    %v4303 = vrcp.pop %v4269
    %v4304 = vrcp.pop %v4276
    %v4305 = vrcp.pop %v4283
    %v4306 = vrcp.pop %v4290
    %v4307 = vmul.f32 %v4148, %v4291
    %v4308 = vmul.f32 %v4150, %v4292
    %v4309 = vmul.f32 %v4152, %v4293
    %v4310 = vmul.f32 %v4154, %v4294
    %v4311 = vmul.f32 %v4156, %v4295
    %v4312 = vmul.f32 %v4158, %v4296
    %v4313 = vmul.f32 %v4160, %v4297
    %v4314 = vmul.f32 %v4162, %v4298
    %v4315 = vmul.f32 %v4164, %v4299
    %v4316 = vmul.f32 %v4166, %v4300
    %v4317 = vmul.f32 %v4168, %v4301
    %v4318 = vmul.f32 %v4170, %v4302
    %v4319 = vmul.f32 %v4172, %v4303
    %v4320 = vmul.f32 %v4174, %v4304
    %v4321 = vmul.f32 %v4176, %v4305
    %v4322 = vmul.f32 %v4178, %v4306
    %v4324 = vsel %vm726, %v4307, 0
    %v4327 = vsel %vm726, %v4308, 0
    %v4330 = vsel %vm726, %v4309, 0
    %v4333 = vsel %vm726, %v4310, 0
    %v4336 = vsel %vm726, %v4311, 0
    %v4339 = vsel %vm726, %v4312, 0
    %v4342 = vsel %vm726, %v4313, 0
    %v4345 = vsel %vm726, %v4314, 0
    %v4348 = vsel %vm726, %v4315, 0
    %v4351 = vsel %vm726, %v4316, 0
    %v4354 = vsel %vm726, %v4317, 0
    %v4357 = vsel %vm726, %v4318, 0
    %v4360 = vsel %vm726, %v4319, 0
    %v4363 = vsel %vm726, %v4320, 0
    %v4366 = vsel %vm726, %v4321, 0
    %v4369 = vsel %vm726, %v4322, 0
    %4371 = vmatprep.subr.mxu0 0.0
    %4372 = vmatpush1.msra.mxu0 %v107
    %4373 = vmatprep.subr.mxu0 0.0
    %4374 = vmatpush1.msra.mxu0 0.0
    %4375 = vmatprep.subr.mxu0 0.0
    %4376 = vmatpush1.msra.mxu0 0.0
    %4377 = vmatprep.subr.mxu0 0.0
    %4378 = vmatpush1.msra.mxu0 0.0
    %4379 = vmatprep.subr.mxu0 0.0
    %4380 = vmatpush1.msra.mxu0 0.0
    %4381 = vmatprep.subr.mxu0 0.0
    %4382 = vmatpush1.msra.mxu0 0.0
    %4383 = vmatprep.subr.mxu0 0.0
    %4384 = vmatpush1.msra.mxu0 0.0
    %4385 = vmatprep.subr.mxu0 0.0
    %4386 = vmatpush1.msra.mxu0 0.0
    %4387 = vmatprep.subr.mxu0 0.0
    %4388 = vmatpush1.msra.mxu0 0.0
    %4389 = vmatprep.subr.mxu0 0.0
    %4390 = vmatpush1.msra.mxu0 0.0
    %4391 = vmatprep.subr.mxu0 0.0
    %4392 = vmatpush1.msra.mxu0 0.0
    %4393 = vmatprep.subr.mxu0 0.0
    %4394 = vmatpush1.msra.mxu0 0.0
    %4395 = vmatprep.subr.mxu0 0.0
    %4396 = vmatpush1.msra.mxu0 0.0
    %4397 = vmatprep.subr.mxu0 0.0
    %4398 = vmatpush1.msra.mxu0 0.0
    %4399 = vmatprep.subr.mxu0 0.0
    %4400 = vmatpush1.msra.mxu0 0.0
    %4401 = vmatprep.subr.mxu0 0.0
    %4402 = vmatpush1.msra.mxu0 0.0
    %4403 = vmatprep.subr.mxu0 0.0
    %4404 = vmatpush1.msra.mxu0 0.0
    %4405 = vmatprep.subr.mxu0 0.0
    %4406 = vmatpush1.msra.mxu0 0.0
    %4407 = vmatprep.subr.mxu0 0.0
    %4408 = vmatpush1.msra.mxu0 0.0
    %4409 = vmatprep.subr.mxu0 0.0
    %4410 = vmatpush1.msra.mxu0 0.0
    %4411 = vmatprep.subr.mxu0 0.0
    %4412 = vmatpush1.msra.mxu0 0.0
    %4413 = vmatprep.subr.mxu0 0.0
    %4414 = vmatpush1.msra.mxu0 0.0
    %4415 = vmatprep.subr.mxu0 0.0
    %4416 = vmatpush1.msra.mxu0 0.0
    %4417 = vmatprep.subr.mxu0 0.0
    %4418 = vmatpush1.msra.mxu0 0.0
    %4419 = vmatprep.subr.mxu0 0.0
    %4420 = vmatpush1.msra.mxu0 0.0
    %4421 = vmatprep.subr.mxu0 0.0
    %4422 = vmatpush1.msra.mxu0 0.0
    %4423 = vmatprep.subr.mxu0 0.0
    %4424 = vmatpush1.msra.mxu0 0.0
    %4425 = vmatprep.subr.mxu0 0.0
    %4426 = vmatpush1.msra.mxu0 0.0
    %4427 = vmatprep.subr.mxu0 0.0
    %4428 = vmatpush1.msra.mxu0 0.0
    %4429 = vmatprep.subr.mxu0 0.0
    %4430 = vmatpush1.msra.mxu0 0.0
    %4431 = vmatprep.subr.mxu0 0.0
    %4432 = vmatpush1.msra.mxu0 0.0
    %4433 = vmatprep.subr.mxu0 0.0
    %4434 = vmatpush1.msra.mxu0 0.0
    %4435 = vmatprep.mubr.f32.mxu0 0.0
    %4436 = vmatmul.mubr.f32.gmra.mrb[0].mxu0 %v4324
    %v4437 = vpop.f32.mrb[0].mxu0
    %v4438 = vadd.f32 0.0, %v4437
    %v4439 = vpop.f32.mrb[0].mxu0
    %4440 = vmatprep.mubr.f32.mxu0 0.0
    %4441 = vmatmul.mubr.f32.gmra.mrb[0].mxu0 %v4327
    %v4442 = vpop.f32.mrb[0].mxu0
    %v4443 = vadd.f32 0.0, %v4442
    %v4444 = vpop.f32.mrb[0].mxu0
    %4445 = vmatprep.mubr.f32.mxu0 0.0
    %4446 = vmatmul.mubr.f32.gmra.mrb[0].mxu0 %v4330
    %v4447 = vpop.f32.mrb[0].mxu0
    %v4448 = vadd.f32 0.0, %v4447
    %v4449 = vpop.f32.mrb[0].mxu0
    %4450 = vmatprep.mubr.f32.mxu0 0.0
    %4451 = vmatmul.mubr.f32.gmra.mrb[0].mxu0 %v4333
    %v4452 = vpop.f32.mrb[0].mxu0
    %v4453 = vadd.f32 0.0, %v4452
    %v4454 = vpop.f32.mrb[0].mxu0
    %4455 = vmatprep.mubr.f32.mxu0 0.0
    %4456 = vmatmul.mubr.f32.gmra.mrb[0].mxu0 %v4336
    %v4457 = vpop.f32.mrb[0].mxu0
    %v4458 = vadd.f32 0.0, %v4457
    %v4459 = vpop.f32.mrb[0].mxu0
    %4460 = vmatprep.mubr.f32.mxu0 0.0
    %4461 = vmatmul.mubr.f32.gmra.mrb[0].mxu0 %v4339
    %v4462 = vpop.f32.mrb[0].mxu0
    %v4463 = vadd.f32 0.0, %v4462
    %v4464 = vpop.f32.mrb[0].mxu0
    %4465 = vmatprep.mubr.f32.mxu0 0.0
    %4466 = vmatmul.mubr.f32.gmra.mrb[0].mxu0 %v4342
    %v4467 = vpop.f32.mrb[0].mxu0
    %v4468 = vadd.f32 0.0, %v4467
    %v4469 = vpop.f32.mrb[0].mxu0
    %4470 = vmatprep.mubr.f32.mxu0 0.0
    %4471 = vmatmul.mubr.f32.gmra.mrb[0].mxu0 %v4345
    %v4472 = vpop.f32.mrb[0].mxu0
    %v4473 = vadd.f32 0.0, %v4472
    %v4474 = vpop.f32.mrb[0].mxu0
    %4475 = vmatprep.mubr.f32.mxu0 0.0
    %4476 = vmatmul.mubr.f32.gmra.mrb[0].mxu0 %v4348
    %v4477 = vpop.f32.mrb[0].mxu0
    %v4478 = vadd.f32 0.0, %v4477
    %v4479 = vpop.f32.mrb[0].mxu0
    %4480 = vmatprep.mubr.f32.mxu0 0.0
    %4481 = vmatmul.mubr.f32.gmra.mrb[0].mxu0 %v4351
    %v4482 = vpop.f32.mrb[0].mxu0
    %v4483 = vadd.f32 0.0, %v4482
    %v4484 = vpop.f32.mrb[0].mxu0
    %4485 = vmatprep.mubr.f32.mxu0 0.0
    %4486 = vmatmul.mubr.f32.gmra.mrb[0].mxu0 %v4354
    %v4487 = vpop.f32.mrb[0].mxu0
    %v4488 = vadd.f32 0.0, %v4487
    %v4489 = vpop.f32.mrb[0].mxu0
    %4490 = vmatprep.mubr.f32.mxu0 0.0
    %4491 = vmatmul.mubr.f32.gmra.mrb[0].mxu0 %v4357
    %v4492 = vpop.f32.mrb[0].mxu0
    %v4493 = vadd.f32 0.0, %v4492
    %v4494 = vpop.f32.mrb[0].mxu0
    %4495 = vmatprep.mubr.f32.mxu0 0.0
    %4496 = vmatmul.mubr.f32.gmra.mrb[0].mxu0 %v4360
    %v4497 = vpop.f32.mrb[0].mxu0
    %v4498 = vadd.f32 0.0, %v4497
    %v4499 = vpop.f32.mrb[0].mxu0
    %4500 = vmatprep.mubr.f32.mxu0 0.0
    %4501 = vmatmul.mubr.f32.gmra.mrb[0].mxu0 %v4363
    %v4502 = vpop.f32.mrb[0].mxu0
    %v4503 = vadd.f32 0.0, %v4502
    %v4504 = vpop.f32.mrb[0].mxu0
    %4505 = vmatprep.mubr.f32.mxu0 0.0
    %4506 = vmatmul.mubr.f32.gmra.mrb[0].mxu0 %v4366
    %v4507 = vpop.f32.mrb[0].mxu0
    %v4508 = vadd.f32 0.0, %v4507
    %v4509 = vpop.f32.mrb[0].mxu0
    %4510 = vmatprep.mubr.f32.mxu0 0.0
    %4511 = vmatmul.mubr.f32.gmra.mrb[0].mxu0 %v4369
    %v4512 = vpop.f32.mrb[0].mxu0
    %v4513 = vadd.f32 0.0, %v4512
    %v4514 = vpop.f32.mrb[0].mxu0
    %4515 = vdwg.mxu0
    %v4516 = vmul.f32 %v4438, %v3608
    %v4517 = vmul.f32 %v4443, %v3608
    %v4518 = vmul.f32 %v4448, %v3608
    %v4519 = vmul.f32 %v4453, %v3608
    %v4520 = vmul.f32 %v4458, %v3608
    %v4521 = vmul.f32 %v4463, %v3608
    %v4522 = vmul.f32 %v4468, %v3608
    %v4523 = vmul.f32 %v4473, %v3608
    %v4524 = vmul.f32 %v4478, %v3611
    %v4525 = vmul.f32 %v4483, %v3611
    %v4526 = vmul.f32 %v4488, %v3611
    %v4527 = vmul.f32 %v4493, %v3611
    %v4528 = vmul.f32 %v4498, %v3611
    %v4529 = vmul.f32 %v4503, %v3611
    %v4530 = vmul.f32 %v4508, %v3611
    %v4531 = vmul.f32 %v4513, %v3611
    %v4532 = vsel %vm134, %v4516, 0.0
    %v4533 = vrot.slane %v4532, 4
    %v4534 = vadd.f32 %v4532, %v4533
    %v4535 = vrot.slane %v4534, 2
    %v4536 = vadd.f32 %v4534, %v4535
    %v4537 = vrot.slane %v4536, 1
    %v4538 = vadd.f32 %v4536, %v4537
    %v4539 = vsel %vm134, %v4517, 0.0
    %v4540 = vrot.slane %v4539, 4
    %v4541 = vadd.f32 %v4539, %v4540
    %v4542 = vrot.slane %v4541, 2
    %v4543 = vadd.f32 %v4541, %v4542
    %v4544 = vrot.slane %v4543, 1
    %v4545 = vadd.f32 %v4543, %v4544
    %v4546 = vsel %vm134, %v4518, 0.0
    %v4547 = vrot.slane %v4546, 4
    %v4548 = vadd.f32 %v4546, %v4547
    %v4549 = vrot.slane %v4548, 2
    %v4550 = vadd.f32 %v4548, %v4549
    %v4551 = vrot.slane %v4550, 1
    %v4552 = vadd.f32 %v4550, %v4551
    %v4553 = vsel %vm134, %v4519, 0.0
    %v4554 = vrot.slane %v4553, 4
    %v4555 = vadd.f32 %v4553, %v4554
    %v4556 = vrot.slane %v4555, 2
    %v4557 = vadd.f32 %v4555, %v4556
    %v4558 = vrot.slane %v4557, 1
    %v4559 = vadd.f32 %v4557, %v4558
    %v4560 = vsel %vm134, %v4520, 0.0
    %v4561 = vrot.slane %v4560, 4
    %v4562 = vadd.f32 %v4560, %v4561
    %v4563 = vrot.slane %v4562, 2
    %v4564 = vadd.f32 %v4562, %v4563
    %v4565 = vrot.slane %v4564, 1
    %v4566 = vadd.f32 %v4564, %v4565
    %v4567 = vsel %vm134, %v4521, 0.0
    %v4568 = vrot.slane %v4567, 4
    %v4569 = vadd.f32 %v4567, %v4568
    %v4570 = vrot.slane %v4569, 2
    %v4571 = vadd.f32 %v4569, %v4570
    %v4572 = vrot.slane %v4571, 1
    %v4573 = vadd.f32 %v4571, %v4572
    %v4574 = vsel %vm134, %v4522, 0.0
    %v4575 = vrot.slane %v4574, 4
    %v4576 = vadd.f32 %v4574, %v4575
    %v4577 = vrot.slane %v4576, 2
    %v4578 = vadd.f32 %v4576, %v4577
    %v4579 = vrot.slane %v4578, 1
    %v4580 = vadd.f32 %v4578, %v4579
    %v4581 = vsel %vm134, %v4523, 0.0
    %v4582 = vrot.slane %v4581, 4
    %v4583 = vadd.f32 %v4581, %v4582
    %v4584 = vrot.slane %v4583, 2
    %v4585 = vadd.f32 %v4583, %v4584
    %v4586 = vrot.slane %v4585, 1
    %v4587 = vadd.f32 %v4585, %v4586
    %v4588 = vsel %vm134, %v4524, 0.0
    %v4589 = vrot.slane %v4588, 4
    %v4590 = vadd.f32 %v4588, %v4589
    %v4591 = vrot.slane %v4590, 2
    %v4592 = vadd.f32 %v4590, %v4591
    %v4593 = vrot.slane %v4592, 1
    %v4594 = vadd.f32 %v4592, %v4593
    %v4595 = vsel %vm134, %v4525, 0.0
    %v4596 = vrot.slane %v4595, 4
    %v4597 = vadd.f32 %v4595, %v4596
    %v4598 = vrot.slane %v4597, 2
    %v4599 = vadd.f32 %v4597, %v4598
    %v4600 = vrot.slane %v4599, 1
    %v4601 = vadd.f32 %v4599, %v4600
    %v4602 = vsel %vm134, %v4526, 0.0
    %v4603 = vrot.slane %v4602, 4
    %v4604 = vadd.f32 %v4602, %v4603
    %v4605 = vrot.slane %v4604, 2
    %v4606 = vadd.f32 %v4604, %v4605
    %v4607 = vrot.slane %v4606, 1
    %v4608 = vadd.f32 %v4606, %v4607
    %v4609 = vsel %vm134, %v4527, 0.0
    %v4610 = vrot.slane %v4609, 4
    %v4611 = vadd.f32 %v4609, %v4610
    %v4612 = vrot.slane %v4611, 2
    %v4613 = vadd.f32 %v4611, %v4612
    %v4614 = vrot.slane %v4613, 1
    %v4615 = vadd.f32 %v4613, %v4614
    %v4616 = vsel %vm134, %v4528, 0.0
    %v4617 = vrot.slane %v4616, 4
    %v4618 = vadd.f32 %v4616, %v4617
    %v4619 = vrot.slane %v4618, 2
    %v4620 = vadd.f32 %v4618, %v4619
    %v4621 = vrot.slane %v4620, 1
    %v4622 = vadd.f32 %v4620, %v4621
    %v4623 = vsel %vm134, %v4529, 0.0
    %v4624 = vrot.slane %v4623, 4
    %v4625 = vadd.f32 %v4623, %v4624
    %v4626 = vrot.slane %v4625, 2
    %v4627 = vadd.f32 %v4625, %v4626
    %v4628 = vrot.slane %v4627, 1
    %v4629 = vadd.f32 %v4627, %v4628
    %v4630 = vsel %vm134, %v4530, 0.0
    %v4631 = vrot.slane %v4630, 4
    %v4632 = vadd.f32 %v4630, %v4631
    %v4633 = vrot.slane %v4632, 2
    %v4634 = vadd.f32 %v4632, %v4633
    %v4635 = vrot.slane %v4634, 1
    %v4636 = vadd.f32 %v4634, %v4635
    %v4637 = vsel %vm134, %v4531, 0.0
    %v4638 = vrot.slane %v4637, 4
    %v4639 = vadd.f32 %v4637, %v4638
    %v4640 = vrot.slane %v4639, 2
    %v4641 = vadd.f32 %v4639, %v4640
    %v4642 = vrot.slane %v4641, 1
    %v4643 = vadd.f32 %v4641, %v4642
    %v4644 = vpack.c.bf16 %v4538, %v4538
    %v4645 = vpack.c.bf16 %v4545, %v4545
    %v4646 = vpack.c.bf16 %v4552, %v4552
    %v4647 = vpack.c.bf16 %v4559, %v4559
    %v4648 = vpack.c.bf16 %v4566, %v4566
    %v4649 = vpack.c.bf16 %v4573, %v4573
    %v4650 = vpack.c.bf16 %v4580, %v4580
    %v4651 = vpack.c.bf16 %v4587, %v4587
    %v4652 = vpack.c.bf16 %v4594, %v4594
    %v4653 = vpack.c.bf16 %v4601, %v4601
    %v4654 = vpack.c.bf16 %v4608, %v4608
    %v4655 = vpack.c.bf16 %v4615, %v4615
    %v4656 = vpack.c.bf16 %v4622, %v4622
    %v4657 = vpack.c.bf16 %v4629, %v4629
    %v4658 = vpack.c.bf16 %v4636, %v4636
    %v4659 = vpack.c.bf16 %v4643, %v4643
    %s4660 = scalar_lea.vmem %s5, 32
    %v4661 = vld [vmem:[%s4660] sm:$0xf]
    %v4662 = vld [vmem:[%s4660 + $0x4] sm:$0xf]
    %v4663 = vld [vmem:[%s4660 + $0x8] sm:$0xf]
    %v4664 = vld [vmem:[%s4660 + $0xc] sm:$0xf]
    %s4665 = scalar_lea.vmem %s6, 2
    %v4666 = vld [vmem:[%s4665] sm:$0x1]
    %v4668 = vlaneseq
    %v4669 = vshrl.u32 %v4668, 7
    %v4670 = vsub.s32 0, %v4669
    %v4671 = vrot.slane %v4666, %v4670
    %v4689 = vunpack.c.l.b16 %v4644
    %v4690 = vunpack.c.l.b16 %v4645
    %v4691 = vunpack.c.l.b16 %v4646
    %v4692 = vunpack.c.l.b16 %v4647
    %v4693 = vunpack.c.l.b16 %v4648
    %v4694 = vunpack.c.l.b16 %v4649
    %v4695 = vunpack.c.l.b16 %v4650
    %v4696 = vunpack.c.l.b16 %v4651
    %v4697 = vunpack.c.l.b16 %v4652
    %v4698 = vunpack.c.l.b16 %v4653
    %v4699 = vunpack.c.l.b16 %v4654
    %v4700 = vunpack.c.l.b16 %v4655
    %v4701 = vunpack.c.l.b16 %v4656
    %v4702 = vunpack.c.l.b16 %v4657
    %v4703 = vunpack.c.l.b16 %v4658
    %v4704 = vunpack.c.l.b16 %v4659
    %v4705 = vsel %vm1411, %v4690, %v4689
    %v4706 = vsel %vm1413, %v4691, %v4705
    %v4707 = vsel %vm1415, %v4692, %v4706
    %v4708 = vsel %vm1417, %v4693, %v4707
    %v4709 = vsel %vm1419, %v4694, %v4708
    %v4710 = vsel %vm1421, %v4695, %v4709
    %v4711 = vsel %vm1423, %v4696, %v4710
    %v4712 = vsel %vm1411, %v4698, %v4697
    %v4713 = vsel %vm1413, %v4699, %v4712
    %v4714 = vsel %vm1415, %v4700, %v4713
    %v4715 = vsel %vm1417, %v4701, %v4714
    %v4716 = vsel %vm1419, %v4702, %v4715
    %v4717 = vsel %vm1421, %v4703, %v4716
    %v4718 = vsel %vm1423, %v4704, %v4717
    %v4719 = vpack.c.b16 %v4718, %v4711
    %v4724 = vunpack.c.l.b16 %v4661
    %v4725 = vunpack.c.l.b16 %v4662
    %v4726 = vunpack.c.l.b16 %v4663
    %v4727 = vunpack.c.l.b16 %v4664
    %v4728 = vpack.c.b16 %v4725, %v4724
    %v4729 = vpack.c.b16 %v4727, %v4726
    %v4733 = vsel %vm134, %v4719, 0
    %4735 = vmatprep.subr.bf16.mxu0 0
    %4736 = vmatpush1.bf16.msra.mxu0 %v4728
    %4737 = vmatprep.subr.bf16.mxu0 0
    %4738 = vmatpush1.bf16.msra.mxu0 %v4729
    %4739 = vmatprep.subr.bf16.mxu0 0
    %4740 = vmatpush1.bf16.msra.mxu0 0
    %4741 = vmatprep.subr.bf16.mxu0 0
    %4742 = vmatpush1.bf16.msra.mxu0 0
    %4743 = vmatprep.subr.bf16.mxu0 0
    %4744 = vmatpush1.bf16.msra.mxu0 0
    %4745 = vmatprep.subr.bf16.mxu0 0
    %4746 = vmatpush1.bf16.msra.mxu0 0
    %4747 = vmatprep.subr.bf16.mxu0 0
    %4748 = vmatpush1.bf16.msra.mxu0 0
    %4749 = vmatprep.subr.bf16.mxu0 0
    %4750 = vmatpush1.bf16.msra.mxu0 0
    %4751 = vmatprep.subr.bf16.mxu0 0
    %4752 = vmatpush1.bf16.msra.mxu0 0
    %4753 = vmatprep.subr.bf16.mxu0 0
    %4754 = vmatpush1.bf16.msra.mxu0 0
    %4755 = vmatprep.subr.bf16.mxu0 0
    %4756 = vmatpush1.bf16.msra.mxu0 0
    %4757 = vmatprep.subr.bf16.mxu0 0
    %4758 = vmatpush1.bf16.msra.mxu0 0
    %4759 = vmatprep.subr.bf16.mxu0 0
    %4760 = vmatpush1.bf16.msra.mxu0 0
    %4761 = vmatprep.subr.bf16.mxu0 0
    %4762 = vmatpush1.bf16.msra.mxu0 0
    %4763 = vmatprep.subr.bf16.mxu0 0
    %4764 = vmatpush1.bf16.msra.mxu0 0
    %4765 = vmatprep.subr.bf16.mxu0 0
    %4766 = vmatpush1.bf16.msra.mxu0 0
    %4767 = vmatprep.mubr.bf16.mxu0 0
    %4768 = vmatmul.mubr.bf16.gmra.mrb[0].mxu0 %v4733
    %v4769 = vpop.f32.mrb[0].mxu0
    %v4770 = vadd.f32 %v4671, %v4769
    %v4771 = vpop.f32.mrb[0].mxu0
    %v4772 = vpop.f32.mrb[0].mxu0
    %v4773 = vadd.f32 %v4671, %v4772
    %v4774 = vpop.f32.mrb[0].mxu0
    %4775 = vdwg.mxu0
    %v4776 = vadd.f32 %v3410, %v4770
    %v4777 = vadd.f32 %v3411, %v4773
    %s4778 = scalar_lea.vmem %s7, 2
    %v4779 = vld [vmem:[%s4778] sm:$0x1]
    %s4780 = scalar_lea.vmem %s8, 2
    %v4781 = vld [vmem:[%s4780] sm:$0x1]
    %v4782 = vsel %vm134, %v4776, 0.0
    %4783 = vadd.xlane.f32.xlu0 %v4782
    %v4784 = vpop.xlane.xlu0 %4783
    %v4785 = vsel %vm134, %v4777, 0.0
    %4786 = vadd.xlane.f32.xlu0 %v4785
    %v4787 = vpop.xlane.xlu0 %4786
    %v4788 = vmul.f32 %v4784, %v1499
    %v4789 = vmul.f32 %v4787, %v1499
    %v4790 = vsub.f32 %v4776, %v4788
    %v4791 = vsub.f32 %v4777, %v4789
    %v4792 = vmul.f32 %v4790, %v4790
    %v4793 = vmul.f32 %v4791, %v4791
    %v4794 = vsel %vm134, %v4792, 0.0
    %4795 = vadd.xlane.f32.xlu0 %v4794
    %v4796 = vpop.xlane.xlu0 %4795
    %v4797 = vsel %vm134, %v4793, 0.0
    %4798 = vadd.xlane.f32.xlu0 %v4797
    %v4799 = vpop.xlane.xlu0 %4798
    %v4800 = vmul.f32 %v4796, %v1499
    %v4801 = vmul.f32 %v4799, %v1499
    %v4802 = vadd.f32 %v4800, 1e-05
    %v4803 = vadd.f32 %v4801, 1e-05
    %v4804 = vrsqrt.pop %v4802
    %v4805 = vrsqrt.pop %v4803
    %v4806 = vmul.f32 %v4790, %v4804
    %v4807 = vmul.f32 %v4791, %v4805
    %v4809 = vlaneseq
    %v4810 = vshrl.u32 %v4809, 7
    %v4811 = vsub.s32 0, %v4810
    %v4812 = vrot.slane %v4779, %v4811
    %v4814 = vmul.f32 %v4806, %v4812
    %v4815 = vmul.f32 %v4807, %v4812
    %v4817 = vlaneseq
    %v4818 = vshrl.u32 %v4817, 7
    %v4819 = vsub.s32 0, %v4818
    %v4820 = vrot.slane %v4781, %v4819
    %v4822 = vadd.f32 %v4814, %v4820
    %v4823 = vadd.f32 %v4815, %v4820
    %v4824 = vpack.c.bf16 %v4823, %v4822
    %s4825 = scalar_lea.vmem %s9, 32
    %v4826 = vld [vmem:[%s4825] sm:$0xf]
    %v4827 = vld [vmem:[%s4825 + $0x4] sm:$0xf]
    %v4828 = vld [vmem:[%s4825 + $0x8] sm:$0xf]
    %v4829 = vld [vmem:[%s4825 + $0xc] sm:$0xf]
    %s4830 = scalar_lea.vmem %s10, 2
    %v4831 = vld [vmem:[%s4830] sm:$0x1]
    %v4833 = vlaneseq
    %v4834 = vshrl.u32 %v4833, 7
    %v4835 = vsub.s32 0, %v4834
    %v4836 = vrot.slane %v4831, %v4835
    %v4842 = vunpack.c.l.b16 %v4826
    %v4843 = vunpack.c.l.b16 %v4827
    %v4844 = vunpack.c.l.b16 %v4828
    %v4845 = vunpack.c.l.b16 %v4829
    %v4846 = vpack.c.b16 %v4843, %v4842
    %v4847 = vpack.c.b16 %v4845, %v4844
    %v4851 = vsel %vm134, %v4824, 0
    %4853 = vmatprep.subr.bf16.mxu0 0
    %4854 = vmatpush1.bf16.msra.mxu0 %v4846
    %4855 = vmatprep.subr.bf16.mxu0 0
    %4856 = vmatpush1.bf16.msra.mxu0 %v4847
    %4857 = vmatprep.subr.bf16.mxu0 0
    %4858 = vmatpush1.bf16.msra.mxu0 0
    %4859 = vmatprep.subr.bf16.mxu0 0
    %4860 = vmatpush1.bf16.msra.mxu0 0
    %4861 = vmatprep.subr.bf16.mxu0 0
    %4862 = vmatpush1.bf16.msra.mxu0 0
    %4863 = vmatprep.subr.bf16.mxu0 0
    %4864 = vmatpush1.bf16.msra.mxu0 0
    %4865 = vmatprep.subr.bf16.mxu0 0
    %4866 = vmatpush1.bf16.msra.mxu0 0
    %4867 = vmatprep.subr.bf16.mxu0 0
    %4868 = vmatpush1.bf16.msra.mxu0 0
    %4869 = vmatprep.subr.bf16.mxu0 0
    %4870 = vmatpush1.bf16.msra.mxu0 0
    %4871 = vmatprep.subr.bf16.mxu0 0
    %4872 = vmatpush1.bf16.msra.mxu0 0
    %4873 = vmatprep.subr.bf16.mxu0 0
    %4874 = vmatpush1.bf16.msra.mxu0 0
    %4875 = vmatprep.subr.bf16.mxu0 0
    %4876 = vmatpush1.bf16.msra.mxu0 0
    %4877 = vmatprep.subr.bf16.mxu0 0
    %4878 = vmatpush1.bf16.msra.mxu0 0
    %4879 = vmatprep.subr.bf16.mxu0 0
    %4880 = vmatpush1.bf16.msra.mxu0 0
    %4881 = vmatprep.subr.bf16.mxu0 0
    %4882 = vmatpush1.bf16.msra.mxu0 0
    %4883 = vmatprep.subr.bf16.mxu0 0
    %4884 = vmatpush1.bf16.msra.mxu0 0
    %4885 = vmatprep.mubr.bf16.mxu0 0
    %4886 = vmatmul.mubr.bf16.gmra.mrb[0].mxu0 %v4851
    %v4887 = vpop.f32.mrb[0].mxu0
    %v4888 = vadd.f32 %v4836, %v4887
    %v4889 = vpop.f32.mrb[0].mxu0
    %v4890 = vpop.f32.mrb[0].mxu0
    %v4891 = vadd.f32 %v4836, %v4890
    %v4892 = vpop.f32.mrb[0].mxu0
    %4893 = vdwg.mxu0
    %v4894 = vmax.f32 %v4888, 0.0
    %v4895 = vmax.f32 %v4891, 0.0
    %v4896 = vpack.c.bf16 %v4895, %v4894
    %s4897 = scalar_lea.vmem %s11, 128
    %v4898 = vld [vmem:[%s4897] sm:$0xf]
    %v4899 = vld [vmem:[%s4897 + $0x4] sm:$0xf]
    %v4900 = vld [vmem:[%s4897 + $0x8] sm:$0xf]
    %v4901 = vld [vmem:[%s4897 + $0xc] sm:$0xf]
    %v4902 = vld [vmem:[%s4897 + $0x10] sm:$0xf]
    %v4903 = vld [vmem:[%s4897 + $0x14] sm:$0xf]
    %v4904 = vld [vmem:[%s4897 + $0x18] sm:$0xf]
    %v4905 = vld [vmem:[%s4897 + $0x1c] sm:$0xf]
    %v4906 = vld [vmem:[%s4897 + $0x20] sm:$0xf]
    %v4907 = vld [vmem:[%s4897 + $0x24] sm:$0xf]
    %v4908 = vld [vmem:[%s4897 + $0x28] sm:$0xf]
    %v4909 = vld [vmem:[%s4897 + $0x2c] sm:$0xf]
    %v4910 = vld [vmem:[%s4897 + $0x30] sm:$0xf]
    %v4911 = vld [vmem:[%s4897 + $0x34] sm:$0xf]
    %v4912 = vld [vmem:[%s4897 + $0x38] sm:$0xf]
    %v4913 = vld [vmem:[%s4897 + $0x3c] sm:$0xf]
    %s4914 = scalar_lea.vmem %s12, 2
    %v4915 = vld [vmem:[%s4914] sm:$0x1]
    %v4917 = vlaneseq
    %v4918 = vshrl.u32 %v4917, 7
    %v4919 = vsub.s32 0, %v4918
    %v4920 = vrot.slane %v4915, %v4919
    %v4938 = vunpack.c.l.b16 %v4898
    %v4939 = vunpack.c.l.b16 %v4899
    %v4940 = vunpack.c.l.b16 %v4900
    %v4941 = vunpack.c.l.b16 %v4901
    %v4942 = vunpack.c.l.b16 %v4902
    %v4943 = vunpack.c.l.b16 %v4903
    %v4944 = vunpack.c.l.b16 %v4904
    %v4945 = vunpack.c.l.b16 %v4905
    %v4946 = vunpack.c.l.b16 %v4906
    %v4947 = vunpack.c.l.b16 %v4907
    %v4948 = vunpack.c.l.b16 %v4908
    %v4949 = vunpack.c.l.b16 %v4909
    %v4950 = vunpack.c.l.b16 %v4910
    %v4951 = vunpack.c.l.b16 %v4911
    %v4952 = vunpack.c.l.b16 %v4912
    %v4953 = vunpack.c.l.b16 %v4913
    %v4954 = vpack.c.b16 %v4939, %v4938
    %v4955 = vpack.c.b16 %v4941, %v4940
    %v4956 = vpack.c.b16 %v4943, %v4942
    %v4957 = vpack.c.b16 %v4945, %v4944
    %v4958 = vpack.c.b16 %v4947, %v4946
    %v4959 = vpack.c.b16 %v4949, %v4948
    %v4960 = vpack.c.b16 %v4951, %v4950
    %v4961 = vpack.c.b16 %v4953, %v4952
    %4970 = vmatprep.subr.bf16.mxu0 0
    %4971 = vmatpush1.bf16.msra.mxu0 %v4954
    %4972 = vmatprep.subr.bf16.mxu0 0
    %4973 = vmatpush1.bf16.msra.mxu0 %v4955
    %4974 = vmatprep.subr.bf16.mxu0 0
    %4975 = vmatpush1.bf16.msra.mxu0 %v4956
    %4976 = vmatprep.subr.bf16.mxu0 0
    %4977 = vmatpush1.bf16.msra.mxu0 %v4957
    %4978 = vmatprep.subr.bf16.mxu0 0
    %4979 = vmatpush1.bf16.msra.mxu0 %v4958
    %4980 = vmatprep.subr.bf16.mxu0 0
    %4981 = vmatpush1.bf16.msra.mxu0 %v4959
    %4982 = vmatprep.subr.bf16.mxu0 0
    %4983 = vmatpush1.bf16.msra.mxu0 %v4960
    %4984 = vmatprep.subr.bf16.mxu0 0
    %4985 = vmatpush1.bf16.msra.mxu0 %v4961
    %4986 = vmatprep.subr.bf16.mxu0 0
    %4987 = vmatpush1.bf16.msra.mxu0 0
    %4988 = vmatprep.subr.bf16.mxu0 0
    %4989 = vmatpush1.bf16.msra.mxu0 0
    %4990 = vmatprep.subr.bf16.mxu0 0
    %4991 = vmatpush1.bf16.msra.mxu0 0
    %4992 = vmatprep.subr.bf16.mxu0 0
    %4993 = vmatpush1.bf16.msra.mxu0 0
    %4994 = vmatprep.subr.bf16.mxu0 0
    %4995 = vmatpush1.bf16.msra.mxu0 0
    %4996 = vmatprep.subr.bf16.mxu0 0
    %4997 = vmatpush1.bf16.msra.mxu0 0
    %4998 = vmatprep.subr.bf16.mxu0 0
    %4999 = vmatpush1.bf16.msra.mxu0 0
    %5000 = vmatprep.subr.bf16.mxu0 0
    %5001 = vmatpush1.bf16.msra.mxu0 0
    %5002 = vmatprep.mubr.bf16.mxu0 0
    %5003 = vmatmul.mubr.bf16.gmra.mrb[0].mxu0 %v4896
    %v5004 = vpop.f32.mrb[0].mxu0
    %v5005 = vadd.f32 %v4920, %v5004
    %v5006 = vpop.f32.mrb[0].mxu0
    %v5007 = vpop.f32.mrb[0].mxu0
    %v5008 = vadd.f32 %v4920, %v5007
    %v5009 = vpop.f32.mrb[0].mxu0
    %5010 = vdwg.mxu0
    %v5011 = vadd.f32 %v4822, %v5005
    %v5012 = vadd.f32 %v4823, %v5008
    %s5013 = scalar_lea.vmem %s13, 2
    %v5014 = vld [vmem:[%s5013] sm:$0x1]
    %s5015 = scalar_lea.vmem %s14, 2
    %v5016 = vld [vmem:[%s5015] sm:$0x1]
    %v5017 = vsel %vm134, %v5011, 0.0
    %5018 = vadd.xlane.f32.xlu0 %v5017
    %v5019 = vpop.xlane.xlu0 %5018
    %v5020 = vsel %vm134, %v5012, 0.0
    %5021 = vadd.xlane.f32.xlu0 %v5020
    %v5022 = vpop.xlane.xlu0 %5021
    %v5023 = vmul.f32 %v5019, %v1499
    %v5024 = vmul.f32 %v5022, %v1499
    %v5025 = vsub.f32 %v5011, %v5023
    %v5026 = vsub.f32 %v5012, %v5024
    %v5027 = vmul.f32 %v5025, %v5025
    %v5028 = vmul.f32 %v5026, %v5026
    %v5029 = vsel %vm134, %v5027, 0.0
    %5030 = vadd.xlane.f32.xlu0 %v5029
    %v5031 = vpop.xlane.xlu0 %5030
    %v5032 = vsel %vm134, %v5028, 0.0
    %5033 = vadd.xlane.f32.xlu0 %v5032
    %v5034 = vpop.xlane.xlu0 %5033
    %v5035 = vmul.f32 %v5031, %v1499
    %v5036 = vmul.f32 %v5034, %v1499
    %v5037 = vadd.f32 %v5035, 1e-05
    %v5038 = vadd.f32 %v5036, 1e-05
    %v5039 = vrsqrt.pop %v5037
    %v5040 = vrsqrt.pop %v5038
    %v5041 = vmul.f32 %v5025, %v5039
    %v5042 = vmul.f32 %v5026, %v5040
    %v5044 = vlaneseq
    %v5045 = vshrl.u32 %v5044, 7
    %v5046 = vsub.s32 0, %v5045
    %v5047 = vrot.slane %v5014, %v5046
    %v5049 = vmul.f32 %v5041, %v5047
    %v5050 = vmul.f32 %v5042, %v5047
    %v5052 = vlaneseq
    %v5053 = vshrl.u32 %v5052, 7
    %v5054 = vsub.s32 0, %v5053
    %v5055 = vrot.slane %v5016, %v5054
    %v5057 = vadd.f32 %v5049, %v5055
    %v5058 = vadd.f32 %v5050, %v5055
    %v5059 = vpack.c.bf16 %v5058, %v5057
    %s5060 = scalar_lea.vmem %s3, 144
    %v5061 = vld [vmem:[%s5060] sm:$0xf]
    %v5062 = vld [vmem:[%s5060 + $0x4] sm:$0xf]
    %v5063 = vld [vmem:[%s5060 + $0x8] sm:$0xf]
    %v5064 = vld [vmem:[%s5060 + $0xc] sm:$0xf]
    %s5065 = scalar_lea.vmem %s4, 9
    %v5066 = vld [vmem:[%s5065] sm:$0x1]
    %v5068 = vlaneseq
    %v5069 = vshrl.u32 %v5068, 7
    %v5070 = vsub.s32 0, %v5069
    %v5071 = vrot.slane %v5066, %v5070
    %v5077 = vunpack.c.l.b16 %v5061
    %v5078 = vunpack.c.l.b16 %v5062
    %v5079 = vunpack.c.l.b16 %v5063
    %v5080 = vunpack.c.l.b16 %v5064
    %v5081 = vpack.c.b16 %v5078, %v5077
    %v5082 = vpack.c.b16 %v5080, %v5079
    %v5086 = vsel %vm134, %v5059, 0
    %5088 = vmatprep.subr.bf16.mxu0 0
    %5089 = vmatpush1.bf16.msra.mxu0 %v5081
    %5090 = vmatprep.subr.bf16.mxu0 0
    %5091 = vmatpush1.bf16.msra.mxu0 %v5082
    %5092 = vmatprep.subr.bf16.mxu0 0
    %5093 = vmatpush1.bf16.msra.mxu0 0
    %5094 = vmatprep.subr.bf16.mxu0 0
    %5095 = vmatpush1.bf16.msra.mxu0 0
    %5096 = vmatprep.subr.bf16.mxu0 0
    %5097 = vmatpush1.bf16.msra.mxu0 0
    %5098 = vmatprep.subr.bf16.mxu0 0
    %5099 = vmatpush1.bf16.msra.mxu0 0
    %5100 = vmatprep.subr.bf16.mxu0 0
    %5101 = vmatpush1.bf16.msra.mxu0 0
    %5102 = vmatprep.subr.bf16.mxu0 0
    %5103 = vmatpush1.bf16.msra.mxu0 0
    %5104 = vmatprep.subr.bf16.mxu0 0
    %5105 = vmatpush1.bf16.msra.mxu0 0
    %5106 = vmatprep.subr.bf16.mxu0 0
    %5107 = vmatpush1.bf16.msra.mxu0 0
    %5108 = vmatprep.subr.bf16.mxu0 0
    %5109 = vmatpush1.bf16.msra.mxu0 0
    %5110 = vmatprep.subr.bf16.mxu0 0
    %5111 = vmatpush1.bf16.msra.mxu0 0
    %5112 = vmatprep.subr.bf16.mxu0 0
    %5113 = vmatpush1.bf16.msra.mxu0 0
    %5114 = vmatprep.subr.bf16.mxu0 0
    %5115 = vmatpush1.bf16.msra.mxu0 0
    %5116 = vmatprep.subr.bf16.mxu0 0
    %5117 = vmatpush1.bf16.msra.mxu0 0
    %5118 = vmatprep.subr.bf16.mxu0 0
    %5119 = vmatpush1.bf16.msra.mxu0 0
    %5120 = vmatprep.mubr.bf16.mxu0 0
    %5121 = vmatmul.mubr.bf16.gmra.mrb[0].mxu0 %v5086
    %v5122 = vpop.f32.mrb[0].mxu0
    %v5123 = vadd.f32 %v5071, %v5122
    %v5124 = vpop.f32.mrb[0].mxu0
    %v5125 = vpop.f32.mrb[0].mxu0
    %v5126 = vadd.f32 %v5071, %v5125
    %v5127 = vpop.f32.mrb[0].mxu0
    %5128 = vdwg.mxu0
    %s5129 = scalar_lea.vmem %s3, 160
    %v5130 = vld [vmem:[%s5129] sm:$0xf]
    %v5131 = vld [vmem:[%s5129 + $0x4] sm:$0xf]
    %v5132 = vld [vmem:[%s5129 + $0x8] sm:$0xf]
    %v5133 = vld [vmem:[%s5129 + $0xc] sm:$0xf]
    %s5134 = scalar_lea.vmem %s4, 10
    %v5135 = vld [vmem:[%s5134] sm:$0x1]
    %v5137 = vlaneseq
    %v5138 = vshrl.u32 %v5137, 7
    %v5139 = vsub.s32 0, %v5138
    %v5140 = vrot.slane %v5135, %v5139
    %v5146 = vunpack.c.l.b16 %v5130
    %v5147 = vunpack.c.l.b16 %v5131
    %v5148 = vunpack.c.l.b16 %v5132
    %v5149 = vunpack.c.l.b16 %v5133
    %v5150 = vpack.c.b16 %v5147, %v5146
    %v5151 = vpack.c.b16 %v5149, %v5148
    %5154 = vmatprep.subr.bf16.mxu0 0
    %5155 = vmatpush1.bf16.msra.mxu0 %v5150
    %5156 = vmatprep.subr.bf16.mxu0 0
    %5157 = vmatpush1.bf16.msra.mxu0 %v5151
    %5158 = vmatprep.subr.bf16.mxu0 0
    %5159 = vmatpush1.bf16.msra.mxu0 0
    %5160 = vmatprep.subr.bf16.mxu0 0
    %5161 = vmatpush1.bf16.msra.mxu0 0
    %5162 = vmatprep.subr.bf16.mxu0 0
    %5163 = vmatpush1.bf16.msra.mxu0 0
    %5164 = vmatprep.subr.bf16.mxu0 0
    %5165 = vmatpush1.bf16.msra.mxu0 0
    %5166 = vmatprep.subr.bf16.mxu0 0
    %5167 = vmatpush1.bf16.msra.mxu0 0
    %5168 = vmatprep.subr.bf16.mxu0 0
    %5169 = vmatpush1.bf16.msra.mxu0 0
    %5170 = vmatprep.subr.bf16.mxu0 0
    %5171 = vmatpush1.bf16.msra.mxu0 0
    %5172 = vmatprep.subr.bf16.mxu0 0
    %5173 = vmatpush1.bf16.msra.mxu0 0
    %5174 = vmatprep.subr.bf16.mxu0 0
    %5175 = vmatpush1.bf16.msra.mxu0 0
    %5176 = vmatprep.subr.bf16.mxu0 0
    %5177 = vmatpush1.bf16.msra.mxu0 0
    %5178 = vmatprep.subr.bf16.mxu0 0
    %5179 = vmatpush1.bf16.msra.mxu0 0
    %5180 = vmatprep.subr.bf16.mxu0 0
    %5181 = vmatpush1.bf16.msra.mxu0 0
    %5182 = vmatprep.subr.bf16.mxu0 0
    %5183 = vmatpush1.bf16.msra.mxu0 0
    %5184 = vmatprep.subr.bf16.mxu0 0
    %5185 = vmatpush1.bf16.msra.mxu0 0
    %5186 = vmatprep.mubr.bf16.mxu0 0
    %5187 = vmatmul.mubr.bf16.gmra.mrb[0].mxu0 %v5086
    %v5188 = vpop.f32.mrb[0].mxu0
    %v5189 = vadd.f32 %v5140, %v5188
    %v5190 = vpop.f32.mrb[0].mxu0
    %v5191 = vpop.f32.mrb[0].mxu0
    %v5192 = vadd.f32 %v5140, %v5191
    %v5193 = vpop.f32.mrb[0].mxu0
    %5194 = vdwg.mxu0
    %s5195 = scalar_lea.vmem %s3, 176
    %v5196 = vld [vmem:[%s5195] sm:$0xf]
    %v5197 = vld [vmem:[%s5195 + $0x4] sm:$0xf]
    %v5198 = vld [vmem:[%s5195 + $0x8] sm:$0xf]
    %v5199 = vld [vmem:[%s5195 + $0xc] sm:$0xf]
    %s5200 = scalar_lea.vmem %s4, 11
    %v5201 = vld [vmem:[%s5200] sm:$0x1]
    %v5203 = vlaneseq
    %v5204 = vshrl.u32 %v5203, 7
    %v5205 = vsub.s32 0, %v5204
    %v5206 = vrot.slane %v5201, %v5205
    %v5212 = vunpack.c.l.b16 %v5196
    %v5213 = vunpack.c.l.b16 %v5197
    %v5214 = vunpack.c.l.b16 %v5198
    %v5215 = vunpack.c.l.b16 %v5199
    %v5216 = vpack.c.b16 %v5213, %v5212
    %v5217 = vpack.c.b16 %v5215, %v5214
    %5220 = vmatprep.subr.bf16.mxu0 0
    %5221 = vmatpush1.bf16.msra.mxu0 %v5216
    %5222 = vmatprep.subr.bf16.mxu0 0
    %5223 = vmatpush1.bf16.msra.mxu0 %v5217
    %5224 = vmatprep.subr.bf16.mxu0 0
    %5225 = vmatpush1.bf16.msra.mxu0 0
    %5226 = vmatprep.subr.bf16.mxu0 0
    %5227 = vmatpush1.bf16.msra.mxu0 0
    %5228 = vmatprep.subr.bf16.mxu0 0
    %5229 = vmatpush1.bf16.msra.mxu0 0
    %5230 = vmatprep.subr.bf16.mxu0 0
    %5231 = vmatpush1.bf16.msra.mxu0 0
    %5232 = vmatprep.subr.bf16.mxu0 0
    %5233 = vmatpush1.bf16.msra.mxu0 0
    %5234 = vmatprep.subr.bf16.mxu0 0
    %5235 = vmatpush1.bf16.msra.mxu0 0
    %5236 = vmatprep.subr.bf16.mxu0 0
    %5237 = vmatpush1.bf16.msra.mxu0 0
    %5238 = vmatprep.subr.bf16.mxu0 0
    %5239 = vmatpush1.bf16.msra.mxu0 0
    %5240 = vmatprep.subr.bf16.mxu0 0
    %5241 = vmatpush1.bf16.msra.mxu0 0
    %5242 = vmatprep.subr.bf16.mxu0 0
    %5243 = vmatpush1.bf16.msra.mxu0 0
    %5244 = vmatprep.subr.bf16.mxu0 0
    %5245 = vmatpush1.bf16.msra.mxu0 0
    %5246 = vmatprep.subr.bf16.mxu0 0
    %5247 = vmatpush1.bf16.msra.mxu0 0
    %5248 = vmatprep.subr.bf16.mxu0 0
    %5249 = vmatpush1.bf16.msra.mxu0 0
    %5250 = vmatprep.subr.bf16.mxu0 0
    %5251 = vmatpush1.bf16.msra.mxu0 0
    %5252 = vmatprep.mubr.bf16.mxu0 0
    %5253 = vmatmul.mubr.bf16.gmra.mrb[0].mxu0 %v5086
    %v5254 = vpop.f32.mrb[0].mxu0
    %v5255 = vadd.f32 %v5206, %v5254
    %v5256 = vpop.f32.mrb[0].mxu0
    %v5257 = vpop.f32.mrb[0].mxu0
    %v5258 = vadd.f32 %v5206, %v5257
    %v5259 = vpop.f32.mrb[0].mxu0
    %5260 = vdwg.mxu0
    %v5263 = vcombine.high %v5123, %v5123
    %v5265 = vunpack.c.l.s4 1966171168
    %v5266 = vunpack.c.0.s8 %v5265
    %v5267 = vlaneseq
    %v5268 = vshrl.u32 %v5267, 7
    %v5269 = vsub.s32 %v5266, %v5268
    %v5270 = vrot.slane %v5123, %v5269
    %v5272 = vunpack.c.l.s4 1966171168
    %v5273 = vunpack.c.0.s8 %v5272
    %v5274 = vlaneseq
    %v5275 = vshrl.u32 %v5274, 7
    %v5276 = vsub.s32 %v5273, %v5275
    %v5277 = vrot.slane %v5263, %v5276
    %v5278 = vcombine.high %v5270, %v5270
    %v5279 = vcombine.high %v5277, %v5277
    %v5281 = vunpack.c.l.s4 1966171168
    %v5282 = vunpack.c.0.s8 %v5281
    %v5283 = vlaneseq
    %v5284 = vshrl.u32 %v5283, 7
    %v5285 = vsub.s32 %v5282, %v5284
    %v5286 = vrot.slane %v5270, %v5285
    %v5288 = vunpack.c.l.s4 1966171168
    %v5289 = vunpack.c.0.s8 %v5288
    %v5290 = vlaneseq
    %v5291 = vshrl.u32 %v5290, 7
    %v5292 = vsub.s32 %v5289, %v5291
    %v5293 = vrot.slane %v5277, %v5292
    %v5295 = vunpack.c.l.s4 1966171168
    %v5296 = vunpack.c.0.s8 %v5295
    %v5297 = vlaneseq
    %v5298 = vshrl.u32 %v5297, 7
    %v5299 = vsub.s32 %v5296, %v5298
    %v5300 = vrot.slane %v5278, %v5299
    %v5302 = vunpack.c.l.s4 1966171168
    %v5303 = vunpack.c.0.s8 %v5302
    %v5304 = vlaneseq
    %v5305 = vshrl.u32 %v5304, 7
    %v5306 = vsub.s32 %v5303, %v5305
    %v5307 = vrot.slane %v5279, %v5306
    %v5308 = vcombine.high %v5286, %v5286
    %v5309 = vcombine.high %v5293, %v5293
    %v5310 = vcombine.high %v5300, %v5300
    %v5311 = vcombine.high %v5307, %v5307
    %v5312 = vcombine.high %v5126, %v5126
    %v5314 = vunpack.c.l.s4 1966171168
    %v5315 = vunpack.c.0.s8 %v5314
    %v5316 = vlaneseq
    %v5317 = vshrl.u32 %v5316, 7
    %v5318 = vsub.s32 %v5315, %v5317
    %v5319 = vrot.slane %v5126, %v5318
    %v5321 = vunpack.c.l.s4 1966171168
    %v5322 = vunpack.c.0.s8 %v5321
    %v5323 = vlaneseq
    %v5324 = vshrl.u32 %v5323, 7
    %v5325 = vsub.s32 %v5322, %v5324
    %v5326 = vrot.slane %v5312, %v5325
    %v5327 = vcombine.high %v5319, %v5319
    %v5328 = vcombine.high %v5326, %v5326
    %v5330 = vunpack.c.l.s4 1966171168
    %v5331 = vunpack.c.0.s8 %v5330
    %v5332 = vlaneseq
    %v5333 = vshrl.u32 %v5332, 7
    %v5334 = vsub.s32 %v5331, %v5333
    %v5335 = vrot.slane %v5319, %v5334
    %v5337 = vunpack.c.l.s4 1966171168
    %v5338 = vunpack.c.0.s8 %v5337
    %v5339 = vlaneseq
    %v5340 = vshrl.u32 %v5339, 7
    %v5341 = vsub.s32 %v5338, %v5340
    %v5342 = vrot.slane %v5326, %v5341
    %v5344 = vunpack.c.l.s4 1966171168
    %v5345 = vunpack.c.0.s8 %v5344
    %v5346 = vlaneseq
    %v5347 = vshrl.u32 %v5346, 7
    %v5348 = vsub.s32 %v5345, %v5347
    %v5349 = vrot.slane %v5327, %v5348
    %v5351 = vunpack.c.l.s4 1966171168
    %v5352 = vunpack.c.0.s8 %v5351
    %v5353 = vlaneseq
    %v5354 = vshrl.u32 %v5353, 7
    %v5355 = vsub.s32 %v5352, %v5354
    %v5356 = vrot.slane %v5328, %v5355
    %v5357 = vcombine.high %v5335, %v5335
    %v5358 = vcombine.high %v5342, %v5342
    %v5359 = vcombine.high %v5349, %v5349
    %v5360 = vcombine.high %v5356, %v5356
    %v5361 = vlaneseq
    %v5362 = vshrl.u32 %v5361, 7
    %v5363 = vsub.s32 0, %v5362
    %v5364 = vrot.slane %v5286, %v5363
    %v5365 = vlaneseq
    %v5366 = vshrl.u32 %v5365, 7
    %v5367 = vsub.s32 0, %v5366
    %v5368 = vrot.slane %v5300, %v5367
    %v5369 = vlaneseq
    %v5370 = vshrl.u32 %v5369, 7
    %v5371 = vsub.s32 0, %v5370
    %v5372 = vrot.slane %v5308, %v5371
    %v5373 = vlaneseq
    %v5374 = vshrl.u32 %v5373, 7
    %v5375 = vsub.s32 0, %v5374
    %v5376 = vrot.slane %v5310, %v5375
    %v5377 = vlaneseq
    %v5378 = vshrl.u32 %v5377, 7
    %v5379 = vsub.s32 0, %v5378
    %v5380 = vrot.slane %v5293, %v5379
    %v5381 = vlaneseq
    %v5382 = vshrl.u32 %v5381, 7
    %v5383 = vsub.s32 0, %v5382
    %v5384 = vrot.slane %v5307, %v5383
    %v5385 = vlaneseq
    %v5386 = vshrl.u32 %v5385, 7
    %v5387 = vsub.s32 0, %v5386
    %v5388 = vrot.slane %v5309, %v5387
    %v5389 = vlaneseq
    %v5390 = vshrl.u32 %v5389, 7
    %v5391 = vsub.s32 0, %v5390
    %v5392 = vrot.slane %v5311, %v5391
    %v5393 = vlaneseq
    %v5394 = vshrl.u32 %v5393, 7
    %v5395 = vsub.s32 0, %v5394
    %v5396 = vrot.slane %v5335, %v5395
    %v5397 = vlaneseq
    %v5398 = vshrl.u32 %v5397, 7
    %v5399 = vsub.s32 0, %v5398
    %v5400 = vrot.slane %v5349, %v5399
    %v5401 = vlaneseq
    %v5402 = vshrl.u32 %v5401, 7
    %v5403 = vsub.s32 0, %v5402
    %v5404 = vrot.slane %v5357, %v5403
    %v5405 = vlaneseq
    %v5406 = vshrl.u32 %v5405, 7
    %v5407 = vsub.s32 0, %v5406
    %v5408 = vrot.slane %v5359, %v5407
    %v5409 = vlaneseq
    %v5410 = vshrl.u32 %v5409, 7
    %v5411 = vsub.s32 0, %v5410
    %v5412 = vrot.slane %v5342, %v5411
    %v5413 = vlaneseq
    %v5414 = vshrl.u32 %v5413, 7
    %v5415 = vsub.s32 0, %v5414
    %v5416 = vrot.slane %v5356, %v5415
    %v5417 = vlaneseq
    %v5418 = vshrl.u32 %v5417, 7
    %v5419 = vsub.s32 0, %v5418
    %v5420 = vrot.slane %v5358, %v5419
    %v5421 = vlaneseq
    %v5422 = vshrl.u32 %v5421, 7
    %v5423 = vsub.s32 0, %v5422
    %v5424 = vrot.slane %v5360, %v5423
    %v5441 = vmul.f32 %v5364, %v5189
    %v5442 = vmul.f32 %v5368, %v5189
    %v5443 = vmul.f32 %v5372, %v5189
    %v5444 = vmul.f32 %v5376, %v5189
    %v5445 = vmul.f32 %v5380, %v5189
    %v5446 = vmul.f32 %v5384, %v5189
    %v5447 = vmul.f32 %v5388, %v5189
    %v5448 = vmul.f32 %v5392, %v5189
    %v5449 = vmul.f32 %v5396, %v5192
    %v5450 = vmul.f32 %v5400, %v5192
    %v5451 = vmul.f32 %v5404, %v5192
    %v5452 = vmul.f32 %v5408, %v5192
    %v5453 = vmul.f32 %v5412, %v5192
    %v5454 = vmul.f32 %v5416, %v5192
    %v5455 = vmul.f32 %v5420, %v5192
    %v5456 = vmul.f32 %v5424, %v5192
    %v5458 = vsel %vm134, %v5441, 0
    %v5461 = vsel %vm134, %v5442, 0
    %v5464 = vsel %vm134, %v5443, 0
    %v5467 = vsel %vm134, %v5444, 0
    %v5470 = vsel %vm134, %v5445, 0
    %v5473 = vsel %vm134, %v5446, 0
    %v5476 = vsel %vm134, %v5447, 0
    %v5479 = vsel %vm134, %v5448, 0
    %v5482 = vsel %vm134, %v5449, 0
    %v5485 = vsel %vm134, %v5450, 0
    %v5488 = vsel %vm134, %v5451, 0
    %v5491 = vsel %vm134, %v5452, 0
    %v5494 = vsel %vm134, %v5453, 0
    %v5497 = vsel %vm134, %v5454, 0
    %v5500 = vsel %vm134, %v5455, 0
    %v5503 = vsel %vm134, %v5456, 0
    %5505 = vmatprep.subr.mxu0 0.0
    %5506 = vmatpush1.msra.mxu0 %v97
    %5507 = vmatprep.subr.mxu0 0.0
    %5508 = vmatpush1.msra.mxu0 %v98
    %5509 = vmatprep.subr.mxu0 0.0
    %5510 = vmatpush1.msra.mxu0 %v99
    %5511 = vmatprep.subr.mxu0 0.0
    %5512 = vmatpush1.msra.mxu0 %v100
    %5513 = vmatprep.subr.mxu0 0.0
    %5514 = vmatpush1.msra.mxu0 0.0
    %5515 = vmatprep.subr.mxu0 0.0
    %5516 = vmatpush1.msra.mxu0 0.0
    %5517 = vmatprep.subr.mxu0 0.0
    %5518 = vmatpush1.msra.mxu0 0.0
    %5519 = vmatprep.subr.mxu0 0.0
    %5520 = vmatpush1.msra.mxu0 0.0
    %5521 = vmatprep.subr.mxu0 0.0
    %5522 = vmatpush1.msra.mxu0 0.0
    %5523 = vmatprep.subr.mxu0 0.0
    %5524 = vmatpush1.msra.mxu0 0.0
    %5525 = vmatprep.subr.mxu0 0.0
    %5526 = vmatpush1.msra.mxu0 0.0
    %5527 = vmatprep.subr.mxu0 0.0
    %5528 = vmatpush1.msra.mxu0 0.0
    %5529 = vmatprep.subr.mxu0 0.0
    %5530 = vmatpush1.msra.mxu0 0.0
    %5531 = vmatprep.subr.mxu0 0.0
    %5532 = vmatpush1.msra.mxu0 0.0
    %5533 = vmatprep.subr.mxu0 0.0
    %5534 = vmatpush1.msra.mxu0 0.0
    %5535 = vmatprep.subr.mxu0 0.0
    %5536 = vmatpush1.msra.mxu0 0.0
    %5537 = vmatprep.subr.mxu0 0.0
    %5538 = vmatpush1.msra.mxu0 0.0
    %5539 = vmatprep.subr.mxu0 0.0
    %5540 = vmatpush1.msra.mxu0 0.0
    %5541 = vmatprep.subr.mxu0 0.0
    %5542 = vmatpush1.msra.mxu0 0.0
    %5543 = vmatprep.subr.mxu0 0.0
    %5544 = vmatpush1.msra.mxu0 0.0
    %5545 = vmatprep.subr.mxu0 0.0
    %5546 = vmatpush1.msra.mxu0 0.0
    %5547 = vmatprep.subr.mxu0 0.0
    %5548 = vmatpush1.msra.mxu0 0.0
    %5549 = vmatprep.subr.mxu0 0.0
    %5550 = vmatpush1.msra.mxu0 0.0
    %5551 = vmatprep.subr.mxu0 0.0
    %5552 = vmatpush1.msra.mxu0 0.0
    %5553 = vmatprep.subr.mxu0 0.0
    %5554 = vmatpush1.msra.mxu0 0.0
    %5555 = vmatprep.subr.mxu0 0.0
    %5556 = vmatpush1.msra.mxu0 0.0
    %5557 = vmatprep.subr.mxu0 0.0
    %5558 = vmatpush1.msra.mxu0 0.0
    %5559 = vmatprep.subr.mxu0 0.0
    %5560 = vmatpush1.msra.mxu0 0.0
    %5561 = vmatprep.subr.mxu0 0.0
    %5562 = vmatpush1.msra.mxu0 0.0
    %5563 = vmatprep.subr.mxu0 0.0
    %5564 = vmatpush1.msra.mxu0 0.0
    %5565 = vmatprep.subr.mxu0 0.0
    %5566 = vmatpush1.msra.mxu0 0.0
    %5567 = vmatprep.subr.mxu0 0.0
    %5568 = vmatpush1.msra.mxu0 0.0
    %5569 = vmatprep.mubr.f32.mxu0 0.0
    %5570 = vmatmul.mubr.f32.gmra.mrb[0].mxu0 %v5458
    %v5571 = vpop.f32.mrb[0].mxu0
    %v5572 = vadd.f32 0.0, %v5571
    %v5573 = vpop.f32.mrb[0].mxu0
    %5574 = vmatprep.mubr.f32.mxu0 0.0
    %5575 = vmatmul.mubr.f32.gmra.mrb[0].mxu0 %v5461
    %v5576 = vpop.f32.mrb[0].mxu0
    %v5577 = vadd.f32 0.0, %v5576
    %v5578 = vpop.f32.mrb[0].mxu0
    %5579 = vmatprep.mubr.f32.mxu0 0.0
    %5580 = vmatmul.mubr.f32.gmra.mrb[0].mxu0 %v5464
    %v5581 = vpop.f32.mrb[0].mxu0
    %v5582 = vadd.f32 0.0, %v5581
    %v5583 = vpop.f32.mrb[0].mxu0
    %5584 = vmatprep.mubr.f32.mxu0 0.0
    %5585 = vmatmul.mubr.f32.gmra.mrb[0].mxu0 %v5467
    %v5586 = vpop.f32.mrb[0].mxu0
    %v5587 = vadd.f32 0.0, %v5586
    %v5588 = vpop.f32.mrb[0].mxu0
    %5589 = vmatprep.mubr.f32.mxu0 0.0
    %5590 = vmatmul.mubr.f32.gmra.mrb[0].mxu0 %v5470
    %v5591 = vpop.f32.mrb[0].mxu0
    %v5592 = vadd.f32 0.0, %v5591
    %v5593 = vpop.f32.mrb[0].mxu0
    %5594 = vmatprep.mubr.f32.mxu0 0.0
    %5595 = vmatmul.mubr.f32.gmra.mrb[0].mxu0 %v5473
    %v5596 = vpop.f32.mrb[0].mxu0
    %v5597 = vadd.f32 0.0, %v5596
    %v5598 = vpop.f32.mrb[0].mxu0
    %5599 = vmatprep.mubr.f32.mxu0 0.0
    %5600 = vmatmul.mubr.f32.gmra.mrb[0].mxu0 %v5476
    %v5601 = vpop.f32.mrb[0].mxu0
    %v5602 = vadd.f32 0.0, %v5601
    %v5603 = vpop.f32.mrb[0].mxu0
    %5604 = vmatprep.mubr.f32.mxu0 0.0
    %5605 = vmatmul.mubr.f32.gmra.mrb[0].mxu0 %v5479
    %v5606 = vpop.f32.mrb[0].mxu0
    %v5607 = vadd.f32 0.0, %v5606
    %v5608 = vpop.f32.mrb[0].mxu0
    %5609 = vmatprep.mubr.f32.mxu0 0.0
    %5610 = vmatmul.mubr.f32.gmra.mrb[0].mxu0 %v5482
    %v5611 = vpop.f32.mrb[0].mxu0
    %v5612 = vadd.f32 0.0, %v5611
    %v5613 = vpop.f32.mrb[0].mxu0
    %5614 = vmatprep.mubr.f32.mxu0 0.0
    %5615 = vmatmul.mubr.f32.gmra.mrb[0].mxu0 %v5485
    %v5616 = vpop.f32.mrb[0].mxu0
    %v5617 = vadd.f32 0.0, %v5616
    %v5618 = vpop.f32.mrb[0].mxu0
    %5619 = vmatprep.mubr.f32.mxu0 0.0
    %5620 = vmatmul.mubr.f32.gmra.mrb[0].mxu0 %v5488
    %v5621 = vpop.f32.mrb[0].mxu0
    %v5622 = vadd.f32 0.0, %v5621
    %v5623 = vpop.f32.mrb[0].mxu0
    %5624 = vmatprep.mubr.f32.mxu0 0.0
    %5625 = vmatmul.mubr.f32.gmra.mrb[0].mxu0 %v5491
    %v5626 = vpop.f32.mrb[0].mxu0
    %v5627 = vadd.f32 0.0, %v5626
    %v5628 = vpop.f32.mrb[0].mxu0
    %5629 = vmatprep.mubr.f32.mxu0 0.0
    %5630 = vmatmul.mubr.f32.gmra.mrb[0].mxu0 %v5494
    %v5631 = vpop.f32.mrb[0].mxu0
    %v5632 = vadd.f32 0.0, %v5631
    %v5633 = vpop.f32.mrb[0].mxu0
    %5634 = vmatprep.mubr.f32.mxu0 0.0
    %5635 = vmatmul.mubr.f32.gmra.mrb[0].mxu0 %v5497
    %v5636 = vpop.f32.mrb[0].mxu0
    %v5637 = vadd.f32 0.0, %v5636
    %v5638 = vpop.f32.mrb[0].mxu0
    %5639 = vmatprep.mubr.f32.mxu0 0.0
    %5640 = vmatmul.mubr.f32.gmra.mrb[0].mxu0 %v5500
    %v5641 = vpop.f32.mrb[0].mxu0
    %v5642 = vadd.f32 0.0, %v5641
    %v5643 = vpop.f32.mrb[0].mxu0
    %5644 = vmatprep.mubr.f32.mxu0 0.0
    %5645 = vmatmul.mubr.f32.gmra.mrb[0].mxu0 %v5503
    %v5646 = vpop.f32.mrb[0].mxu0
    %v5647 = vadd.f32 0.0, %v5646
    %v5648 = vpop.f32.mrb[0].mxu0
    %5649 = vdwg.mxu0
    %v5650 = vadd.f32 %v5572, %v703
    %v5651 = vadd.f32 %v5577, %v703
    %v5652 = vadd.f32 %v5582, %v703
    %v5653 = vadd.f32 %v5587, %v703
    %v5654 = vadd.f32 %v5592, %v703
    %v5655 = vadd.f32 %v5597, %v703
    %v5656 = vadd.f32 %v5602, %v703
    %v5657 = vadd.f32 %v5607, %v703
    %v5658 = vadd.f32 %v5612, %v708
    %v5659 = vadd.f32 %v5617, %v708
    %v5660 = vadd.f32 %v5622, %v708
    %v5661 = vadd.f32 %v5627, %v708
    %v5662 = vadd.f32 %v5632, %v708
    %v5663 = vadd.f32 %v5637, %v708
    %v5664 = vadd.f32 %v5642, %v708
    %v5665 = vadd.f32 %v5647, %v708
    %v5666 = vsel %vm726, %v5650, -inf
    %v5667 = vrot.slane %v5666, 4
    %v5668 = vmax.f32 %v5666, %v5667
    %v5669 = vrot.slane %v5668, 2
    %v5670 = vmax.f32 %v5668, %v5669
    %v5671 = vrot.slane %v5670, 1
    %v5672 = vmax.f32 %v5670, %v5671
    %v5673 = vsel %vm726, %v5651, -inf
    %v5674 = vrot.slane %v5673, 4
    %v5675 = vmax.f32 %v5673, %v5674
    %v5676 = vrot.slane %v5675, 2
    %v5677 = vmax.f32 %v5675, %v5676
    %v5678 = vrot.slane %v5677, 1
    %v5679 = vmax.f32 %v5677, %v5678
    %v5680 = vsel %vm726, %v5652, -inf
    %v5681 = vrot.slane %v5680, 4
    %v5682 = vmax.f32 %v5680, %v5681
    %v5683 = vrot.slane %v5682, 2
    %v5684 = vmax.f32 %v5682, %v5683
    %v5685 = vrot.slane %v5684, 1
    %v5686 = vmax.f32 %v5684, %v5685
    %v5687 = vsel %vm726, %v5653, -inf
    %v5688 = vrot.slane %v5687, 4
    %v5689 = vmax.f32 %v5687, %v5688
    %v5690 = vrot.slane %v5689, 2
    %v5691 = vmax.f32 %v5689, %v5690
    %v5692 = vrot.slane %v5691, 1
    %v5693 = vmax.f32 %v5691, %v5692
    %v5694 = vsel %vm726, %v5654, -inf
    %v5695 = vrot.slane %v5694, 4
    %v5696 = vmax.f32 %v5694, %v5695
    %v5697 = vrot.slane %v5696, 2
    %v5698 = vmax.f32 %v5696, %v5697
    %v5699 = vrot.slane %v5698, 1
    %v5700 = vmax.f32 %v5698, %v5699
    %v5701 = vsel %vm726, %v5655, -inf
    %v5702 = vrot.slane %v5701, 4
    %v5703 = vmax.f32 %v5701, %v5702
    %v5704 = vrot.slane %v5703, 2
    %v5705 = vmax.f32 %v5703, %v5704
    %v5706 = vrot.slane %v5705, 1
    %v5707 = vmax.f32 %v5705, %v5706
    %v5708 = vsel %vm726, %v5656, -inf
    %v5709 = vrot.slane %v5708, 4
    %v5710 = vmax.f32 %v5708, %v5709
    %v5711 = vrot.slane %v5710, 2
    %v5712 = vmax.f32 %v5710, %v5711
    %v5713 = vrot.slane %v5712, 1
    %v5714 = vmax.f32 %v5712, %v5713
    %v5715 = vsel %vm726, %v5657, -inf
    %v5716 = vrot.slane %v5715, 4
    %v5717 = vmax.f32 %v5715, %v5716
    %v5718 = vrot.slane %v5717, 2
    %v5719 = vmax.f32 %v5717, %v5718
    %v5720 = vrot.slane %v5719, 1
    %v5721 = vmax.f32 %v5719, %v5720
    %v5722 = vsel %vm726, %v5658, -inf
    %v5723 = vrot.slane %v5722, 4
    %v5724 = vmax.f32 %v5722, %v5723
    %v5725 = vrot.slane %v5724, 2
    %v5726 = vmax.f32 %v5724, %v5725
    %v5727 = vrot.slane %v5726, 1
    %v5728 = vmax.f32 %v5726, %v5727
    %v5729 = vsel %vm726, %v5659, -inf
    %v5730 = vrot.slane %v5729, 4
    %v5731 = vmax.f32 %v5729, %v5730
    %v5732 = vrot.slane %v5731, 2
    %v5733 = vmax.f32 %v5731, %v5732
    %v5734 = vrot.slane %v5733, 1
    %v5735 = vmax.f32 %v5733, %v5734
    %v5736 = vsel %vm726, %v5660, -inf
    %v5737 = vrot.slane %v5736, 4
    %v5738 = vmax.f32 %v5736, %v5737
    %v5739 = vrot.slane %v5738, 2
    %v5740 = vmax.f32 %v5738, %v5739
    %v5741 = vrot.slane %v5740, 1
    %v5742 = vmax.f32 %v5740, %v5741
    %v5743 = vsel %vm726, %v5661, -inf
    %v5744 = vrot.slane %v5743, 4
    %v5745 = vmax.f32 %v5743, %v5744
    %v5746 = vrot.slane %v5745, 2
    %v5747 = vmax.f32 %v5745, %v5746
    %v5748 = vrot.slane %v5747, 1
    %v5749 = vmax.f32 %v5747, %v5748
    %v5750 = vsel %vm726, %v5662, -inf
    %v5751 = vrot.slane %v5750, 4
    %v5752 = vmax.f32 %v5750, %v5751
    %v5753 = vrot.slane %v5752, 2
    %v5754 = vmax.f32 %v5752, %v5753
    %v5755 = vrot.slane %v5754, 1
    %v5756 = vmax.f32 %v5754, %v5755
    %v5757 = vsel %vm726, %v5663, -inf
    %v5758 = vrot.slane %v5757, 4
    %v5759 = vmax.f32 %v5757, %v5758
    %v5760 = vrot.slane %v5759, 2
    %v5761 = vmax.f32 %v5759, %v5760
    %v5762 = vrot.slane %v5761, 1
    %v5763 = vmax.f32 %v5761, %v5762
    %v5764 = vsel %vm726, %v5664, -inf
    %v5765 = vrot.slane %v5764, 4
    %v5766 = vmax.f32 %v5764, %v5765
    %v5767 = vrot.slane %v5766, 2
    %v5768 = vmax.f32 %v5766, %v5767
    %v5769 = vrot.slane %v5768, 1
    %v5770 = vmax.f32 %v5768, %v5769
    %v5771 = vsel %vm726, %v5665, -inf
    %v5772 = vrot.slane %v5771, 4
    %v5773 = vmax.f32 %v5771, %v5772
    %v5774 = vrot.slane %v5773, 2
    %v5775 = vmax.f32 %v5773, %v5774
    %v5776 = vrot.slane %v5775, 1
    %v5777 = vmax.f32 %v5775, %v5776
    %v5778 = vsub.f32 %v5650, %v5672
    %v5779 = vsub.f32 %v5651, %v5679
    %v5780 = vsub.f32 %v5652, %v5686
    %v5781 = vsub.f32 %v5653, %v5693
    %v5782 = vsub.f32 %v5654, %v5700
    %v5783 = vsub.f32 %v5655, %v5707
    %v5784 = vsub.f32 %v5656, %v5714
    %v5785 = vsub.f32 %v5657, %v5721
    %v5786 = vsub.f32 %v5658, %v5728
    %v5787 = vsub.f32 %v5659, %v5735
    %v5788 = vsub.f32 %v5660, %v5742
    %v5789 = vsub.f32 %v5661, %v5749
    %v5790 = vsub.f32 %v5662, %v5756
    %v5791 = vsub.f32 %v5663, %v5763
    %v5792 = vsub.f32 %v5664, %v5770
    %v5793 = vsub.f32 %v5665, %v5777
    %v5794 = vmul.f32 %v5778, 1.442695
    %v5795 = vpow.pop %v5794
    %v5796 = vmul.f32 %v5779, 1.442695
    %v5797 = vpow.pop %v5796
    %v5798 = vmul.f32 %v5780, 1.442695
    %v5799 = vpow.pop %v5798
    %v5800 = vmul.f32 %v5781, 1.442695
    %v5801 = vpow.pop %v5800
    %v5802 = vmul.f32 %v5782, 1.442695
    %v5803 = vpow.pop %v5802
    %v5804 = vmul.f32 %v5783, 1.442695
    %v5805 = vpow.pop %v5804
    %v5806 = vmul.f32 %v5784, 1.442695
    %v5807 = vpow.pop %v5806
    %v5808 = vmul.f32 %v5785, 1.442695
    %v5809 = vpow.pop %v5808
    %v5810 = vmul.f32 %v5786, 1.442695
    %v5811 = vpow.pop %v5810
    %v5812 = vmul.f32 %v5787, 1.442695
    %v5813 = vpow.pop %v5812
    %v5814 = vmul.f32 %v5788, 1.442695
    %v5815 = vpow.pop %v5814
    %v5816 = vmul.f32 %v5789, 1.442695
    %v5817 = vpow.pop %v5816
    %v5818 = vmul.f32 %v5790, 1.442695
    %v5819 = vpow.pop %v5818
    %v5820 = vmul.f32 %v5791, 1.442695
    %v5821 = vpow.pop %v5820
    %v5822 = vmul.f32 %v5792, 1.442695
    %v5823 = vpow.pop %v5822
    %v5824 = vmul.f32 %v5793, 1.442695
    %v5825 = vpow.pop %v5824
    %v5826 = vsel %vm726, %v5795, 0.0
    %v5827 = vrot.slane %v5826, 4
    %v5828 = vadd.f32 %v5826, %v5827
    %v5829 = vrot.slane %v5828, 2
    %v5830 = vadd.f32 %v5828, %v5829
    %v5831 = vrot.slane %v5830, 1
    %v5832 = vadd.f32 %v5830, %v5831
    %v5833 = vsel %vm726, %v5797, 0.0
    %v5834 = vrot.slane %v5833, 4
    %v5835 = vadd.f32 %v5833, %v5834
    %v5836 = vrot.slane %v5835, 2
    %v5837 = vadd.f32 %v5835, %v5836
    %v5838 = vrot.slane %v5837, 1
    %v5839 = vadd.f32 %v5837, %v5838
    %v5840 = vsel %vm726, %v5799, 0.0
    %v5841 = vrot.slane %v5840, 4
    %v5842 = vadd.f32 %v5840, %v5841
    %v5843 = vrot.slane %v5842, 2
    %v5844 = vadd.f32 %v5842, %v5843
    %v5845 = vrot.slane %v5844, 1
    %v5846 = vadd.f32 %v5844, %v5845
    %v5847 = vsel %vm726, %v5801, 0.0
    %v5848 = vrot.slane %v5847, 4
    %v5849 = vadd.f32 %v5847, %v5848
    %v5850 = vrot.slane %v5849, 2
    %v5851 = vadd.f32 %v5849, %v5850
    %v5852 = vrot.slane %v5851, 1
    %v5853 = vadd.f32 %v5851, %v5852
    %v5854 = vsel %vm726, %v5803, 0.0
    %v5855 = vrot.slane %v5854, 4
    %v5856 = vadd.f32 %v5854, %v5855
    %v5857 = vrot.slane %v5856, 2
    %v5858 = vadd.f32 %v5856, %v5857
    %v5859 = vrot.slane %v5858, 1
    %v5860 = vadd.f32 %v5858, %v5859
    %v5861 = vsel %vm726, %v5805, 0.0
    %v5862 = vrot.slane %v5861, 4
    %v5863 = vadd.f32 %v5861, %v5862
    %v5864 = vrot.slane %v5863, 2
    %v5865 = vadd.f32 %v5863, %v5864
    %v5866 = vrot.slane %v5865, 1
    %v5867 = vadd.f32 %v5865, %v5866
    %v5868 = vsel %vm726, %v5807, 0.0
    %v5869 = vrot.slane %v5868, 4
    %v5870 = vadd.f32 %v5868, %v5869
    %v5871 = vrot.slane %v5870, 2
    %v5872 = vadd.f32 %v5870, %v5871
    %v5873 = vrot.slane %v5872, 1
    %v5874 = vadd.f32 %v5872, %v5873
    %v5875 = vsel %vm726, %v5809, 0.0
    %v5876 = vrot.slane %v5875, 4
    %v5877 = vadd.f32 %v5875, %v5876
    %v5878 = vrot.slane %v5877, 2
    %v5879 = vadd.f32 %v5877, %v5878
    %v5880 = vrot.slane %v5879, 1
    %v5881 = vadd.f32 %v5879, %v5880
    %v5882 = vsel %vm726, %v5811, 0.0
    %v5883 = vrot.slane %v5882, 4
    %v5884 = vadd.f32 %v5882, %v5883
    %v5885 = vrot.slane %v5884, 2
    %v5886 = vadd.f32 %v5884, %v5885
    %v5887 = vrot.slane %v5886, 1
    %v5888 = vadd.f32 %v5886, %v5887
    %v5889 = vsel %vm726, %v5813, 0.0
    %v5890 = vrot.slane %v5889, 4
    %v5891 = vadd.f32 %v5889, %v5890
    %v5892 = vrot.slane %v5891, 2
    %v5893 = vadd.f32 %v5891, %v5892
    %v5894 = vrot.slane %v5893, 1
    %v5895 = vadd.f32 %v5893, %v5894
    %v5896 = vsel %vm726, %v5815, 0.0
    %v5897 = vrot.slane %v5896, 4
    %v5898 = vadd.f32 %v5896, %v5897
    %v5899 = vrot.slane %v5898, 2
    %v5900 = vadd.f32 %v5898, %v5899
    %v5901 = vrot.slane %v5900, 1
    %v5902 = vadd.f32 %v5900, %v5901
    %v5903 = vsel %vm726, %v5817, 0.0
    %v5904 = vrot.slane %v5903, 4
    %v5905 = vadd.f32 %v5903, %v5904
    %v5906 = vrot.slane %v5905, 2
    %v5907 = vadd.f32 %v5905, %v5906
    %v5908 = vrot.slane %v5907, 1
    %v5909 = vadd.f32 %v5907, %v5908
    %v5910 = vsel %vm726, %v5819, 0.0
    %v5911 = vrot.slane %v5910, 4
    %v5912 = vadd.f32 %v5910, %v5911
    %v5913 = vrot.slane %v5912, 2
    %v5914 = vadd.f32 %v5912, %v5913
    %v5915 = vrot.slane %v5914, 1
    %v5916 = vadd.f32 %v5914, %v5915
    %v5917 = vsel %vm726, %v5821, 0.0
    %v5918 = vrot.slane %v5917, 4
    %v5919 = vadd.f32 %v5917, %v5918
    %v5920 = vrot.slane %v5919, 2
    %v5921 = vadd.f32 %v5919, %v5920
    %v5922 = vrot.slane %v5921, 1
    %v5923 = vadd.f32 %v5921, %v5922
    %v5924 = vsel %vm726, %v5823, 0.0
    %v5925 = vrot.slane %v5924, 4
    %v5926 = vadd.f32 %v5924, %v5925
    %v5927 = vrot.slane %v5926, 2
    %v5928 = vadd.f32 %v5926, %v5927
    %v5929 = vrot.slane %v5928, 1
    %v5930 = vadd.f32 %v5928, %v5929
    %v5931 = vsel %vm726, %v5825, 0.0
    %v5932 = vrot.slane %v5931, 4
    %v5933 = vadd.f32 %v5931, %v5932
    %v5934 = vrot.slane %v5933, 2
    %v5935 = vadd.f32 %v5933, %v5934
    %v5936 = vrot.slane %v5935, 1
    %v5937 = vadd.f32 %v5935, %v5936
    %v5938 = vrcp.pop %v5832
    %v5939 = vrcp.pop %v5839
    %v5940 = vrcp.pop %v5846
    %v5941 = vrcp.pop %v5853
    %v5942 = vrcp.pop %v5860
    %v5943 = vrcp.pop %v5867
    %v5944 = vrcp.pop %v5874
    %v5945 = vrcp.pop %v5881
    %v5946 = vrcp.pop %v5888
    %v5947 = vrcp.pop %v5895
    %v5948 = vrcp.pop %v5902
    %v5949 = vrcp.pop %v5909
    %v5950 = vrcp.pop %v5916
    %v5951 = vrcp.pop %v5923
    %v5952 = vrcp.pop %v5930
    %v5953 = vrcp.pop %v5937
    %v5954 = vmul.f32 %v5795, %v5938
    %v5955 = vmul.f32 %v5797, %v5939
    %v5956 = vmul.f32 %v5799, %v5940
    %v5957 = vmul.f32 %v5801, %v5941
    %v5958 = vmul.f32 %v5803, %v5942
    %v5959 = vmul.f32 %v5805, %v5943
    %v5960 = vmul.f32 %v5807, %v5944
    %v5961 = vmul.f32 %v5809, %v5945
    %v5962 = vmul.f32 %v5811, %v5946
    %v5963 = vmul.f32 %v5813, %v5947
    %v5964 = vmul.f32 %v5815, %v5948
    %v5965 = vmul.f32 %v5817, %v5949
    %v5966 = vmul.f32 %v5819, %v5950
    %v5967 = vmul.f32 %v5821, %v5951
    %v5968 = vmul.f32 %v5823, %v5952
    %v5969 = vmul.f32 %v5825, %v5953
    %v5971 = vsel %vm726, %v5954, 0
    %v5974 = vsel %vm726, %v5955, 0
    %v5977 = vsel %vm726, %v5956, 0
    %v5980 = vsel %vm726, %v5957, 0
    %v5983 = vsel %vm726, %v5958, 0
    %v5986 = vsel %vm726, %v5959, 0
    %v5989 = vsel %vm726, %v5960, 0
    %v5992 = vsel %vm726, %v5961, 0
    %v5995 = vsel %vm726, %v5962, 0
    %v5998 = vsel %vm726, %v5963, 0
    %v6001 = vsel %vm726, %v5964, 0
    %v6004 = vsel %vm726, %v5965, 0
    %v6007 = vsel %vm726, %v5966, 0
    %v6010 = vsel %vm726, %v5967, 0
    %v6013 = vsel %vm726, %v5968, 0
    %v6016 = vsel %vm726, %v5969, 0
    %6018 = vmatprep.subr.mxu0 0.0
    %6019 = vmatpush1.msra.mxu0 %v107
    %6020 = vmatprep.subr.mxu0 0.0
    %6021 = vmatpush1.msra.mxu0 0.0
    %6022 = vmatprep.subr.mxu0 0.0
    %6023 = vmatpush1.msra.mxu0 0.0
    %6024 = vmatprep.subr.mxu0 0.0
    %6025 = vmatpush1.msra.mxu0 0.0
    %6026 = vmatprep.subr.mxu0 0.0
    %6027 = vmatpush1.msra.mxu0 0.0
    %6028 = vmatprep.subr.mxu0 0.0
    %6029 = vmatpush1.msra.mxu0 0.0
    %6030 = vmatprep.subr.mxu0 0.0
    %6031 = vmatpush1.msra.mxu0 0.0
    %6032 = vmatprep.subr.mxu0 0.0
    %6033 = vmatpush1.msra.mxu0 0.0
    %6034 = vmatprep.subr.mxu0 0.0
    %6035 = vmatpush1.msra.mxu0 0.0
    %6036 = vmatprep.subr.mxu0 0.0
    %6037 = vmatpush1.msra.mxu0 0.0
    %6038 = vmatprep.subr.mxu0 0.0
    %6039 = vmatpush1.msra.mxu0 0.0
    %6040 = vmatprep.subr.mxu0 0.0
    %6041 = vmatpush1.msra.mxu0 0.0
    %6042 = vmatprep.subr.mxu0 0.0
    %6043 = vmatpush1.msra.mxu0 0.0
    %6044 = vmatprep.subr.mxu0 0.0
    %6045 = vmatpush1.msra.mxu0 0.0
    %6046 = vmatprep.subr.mxu0 0.0
    %6047 = vmatpush1.msra.mxu0 0.0
    %6048 = vmatprep.subr.mxu0 0.0
    %6049 = vmatpush1.msra.mxu0 0.0
    %6050 = vmatprep.subr.mxu0 0.0
    %6051 = vmatpush1.msra.mxu0 0.0
    %6052 = vmatprep.subr.mxu0 0.0
    %6053 = vmatpush1.msra.mxu0 0.0
    %6054 = vmatprep.subr.mxu0 0.0
    %6055 = vmatpush1.msra.mxu0 0.0
    %6056 = vmatprep.subr.mxu0 0.0
    %6057 = vmatpush1.msra.mxu0 0.0
    %6058 = vmatprep.subr.mxu0 0.0
    %6059 = vmatpush1.msra.mxu0 0.0
    %6060 = vmatprep.subr.mxu0 0.0
    %6061 = vmatpush1.msra.mxu0 0.0
    %6062 = vmatprep.subr.mxu0 0.0
    %6063 = vmatpush1.msra.mxu0 0.0
    %6064 = vmatprep.subr.mxu0 0.0
    %6065 = vmatpush1.msra.mxu0 0.0
    %6066 = vmatprep.subr.mxu0 0.0
    %6067 = vmatpush1.msra.mxu0 0.0
    %6068 = vmatprep.subr.mxu0 0.0
    %6069 = vmatpush1.msra.mxu0 0.0
    %6070 = vmatprep.subr.mxu0 0.0
    %6071 = vmatpush1.msra.mxu0 0.0
    %6072 = vmatprep.subr.mxu0 0.0
    %6073 = vmatpush1.msra.mxu0 0.0
    %6074 = vmatprep.subr.mxu0 0.0
    %6075 = vmatpush1.msra.mxu0 0.0
    %6076 = vmatprep.subr.mxu0 0.0
    %6077 = vmatpush1.msra.mxu0 0.0
    %6078 = vmatprep.subr.mxu0 0.0
    %6079 = vmatpush1.msra.mxu0 0.0
    %6080 = vmatprep.subr.mxu0 0.0
    %6081 = vmatpush1.msra.mxu0 0.0
    %6082 = vmatprep.mubr.f32.mxu0 0.0
    %6083 = vmatmul.mubr.f32.gmra.mrb[0].mxu0 %v5971
    %v6084 = vpop.f32.mrb[0].mxu0
    %v6085 = vadd.f32 0.0, %v6084
    %v6086 = vpop.f32.mrb[0].mxu0
    %6087 = vmatprep.mubr.f32.mxu0 0.0
    %6088 = vmatmul.mubr.f32.gmra.mrb[0].mxu0 %v5974
    %v6089 = vpop.f32.mrb[0].mxu0
    %v6090 = vadd.f32 0.0, %v6089
    %v6091 = vpop.f32.mrb[0].mxu0
    %6092 = vmatprep.mubr.f32.mxu0 0.0
    %6093 = vmatmul.mubr.f32.gmra.mrb[0].mxu0 %v5977
    %v6094 = vpop.f32.mrb[0].mxu0
    %v6095 = vadd.f32 0.0, %v6094
    %v6096 = vpop.f32.mrb[0].mxu0
    %6097 = vmatprep.mubr.f32.mxu0 0.0
    %6098 = vmatmul.mubr.f32.gmra.mrb[0].mxu0 %v5980
    %v6099 = vpop.f32.mrb[0].mxu0
    %v6100 = vadd.f32 0.0, %v6099
    %v6101 = vpop.f32.mrb[0].mxu0
    %6102 = vmatprep.mubr.f32.mxu0 0.0
    %6103 = vmatmul.mubr.f32.gmra.mrb[0].mxu0 %v5983
    %v6104 = vpop.f32.mrb[0].mxu0
    %v6105 = vadd.f32 0.0, %v6104
    %v6106 = vpop.f32.mrb[0].mxu0
    %6107 = vmatprep.mubr.f32.mxu0 0.0
    %6108 = vmatmul.mubr.f32.gmra.mrb[0].mxu0 %v5986
    %v6109 = vpop.f32.mrb[0].mxu0
    %v6110 = vadd.f32 0.0, %v6109
    %v6111 = vpop.f32.mrb[0].mxu0
    %6112 = vmatprep.mubr.f32.mxu0 0.0
    %6113 = vmatmul.mubr.f32.gmra.mrb[0].mxu0 %v5989
    %v6114 = vpop.f32.mrb[0].mxu0
    %v6115 = vadd.f32 0.0, %v6114
    %v6116 = vpop.f32.mrb[0].mxu0
    %6117 = vmatprep.mubr.f32.mxu0 0.0
    %6118 = vmatmul.mubr.f32.gmra.mrb[0].mxu0 %v5992
    %v6119 = vpop.f32.mrb[0].mxu0
    %v6120 = vadd.f32 0.0, %v6119
    %v6121 = vpop.f32.mrb[0].mxu0
    %6122 = vmatprep.mubr.f32.mxu0 0.0
    %6123 = vmatmul.mubr.f32.gmra.mrb[0].mxu0 %v5995
    %v6124 = vpop.f32.mrb[0].mxu0
    %v6125 = vadd.f32 0.0, %v6124
    %v6126 = vpop.f32.mrb[0].mxu0
    %6127 = vmatprep.mubr.f32.mxu0 0.0
    %6128 = vmatmul.mubr.f32.gmra.mrb[0].mxu0 %v5998
    %v6129 = vpop.f32.mrb[0].mxu0
    %v6130 = vadd.f32 0.0, %v6129
    %v6131 = vpop.f32.mrb[0].mxu0
    %6132 = vmatprep.mubr.f32.mxu0 0.0
    %6133 = vmatmul.mubr.f32.gmra.mrb[0].mxu0 %v6001
    %v6134 = vpop.f32.mrb[0].mxu0
    %v6135 = vadd.f32 0.0, %v6134
    %v6136 = vpop.f32.mrb[0].mxu0
    %6137 = vmatprep.mubr.f32.mxu0 0.0
    %6138 = vmatmul.mubr.f32.gmra.mrb[0].mxu0 %v6004
    %v6139 = vpop.f32.mrb[0].mxu0
    %v6140 = vadd.f32 0.0, %v6139
    %v6141 = vpop.f32.mrb[0].mxu0
    %6142 = vmatprep.mubr.f32.mxu0 0.0
    %6143 = vmatmul.mubr.f32.gmra.mrb[0].mxu0 %v6007
    %v6144 = vpop.f32.mrb[0].mxu0
    %v6145 = vadd.f32 0.0, %v6144
    %v6146 = vpop.f32.mrb[0].mxu0
    %6147 = vmatprep.mubr.f32.mxu0 0.0
    %6148 = vmatmul.mubr.f32.gmra.mrb[0].mxu0 %v6010
    %v6149 = vpop.f32.mrb[0].mxu0
    %v6150 = vadd.f32 0.0, %v6149
    %v6151 = vpop.f32.mrb[0].mxu0
    %6152 = vmatprep.mubr.f32.mxu0 0.0
    %6153 = vmatmul.mubr.f32.gmra.mrb[0].mxu0 %v6013
    %v6154 = vpop.f32.mrb[0].mxu0
    %v6155 = vadd.f32 0.0, %v6154
    %v6156 = vpop.f32.mrb[0].mxu0
    %6157 = vmatprep.mubr.f32.mxu0 0.0
    %6158 = vmatmul.mubr.f32.gmra.mrb[0].mxu0 %v6016
    %v6159 = vpop.f32.mrb[0].mxu0
    %v6160 = vadd.f32 0.0, %v6159
    %v6161 = vpop.f32.mrb[0].mxu0
    %6162 = vdwg.mxu0
    %v6163 = vmul.f32 %v6085, %v5255
    %v6164 = vmul.f32 %v6090, %v5255
    %v6165 = vmul.f32 %v6095, %v5255
    %v6166 = vmul.f32 %v6100, %v5255
    %v6167 = vmul.f32 %v6105, %v5255
    %v6168 = vmul.f32 %v6110, %v5255
    %v6169 = vmul.f32 %v6115, %v5255
    %v6170 = vmul.f32 %v6120, %v5255
    %v6171 = vmul.f32 %v6125, %v5258
    %v6172 = vmul.f32 %v6130, %v5258
    %v6173 = vmul.f32 %v6135, %v5258
    %v6174 = vmul.f32 %v6140, %v5258
    %v6175 = vmul.f32 %v6145, %v5258
    %v6176 = vmul.f32 %v6150, %v5258
    %v6177 = vmul.f32 %v6155, %v5258
    %v6178 = vmul.f32 %v6160, %v5258
    %v6179 = vsel %vm134, %v6163, 0.0
    %v6180 = vrot.slane %v6179, 4
    %v6181 = vadd.f32 %v6179, %v6180
    %v6182 = vrot.slane %v6181, 2
    %v6183 = vadd.f32 %v6181, %v6182
    %v6184 = vrot.slane %v6183, 1
    %v6185 = vadd.f32 %v6183, %v6184
    %v6186 = vsel %vm134, %v6164, 0.0
    %v6187 = vrot.slane %v6186, 4
    %v6188 = vadd.f32 %v6186, %v6187
    %v6189 = vrot.slane %v6188, 2
    %v6190 = vadd.f32 %v6188, %v6189
    %v6191 = vrot.slane %v6190, 1
    %v6192 = vadd.f32 %v6190, %v6191
    %v6193 = vsel %vm134, %v6165, 0.0
    %v6194 = vrot.slane %v6193, 4
    %v6195 = vadd.f32 %v6193, %v6194
    %v6196 = vrot.slane %v6195, 2
    %v6197 = vadd.f32 %v6195, %v6196
    %v6198 = vrot.slane %v6197, 1
    %v6199 = vadd.f32 %v6197, %v6198
    %v6200 = vsel %vm134, %v6166, 0.0
    %v6201 = vrot.slane %v6200, 4
    %v6202 = vadd.f32 %v6200, %v6201
    %v6203 = vrot.slane %v6202, 2
    %v6204 = vadd.f32 %v6202, %v6203
    %v6205 = vrot.slane %v6204, 1
    %v6206 = vadd.f32 %v6204, %v6205
    %v6207 = vsel %vm134, %v6167, 0.0
    %v6208 = vrot.slane %v6207, 4
    %v6209 = vadd.f32 %v6207, %v6208
    %v6210 = vrot.slane %v6209, 2
    %v6211 = vadd.f32 %v6209, %v6210
    %v6212 = vrot.slane %v6211, 1
    %v6213 = vadd.f32 %v6211, %v6212
    %v6214 = vsel %vm134, %v6168, 0.0
    %v6215 = vrot.slane %v6214, 4
    %v6216 = vadd.f32 %v6214, %v6215
    %v6217 = vrot.slane %v6216, 2
    %v6218 = vadd.f32 %v6216, %v6217
    %v6219 = vrot.slane %v6218, 1
    %v6220 = vadd.f32 %v6218, %v6219
    %v6221 = vsel %vm134, %v6169, 0.0
    %v6222 = vrot.slane %v6221, 4
    %v6223 = vadd.f32 %v6221, %v6222
    %v6224 = vrot.slane %v6223, 2
    %v6225 = vadd.f32 %v6223, %v6224
    %v6226 = vrot.slane %v6225, 1
    %v6227 = vadd.f32 %v6225, %v6226
    %v6228 = vsel %vm134, %v6170, 0.0
    %v6229 = vrot.slane %v6228, 4
    %v6230 = vadd.f32 %v6228, %v6229
    %v6231 = vrot.slane %v6230, 2
    %v6232 = vadd.f32 %v6230, %v6231
    %v6233 = vrot.slane %v6232, 1
    %v6234 = vadd.f32 %v6232, %v6233
    %v6235 = vsel %vm134, %v6171, 0.0
    %v6236 = vrot.slane %v6235, 4
    %v6237 = vadd.f32 %v6235, %v6236
    %v6238 = vrot.slane %v6237, 2
    %v6239 = vadd.f32 %v6237, %v6238
    %v6240 = vrot.slane %v6239, 1
    %v6241 = vadd.f32 %v6239, %v6240
    %v6242 = vsel %vm134, %v6172, 0.0
    %v6243 = vrot.slane %v6242, 4
    %v6244 = vadd.f32 %v6242, %v6243
    %v6245 = vrot.slane %v6244, 2
    %v6246 = vadd.f32 %v6244, %v6245
    %v6247 = vrot.slane %v6246, 1
    %v6248 = vadd.f32 %v6246, %v6247
    %v6249 = vsel %vm134, %v6173, 0.0
    %v6250 = vrot.slane %v6249, 4
    %v6251 = vadd.f32 %v6249, %v6250
    %v6252 = vrot.slane %v6251, 2
    %v6253 = vadd.f32 %v6251, %v6252
    %v6254 = vrot.slane %v6253, 1
    %v6255 = vadd.f32 %v6253, %v6254
    %v6256 = vsel %vm134, %v6174, 0.0
    %v6257 = vrot.slane %v6256, 4
    %v6258 = vadd.f32 %v6256, %v6257
    %v6259 = vrot.slane %v6258, 2
    %v6260 = vadd.f32 %v6258, %v6259
    %v6261 = vrot.slane %v6260, 1
    %v6262 = vadd.f32 %v6260, %v6261
    %v6263 = vsel %vm134, %v6175, 0.0
    %v6264 = vrot.slane %v6263, 4
    %v6265 = vadd.f32 %v6263, %v6264
    %v6266 = vrot.slane %v6265, 2
    %v6267 = vadd.f32 %v6265, %v6266
    %v6268 = vrot.slane %v6267, 1
    %v6269 = vadd.f32 %v6267, %v6268
    %v6270 = vsel %vm134, %v6176, 0.0
    %v6271 = vrot.slane %v6270, 4
    %v6272 = vadd.f32 %v6270, %v6271
    %v6273 = vrot.slane %v6272, 2
    %v6274 = vadd.f32 %v6272, %v6273
    %v6275 = vrot.slane %v6274, 1
    %v6276 = vadd.f32 %v6274, %v6275
    %v6277 = vsel %vm134, %v6177, 0.0
    %v6278 = vrot.slane %v6277, 4
    %v6279 = vadd.f32 %v6277, %v6278
    %v6280 = vrot.slane %v6279, 2
    %v6281 = vadd.f32 %v6279, %v6280
    %v6282 = vrot.slane %v6281, 1
    %v6283 = vadd.f32 %v6281, %v6282
    %v6284 = vsel %vm134, %v6178, 0.0
    %v6285 = vrot.slane %v6284, 4
    %v6286 = vadd.f32 %v6284, %v6285
    %v6287 = vrot.slane %v6286, 2
    %v6288 = vadd.f32 %v6286, %v6287
    %v6289 = vrot.slane %v6288, 1
    %v6290 = vadd.f32 %v6288, %v6289
    %v6291 = vpack.c.bf16 %v6185, %v6185
    %v6292 = vpack.c.bf16 %v6192, %v6192
    %v6293 = vpack.c.bf16 %v6199, %v6199
    %v6294 = vpack.c.bf16 %v6206, %v6206
    %v6295 = vpack.c.bf16 %v6213, %v6213
    %v6296 = vpack.c.bf16 %v6220, %v6220
    %v6297 = vpack.c.bf16 %v6227, %v6227
    %v6298 = vpack.c.bf16 %v6234, %v6234
    %v6299 = vpack.c.bf16 %v6241, %v6241
    %v6300 = vpack.c.bf16 %v6248, %v6248
    %v6301 = vpack.c.bf16 %v6255, %v6255
    %v6302 = vpack.c.bf16 %v6262, %v6262
    %v6303 = vpack.c.bf16 %v6269, %v6269
    %v6304 = vpack.c.bf16 %v6276, %v6276
    %v6305 = vpack.c.bf16 %v6283, %v6283
    %v6306 = vpack.c.bf16 %v6290, %v6290
    %s6307 = scalar_lea.vmem %s5, 48
    %v6308 = vld [vmem:[%s6307] sm:$0xf]
    %v6309 = vld [vmem:[%s6307 + $0x4] sm:$0xf]
    %v6310 = vld [vmem:[%s6307 + $0x8] sm:$0xf]
    %v6311 = vld [vmem:[%s6307 + $0xc] sm:$0xf]
    %s6312 = scalar_lea.vmem %s6, 3
    %v6313 = vld [vmem:[%s6312] sm:$0x1]
    %v6315 = vlaneseq
    %v6316 = vshrl.u32 %v6315, 7
    %v6317 = vsub.s32 0, %v6316
    %v6318 = vrot.slane %v6313, %v6317
    %v6336 = vunpack.c.l.b16 %v6291
    %v6337 = vunpack.c.l.b16 %v6292
    %v6338 = vunpack.c.l.b16 %v6293
    %v6339 = vunpack.c.l.b16 %v6294
    %v6340 = vunpack.c.l.b16 %v6295
    %v6341 = vunpack.c.l.b16 %v6296
    %v6342 = vunpack.c.l.b16 %v6297
    %v6343 = vunpack.c.l.b16 %v6298
    %v6344 = vunpack.c.l.b16 %v6299
    %v6345 = vunpack.c.l.b16 %v6300
    %v6346 = vunpack.c.l.b16 %v6301
    %v6347 = vunpack.c.l.b16 %v6302
    %v6348 = vunpack.c.l.b16 %v6303
    %v6349 = vunpack.c.l.b16 %v6304
    %v6350 = vunpack.c.l.b16 %v6305
    %v6351 = vunpack.c.l.b16 %v6306
    %v6352 = vsel %vm1411, %v6337, %v6336
    %v6353 = vsel %vm1413, %v6338, %v6352
    %v6354 = vsel %vm1415, %v6339, %v6353
    %v6355 = vsel %vm1417, %v6340, %v6354
    %v6356 = vsel %vm1419, %v6341, %v6355
    %v6357 = vsel %vm1421, %v6342, %v6356
    %v6358 = vsel %vm1423, %v6343, %v6357
    %v6359 = vsel %vm1411, %v6345, %v6344
    %v6360 = vsel %vm1413, %v6346, %v6359
    %v6361 = vsel %vm1415, %v6347, %v6360
    %v6362 = vsel %vm1417, %v6348, %v6361
    %v6363 = vsel %vm1419, %v6349, %v6362
    %v6364 = vsel %vm1421, %v6350, %v6363
    %v6365 = vsel %vm1423, %v6351, %v6364
    %v6366 = vpack.c.b16 %v6365, %v6358
    %v6371 = vunpack.c.l.b16 %v6308
    %v6372 = vunpack.c.l.b16 %v6309
    %v6373 = vunpack.c.l.b16 %v6310
    %v6374 = vunpack.c.l.b16 %v6311
    %v6375 = vpack.c.b16 %v6372, %v6371
    %v6376 = vpack.c.b16 %v6374, %v6373
    %v6380 = vsel %vm134, %v6366, 0
    %6382 = vmatprep.subr.bf16.mxu0 0
    %6383 = vmatpush1.bf16.msra.mxu0 %v6375
    %6384 = vmatprep.subr.bf16.mxu0 0
    %6385 = vmatpush1.bf16.msra.mxu0 %v6376
    %6386 = vmatprep.subr.bf16.mxu0 0
    %6387 = vmatpush1.bf16.msra.mxu0 0
    %6388 = vmatprep.subr.bf16.mxu0 0
    %6389 = vmatpush1.bf16.msra.mxu0 0
    %6390 = vmatprep.subr.bf16.mxu0 0
    %6391 = vmatpush1.bf16.msra.mxu0 0
    %6392 = vmatprep.subr.bf16.mxu0 0
    %6393 = vmatpush1.bf16.msra.mxu0 0
    %6394 = vmatprep.subr.bf16.mxu0 0
    %6395 = vmatpush1.bf16.msra.mxu0 0
    %6396 = vmatprep.subr.bf16.mxu0 0
    %6397 = vmatpush1.bf16.msra.mxu0 0
    %6398 = vmatprep.subr.bf16.mxu0 0
    %6399 = vmatpush1.bf16.msra.mxu0 0
    %6400 = vmatprep.subr.bf16.mxu0 0
    %6401 = vmatpush1.bf16.msra.mxu0 0
    %6402 = vmatprep.subr.bf16.mxu0 0
    %6403 = vmatpush1.bf16.msra.mxu0 0
    %6404 = vmatprep.subr.bf16.mxu0 0
    %6405 = vmatpush1.bf16.msra.mxu0 0
    %6406 = vmatprep.subr.bf16.mxu0 0
    %6407 = vmatpush1.bf16.msra.mxu0 0
    %6408 = vmatprep.subr.bf16.mxu0 0
    %6409 = vmatpush1.bf16.msra.mxu0 0
    %6410 = vmatprep.subr.bf16.mxu0 0
    %6411 = vmatpush1.bf16.msra.mxu0 0
    %6412 = vmatprep.subr.bf16.mxu0 0
    %6413 = vmatpush1.bf16.msra.mxu0 0
    %6414 = vmatprep.mubr.bf16.mxu0 0
    %6415 = vmatmul.mubr.bf16.gmra.mrb[0].mxu0 %v6380
    %v6416 = vpop.f32.mrb[0].mxu0
    %v6417 = vadd.f32 %v6318, %v6416
    %v6418 = vpop.f32.mrb[0].mxu0
    %v6419 = vpop.f32.mrb[0].mxu0
    %v6420 = vadd.f32 %v6318, %v6419
    %v6421 = vpop.f32.mrb[0].mxu0
    %6422 = vdwg.mxu0
    %v6423 = vadd.f32 %v5057, %v6417
    %v6424 = vadd.f32 %v5058, %v6420
    %s6425 = scalar_lea.vmem %s7, 3
    %v6426 = vld [vmem:[%s6425] sm:$0x1]
    %s6427 = scalar_lea.vmem %s8, 3
    %v6428 = vld [vmem:[%s6427] sm:$0x1]
    %v6429 = vsel %vm134, %v6423, 0.0
    %6430 = vadd.xlane.f32.xlu0 %v6429
    %v6431 = vpop.xlane.xlu0 %6430
    %v6432 = vsel %vm134, %v6424, 0.0
    %6433 = vadd.xlane.f32.xlu0 %v6432
    %v6434 = vpop.xlane.xlu0 %6433
    %v6435 = vmul.f32 %v6431, %v1499
    %v6436 = vmul.f32 %v6434, %v1499
    %v6437 = vsub.f32 %v6423, %v6435
    %v6438 = vsub.f32 %v6424, %v6436
    %v6439 = vmul.f32 %v6437, %v6437
    %v6440 = vmul.f32 %v6438, %v6438
    %v6441 = vsel %vm134, %v6439, 0.0
    %6442 = vadd.xlane.f32.xlu0 %v6441
    %v6443 = vpop.xlane.xlu0 %6442
    %v6444 = vsel %vm134, %v6440, 0.0
    %6445 = vadd.xlane.f32.xlu0 %v6444
    %v6446 = vpop.xlane.xlu0 %6445
    %v6447 = vmul.f32 %v6443, %v1499
    %v6448 = vmul.f32 %v6446, %v1499
    %v6449 = vadd.f32 %v6447, 1e-05
    %v6450 = vadd.f32 %v6448, 1e-05
    %v6451 = vrsqrt.pop %v6449
    %v6452 = vrsqrt.pop %v6450
    %v6453 = vmul.f32 %v6437, %v6451
    %v6454 = vmul.f32 %v6438, %v6452
    %v6456 = vlaneseq
    %v6457 = vshrl.u32 %v6456, 7
    %v6458 = vsub.s32 0, %v6457
    %v6459 = vrot.slane %v6426, %v6458
    %v6461 = vmul.f32 %v6453, %v6459
    %v6462 = vmul.f32 %v6454, %v6459
    %v6464 = vlaneseq
    %v6465 = vshrl.u32 %v6464, 7
    %v6466 = vsub.s32 0, %v6465
    %v6467 = vrot.slane %v6428, %v6466
    %v6469 = vadd.f32 %v6461, %v6467
    %v6470 = vadd.f32 %v6462, %v6467
    %v6471 = vpack.c.bf16 %v6470, %v6469
    %s6472 = scalar_lea.vmem %s9, 48
    %v6473 = vld [vmem:[%s6472] sm:$0xf]
    %v6474 = vld [vmem:[%s6472 + $0x4] sm:$0xf]
    %v6475 = vld [vmem:[%s6472 + $0x8] sm:$0xf]
    %v6476 = vld [vmem:[%s6472 + $0xc] sm:$0xf]
    %s6477 = scalar_lea.vmem %s10, 3
    %v6478 = vld [vmem:[%s6477] sm:$0x1]
    %v6480 = vlaneseq
    %v6481 = vshrl.u32 %v6480, 7
    %v6482 = vsub.s32 0, %v6481
    %v6483 = vrot.slane %v6478, %v6482
    %v6489 = vunpack.c.l.b16 %v6473
    %v6490 = vunpack.c.l.b16 %v6474
    %v6491 = vunpack.c.l.b16 %v6475
    %v6492 = vunpack.c.l.b16 %v6476
    %v6493 = vpack.c.b16 %v6490, %v6489
    %v6494 = vpack.c.b16 %v6492, %v6491
    %v6498 = vsel %vm134, %v6471, 0
    %6500 = vmatprep.subr.bf16.mxu0 0
    %6501 = vmatpush1.bf16.msra.mxu0 %v6493
    %6502 = vmatprep.subr.bf16.mxu0 0
    %6503 = vmatpush1.bf16.msra.mxu0 %v6494
    %6504 = vmatprep.subr.bf16.mxu0 0
    %6505 = vmatpush1.bf16.msra.mxu0 0
    %6506 = vmatprep.subr.bf16.mxu0 0
    %6507 = vmatpush1.bf16.msra.mxu0 0
    %6508 = vmatprep.subr.bf16.mxu0 0
    %6509 = vmatpush1.bf16.msra.mxu0 0
    %6510 = vmatprep.subr.bf16.mxu0 0
    %6511 = vmatpush1.bf16.msra.mxu0 0
    %6512 = vmatprep.subr.bf16.mxu0 0
    %6513 = vmatpush1.bf16.msra.mxu0 0
    %6514 = vmatprep.subr.bf16.mxu0 0
    %6515 = vmatpush1.bf16.msra.mxu0 0
    %6516 = vmatprep.subr.bf16.mxu0 0
    %6517 = vmatpush1.bf16.msra.mxu0 0
    %6518 = vmatprep.subr.bf16.mxu0 0
    %6519 = vmatpush1.bf16.msra.mxu0 0
    %6520 = vmatprep.subr.bf16.mxu0 0
    %6521 = vmatpush1.bf16.msra.mxu0 0
    %6522 = vmatprep.subr.bf16.mxu0 0
    %6523 = vmatpush1.bf16.msra.mxu0 0
    %6524 = vmatprep.subr.bf16.mxu0 0
    %6525 = vmatpush1.bf16.msra.mxu0 0
    %6526 = vmatprep.subr.bf16.mxu0 0
    %6527 = vmatpush1.bf16.msra.mxu0 0
    %6528 = vmatprep.subr.bf16.mxu0 0
    %6529 = vmatpush1.bf16.msra.mxu0 0
    %6530 = vmatprep.subr.bf16.mxu0 0
    %6531 = vmatpush1.bf16.msra.mxu0 0
    %6532 = vmatprep.mubr.bf16.mxu0 0
    %6533 = vmatmul.mubr.bf16.gmra.mrb[0].mxu0 %v6498
    %v6534 = vpop.f32.mrb[0].mxu0
    %v6535 = vadd.f32 %v6483, %v6534
    %v6536 = vpop.f32.mrb[0].mxu0
    %v6537 = vpop.f32.mrb[0].mxu0
    %v6538 = vadd.f32 %v6483, %v6537
    %v6539 = vpop.f32.mrb[0].mxu0
    %6540 = vdwg.mxu0
    %v6541 = vmax.f32 %v6535, 0.0
    %v6542 = vmax.f32 %v6538, 0.0
    %v6543 = vpack.c.bf16 %v6542, %v6541
    %s6544 = scalar_lea.vmem %s11, 192
    %v6545 = vld [vmem:[%s6544] sm:$0xf]
    %v6546 = vld [vmem:[%s6544 + $0x4] sm:$0xf]
    %v6547 = vld [vmem:[%s6544 + $0x8] sm:$0xf]
    %v6548 = vld [vmem:[%s6544 + $0xc] sm:$0xf]
    %v6549 = vld [vmem:[%s6544 + $0x10] sm:$0xf]
    %v6550 = vld [vmem:[%s6544 + $0x14] sm:$0xf]
    %v6551 = vld [vmem:[%s6544 + $0x18] sm:$0xf]
    %v6552 = vld [vmem:[%s6544 + $0x1c] sm:$0xf]
    %v6553 = vld [vmem:[%s6544 + $0x20] sm:$0xf]
    %v6554 = vld [vmem:[%s6544 + $0x24] sm:$0xf]
    %v6555 = vld [vmem:[%s6544 + $0x28] sm:$0xf]
    %v6556 = vld [vmem:[%s6544 + $0x2c] sm:$0xf]
    %v6557 = vld [vmem:[%s6544 + $0x30] sm:$0xf]
    %v6558 = vld [vmem:[%s6544 + $0x34] sm:$0xf]
    %v6559 = vld [vmem:[%s6544 + $0x38] sm:$0xf]
    %v6560 = vld [vmem:[%s6544 + $0x3c] sm:$0xf]
    %s6561 = scalar_lea.vmem %s12, 3
    %v6562 = vld [vmem:[%s6561] sm:$0x1]
    %v6564 = vlaneseq
    %v6565 = vshrl.u32 %v6564, 7
    %v6566 = vsub.s32 0, %v6565
    %v6567 = vrot.slane %v6562, %v6566
    %v6585 = vunpack.c.l.b16 %v6545
    %v6586 = vunpack.c.l.b16 %v6546
    %v6587 = vunpack.c.l.b16 %v6547
    %v6588 = vunpack.c.l.b16 %v6548
    %v6589 = vunpack.c.l.b16 %v6549
    %v6590 = vunpack.c.l.b16 %v6550
    %v6591 = vunpack.c.l.b16 %v6551
    %v6592 = vunpack.c.l.b16 %v6552
    %v6593 = vunpack.c.l.b16 %v6553
    %v6594 = vunpack.c.l.b16 %v6554
    %v6595 = vunpack.c.l.b16 %v6555
    %v6596 = vunpack.c.l.b16 %v6556
    %v6597 = vunpack.c.l.b16 %v6557
    %v6598 = vunpack.c.l.b16 %v6558
    %v6599 = vunpack.c.l.b16 %v6559
    %v6600 = vunpack.c.l.b16 %v6560
    %v6601 = vpack.c.b16 %v6586, %v6585
    %v6602 = vpack.c.b16 %v6588, %v6587
    %v6603 = vpack.c.b16 %v6590, %v6589
    %v6604 = vpack.c.b16 %v6592, %v6591
    %v6605 = vpack.c.b16 %v6594, %v6593
    %v6606 = vpack.c.b16 %v6596, %v6595
    %v6607 = vpack.c.b16 %v6598, %v6597
    %v6608 = vpack.c.b16 %v6600, %v6599
    %6617 = vmatprep.subr.bf16.mxu0 0
    %6618 = vmatpush1.bf16.msra.mxu0 %v6601
    %6619 = vmatprep.subr.bf16.mxu0 0
    %6620 = vmatpush1.bf16.msra.mxu0 %v6602
    %6621 = vmatprep.subr.bf16.mxu0 0
    %6622 = vmatpush1.bf16.msra.mxu0 %v6603
    %6623 = vmatprep.subr.bf16.mxu0 0
    %6624 = vmatpush1.bf16.msra.mxu0 %v6604
    %6625 = vmatprep.subr.bf16.mxu0 0
    %6626 = vmatpush1.bf16.msra.mxu0 %v6605
    %6627 = vmatprep.subr.bf16.mxu0 0
    %6628 = vmatpush1.bf16.msra.mxu0 %v6606
    %6629 = vmatprep.subr.bf16.mxu0 0
    %6630 = vmatpush1.bf16.msra.mxu0 %v6607
    %6631 = vmatprep.subr.bf16.mxu0 0
    %6632 = vmatpush1.bf16.msra.mxu0 %v6608
    %6633 = vmatprep.subr.bf16.mxu0 0
    %6634 = vmatpush1.bf16.msra.mxu0 0
    %6635 = vmatprep.subr.bf16.mxu0 0
    %6636 = vmatpush1.bf16.msra.mxu0 0
    %6637 = vmatprep.subr.bf16.mxu0 0
    %6638 = vmatpush1.bf16.msra.mxu0 0
    %6639 = vmatprep.subr.bf16.mxu0 0
    %6640 = vmatpush1.bf16.msra.mxu0 0
    %6641 = vmatprep.subr.bf16.mxu0 0
    %6642 = vmatpush1.bf16.msra.mxu0 0
    %6643 = vmatprep.subr.bf16.mxu0 0
    %6644 = vmatpush1.bf16.msra.mxu0 0
    %6645 = vmatprep.subr.bf16.mxu0 0
    %6646 = vmatpush1.bf16.msra.mxu0 0
    %6647 = vmatprep.subr.bf16.mxu0 0
    %6648 = vmatpush1.bf16.msra.mxu0 0
    %6649 = vmatprep.mubr.bf16.mxu0 0
    %6650 = vmatmul.mubr.bf16.gmra.mrb[0].mxu0 %v6543
    %v6651 = vpop.f32.mrb[0].mxu0
    %v6652 = vadd.f32 %v6567, %v6651
    %v6653 = vpop.f32.mrb[0].mxu0
    %v6654 = vpop.f32.mrb[0].mxu0
    %v6655 = vadd.f32 %v6567, %v6654
    %v6656 = vpop.f32.mrb[0].mxu0
    %6657 = vdwg.mxu0
    %v6658 = vadd.f32 %v6469, %v6652
    %v6659 = vadd.f32 %v6470, %v6655
    %s6660 = scalar_lea.vmem %s13, 3
    %v6661 = vld [vmem:[%s6660] sm:$0x1]
    %s6662 = scalar_lea.vmem %s14, 3
    %v6663 = vld [vmem:[%s6662] sm:$0x1]
    %v6664 = vsel %vm134, %v6658, 0.0
    %6665 = vadd.xlane.f32.xlu0 %v6664
    %v6666 = vpop.xlane.xlu0 %6665
    %v6667 = vsel %vm134, %v6659, 0.0
    %6668 = vadd.xlane.f32.xlu0 %v6667
    %v6669 = vpop.xlane.xlu0 %6668
    %v6670 = vmul.f32 %v6666, %v1499
    %v6671 = vmul.f32 %v6669, %v1499
    %v6672 = vsub.f32 %v6658, %v6670
    %v6673 = vsub.f32 %v6659, %v6671
    %v6674 = vmul.f32 %v6672, %v6672
    %v6675 = vmul.f32 %v6673, %v6673
    %v6676 = vsel %vm134, %v6674, 0.0
    %6677 = vadd.xlane.f32.xlu0 %v6676
    %v6678 = vpop.xlane.xlu0 %6677
    %v6679 = vsel %vm134, %v6675, 0.0
    %6680 = vadd.xlane.f32.xlu0 %v6679
    %v6681 = vpop.xlane.xlu0 %6680
    %v6682 = vmul.f32 %v6678, %v1499
    %v6683 = vmul.f32 %v6681, %v1499
    %v6684 = vadd.f32 %v6682, 1e-05
    %v6685 = vadd.f32 %v6683, 1e-05
    %v6686 = vrsqrt.pop %v6684
    %v6687 = vrsqrt.pop %v6685
    %v6688 = vmul.f32 %v6672, %v6686
    %v6689 = vmul.f32 %v6673, %v6687
    %v6691 = vlaneseq
    %v6692 = vshrl.u32 %v6691, 7
    %v6693 = vsub.s32 0, %v6692
    %v6694 = vrot.slane %v6661, %v6693
    %v6696 = vmul.f32 %v6688, %v6694
    %v6697 = vmul.f32 %v6689, %v6694
    %v6699 = vlaneseq
    %v6700 = vshrl.u32 %v6699, 7
    %v6701 = vsub.s32 0, %v6700
    %v6702 = vrot.slane %v6663, %v6701
    %v6704 = vadd.f32 %v6696, %v6702
    %v6705 = vadd.f32 %v6697, %v6702
    %6706 = vst.msk [vmem:[#allocation5] sm:$0xff] %vm134, %v6704
    %6707 = vst.msk [vmem:[#allocation5 + $0x8] sm:$0xff] %vm134, %v6705
    // Predicated region
    $region66: #{tpu_custom_call.1} parent=1 // pred_check
      _
    $region67: #{tpu_custom_call.1} parent=1 // pred_check_branch
      %6709 = sbr.rel (0) target = $region69
    $region68: #{tpu_custom_call.1} parent=1 // pred_region
      %s6711 = ssub.s32 256, 256
      %6712 = vsyncadd [#allocation4], %s6711
      %s6713 = sshll.u32 [#allocation5], 4
      %s6714 = int_to_ptr.vmem [resolvable:$true] %s6713
      %6719 = dma.vmem_to_hbm [thread:$0]  %s6714, 256, %s15, [#allocation4], 128, 128, 8
    $region69: #{tpu_custom_call.1} parent=1 // pred_fallthru
      _
    // Predicated region
    $region70: #{tpu_custom_call.1} parent=1 // pred_check
      _
    $region71: #{tpu_custom_call.1} parent=1 // pred_check_branch
      %6721 = sbr.rel (0) target = $region73
    $region72: #{tpu_custom_call.1} parent=1 // pred_region
      %6722 = dma.done [#allocation4], 256
    $region73: #{tpu_custom_call.1} parent=1 // pred_fallthru
      _
    %6723 = vsyncpa [#allocation3], 1
    %6724 = vsyncpa [#allocation4], 1

</llo_original>
